<compile_context>
chip_gen: v5e
topology: v5e:2x2
jax: 0.10.0
libtpu: 0.0.40
codegen_flags: <defaults>
</compile_context>

<pallas_src>
import functools

import jax
import jax.numpy as jnp
from jax import lax
from jax.experimental import pallas as pl
from jax.experimental.pallas import tpu as pltpu


_PADW = 8     # sublane-aligned column offset of the image inside the padded VMEM buffer
_K1 = 27      # conv1 im2col contraction depth (3*3*3)
_K1P = 32     # ... zero-padded


# ----------------------------------------------------------------------------
# Fused Pallas kernel: stem + layer1 BasicBlocks + Ortho
# ----------------------------------------------------------------------------

def _fused_kernel_factory(H, W, C, D, n_convs, bt):
    HW = H * W
    m_rows = bt * HW
    wbuf = _PADW + W + 8

    def kernel(col1_ref, w1_ref, b1_ref, wb_ref, bb_ref, m_ref, pt_ref,
               nulled_ref, repr_ref, pad_a, pad_b):
        # --- halo-only scratch init.  The interiors are fully overwritten each step;
        # only the conv border (1 row top/bottom, 1 col left/right of the image) must
        # read as zero.  Done per grid step because with a "parallel" batch axis each
        # TensorCore has its own scratch instance (program_id()==0 fires on one core).
        zrow = jnp.zeros((bt, 1, wbuf, C), jnp.float32)
        zcol = jnp.zeros((bt, H, 1, C), jnp.float32)
        for dst in (pad_a, pad_b):
            dst[:, 0:1, :, :] = zrow
            dst[:, H + 1:H + 2, :, :] = zrow
            dst[:, 1:H + 1, _PADW - 1:_PADW, :] = zcol
            dst[:, 1:H + 1, _PADW + W:_PADW + W + 1, :] = zcol

        def write_act(dst, y_flat):
            # image interiors at rows [1, H+1), cols [_PADW, _PADW+W): aligned stores.
            dst[:, 1:H + 1, _PADW:_PADW + W, :] = y_flat.reshape(bt, H, W, C)

        def read_interior(src):
            return src[:, 1:H + 1, _PADW:_PADW + W, :].reshape(m_rows, C)

        def conv3x3_bn(src, ci):
            """3x3 / stride 1 / pad 1 conv + folded BN as 9 accumulating MXU matmuls.

            Each tap window is sliced from the Ref right before its matmul (nothing big
            stays live across the loop) and feeds the MXU with the exact K=64
            contraction depth -- no zero-padded K, no im2col slab.
            """
            acc = None
            for dh in range(3):
                for dw in range(3):
                    k = dh * 3 + dw
                    c0 = _PADW - 1 + dw
                    tap = src[:, dh:dh + H, c0:c0 + W, :].reshape(m_rows, C)
                    d = jnp.dot(tap, wb_ref[ci, k],
                                preferred_element_type=jnp.float32)
                    acc = d if acc is None else acc + d
            return acc + bb_ref[ci]

        # ---- stem: conv1 + bn1 + relu, single K=32 matmul on host-built patches ----
        y = jnp.dot(col1_ref[...].reshape(m_rows, _K1P), w1_ref[...],
                    preferred_element_type=jnp.float32)
        y = jnp.maximum(y + b1_ref[...], 0.0)                    # (m_rows, C)
        write_act(pad_a, y)

        # ---- layer1: BasicBlocks, fully VMEM resident (pad_a / pad_b ping-pong) ----
        ci = 0
        for _ in range(n_convs // 2):
            t = jnp.maximum(conv3x3_bn(pad_a, ci), 0.0)
            ci += 1
            write_act(pad_b, t)
            # residual (block input) is still resident in pad_a
            y = jnp.maximum(conv3x3_bn(pad_b, ci) + read_interior(pad_a), 0.0)
            ci += 1
            if ci < n_convs:
                write_act(pad_a, y)            # becomes next block's input / residual

        # ---- Ortho: layer_repr = mean_HW(y) @ M ; nulled = y @ P (channel-major) ----
        for b in range(bt):
            pooled = jnp.mean(y[b * HW:(b + 1) * HW], axis=0, keepdims=True)   # (1, C)
            repr_ref[b] = jnp.dot(pooled, m_ref[...],
                                  preferred_element_type=jnp.float32)
        # nulled^T = P^T @ y^T, contracted on both minors (q @ k^T pattern); the
        # (C, bt*HW) result is lane-dense (>=256 lanes) and already NCHW-ordered.
        nt = lax.dot_general(pt_ref[...], y, (((1,), (1,)), ((), ())),
                             preferred_element_type=jnp.float32)
        for b in range(bt):
            nulled_ref[b] = nt[:, b * HW:(b + 1) * HW]

    return kernel


def _fused_call(col1, fp, H, W, bt):
    B, HW, k1p = col1.shape
    C = fp["w1"].shape[1]
    D = fp["M"].shape[1]
    n_convs = fp["wb"].shape[0]
    wbuf = _PADW + W + 8
    assert B % bt == 0, "batch must be divisible by batch_tile"

    kernel = _fused_kernel_factory(H, W, C, D, n_convs, bt)

    # Advisory cost estimate: helps XLA schedule the host-side im2col / transposes
    # around this latency-bound custom call.
    flops = 2 * B * HW * (_K1P * C + n_convs * 9 * C * C + C * C) + 2 * B * C * D
    bytes_accessed = 4 * (col1.size + fp["w1"].size + fp["b1"].size + fp["wb"].size
                          + fp["bb"].size + fp["M"].size + fp["P_T"].size
                          + B * C * HW + B * D)

    return pl.pallas_call(
        kernel,
        out_shape=(
            jax.ShapeDtypeStruct((B, C, HW), jnp.float32),   # nulled, channel-major
            jax.ShapeDtypeStruct((B, 1, D), jnp.float32),    # layer_repr
        ),
        grid=(B // bt,),
        in_specs=[
            pl.BlockSpec((bt, HW, k1p), lambda g: (g, 0, 0)),          # conv1 patches
            pl.BlockSpec((k1p, C), lambda g: (0, 0)),                  # conv1 weight (BN folded)
            pl.BlockSpec((1, C), lambda g: (0, 0)),                    # conv1 bias
            pl.BlockSpec((n_convs, 9, C, C), lambda g: (0, 0, 0, 0)),  # block conv weights
            pl.BlockSpec((n_convs, 1, C), lambda g: (0, 0, 0)),        # block conv biases
            pl.BlockSpec((C, D), lambda g: (0, 0)),                    # Ortho.M
            pl.BlockSpec((C, C), lambda g: (0, 0)),                    # null projector^T
        ],
        out_specs=(
            pl.BlockSpec((bt, C, HW), lambda g: (g, 0, 0)),
            pl.BlockSpec((bt, 1, D), lambda g: (g, 0, 0)),
        ),
        scratch_shapes=[
            pltpu.VMEM((bt, H + 2, wbuf, C), jnp.float32),   # padded activation buffer A
            pltpu.VMEM((bt, H + 2, wbuf, C), jnp.float32),   # padded activation buffer B
        ],
        compiler_params=pltpu.CompilerParams(dimension_semantics=("parallel",)),
        cost_estimate=pl.CostEstimate(flops=flops, transcendentals=0,
                                      bytes_accessed=bytes_accessed),
    )(col1, fp["w1"], fp["b1"], fp["wb"], fp["bb"], fp["M"], fp["P_T"])


def _stem_call(col1, w1, b1):
    """layer == 1 path: conv1 + bn1 + relu only."""
    B, HW, k1p = col1.shape
    C = w1.shape[1]

    def kernel(col1_ref, w1_ref, b1_ref, o_ref):
        y = jnp.dot(col1_ref[0], w1_ref[...], preferred_element_type=jnp.float32)
        o_ref[0] = jnp.maximum(y + b1_ref[...], 0.0)

    return pl.pallas_call(
        kernel,
        out_shape=jax.ShapeDtypeStruct((B, HW, C), jnp.float32),
        grid=(B,),
        in_specs=[
            pl.BlockSpec((1, HW, k1p), lambda b: (b, 0, 0)),
            pl.BlockSpec((k1p, C), lambda b: (0, 0)),
            pl.BlockSpec((1, C), lambda b: (0, 0)),
        ],
        out_specs=pl.BlockSpec((1, HW, C), lambda b: (b, 0, 0)),
        compiler_params=pltpu.CompilerParams(dimension_semantics=("parallel",)),
    )(col1, w1, b1)


# ----------------------------------------------------------------------------
# Host glue
# ----------------------------------------------------------------------------

def _conv1_im2col(x_nhwc):
    """(B, H, W, 3) -> (B, H*W, 32) patches for a single K=32 conv1 matmul."""
    B, H, W, cin = x_nhwc.shape
    xp = jnp.pad(x_nhwc, ((0, 0), (1, 1), (1, 1), (0, 0)))
    taps = [xp[:, dh:dh + H, dw:dw + W, :] for dh in range(3) for dw in range(3)]
    col = jnp.concatenate(taps, axis=-1).reshape(B, H * W, 9 * cin)   # (B, HW, 27)
    return jnp.pad(col, ((0, 0), (0, 0), (0, _K1P - 9 * cin)))


@functools.partial(jax.jit, static_argnames=("layer", "batch_tile"))
def resnet_null_forward(x_nchw, fused_params, layer=2, batch_tile=1):
    """ResNetNull.forward for layer in {0, 1, 2} (the non-erroring reference paths)."""
    if layer <= 0:
        return x_nchw
    B, _, H, W = x_nchw.shape
    x_nhwc = jnp.transpose(x_nchw, (0, 2, 3, 1)).astype(jnp.float32)
    col1 = _conv1_im2col(x_nhwc)

    if layer == 1:
        stem = _stem_call(col1, fused_params["w1"], fused_params["b1"])   # (B, HW, 64)
        return jnp.transpose(stem.reshape(B, H, W, -1), (0, 3, 1, 2))

    nulled_t, repr3 = _fused_call(col1, fused_params, H, W, batch_tile)
    nulled_nchw = jax.lax.stop_gradient(nulled_t.reshape(B, -1, H, W))   # .detach()
    # TODO(synk): layer > 2 is not reproducible — the reference feeds the Ortho tuple
    # into the next Sequential's conv (TypeError); layer > 5 uses undefined ortho1..4.
    return nulled_nchw, repr3[:, 0, :]


# ----------------------------------------------------------------------------
# Deterministic parameter init + one-time packing (BN fold, tap-major weights, SVD)
# ----------------------------------------------------------------------------

def _conv_init(key, kh, kw, cin, cout):
    fan_in = kh * kw * cin
    std = (2.0 / fan_in) ** 0.5
    return std * jax.random.normal(key, (kh, kw, cin, cout), dtype=jnp.float32)


def _xavier_normal(key, rows, cols):
    std = (2.0 / (rows + cols)) ** 0.5
    return std * jax.random.normal(key, (rows, cols), dtype=jnp.float32)


def _bn_folded(c, eps=1e-5):
    # PyTorch defaults: gamma=1, beta=0, running_mean=0, running_var=1 (eval-mode fold)
    gamma = jnp.ones((c,), jnp.float32)
    beta = jnp.zeros((c,), jnp.float32)
    rmean = jnp.zeros((c,), jnp.float32)
    rvar = jnp.ones((c,), jnp.float32)
    scale = gamma / jnp.sqrt(rvar + eps)
    bias = beta - rmean * scale
    return scale, bias


def init_params(key, num_blocks=(2, 2, 2, 2), output_dim=128):
    assert output_dim % 4 == 0
    ortho_dim = output_dim // 4
    keys = jax.random.split(key, 2 + 2 * num_blocks[0] + 1)
    ki = iter(keys)

    params = {}
    params["conv1_w"] = _conv_init(next(ki), 3, 3, 3, 64)
    params["bn1_scale"], params["bn1_bias"] = _bn_folded(64)

    blocks = []
    for _ in range(num_blocks[0]):
        s1, b1 = _bn_folded(64)
        s2, b2 = _bn_folded(64)
        blocks.append({
            "w1": _conv_init(next(ki), 3, 3, 64, 64), "s1": s1, "b1": b1,
            "w2": _conv_init(next(ki), 3, 3, 64, 64), "s2": s2, "b2": b2,
        })
    params["layer1_blocks"] = blocks

    M = _xavier_normal(next(ki), 64, ortho_dim)
    params["ortho1_M"] = M
    # Null projector depends only on M -> computed ONCE here, never in the forward.
    # TODO(synk): torch.svd has no Pallas equivalent; the tiny 64x32 SVD is plain JAX
    # (column sign / degenerate-basis choice may differ from torch), and the reference's
    # literal U[:input_size-dim] row slicing is reproduced as-is.
    U, _, _ = jnp.linalg.svd(M, full_matrices=True)        # full U, as torch.svd(some=False)
    null_basis = U[: 64 - ortho_dim]                       # first (C - D) rows, per reference
    params["ortho1_P"] = null_basis.T @ null_basis         # (64, 64)
    return params


def pack_params(params):
    """One-time packing: fold BN into conv weights; tap-major block-conv weights."""
    C = 64
    # conv1: (3,3,3,64) -> im2col rows (27, 64) -> zero-pad K to 32
    w1 = (params["conv1_w"] * params["bn1_scale"]).reshape(_K1, C)
    w1 = jnp.pad(w1, ((0, _K1P - _K1), (0, 0)))
    b1 = params["bn1_bias"].reshape(1, C)

    wbs, bbs = [], []
    for bp in params["layer1_blocks"]:
        for w, s, b in ((bp["w1"], bp["s1"], bp["b1"]), (bp["w2"], bp["s2"], bp["b2"])):
            wbs.append((w * s).reshape(9, C, C))          # BN-folded, (tap, cin, cout)
            bbs.append(b.reshape(1, C))
    return {
        "w1": w1, "b1": b1,
        "wb": jnp.stack(wbs),          # (n_convs, 9, 64, 64) — exact K=64 per tap matmul
        "bb": jnp.stack(bbs),          # (n_convs, 1, 64)
        "M": params["ortho1_M"],       # (64, 32)
        "P_T": params["ortho1_P"].T,   # (64, 64)  (symmetric, transposed for exactness)
    }


# ----------------------------------------------------------------------------

if __name__ == "__main__":
    key = jax.random.PRNGKey(0)
    kparam, kx = jax.random.split(key)

    params = init_params(kparam, num_blocks=(2, 2, 2, 2), output_dim=128)
    fused = pack_params(params)      # one-time: BN fold + weight layout + SVD projector

    # Input matches conv1's expectation: 3 channels, NCHW like the PyTorch module.
    x = jax.random.normal(kx, (2, 3, 16, 16), dtype=jnp.float32)

    # batch_tile=1: even "parallel" grid (best for v7x's two TensorCores).
    # batch_tile=2: batch folded into one grid step (M=512 matmuls; best on v5e/v6e).
    nulled_x, layer_repr = resnet_null_forward(x, fused, layer=2, batch_tile=1)
    nulled_x2, layer_repr2 = resnet_null_forward(x, fused, layer=2, batch_tile=2)
    stem_out = resnet_null_forward(x, fused, layer=1)
    jax.block_until_ready((nulled_x, layer_repr, nulled_x2, layer_repr2, stem_out))

    assert nulled_x.shape == (2, 64, 16, 16)
    assert layer_repr.shape == (2, 32)
    assert stem_out.shape == (2, 64, 16, 16)
    # Batch folding must not change numerics.
    assert jnp.allclose(nulled_x, nulled_x2, rtol=1e-4, atol=1e-4)
    assert jnp.allclose(layer_repr, layer_repr2, rtol=1e-4, atol=1e-4)
    print("KERNEL_OK")
</pallas_src>

<mosaic_0001>
module attributes {stable_mosaic.version = 11 : i64} {
  func.func @kernel(%arg0: i32, %arg1: memref<1x256x32xf32, #tpu.memory_space<vmem>>, %arg2: memref<32x64xf32, #tpu.memory_space<vmem>>, %arg3: memref<1x64xf32, #tpu.memory_space<vmem>>, %arg4: memref<4x9x64x64xf32, #tpu.memory_space<vmem>>, %arg5: memref<4x1x64xf32, #tpu.memory_space<vmem>>, %arg6: memref<64x32xf32, #tpu.memory_space<vmem>>, %arg7: memref<64x64xf32, #tpu.memory_space<vmem>>, %arg8: memref<1x64x256xf32, #tpu.memory_space<vmem>>, %arg9: memref<1x1x32xf32, #tpu.memory_space<vmem>>, %arg10: memref<1x18x32x64xf32, #tpu.memory_space<vmem>>, %arg11: memref<1x18x32x64xf32, #tpu.memory_space<vmem>>) attributes {dimension_semantics = [#tpu.dimension_semantics<parallel>], iteration_bounds = array<i64: 2>, scalar_prefetch = 0 : i64, scratch_operands = 2 : i64, tpu.core_type = #tpu.core_type<tc>, window_params = [{transform_indices = @transform_0, window_bounds = array<i64: 1, 256, 32>}, {pipeline_mode = #tpu.pipeline_mode<synchronous>, transform_indices = @transform_1, window_bounds = array<i64: 32, 64>}, {pipeline_mode = #tpu.pipeline_mode<synchronous>, transform_indices = @transform_2, window_bounds = array<i64: 1, 64>}, {pipeline_mode = #tpu.pipeline_mode<synchronous>, transform_indices = @transform_3, window_bounds = array<i64: 4, 9, 64, 64>}, {pipeline_mode = #tpu.pipeline_mode<synchronous>, transform_indices = @transform_4, window_bounds = array<i64: 4, 1, 64>}, {pipeline_mode = #tpu.pipeline_mode<synchronous>, transform_indices = @transform_5, window_bounds = array<i64: 64, 32>}, {pipeline_mode = #tpu.pipeline_mode<synchronous>, transform_indices = @transform_6, window_bounds = array<i64: 64, 64>}, {transform_indices = @transform_7, window_bounds = array<i64: 1, 64, 256>}, {transform_indices = @transform_8, window_bounds = array<i64: 1, 1, 32>}]} {
    %cst = arith.constant 0.000000e+00 : f32
    %0 = vector.broadcast %cst : f32 to vector<1x1x32x64xf32>
    %cst_0 = arith.constant 0.000000e+00 : f32
    %1 = vector.broadcast %cst_0 : f32 to vector<1x16x1x64xf32>
    %c0 = arith.constant 0 : index
    %c0_1 = arith.constant 0 : index
    %c0_2 = arith.constant 0 : index
    %c0_3 = arith.constant 0 : index
    %2 = vector.load %arg10[%c0, %c0_1, %c0_2, %c0_3] : memref<1x18x32x64xf32, #tpu.memory_space<vmem>>, vector<1x1x32x64xf32>
    tpu.vector_store %arg10[%c0, %c0_1, %c0_2, %c0_3], %0 {strides = array<i32>} : memref<1x18x32x64xf32, #tpu.memory_space<vmem>>, vector<1x1x32x64xf32>,
    %c0_4 = arith.constant 0 : index
    %c17 = arith.constant 17 : index
    %c0_5 = arith.constant 0 : index
    %c0_6 = arith.constant 0 : index
    %3 = vector.load %arg10[%c0_4, %c17, %c0_5, %c0_6] : memref<1x18x32x64xf32, #tpu.memory_space<vmem>>, vector<1x1x32x64xf32>
    tpu.vector_store %arg10[%c0_4, %c17, %c0_5, %c0_6], %0 {strides = array<i32>} : memref<1x18x32x64xf32, #tpu.memory_space<vmem>>, vector<1x1x32x64xf32>,
    %c0_7 = arith.constant 0 : index
    %c1 = arith.constant 1 : index
    %c7 = arith.constant 7 : index
    %c0_8 = arith.constant 0 : index
    %4 = vector.load %arg10[%c0_7, %c1, %c7, %c0_8] : memref<1x18x32x64xf32, #tpu.memory_space<vmem>>, vector<1x16x1x64xf32>
    tpu.vector_store %arg10[%c0_7, %c1, %c7, %c0_8], %1 {strides = array<i32>} : memref<1x18x32x64xf32, #tpu.memory_space<vmem>>, vector<1x16x1x64xf32>,
    %c0_9 = arith.constant 0 : index
    %c1_10 = arith.constant 1 : index
    %c24 = arith.constant 24 : index
    %c0_11 = arith.constant 0 : index
    %5 = vector.load %arg10[%c0_9, %c1_10, %c24, %c0_11] : memref<1x18x32x64xf32, #tpu.memory_space<vmem>>, vector<1x16x1x64xf32>
    tpu.vector_store %arg10[%c0_9, %c1_10, %c24, %c0_11], %1 {strides = array<i32>} : memref<1x18x32x64xf32, #tpu.memory_space<vmem>>, vector<1x16x1x64xf32>,
    %c0_12 = arith.constant 0 : index
    %c0_13 = arith.constant 0 : index
    %c0_14 = arith.constant 0 : index
    %c0_15 = arith.constant 0 : index
    %6 = vector.load %arg11[%c0_12, %c0_13, %c0_14, %c0_15] : memref<1x18x32x64xf32, #tpu.memory_space<vmem>>, vector<1x1x32x64xf32>
    tpu.vector_store %arg11[%c0_12, %c0_13, %c0_14, %c0_15], %0 {strides = array<i32>} : memref<1x18x32x64xf32, #tpu.memory_space<vmem>>, vector<1x1x32x64xf32>,
    %c0_16 = arith.constant 0 : index
    %c17_17 = arith.constant 17 : index
    %c0_18 = arith.constant 0 : index
    %c0_19 = arith.constant 0 : index
    %7 = vector.load %arg11[%c0_16, %c17_17, %c0_18, %c0_19] : memref<1x18x32x64xf32, #tpu.memory_space<vmem>>, vector<1x1x32x64xf32>
    tpu.vector_store %arg11[%c0_16, %c17_17, %c0_18, %c0_19], %0 {strides = array<i32>} : memref<1x18x32x64xf32, #tpu.memory_space<vmem>>, vector<1x1x32x64xf32>,
    %c0_20 = arith.constant 0 : index
    %c1_21 = arith.constant 1 : index
    %c7_22 = arith.constant 7 : index
    %c0_23 = arith.constant 0 : index
    %8 = vector.load %arg11[%c0_20, %c1_21, %c7_22, %c0_23] : memref<1x18x32x64xf32, #tpu.memory_space<vmem>>, vector<1x16x1x64xf32>
    tpu.vector_store %arg11[%c0_20, %c1_21, %c7_22, %c0_23], %1 {strides = array<i32>} : memref<1x18x32x64xf32, #tpu.memory_space<vmem>>, vector<1x16x1x64xf32>,
    %c0_24 = arith.constant 0 : index
    %c1_25 = arith.constant 1 : index
    %c24_26 = arith.constant 24 : index
    %c0_27 = arith.constant 0 : index
    %9 = vector.load %arg11[%c0_24, %c1_25, %c24_26, %c0_27] : memref<1x18x32x64xf32, #tpu.memory_space<vmem>>, vector<1x16x1x64xf32>
    tpu.vector_store %arg11[%c0_24, %c1_25, %c24_26, %c0_27], %1 {strides = array<i32>} : memref<1x18x32x64xf32, #tpu.memory_space<vmem>>, vector<1x16x1x64xf32>,
    %c0_28 = arith.constant 0 : index
    %c0_29 = arith.constant 0 : index
    %c0_30 = arith.constant 0 : index
    %10 = vector.load %arg1[%c0_28, %c0_29, %c0_30] : memref<1x256x32xf32, #tpu.memory_space<vmem>>, vector<1x256x32xf32>
    %11 = vector.shape_cast %10 : vector<1x256x32xf32> to vector<256x32xf32>
    %c0_31 = arith.constant 0 : index
    %c0_32 = arith.constant 0 : index
    %12 = vector.load %arg2[%c0_31, %c0_32] : memref<32x64xf32, #tpu.memory_space<vmem>>, vector<32x64xf32>
    %cst_33 = arith.constant dense<0.000000e+00> : vector<256x64xf32>
    %13 = tpu.matmul %11, %12, %cst_33 {dimension_numbers = #tpu.dot_dimension_numbers<[1], [0], [0], [1], [0, 0, 1, 1], [], []>} : vector<256x32xf32>, vector<32x64xf32>, vector<256x64xf32> -> vector<256x64xf32>
    %c0_34 = arith.constant 0 : index
    %c0_35 = arith.constant 0 : index
    %14 = vector.load %arg3[%c0_34, %c0_35] : memref<1x64xf32, #tpu.memory_space<vmem>>, vector<1x64xf32>
    %15 = vector.broadcast %14 : vector<1x64xf32> to vector<256x64xf32>
    %16 = arith.addf %13, %15 : vector<256x64xf32>
    %cst_36 = arith.constant 0.000000e+00 : f32
    %17 = vector.broadcast %cst_36 : f32 to vector<256x64xf32>
    %18 = arith.maximumf %16, %17 : vector<256x64xf32>
    %19 = vector.shape_cast %18 : vector<256x64xf32> to vector<1x16x16x64xf32>
    %c0_37 = arith.constant 0 : index
    %c1_38 = arith.constant 1 : index
    %c8 = arith.constant 8 : index
    %c0_39 = arith.constant 0 : index
    %20 = vector.load %arg10[%c0_37, %c1_38, %c8, %c0_39] : memref<1x18x32x64xf32, #tpu.memory_space<vmem>>, vector<1x16x16x64xf32>
    tpu.vector_store %arg10[%c0_37, %c1_38, %c8, %c0_39], %19 {strides = array<i32>} : memref<1x18x32x64xf32, #tpu.memory_space<vmem>>, vector<1x16x16x64xf32>,
    %c0_40 = arith.constant 0 : index
    %c0_41 = arith.constant 0 : index
    %c7_42 = arith.constant 7 : index
    %c0_43 = arith.constant 0 : index
    %21 = vector.load %arg10[%c0_40, %c0_41, %c7_42, %c0_43] : memref<1x18x32x64xf32, #tpu.memory_space<vmem>>, vector<1x16x16x64xf32>
    %22 = vector.shape_cast %21 : vector<1x16x16x64xf32> to vector<256x64xf32>
    %c0_44 = arith.constant 0 : index
    %c0_45 = arith.constant 0 : index
    %c0_46 = arith.constant 0 : index
    %c0_47 = arith.constant 0 : index
    %23 = vector.load %arg4[%c0_44, %c0_45, %c0_46, %c0_47] : memref<4x9x64x64xf32, #tpu.memory_space<vmem>>, vector<1x1x64x64xf32>
    %24 = vector.shape_cast %23 : vector<1x1x64x64xf32> to vector<64x64xf32>
    %cst_48 = arith.constant dense<0.000000e+00> : vector<256x64xf32>
    %25 = tpu.matmul %22, %24, %cst_48 {dimension_numbers = #tpu.dot_dimension_numbers<[1], [0], [0], [1], [0, 0, 1, 1], [], []>} : vector<256x64xf32>, vector<64x64xf32>, vector<256x64xf32> -> vector<256x64xf32>
    %c0_49 = arith.constant 0 : index
    %c0_50 = arith.constant 0 : index
    %c8_51 = arith.constant 8 : index
    %c0_52 = arith.constant 0 : index
    %26 = vector.load %arg10[%c0_49, %c0_50, %c8_51, %c0_52] : memref<1x18x32x64xf32, #tpu.memory_space<vmem>>, vector<1x16x16x64xf32>
    %27 = vector.shape_cast %26 : vector<1x16x16x64xf32> to vector<256x64xf32>
    %c0_53 = arith.constant 0 : index
    %c1_54 = arith.constant 1 : index
    %c0_55 = arith.constant 0 : index
    %c0_56 = arith.constant 0 : index
    %28 = vector.load %arg4[%c0_53, %c1_54, %c0_55, %c0_56] : memref<4x9x64x64xf32, #tpu.memory_space<vmem>>, vector<1x1x64x64xf32>
    %29 = vector.shape_cast %28 : vector<1x1x64x64xf32> to vector<64x64xf32>
    %cst_57 = arith.constant dense<0.000000e+00> : vector<256x64xf32>
    %30 = tpu.matmul %27, %29, %cst_57 {dimension_numbers = #tpu.dot_dimension_numbers<[1], [0], [0], [1], [0, 0, 1, 1], [], []>} : vector<256x64xf32>, vector<64x64xf32>, vector<256x64xf32> -> vector<256x64xf32>
    %31 = arith.addf %25, %30 : vector<256x64xf32>
    %c0_58 = arith.constant 0 : index
    %c0_59 = arith.constant 0 : index
    %c9 = arith.constant 9 : index
    %c0_60 = arith.constant 0 : index
    %32 = vector.load %arg10[%c0_58, %c0_59, %c9, %c0_60] : memref<1x18x32x64xf32, #tpu.memory_space<vmem>>, vector<1x16x16x64xf32>
    %33 = vector.shape_cast %32 : vector<1x16x16x64xf32> to vector<256x64xf32>
    %c0_61 = arith.constant 0 : index
    %c2 = arith.constant 2 : index
    %c0_62 = arith.constant 0 : index
    %c0_63 = arith.constant 0 : index
    %34 = vector.load %arg4[%c0_61, %c2, %c0_62, %c0_63] : memref<4x9x64x64xf32, #tpu.memory_space<vmem>>, vector<1x1x64x64xf32>
    %35 = vector.shape_cast %34 : vector<1x1x64x64xf32> to vector<64x64xf32>
    %cst_64 = arith.constant dense<0.000000e+00> : vector<256x64xf32>
    %36 = tpu.matmul %33, %35, %cst_64 {dimension_numbers = #tpu.dot_dimension_numbers<[1], [0], [0], [1], [0, 0, 1, 1], [], []>} : vector<256x64xf32>, vector<64x64xf32>, vector<256x64xf32> -> vector<256x64xf32>
    %37 = arith.addf %31, %36 : vector<256x64xf32>
    %c0_65 = arith.constant 0 : index
    %c1_66 = arith.constant 1 : index
    %c7_67 = arith.constant 7 : index
    %c0_68 = arith.constant 0 : index
    %38 = vector.load %arg10[%c0_65, %c1_66, %c7_67, %c0_68] : memref<1x18x32x64xf32, #tpu.memory_space<vmem>>, vector<1x16x16x64xf32>
    %39 = vector.shape_cast %38 : vector<1x16x16x64xf32> to vector<256x64xf32>
    %c0_69 = arith.constant 0 : index
    %c3 = arith.constant 3 : index
    %c0_70 = arith.constant 0 : index
    %c0_71 = arith.constant 0 : index
    %40 = vector.load %arg4[%c0_69, %c3, %c0_70, %c0_71] : memref<4x9x64x64xf32, #tpu.memory_space<vmem>>, vector<1x1x64x64xf32>
    %41 = vector.shape_cast %40 : vector<1x1x64x64xf32> to vector<64x64xf32>
    %cst_72 = arith.constant dense<0.000000e+00> : vector<256x64xf32>
    %42 = tpu.matmul %39, %41, %cst_72 {dimension_numbers = #tpu.dot_dimension_numbers<[1], [0], [0], [1], [0, 0, 1, 1], [], []>} : vector<256x64xf32>, vector<64x64xf32>, vector<256x64xf32> -> vector<256x64xf32>
    %43 = arith.addf %37, %42 : vector<256x64xf32>
    %c0_73 = arith.constant 0 : index
    %c1_74 = arith.constant 1 : index
    %c8_75 = arith.constant 8 : index
    %c0_76 = arith.constant 0 : index
    %44 = vector.load %arg10[%c0_73, %c1_74, %c8_75, %c0_76] : memref<1x18x32x64xf32, #tpu.memory_space<vmem>>, vector<1x16x16x64xf32>
    %45 = vector.shape_cast %44 : vector<1x16x16x64xf32> to vector<256x64xf32>
    %c0_77 = arith.constant 0 : index
    %c4 = arith.constant 4 : index
    %c0_78 = arith.constant 0 : index
    %c0_79 = arith.constant 0 : index
    %46 = vector.load %arg4[%c0_77, %c4, %c0_78, %c0_79] : memref<4x9x64x64xf32, #tpu.memory_space<vmem>>, vector<1x1x64x64xf32>
    %47 = vector.shape_cast %46 : vector<1x1x64x64xf32> to vector<64x64xf32>
    %cst_80 = arith.constant dense<0.000000e+00> : vector<256x64xf32>
    %48 = tpu.matmul %45, %47, %cst_80 {dimension_numbers = #tpu.dot_dimension_numbers<[1], [0], [0], [1], [0, 0, 1, 1], [], []>} : vector<256x64xf32>, vector<64x64xf32>, vector<256x64xf32> -> vector<256x64xf32>
    %49 = arith.addf %43, %48 : vector<256x64xf32>
    %c0_81 = arith.constant 0 : index
    %c1_82 = arith.constant 1 : index
    %c9_83 = arith.constant 9 : index
    %c0_84 = arith.constant 0 : index
    %50 = vector.load %arg10[%c0_81, %c1_82, %c9_83, %c0_84] : memref<1x18x32x64xf32, #tpu.memory_space<vmem>>, vector<1x16x16x64xf32>
    %51 = vector.shape_cast %50 : vector<1x16x16x64xf32> to vector<256x64xf32>
    %c0_85 = arith.constant 0 : index
    %c5 = arith.constant 5 : index
    %c0_86 = arith.constant 0 : index
    %c0_87 = arith.constant 0 : index
    %52 = vector.load %arg4[%c0_85, %c5, %c0_86, %c0_87] : memref<4x9x64x64xf32, #tpu.memory_space<vmem>>, vector<1x1x64x64xf32>
    %53 = vector.shape_cast %52 : vector<1x1x64x64xf32> to vector<64x64xf32>
    %cst_88 = arith.constant dense<0.000000e+00> : vector<256x64xf32>
    %54 = tpu.matmul %51, %53, %cst_88 {dimension_numbers = #tpu.dot_dimension_numbers<[1], [0], [0], [1], [0, 0, 1, 1], [], []>} : vector<256x64xf32>, vector<64x64xf32>, vector<256x64xf32> -> vector<256x64xf32>
    %55 = arith.addf %49, %54 : vector<256x64xf32>
    %c0_89 = arith.constant 0 : index
    %c2_90 = arith.constant 2 : index
    %c7_91 = arith.constant 7 : index
    %c0_92 = arith.constant 0 : index
    %56 = vector.load %arg10[%c0_89, %c2_90, %c7_91, %c0_92] : memref<1x18x32x64xf32, #tpu.memory_space<vmem>>, vector<1x16x16x64xf32>
    %57 = vector.shape_cast %56 : vector<1x16x16x64xf32> to vector<256x64xf32>
    %c0_93 = arith.constant 0 : index
    %c6 = arith.constant 6 : index
    %c0_94 = arith.constant 0 : index
    %c0_95 = arith.constant 0 : index
    %58 = vector.load %arg4[%c0_93, %c6, %c0_94, %c0_95] : memref<4x9x64x64xf32, #tpu.memory_space<vmem>>, vector<1x1x64x64xf32>
    %59 = vector.shape_cast %58 : vector<1x1x64x64xf32> to vector<64x64xf32>
    %cst_96 = arith.constant dense<0.000000e+00> : vector<256x64xf32>
    %60 = tpu.matmul %57, %59, %cst_96 {dimension_numbers = #tpu.dot_dimension_numbers<[1], [0], [0], [1], [0, 0, 1, 1], [], []>} : vector<256x64xf32>, vector<64x64xf32>, vector<256x64xf32> -> vector<256x64xf32>
    %61 = arith.addf %55, %60 : vector<256x64xf32>
    %c0_97 = arith.constant 0 : index
    %c2_98 = arith.constant 2 : index
    %c8_99 = arith.constant 8 : index
    %c0_100 = arith.constant 0 : index
    %62 = vector.load %arg10[%c0_97, %c2_98, %c8_99, %c0_100] : memref<1x18x32x64xf32, #tpu.memory_space<vmem>>, vector<1x16x16x64xf32>
    %63 = vector.shape_cast %62 : vector<1x16x16x64xf32> to vector<256x64xf32>
    %c0_101 = arith.constant 0 : index
    %c7_102 = arith.constant 7 : index
    %c0_103 = arith.constant 0 : index
    %c0_104 = arith.constant 0 : index
    %64 = vector.load %arg4[%c0_101, %c7_102, %c0_103, %c0_104] : memref<4x9x64x64xf32, #tpu.memory_space<vmem>>, vector<1x1x64x64xf32>
    %65 = vector.shape_cast %64 : vector<1x1x64x64xf32> to vector<64x64xf32>
    %cst_105 = arith.constant dense<0.000000e+00> : vector<256x64xf32>
    %66 = tpu.matmul %63, %65, %cst_105 {dimension_numbers = #tpu.dot_dimension_numbers<[1], [0], [0], [1], [0, 0, 1, 1], [], []>} : vector<256x64xf32>, vector<64x64xf32>, vector<256x64xf32> -> vector<256x64xf32>
    %67 = arith.addf %61, %66 : vector<256x64xf32>
    %c0_106 = arith.constant 0 : index
    %c2_107 = arith.constant 2 : index
    %c9_108 = arith.constant 9 : index
    %c0_109 = arith.constant 0 : index
    %68 = vector.load %arg10[%c0_106, %c2_107, %c9_108, %c0_109] : memref<1x18x32x64xf32, #tpu.memory_space<vmem>>, vector<1x16x16x64xf32>
    %69 = vector.shape_cast %68 : vector<1x16x16x64xf32> to vector<256x64xf32>
    %c0_110 = arith.constant 0 : index
    %c8_111 = arith.constant 8 : index
    %c0_112 = arith.constant 0 : index
    %c0_113 = arith.constant 0 : index
    %70 = vector.load %arg4[%c0_110, %c8_111, %c0_112, %c0_113] : memref<4x9x64x64xf32, #tpu.memory_space<vmem>>, vector<1x1x64x64xf32>
    %71 = vector.shape_cast %70 : vector<1x1x64x64xf32> to vector<64x64xf32>
    %cst_114 = arith.constant dense<0.000000e+00> : vector<256x64xf32>
    %72 = tpu.matmul %69, %71, %cst_114 {dimension_numbers = #tpu.dot_dimension_numbers<[1], [0], [0], [1], [0, 0, 1, 1], [], []>} : vector<256x64xf32>, vector<64x64xf32>, vector<256x64xf32> -> vector<256x64xf32>
    %73 = arith.addf %67, %72 : vector<256x64xf32>
    %c0_115 = arith.constant 0 : index
    %c0_116 = arith.constant 0 : index
    %c0_117 = arith.constant 0 : index
    %74 = vector.load %arg5[%c0_115, %c0_116, %c0_117] : memref<4x1x64xf32, #tpu.memory_space<vmem>>, vector<1x1x64xf32>
    %75 = vector.shape_cast %74 : vector<1x1x64xf32> to vector<1x64xf32>
    %76 = vector.broadcast %75 : vector<1x64xf32> to vector<256x64xf32>
    %77 = arith.addf %73, %76 : vector<256x64xf32>
    %cst_118 = arith.constant 0.000000e+00 : f32
    %78 = vector.broadcast %cst_118 : f32 to vector<256x64xf32>
    %79 = arith.maximumf %77, %78 : vector<256x64xf32>
    %80 = vector.shape_cast %79 : vector<256x64xf32> to vector<1x16x16x64xf32>
    %c0_119 = arith.constant 0 : index
    %c1_120 = arith.constant 1 : index
    %c8_121 = arith.constant 8 : index
    %c0_122 = arith.constant 0 : index
    %81 = vector.load %arg11[%c0_119, %c1_120, %c8_121, %c0_122] : memref<1x18x32x64xf32, #tpu.memory_space<vmem>>, vector<1x16x16x64xf32>
    tpu.vector_store %arg11[%c0_119, %c1_120, %c8_121, %c0_122], %80 {strides = array<i32>} : memref<1x18x32x64xf32, #tpu.memory_space<vmem>>, vector<1x16x16x64xf32>,
    %c0_123 = arith.constant 0 : index
    %c0_124 = arith.constant 0 : index
    %c7_125 = arith.constant 7 : index
    %c0_126 = arith.constant 0 : index
    %82 = vector.load %arg11[%c0_123, %c0_124, %c7_125, %c0_126] : memref<1x18x32x64xf32, #tpu.memory_space<vmem>>, vector<1x16x16x64xf32>
    %83 = vector.shape_cast %82 : vector<1x16x16x64xf32> to vector<256x64xf32>
    %c1_127 = arith.constant 1 : index
    %c0_128 = arith.constant 0 : index
    %c0_129 = arith.constant 0 : index
    %c0_130 = arith.constant 0 : index
    %84 = vector.load %arg4[%c1_127, %c0_128, %c0_129, %c0_130] : memref<4x9x64x64xf32, #tpu.memory_space<vmem>>, vector<1x1x64x64xf32>
    %85 = vector.shape_cast %84 : vector<1x1x64x64xf32> to vector<64x64xf32>
    %cst_131 = arith.constant dense<0.000000e+00> : vector<256x64xf32>
    %86 = tpu.matmul %83, %85, %cst_131 {dimension_numbers = #tpu.dot_dimension_numbers<[1], [0], [0], [1], [0, 0, 1, 1], [], []>} : vector<256x64xf32>, vector<64x64xf32>, vector<256x64xf32> -> vector<256x64xf32>
    %c0_132 = arith.constant 0 : index
    %c0_133 = arith.constant 0 : index
    %c8_134 = arith.constant 8 : index
    %c0_135 = arith.constant 0 : index
    %87 = vector.load %arg11[%c0_132, %c0_133, %c8_134, %c0_135] : memref<1x18x32x64xf32, #tpu.memory_space<vmem>>, vector<1x16x16x64xf32>
    %88 = vector.shape_cast %87 : vector<1x16x16x64xf32> to vector<256x64xf32>
    %c1_136 = arith.constant 1 : index
    %c1_137 = arith.constant 1 : index
    %c0_138 = arith.constant 0 : index
    %c0_139 = arith.constant 0 : index
    %89 = vector.load %arg4[%c1_136, %c1_137, %c0_138, %c0_139] : memref<4x9x64x64xf32, #tpu.memory_space<vmem>>, vector<1x1x64x64xf32>
    %90 = vector.shape_cast %89 : vector<1x1x64x64xf32> to vector<64x64xf32>
    %cst_140 = arith.constant dense<0.000000e+00> : vector<256x64xf32>
    %91 = tpu.matmul %88, %90, %cst_140 {dimension_numbers = #tpu.dot_dimension_numbers<[1], [0], [0], [1], [0, 0, 1, 1], [], []>} : vector<256x64xf32>, vector<64x64xf32>, vector<256x64xf32> -> vector<256x64xf32>
    %92 = arith.addf %86, %91 : vector<256x64xf32>
    %c0_141 = arith.constant 0 : index
    %c0_142 = arith.constant 0 : index
    %c9_143 = arith.constant 9 : index
    %c0_144 = arith.constant 0 : index
    %93 = vector.load %arg11[%c0_141, %c0_142, %c9_143, %c0_144] : memref<1x18x32x64xf32, #tpu.memory_space<vmem>>, vector<1x16x16x64xf32>
    %94 = vector.shape_cast %93 : vector<1x16x16x64xf32> to vector<256x64xf32>
    %c1_145 = arith.constant 1 : index
    %c2_146 = arith.constant 2 : index
    %c0_147 = arith.constant 0 : index
    %c0_148 = arith.constant 0 : index
    %95 = vector.load %arg4[%c1_145, %c2_146, %c0_147, %c0_148] : memref<4x9x64x64xf32, #tpu.memory_space<vmem>>, vector<1x1x64x64xf32>
    %96 = vector.shape_cast %95 : vector<1x1x64x64xf32> to vector<64x64xf32>
    %cst_149 = arith.constant dense<0.000000e+00> : vector<256x64xf32>
    %97 = tpu.matmul %94, %96, %cst_149 {dimension_numbers = #tpu.dot_dimension_numbers<[1], [0], [0], [1], [0, 0, 1, 1], [], []>} : vector<256x64xf32>, vector<64x64xf32>, vector<256x64xf32> -> vector<256x64xf32>
    %98 = arith.addf %92, %97 : vector<256x64xf32>
    %c0_150 = arith.constant 0 : index
    %c1_151 = arith.constant 1 : index
    %c7_152 = arith.constant 7 : index
    %c0_153 = arith.constant 0 : index
    %99 = vector.load %arg11[%c0_150, %c1_151, %c7_152, %c0_153] : memref<1x18x32x64xf32, #tpu.memory_space<vmem>>, vector<1x16x16x64xf32>
    %100 = vector.shape_cast %99 : vector<1x16x16x64xf32> to vector<256x64xf32>
    %c1_154 = arith.constant 1 : index
    %c3_155 = arith.constant 3 : index
    %c0_156 = arith.constant 0 : index
    %c0_157 = arith.constant 0 : index
    %101 = vector.load %arg4[%c1_154, %c3_155, %c0_156, %c0_157] : memref<4x9x64x64xf32, #tpu.memory_space<vmem>>, vector<1x1x64x64xf32>
    %102 = vector.shape_cast %101 : vector<1x1x64x64xf32> to vector<64x64xf32>
    %cst_158 = arith.constant dense<0.000000e+00> : vector<256x64xf32>
    %103 = tpu.matmul %100, %102, %cst_158 {dimension_numbers = #tpu.dot_dimension_numbers<[1], [0], [0], [1], [0, 0, 1, 1], [], []>} : vector<256x64xf32>, vector<64x64xf32>, vector<256x64xf32> -> vector<256x64xf32>
    %104 = arith.addf %98, %103 : vector<256x64xf32>
    %c0_159 = arith.constant 0 : index
    %c1_160 = arith.constant 1 : index
    %c8_161 = arith.constant 8 : index
    %c0_162 = arith.constant 0 : index
    %105 = vector.load %arg11[%c0_159, %c1_160, %c8_161, %c0_162] : memref<1x18x32x64xf32, #tpu.memory_space<vmem>>, vector<1x16x16x64xf32>
    %106 = vector.shape_cast %105 : vector<1x16x16x64xf32> to vector<256x64xf32>
    %c1_163 = arith.constant 1 : index
    %c4_164 = arith.constant 4 : index
    %c0_165 = arith.constant 0 : index
    %c0_166 = arith.constant 0 : index
    %107 = vector.load %arg4[%c1_163, %c4_164, %c0_165, %c0_166] : memref<4x9x64x64xf32, #tpu.memory_space<vmem>>, vector<1x1x64x64xf32>
    %108 = vector.shape_cast %107 : vector<1x1x64x64xf32> to vector<64x64xf32>
    %cst_167 = arith.constant dense<0.000000e+00> : vector<256x64xf32>
    %109 = tpu.matmul %106, %108, %cst_167 {dimension_numbers = #tpu.dot_dimension_numbers<[1], [0], [0], [1], [0, 0, 1, 1], [], []>} : vector<256x64xf32>, vector<64x64xf32>, vector<256x64xf32> -> vector<256x64xf32>
    %110 = arith.addf %104, %109 : vector<256x64xf32>
    %c0_168 = arith.constant 0 : index
    %c1_169 = arith.constant 1 : index
    %c9_170 = arith.constant 9 : index
    %c0_171 = arith.constant 0 : index
    %111 = vector.load %arg11[%c0_168, %c1_169, %c9_170, %c0_171] : memref<1x18x32x64xf32, #tpu.memory_space<vmem>>, vector<1x16x16x64xf32>
    %112 = vector.shape_cast %111 : vector<1x16x16x64xf32> to vector<256x64xf32>
    %c1_172 = arith.constant 1 : index
    %c5_173 = arith.constant 5 : index
    %c0_174 = arith.constant 0 : index
    %c0_175 = arith.constant 0 : index
    %113 = vector.load %arg4[%c1_172, %c5_173, %c0_174, %c0_175] : memref<4x9x64x64xf32, #tpu.memory_space<vmem>>, vector<1x1x64x64xf32>
    %114 = vector.shape_cast %113 : vector<1x1x64x64xf32> to vector<64x64xf32>
    %cst_176 = arith.constant dense<0.000000e+00> : vector<256x64xf32>
    %115 = tpu.matmul %112, %114, %cst_176 {dimension_numbers = #tpu.dot_dimension_numbers<[1], [0], [0], [1], [0, 0, 1, 1], [], []>} : vector<256x64xf32>, vector<64x64xf32>, vector<256x64xf32> -> vector<256x64xf32>
    %116 = arith.addf %110, %115 : vector<256x64xf32>
    %c0_177 = arith.constant 0 : index
    %c2_178 = arith.constant 2 : index
    %c7_179 = arith.constant 7 : index
    %c0_180 = arith.constant 0 : index
    %117 = vector.load %arg11[%c0_177, %c2_178, %c7_179, %c0_180] : memref<1x18x32x64xf32, #tpu.memory_space<vmem>>, vector<1x16x16x64xf32>
    %118 = vector.shape_cast %117 : vector<1x16x16x64xf32> to vector<256x64xf32>
    %c1_181 = arith.constant 1 : index
    %c6_182 = arith.constant 6 : index
    %c0_183 = arith.constant 0 : index
    %c0_184 = arith.constant 0 : index
    %119 = vector.load %arg4[%c1_181, %c6_182, %c0_183, %c0_184] : memref<4x9x64x64xf32, #tpu.memory_space<vmem>>, vector<1x1x64x64xf32>
    %120 = vector.shape_cast %119 : vector<1x1x64x64xf32> to vector<64x64xf32>
    %cst_185 = arith.constant dense<0.000000e+00> : vector<256x64xf32>
    %121 = tpu.matmul %118, %120, %cst_185 {dimension_numbers = #tpu.dot_dimension_numbers<[1], [0], [0], [1], [0, 0, 1, 1], [], []>} : vector<256x64xf32>, vector<64x64xf32>, vector<256x64xf32> -> vector<256x64xf32>
    %122 = arith.addf %116, %121 : vector<256x64xf32>
    %c0_186 = arith.constant 0 : index
    %c2_187 = arith.constant 2 : index
    %c8_188 = arith.constant 8 : index
    %c0_189 = arith.constant 0 : index
    %123 = vector.load %arg11[%c0_186, %c2_187, %c8_188, %c0_189] : memref<1x18x32x64xf32, #tpu.memory_space<vmem>>, vector<1x16x16x64xf32>
    %124 = vector.shape_cast %123 : vector<1x16x16x64xf32> to vector<256x64xf32>
    %c1_190 = arith.constant 1 : index
    %c7_191 = arith.constant 7 : index
    %c0_192 = arith.constant 0 : index
    %c0_193 = arith.constant 0 : index
    %125 = vector.load %arg4[%c1_190, %c7_191, %c0_192, %c0_193] : memref<4x9x64x64xf32, #tpu.memory_space<vmem>>, vector<1x1x64x64xf32>
    %126 = vector.shape_cast %125 : vector<1x1x64x64xf32> to vector<64x64xf32>
    %cst_194 = arith.constant dense<0.000000e+00> : vector<256x64xf32>
    %127 = tpu.matmul %124, %126, %cst_194 {dimension_numbers = #tpu.dot_dimension_numbers<[1], [0], [0], [1], [0, 0, 1, 1], [], []>} : vector<256x64xf32>, vector<64x64xf32>, vector<256x64xf32> -> vector<256x64xf32>
    %128 = arith.addf %122, %127 : vector<256x64xf32>
    %c0_195 = arith.constant 0 : index
    %c2_196 = arith.constant 2 : index
    %c9_197 = arith.constant 9 : index
    %c0_198 = arith.constant 0 : index
    %129 = vector.load %arg11[%c0_195, %c2_196, %c9_197, %c0_198] : memref<1x18x32x64xf32, #tpu.memory_space<vmem>>, vector<1x16x16x64xf32>
    %130 = vector.shape_cast %129 : vector<1x16x16x64xf32> to vector<256x64xf32>
    %c1_199 = arith.constant 1 : index
    %c8_200 = arith.constant 8 : index
    %c0_201 = arith.constant 0 : index
    %c0_202 = arith.constant 0 : index
    %131 = vector.load %arg4[%c1_199, %c8_200, %c0_201, %c0_202] : memref<4x9x64x64xf32, #tpu.memory_space<vmem>>, vector<1x1x64x64xf32>
    %132 = vector.shape_cast %131 : vector<1x1x64x64xf32> to vector<64x64xf32>
    %cst_203 = arith.constant dense<0.000000e+00> : vector<256x64xf32>
    %133 = tpu.matmul %130, %132, %cst_203 {dimension_numbers = #tpu.dot_dimension_numbers<[1], [0], [0], [1], [0, 0, 1, 1], [], []>} : vector<256x64xf32>, vector<64x64xf32>, vector<256x64xf32> -> vector<256x64xf32>
    %134 = arith.addf %128, %133 : vector<256x64xf32>
    %c1_204 = arith.constant 1 : index
    %c0_205 = arith.constant 0 : index
    %c0_206 = arith.constant 0 : index
    %135 = vector.load %arg5[%c1_204, %c0_205, %c0_206] : memref<4x1x64xf32, #tpu.memory_space<vmem>>, vector<1x1x64xf32>
    %136 = vector.shape_cast %135 : vector<1x1x64xf32> to vector<1x64xf32>
    %137 = vector.broadcast %136 : vector<1x64xf32> to vector<256x64xf32>
    %138 = arith.addf %134, %137 : vector<256x64xf32>
    %c0_207 = arith.constant 0 : index
    %c1_208 = arith.constant 1 : index
    %c8_209 = arith.constant 8 : index
    %c0_210 = arith.constant 0 : index
    %139 = vector.load %arg10[%c0_207, %c1_208, %c8_209, %c0_210] : memref<1x18x32x64xf32, #tpu.memory_space<vmem>>, vector<1x16x16x64xf32>
    %140 = vector.shape_cast %139 : vector<1x16x16x64xf32> to vector<256x64xf32>
    %141 = arith.addf %138, %140 : vector<256x64xf32>
    %cst_211 = arith.constant 0.000000e+00 : f32
    %142 = vector.broadcast %cst_211 : f32 to vector<256x64xf32>
    %143 = arith.maximumf %141, %142 : vector<256x64xf32>
    %144 = vector.shape_cast %143 : vector<256x64xf32> to vector<1x16x16x64xf32>
    %c0_212 = arith.constant 0 : index
    %c1_213 = arith.constant 1 : index
    %c8_214 = arith.constant 8 : index
    %c0_215 = arith.constant 0 : index
    %145 = vector.load %arg10[%c0_212, %c1_213, %c8_214, %c0_215] : memref<1x18x32x64xf32, #tpu.memory_space<vmem>>, vector<1x16x16x64xf32>
    tpu.vector_store %arg10[%c0_212, %c1_213, %c8_214, %c0_215], %144 {strides = array<i32>} : memref<1x18x32x64xf32, #tpu.memory_space<vmem>>, vector<1x16x16x64xf32>,
    %c0_216 = arith.constant 0 : index
    %c0_217 = arith.constant 0 : index
    %c7_218 = arith.constant 7 : index
    %c0_219 = arith.constant 0 : index
    %146 = vector.load %arg10[%c0_216, %c0_217, %c7_218, %c0_219] : memref<1x18x32x64xf32, #tpu.memory_space<vmem>>, vector<1x16x16x64xf32>
    %147 = vector.shape_cast %146 : vector<1x16x16x64xf32> to vector<256x64xf32>
    %c2_220 = arith.constant 2 : index
    %c0_221 = arith.constant 0 : index
    %c0_222 = arith.constant 0 : index
    %c0_223 = arith.constant 0 : index
    %148 = vector.load %arg4[%c2_220, %c0_221, %c0_222, %c0_223] : memref<4x9x64x64xf32, #tpu.memory_space<vmem>>, vector<1x1x64x64xf32>
    %149 = vector.shape_cast %148 : vector<1x1x64x64xf32> to vector<64x64xf32>
    %cst_224 = arith.constant dense<0.000000e+00> : vector<256x64xf32>
    %150 = tpu.matmul %147, %149, %cst_224 {dimension_numbers = #tpu.dot_dimension_numbers<[1], [0], [0], [1], [0, 0, 1, 1], [], []>} : vector<256x64xf32>, vector<64x64xf32>, vector<256x64xf32> -> vector<256x64xf32>
    %c0_225 = arith.constant 0 : index
    %c0_226 = arith.constant 0 : index
    %c8_227 = arith.constant 8 : index
    %c0_228 = arith.constant 0 : index
    %151 = vector.load %arg10[%c0_225, %c0_226, %c8_227, %c0_228] : memref<1x18x32x64xf32, #tpu.memory_space<vmem>>, vector<1x16x16x64xf32>
    %152 = vector.shape_cast %151 : vector<1x16x16x64xf32> to vector<256x64xf32>
    %c2_229 = arith.constant 2 : index
    %c1_230 = arith.constant 1 : index
    %c0_231 = arith.constant 0 : index
    %c0_232 = arith.constant 0 : index
    %153 = vector.load %arg4[%c2_229, %c1_230, %c0_231, %c0_232] : memref<4x9x64x64xf32, #tpu.memory_space<vmem>>, vector<1x1x64x64xf32>
    %154 = vector.shape_cast %153 : vector<1x1x64x64xf32> to vector<64x64xf32>
    %cst_233 = arith.constant dense<0.000000e+00> : vector<256x64xf32>
    %155 = tpu.matmul %152, %154, %cst_233 {dimension_numbers = #tpu.dot_dimension_numbers<[1], [0], [0], [1], [0, 0, 1, 1], [], []>} : vector<256x64xf32>, vector<64x64xf32>, vector<256x64xf32> -> vector<256x64xf32>
    %156 = arith.addf %150, %155 : vector<256x64xf32>
    %c0_234 = arith.constant 0 : index
    %c0_235 = arith.constant 0 : index
    %c9_236 = arith.constant 9 : index
    %c0_237 = arith.constant 0 : index
    %157 = vector.load %arg10[%c0_234, %c0_235, %c9_236, %c0_237] : memref<1x18x32x64xf32, #tpu.memory_space<vmem>>, vector<1x16x16x64xf32>
    %158 = vector.shape_cast %157 : vector<1x16x16x64xf32> to vector<256x64xf32>
    %c2_238 = arith.constant 2 : index
    %c2_239 = arith.constant 2 : index
    %c0_240 = arith.constant 0 : index
    %c0_241 = arith.constant 0 : index
    %159 = vector.load %arg4[%c2_238, %c2_239, %c0_240, %c0_241] : memref<4x9x64x64xf32, #tpu.memory_space<vmem>>, vector<1x1x64x64xf32>
    %160 = vector.shape_cast %159 : vector<1x1x64x64xf32> to vector<64x64xf32>
    %cst_242 = arith.constant dense<0.000000e+00> : vector<256x64xf32>
    %161 = tpu.matmul %158, %160, %cst_242 {dimension_numbers = #tpu.dot_dimension_numbers<[1], [0], [0], [1], [0, 0, 1, 1], [], []>} : vector<256x64xf32>, vector<64x64xf32>, vector<256x64xf32> -> vector<256x64xf32>
    %162 = arith.addf %156, %161 : vector<256x64xf32>
    %c0_243 = arith.constant 0 : index
    %c1_244 = arith.constant 1 : index
    %c7_245 = arith.constant 7 : index
    %c0_246 = arith.constant 0 : index
    %163 = vector.load %arg10[%c0_243, %c1_244, %c7_245, %c0_246] : memref<1x18x32x64xf32, #tpu.memory_space<vmem>>, vector<1x16x16x64xf32>
    %164 = vector.shape_cast %163 : vector<1x16x16x64xf32> to vector<256x64xf32>
    %c2_247 = arith.constant 2 : index
    %c3_248 = arith.constant 3 : index
    %c0_249 = arith.constant 0 : index
    %c0_250 = arith.constant 0 : index
    %165 = vector.load %arg4[%c2_247, %c3_248, %c0_249, %c0_250] : memref<4x9x64x64xf32, #tpu.memory_space<vmem>>, vector<1x1x64x64xf32>
    %166 = vector.shape_cast %165 : vector<1x1x64x64xf32> to vector<64x64xf32>
    %cst_251 = arith.constant dense<0.000000e+00> : vector<256x64xf32>
    %167 = tpu.matmul %164, %166, %cst_251 {dimension_numbers = #tpu.dot_dimension_numbers<[1], [0], [0], [1], [0, 0, 1, 1], [], []>} : vector<256x64xf32>, vector<64x64xf32>, vector<256x64xf32> -> vector<256x64xf32>
    %168 = arith.addf %162, %167 : vector<256x64xf32>
    %c0_252 = arith.constant 0 : index
    %c1_253 = arith.constant 1 : index
    %c8_254 = arith.constant 8 : index
    %c0_255 = arith.constant 0 : index
    %169 = vector.load %arg10[%c0_252, %c1_253, %c8_254, %c0_255] : memref<1x18x32x64xf32, #tpu.memory_space<vmem>>, vector<1x16x16x64xf32>
    %170 = vector.shape_cast %169 : vector<1x16x16x64xf32> to vector<256x64xf32>
    %c2_256 = arith.constant 2 : index
    %c4_257 = arith.constant 4 : index
    %c0_258 = arith.constant 0 : index
    %c0_259 = arith.constant 0 : index
    %171 = vector.load %arg4[%c2_256, %c4_257, %c0_258, %c0_259] : memref<4x9x64x64xf32, #tpu.memory_space<vmem>>, vector<1x1x64x64xf32>
    %172 = vector.shape_cast %171 : vector<1x1x64x64xf32> to vector<64x64xf32>
    %cst_260 = arith.constant dense<0.000000e+00> : vector<256x64xf32>
    %173 = tpu.matmul %170, %172, %cst_260 {dimension_numbers = #tpu.dot_dimension_numbers<[1], [0], [0], [1], [0, 0, 1, 1], [], []>} : vector<256x64xf32>, vector<64x64xf32>, vector<256x64xf32> -> vector<256x64xf32>
    %174 = arith.addf %168, %173 : vector<256x64xf32>
    %c0_261 = arith.constant 0 : index
    %c1_262 = arith.constant 1 : index
    %c9_263 = arith.constant 9 : index
    %c0_264 = arith.constant 0 : index
    %175 = vector.load %arg10[%c0_261, %c1_262, %c9_263, %c0_264] : memref<1x18x32x64xf32, #tpu.memory_space<vmem>>, vector<1x16x16x64xf32>
    %176 = vector.shape_cast %175 : vector<1x16x16x64xf32> to vector<256x64xf32>
    %c2_265 = arith.constant 2 : index
    %c5_266 = arith.constant 5 : index
    %c0_267 = arith.constant 0 : index
    %c0_268 = arith.constant 0 : index
    %177 = vector.load %arg4[%c2_265, %c5_266, %c0_267, %c0_268] : memref<4x9x64x64xf32, #tpu.memory_space<vmem>>, vector<1x1x64x64xf32>
    %178 = vector.shape_cast %177 : vector<1x1x64x64xf32> to vector<64x64xf32>
    %cst_269 = arith.constant dense<0.000000e+00> : vector<256x64xf32>
    %179 = tpu.matmul %176, %178, %cst_269 {dimension_numbers = #tpu.dot_dimension_numbers<[1], [0], [0], [1], [0, 0, 1, 1], [], []>} : vector<256x64xf32>, vector<64x64xf32>, vector<256x64xf32> -> vector<256x64xf32>
    %180 = arith.addf %174, %179 : vector<256x64xf32>
    %c0_270 = arith.constant 0 : index
    %c2_271 = arith.constant 2 : index
    %c7_272 = arith.constant 7 : index
    %c0_273 = arith.constant 0 : index
    %181 = vector.load %arg10[%c0_270, %c2_271, %c7_272, %c0_273] : memref<1x18x32x64xf32, #tpu.memory_space<vmem>>, vector<1x16x16x64xf32>
    %182 = vector.shape_cast %181 : vector<1x16x16x64xf32> to vector<256x64xf32>
    %c2_274 = arith.constant 2 : index
    %c6_275 = arith.constant 6 : index
    %c0_276 = arith.constant 0 : index
    %c0_277 = arith.constant 0 : index
    %183 = vector.load %arg4[%c2_274, %c6_275, %c0_276, %c0_277] : memref<4x9x64x64xf32, #tpu.memory_space<vmem>>, vector<1x1x64x64xf32>
    %184 = vector.shape_cast %183 : vector<1x1x64x64xf32> to vector<64x64xf32>
    %cst_278 = arith.constant dense<0.000000e+00> : vector<256x64xf32>
    %185 = tpu.matmul %182, %184, %cst_278 {dimension_numbers = #tpu.dot_dimension_numbers<[1], [0], [0], [1], [0, 0, 1, 1], [], []>} : vector<256x64xf32>, vector<64x64xf32>, vector<256x64xf32> -> vector<256x64xf32>
    %186 = arith.addf %180, %185 : vector<256x64xf32>
    %c0_279 = arith.constant 0 : index
    %c2_280 = arith.constant 2 : index
    %c8_281 = arith.constant 8 : index
    %c0_282 = arith.constant 0 : index
    %187 = vector.load %arg10[%c0_279, %c2_280, %c8_281, %c0_282] : memref<1x18x32x64xf32, #tpu.memory_space<vmem>>, vector<1x16x16x64xf32>
    %188 = vector.shape_cast %187 : vector<1x16x16x64xf32> to vector<256x64xf32>
    %c2_283 = arith.constant 2 : index
    %c7_284 = arith.constant 7 : index
    %c0_285 = arith.constant 0 : index
    %c0_286 = arith.constant 0 : index
    %189 = vector.load %arg4[%c2_283, %c7_284, %c0_285, %c0_286] : memref<4x9x64x64xf32, #tpu.memory_space<vmem>>, vector<1x1x64x64xf32>
    %190 = vector.shape_cast %189 : vector<1x1x64x64xf32> to vector<64x64xf32>
    %cst_287 = arith.constant dense<0.000000e+00> : vector<256x64xf32>
    %191 = tpu.matmul %188, %190, %cst_287 {dimension_numbers = #tpu.dot_dimension_numbers<[1], [0], [0], [1], [0, 0, 1, 1], [], []>} : vector<256x64xf32>, vector<64x64xf32>, vector<256x64xf32> -> vector<256x64xf32>
    %192 = arith.addf %186, %191 : vector<256x64xf32>
    %c0_288 = arith.constant 0 : index
    %c2_289 = arith.constant 2 : index
    %c9_290 = arith.constant 9 : index
    %c0_291 = arith.constant 0 : index
    %193 = vector.load %arg10[%c0_288, %c2_289, %c9_290, %c0_291] : memref<1x18x32x64xf32, #tpu.memory_space<vmem>>, vector<1x16x16x64xf32>
    %194 = vector.shape_cast %193 : vector<1x16x16x64xf32> to vector<256x64xf32>
    %c2_292 = arith.constant 2 : index
    %c8_293 = arith.constant 8 : index
    %c0_294 = arith.constant 0 : index
    %c0_295 = arith.constant 0 : index
    %195 = vector.load %arg4[%c2_292, %c8_293, %c0_294, %c0_295] : memref<4x9x64x64xf32, #tpu.memory_space<vmem>>, vector<1x1x64x64xf32>
    %196 = vector.shape_cast %195 : vector<1x1x64x64xf32> to vector<64x64xf32>
    %cst_296 = arith.constant dense<0.000000e+00> : vector<256x64xf32>
    %197 = tpu.matmul %194, %196, %cst_296 {dimension_numbers = #tpu.dot_dimension_numbers<[1], [0], [0], [1], [0, 0, 1, 1], [], []>} : vector<256x64xf32>, vector<64x64xf32>, vector<256x64xf32> -> vector<256x64xf32>
    %198 = arith.addf %192, %197 : vector<256x64xf32>
    %c2_297 = arith.constant 2 : index
    %c0_298 = arith.constant 0 : index
    %c0_299 = arith.constant 0 : index
    %199 = vector.load %arg5[%c2_297, %c0_298, %c0_299] : memref<4x1x64xf32, #tpu.memory_space<vmem>>, vector<1x1x64xf32>
    %200 = vector.shape_cast %199 : vector<1x1x64xf32> to vector<1x64xf32>
    %201 = vector.broadcast %200 : vector<1x64xf32> to vector<256x64xf32>
    %202 = arith.addf %198, %201 : vector<256x64xf32>
    %cst_300 = arith.constant 0.000000e+00 : f32
    %203 = vector.broadcast %cst_300 : f32 to vector<256x64xf32>
    %204 = arith.maximumf %202, %203 : vector<256x64xf32>
    %205 = vector.shape_cast %204 : vector<256x64xf32> to vector<1x16x16x64xf32>
    %c0_301 = arith.constant 0 : index
    %c1_302 = arith.constant 1 : index
    %c8_303 = arith.constant 8 : index
    %c0_304 = arith.constant 0 : index
    %206 = vector.load %arg11[%c0_301, %c1_302, %c8_303, %c0_304] : memref<1x18x32x64xf32, #tpu.memory_space<vmem>>, vector<1x16x16x64xf32>
    tpu.vector_store %arg11[%c0_301, %c1_302, %c8_303, %c0_304], %205 {strides = array<i32>} : memref<1x18x32x64xf32, #tpu.memory_space<vmem>>, vector<1x16x16x64xf32>,
    %c0_305 = arith.constant 0 : index
    %c0_306 = arith.constant 0 : index
    %c7_307 = arith.constant 7 : index
    %c0_308 = arith.constant 0 : index
    %207 = vector.load %arg11[%c0_305, %c0_306, %c7_307, %c0_308] : memref<1x18x32x64xf32, #tpu.memory_space<vmem>>, vector<1x16x16x64xf32>
    %208 = vector.shape_cast %207 : vector<1x16x16x64xf32> to vector<256x64xf32>
    %c3_309 = arith.constant 3 : index
    %c0_310 = arith.constant 0 : index
    %c0_311 = arith.constant 0 : index
    %c0_312 = arith.constant 0 : index
    %209 = vector.load %arg4[%c3_309, %c0_310, %c0_311, %c0_312] : memref<4x9x64x64xf32, #tpu.memory_space<vmem>>, vector<1x1x64x64xf32>
    %210 = vector.shape_cast %209 : vector<1x1x64x64xf32> to vector<64x64xf32>
    %cst_313 = arith.constant dense<0.000000e+00> : vector<256x64xf32>
    %211 = tpu.matmul %208, %210, %cst_313 {dimension_numbers = #tpu.dot_dimension_numbers<[1], [0], [0], [1], [0, 0, 1, 1], [], []>} : vector<256x64xf32>, vector<64x64xf32>, vector<256x64xf32> -> vector<256x64xf32>
    %c0_314 = arith.constant 0 : index
    %c0_315 = arith.constant 0 : index
    %c8_316 = arith.constant 8 : index
    %c0_317 = arith.constant 0 : index
    %212 = vector.load %arg11[%c0_314, %c0_315, %c8_316, %c0_317] : memref<1x18x32x64xf32, #tpu.memory_space<vmem>>, vector<1x16x16x64xf32>
    %213 = vector.shape_cast %212 : vector<1x16x16x64xf32> to vector<256x64xf32>
    %c3_318 = arith.constant 3 : index
    %c1_319 = arith.constant 1 : index
    %c0_320 = arith.constant 0 : index
    %c0_321 = arith.constant 0 : index
    %214 = vector.load %arg4[%c3_318, %c1_319, %c0_320, %c0_321] : memref<4x9x64x64xf32, #tpu.memory_space<vmem>>, vector<1x1x64x64xf32>
    %215 = vector.shape_cast %214 : vector<1x1x64x64xf32> to vector<64x64xf32>
    %cst_322 = arith.constant dense<0.000000e+00> : vector<256x64xf32>
    %216 = tpu.matmul %213, %215, %cst_322 {dimension_numbers = #tpu.dot_dimension_numbers<[1], [0], [0], [1], [0, 0, 1, 1], [], []>} : vector<256x64xf32>, vector<64x64xf32>, vector<256x64xf32> -> vector<256x64xf32>
    %217 = arith.addf %211, %216 : vector<256x64xf32>
    %c0_323 = arith.constant 0 : index
    %c0_324 = arith.constant 0 : index
    %c9_325 = arith.constant 9 : index
    %c0_326 = arith.constant 0 : index
    %218 = vector.load %arg11[%c0_323, %c0_324, %c9_325, %c0_326] : memref<1x18x32x64xf32, #tpu.memory_space<vmem>>, vector<1x16x16x64xf32>
    %219 = vector.shape_cast %218 : vector<1x16x16x64xf32> to vector<256x64xf32>
    %c3_327 = arith.constant 3 : index
    %c2_328 = arith.constant 2 : index
    %c0_329 = arith.constant 0 : index
    %c0_330 = arith.constant 0 : index
    %220 = vector.load %arg4[%c3_327, %c2_328, %c0_329, %c0_330] : memref<4x9x64x64xf32, #tpu.memory_space<vmem>>, vector<1x1x64x64xf32>
    %221 = vector.shape_cast %220 : vector<1x1x64x64xf32> to vector<64x64xf32>
    %cst_331 = arith.constant dense<0.000000e+00> : vector<256x64xf32>
    %222 = tpu.matmul %219, %221, %cst_331 {dimension_numbers = #tpu.dot_dimension_numbers<[1], [0], [0], [1], [0, 0, 1, 1], [], []>} : vector<256x64xf32>, vector<64x64xf32>, vector<256x64xf32> -> vector<256x64xf32>
    %223 = arith.addf %217, %222 : vector<256x64xf32>
    %c0_332 = arith.constant 0 : index
    %c1_333 = arith.constant 1 : index
    %c7_334 = arith.constant 7 : index
    %c0_335 = arith.constant 0 : index
    %224 = vector.load %arg11[%c0_332, %c1_333, %c7_334, %c0_335] : memref<1x18x32x64xf32, #tpu.memory_space<vmem>>, vector<1x16x16x64xf32>
    %225 = vector.shape_cast %224 : vector<1x16x16x64xf32> to vector<256x64xf32>
    %c3_336 = arith.constant 3 : index
    %c3_337 = arith.constant 3 : index
    %c0_338 = arith.constant 0 : index
    %c0_339 = arith.constant 0 : index
    %226 = vector.load %arg4[%c3_336, %c3_337, %c0_338, %c0_339] : memref<4x9x64x64xf32, #tpu.memory_space<vmem>>, vector<1x1x64x64xf32>
    %227 = vector.shape_cast %226 : vector<1x1x64x64xf32> to vector<64x64xf32>
    %cst_340 = arith.constant dense<0.000000e+00> : vector<256x64xf32>
    %228 = tpu.matmul %225, %227, %cst_340 {dimension_numbers = #tpu.dot_dimension_numbers<[1], [0], [0], [1], [0, 0, 1, 1], [], []>} : vector<256x64xf32>, vector<64x64xf32>, vector<256x64xf32> -> vector<256x64xf32>
    %229 = arith.addf %223, %228 : vector<256x64xf32>
    %c0_341 = arith.constant 0 : index
    %c1_342 = arith.constant 1 : index
    %c8_343 = arith.constant 8 : index
    %c0_344 = arith.constant 0 : index
    %230 = vector.load %arg11[%c0_341, %c1_342, %c8_343, %c0_344] : memref<1x18x32x64xf32, #tpu.memory_space<vmem>>, vector<1x16x16x64xf32>
    %231 = vector.shape_cast %230 : vector<1x16x16x64xf32> to vector<256x64xf32>
    %c3_345 = arith.constant 3 : index
    %c4_346 = arith.constant 4 : index
    %c0_347 = arith.constant 0 : index
    %c0_348 = arith.constant 0 : index
    %232 = vector.load %arg4[%c3_345, %c4_346, %c0_347, %c0_348] : memref<4x9x64x64xf32, #tpu.memory_space<vmem>>, vector<1x1x64x64xf32>
    %233 = vector.shape_cast %232 : vector<1x1x64x64xf32> to vector<64x64xf32>
    %cst_349 = arith.constant dense<0.000000e+00> : vector<256x64xf32>
    %234 = tpu.matmul %231, %233, %cst_349 {dimension_numbers = #tpu.dot_dimension_numbers<[1], [0], [0], [1], [0, 0, 1, 1], [], []>} : vector<256x64xf32>, vector<64x64xf32>, vector<256x64xf32> -> vector<256x64xf32>
    %235 = arith.addf %229, %234 : vector<256x64xf32>
    %c0_350 = arith.constant 0 : index
    %c1_351 = arith.constant 1 : index
    %c9_352 = arith.constant 9 : index
    %c0_353 = arith.constant 0 : index
    %236 = vector.load %arg11[%c0_350, %c1_351, %c9_352, %c0_353] : memref<1x18x32x64xf32, #tpu.memory_space<vmem>>, vector<1x16x16x64xf32>
    %237 = vector.shape_cast %236 : vector<1x16x16x64xf32> to vector<256x64xf32>
    %c3_354 = arith.constant 3 : index
    %c5_355 = arith.constant 5 : index
    %c0_356 = arith.constant 0 : index
    %c0_357 = arith.constant 0 : index
    %238 = vector.load %arg4[%c3_354, %c5_355, %c0_356, %c0_357] : memref<4x9x64x64xf32, #tpu.memory_space<vmem>>, vector<1x1x64x64xf32>
    %239 = vector.shape_cast %238 : vector<1x1x64x64xf32> to vector<64x64xf32>
    %cst_358 = arith.constant dense<0.000000e+00> : vector<256x64xf32>
    %240 = tpu.matmul %237, %239, %cst_358 {dimension_numbers = #tpu.dot_dimension_numbers<[1], [0], [0], [1], [0, 0, 1, 1], [], []>} : vector<256x64xf32>, vector<64x64xf32>, vector<256x64xf32> -> vector<256x64xf32>
    %241 = arith.addf %235, %240 : vector<256x64xf32>
    %c0_359 = arith.constant 0 : index
    %c2_360 = arith.constant 2 : index
    %c7_361 = arith.constant 7 : index
    %c0_362 = arith.constant 0 : index
    %242 = vector.load %arg11[%c0_359, %c2_360, %c7_361, %c0_362] : memref<1x18x32x64xf32, #tpu.memory_space<vmem>>, vector<1x16x16x64xf32>
    %243 = vector.shape_cast %242 : vector<1x16x16x64xf32> to vector<256x64xf32>
    %c3_363 = arith.constant 3 : index
    %c6_364 = arith.constant 6 : index
    %c0_365 = arith.constant 0 : index
    %c0_366 = arith.constant 0 : index
    %244 = vector.load %arg4[%c3_363, %c6_364, %c0_365, %c0_366] : memref<4x9x64x64xf32, #tpu.memory_space<vmem>>, vector<1x1x64x64xf32>
    %245 = vector.shape_cast %244 : vector<1x1x64x64xf32> to vector<64x64xf32>
    %cst_367 = arith.constant dense<0.000000e+00> : vector<256x64xf32>
    %246 = tpu.matmul %243, %245, %cst_367 {dimension_numbers = #tpu.dot_dimension_numbers<[1], [0], [0], [1], [0, 0, 1, 1], [], []>} : vector<256x64xf32>, vector<64x64xf32>, vector<256x64xf32> -> vector<256x64xf32>
    %247 = arith.addf %241, %246 : vector<256x64xf32>
    %c0_368 = arith.constant 0 : index
    %c2_369 = arith.constant 2 : index
    %c8_370 = arith.constant 8 : index
    %c0_371 = arith.constant 0 : index
    %248 = vector.load %arg11[%c0_368, %c2_369, %c8_370, %c0_371] : memref<1x18x32x64xf32, #tpu.memory_space<vmem>>, vector<1x16x16x64xf32>
    %249 = vector.shape_cast %248 : vector<1x16x16x64xf32> to vector<256x64xf32>
    %c3_372 = arith.constant 3 : index
    %c7_373 = arith.constant 7 : index
    %c0_374 = arith.constant 0 : index
    %c0_375 = arith.constant 0 : index
    %250 = vector.load %arg4[%c3_372, %c7_373, %c0_374, %c0_375] : memref<4x9x64x64xf32, #tpu.memory_space<vmem>>, vector<1x1x64x64xf32>
    %251 = vector.shape_cast %250 : vector<1x1x64x64xf32> to vector<64x64xf32>
    %cst_376 = arith.constant dense<0.000000e+00> : vector<256x64xf32>
    %252 = tpu.matmul %249, %251, %cst_376 {dimension_numbers = #tpu.dot_dimension_numbers<[1], [0], [0], [1], [0, 0, 1, 1], [], []>} : vector<256x64xf32>, vector<64x64xf32>, vector<256x64xf32> -> vector<256x64xf32>
    %253 = arith.addf %247, %252 : vector<256x64xf32>
    %c0_377 = arith.constant 0 : index
    %c2_378 = arith.constant 2 : index
    %c9_379 = arith.constant 9 : index
    %c0_380 = arith.constant 0 : index
    %254 = vector.load %arg11[%c0_377, %c2_378, %c9_379, %c0_380] : memref<1x18x32x64xf32, #tpu.memory_space<vmem>>, vector<1x16x16x64xf32>
    %255 = vector.shape_cast %254 : vector<1x16x16x64xf32> to vector<256x64xf32>
    %c3_381 = arith.constant 3 : index
    %c8_382 = arith.constant 8 : index
    %c0_383 = arith.constant 0 : index
    %c0_384 = arith.constant 0 : index
    %256 = vector.load %arg4[%c3_381, %c8_382, %c0_383, %c0_384] : memref<4x9x64x64xf32, #tpu.memory_space<vmem>>, vector<1x1x64x64xf32>
    %257 = vector.shape_cast %256 : vector<1x1x64x64xf32> to vector<64x64xf32>
    %cst_385 = arith.constant dense<0.000000e+00> : vector<256x64xf32>
    %258 = tpu.matmul %255, %257, %cst_385 {dimension_numbers = #tpu.dot_dimension_numbers<[1], [0], [0], [1], [0, 0, 1, 1], [], []>} : vector<256x64xf32>, vector<64x64xf32>, vector<256x64xf32> -> vector<256x64xf32>
    %259 = arith.addf %253, %258 : vector<256x64xf32>
    %c3_386 = arith.constant 3 : index
    %c0_387 = arith.constant 0 : index
    %c0_388 = arith.constant 0 : index
    %260 = vector.load %arg5[%c3_386, %c0_387, %c0_388] : memref<4x1x64xf32, #tpu.memory_space<vmem>>, vector<1x1x64xf32>
    %261 = vector.shape_cast %260 : vector<1x1x64xf32> to vector<1x64xf32>
    %262 = vector.broadcast %261 : vector<1x64xf32> to vector<256x64xf32>
    %263 = arith.addf %259, %262 : vector<256x64xf32>
    %c0_389 = arith.constant 0 : index
    %c1_390 = arith.constant 1 : index
    %c8_391 = arith.constant 8 : index
    %c0_392 = arith.constant 0 : index
    %264 = vector.load %arg10[%c0_389, %c1_390, %c8_391, %c0_392] : memref<1x18x32x64xf32, #tpu.memory_space<vmem>>, vector<1x16x16x64xf32>
    %265 = vector.shape_cast %264 : vector<1x16x16x64xf32> to vector<256x64xf32>
    %266 = arith.addf %263, %265 : vector<256x64xf32>
    %cst_393 = arith.constant 0.000000e+00 : f32
    %267 = vector.broadcast %cst_393 : f32 to vector<256x64xf32>
    %268 = arith.maximumf %266, %267 : vector<256x64xf32>
    %cst_394 = arith.constant dense<0.000000e+00> : vector<64xf32>
    %269 = vector.multi_reduction <add>, %268, %cst_394 [0] : vector<256x64xf32> to vector<64xf32>
    %270 = vector.shape_cast %269 : vector<64xf32> to vector<1x64xf32>
    %cst_395 = arith.constant 2.560000e+02 : f32
    %271 = vector.broadcast %cst_395 : f32 to vector<1x64xf32>
    %272 = arith.divf %270, %271 : vector<1x64xf32>
    %c0_396 = arith.constant 0 : index
    %c0_397 = arith.constant 0 : index
    %273 = vector.load %arg6[%c0_396, %c0_397] : memref<64x32xf32, #tpu.memory_space<vmem>>, vector<64x32xf32>
    %cst_398 = arith.constant dense<0.000000e+00> : vector<1x32xf32>
    %274 = tpu.matmul %272, %273, %cst_398 {dimension_numbers = #tpu.dot_dimension_numbers<[1], [0], [0], [1], [0, 0, 1, 1], [], []>} : vector<1x64xf32>, vector<64x32xf32>, vector<1x32xf32> -> vector<1x32xf32>
    %c0_399 = arith.constant 0 : index
    %c0_400 = arith.constant 0 : index
    %c0_401 = arith.constant 0 : index
    %275 = vector.load %arg9[%c0_399, %c0_400, %c0_401] : memref<1x1x32xf32, #tpu.memory_space<vmem>>, vector<1x1x32xf32>
    %276 = vector.shape_cast %275 : vector<1x1x32xf32> to vector<1x32xf32>
    %277 = vector.shape_cast %274 : vector<1x32xf32> to vector<1x1x32xf32>
    tpu.vector_store %arg9[%c0_399, %c0_400, %c0_401], %277 {strides = array<i32>} : memref<1x1x32xf32, #tpu.memory_space<vmem>>, vector<1x1x32xf32>,
    %c0_402 = arith.constant 0 : index
    %c0_403 = arith.constant 0 : index
    %278 = vector.load %arg7[%c0_402, %c0_403] : memref<64x64xf32, #tpu.memory_space<vmem>>, vector<64x64xf32>
    %cst_404 = arith.constant dense<0.000000e+00> : vector<64x256xf32>
    %279 = tpu.matmul %278, %268, %cst_404 {dimension_numbers = #tpu.dot_dimension_numbers<[1], [1], [0], [0], [0, 0, 1, 0], [], []>} : vector<64x64xf32>, vector<256x64xf32>, vector<64x256xf32> -> vector<64x256xf32>
    %c0_405 = arith.constant 0 : index
    %c0_406 = arith.constant 0 : index
    %c0_407 = arith.constant 0 : index
    %280 = vector.load %arg8[%c0_405, %c0_406, %c0_407] : memref<1x64x256xf32, #tpu.memory_space<vmem>>, vector<1x64x256xf32>
    %281 = vector.shape_cast %280 : vector<1x64x256xf32> to vector<64x256xf32>
    %282 = vector.shape_cast %279 : vector<64x256xf32> to vector<1x64x256xf32>
    tpu.vector_store %arg8[%c0_405, %c0_406, %c0_407], %282 {strides = array<i32>} : memref<1x64x256xf32, #tpu.memory_space<vmem>>, vector<1x64x256xf32>,
    return
  }
  func.func @transform_0(%arg0: i32) -> (i32, i32, i32) {
    %c0_i32 = arith.constant 0 : i32
    %c0_i32_0 = arith.constant 0 : i32
    %c0_i32_1 = arith.constant 0 : i32
    return %arg0, %c0_i32, %c0_i32_0 : i32, i32, i32
  }
  func.func @transform_1(%arg0: i32) -> (i32, i32) {
    %c0_i32 = arith.constant 0 : i32
    %c0_i32_0 = arith.constant 0 : i32
    %c0_i32_1 = arith.constant 0 : i32
    return %c0_i32, %c0_i32_0 : i32, i32
  }
  func.func @transform_2(%arg0: i32) -> (i32, i32) {
    %c0_i32 = arith.constant 0 : i32
    %c0_i32_0 = arith.constant 0 : i32
    %c0_i32_1 = arith.constant 0 : i32
    return %c0_i32, %c0_i32_0 : i32, i32
  }
  func.func @transform_3(%arg0: i32) -> (i32, i32, i32, i32) {
    %c0_i32 = arith.constant 0 : i32
    %c0_i32_0 = arith.constant 0 : i32
    %c0_i32_1 = arith.constant 0 : i32
    %c0_i32_2 = arith.constant 0 : i32
    %c0_i32_3 = arith.constant 0 : i32
    return %c0_i32, %c0_i32_0, %c0_i32_1, %c0_i32_2 : i32, i32, i32, i32
  }
  func.func @transform_4(%arg0: i32) -> (i32, i32, i32) {
    %c0_i32 = arith.constant 0 : i32
    %c0_i32_0 = arith.constant 0 : i32
    %c0_i32_1 = arith.constant 0 : i32
    %c0_i32_2 = arith.constant 0 : i32
    return %c0_i32, %c0_i32_0, %c0_i32_1 : i32, i32, i32
  }
  func.func @transform_5(%arg0: i32) -> (i32, i32) {
    %c0_i32 = arith.constant 0 : i32
    %c0_i32_0 = arith.constant 0 : i32
    %c0_i32_1 = arith.constant 0 : i32
    return %c0_i32, %c0_i32_0 : i32, i32
  }
  func.func @transform_6(%arg0: i32) -> (i32, i32) {
    %c0_i32 = arith.constant 0 : i32
    %c0_i32_0 = arith.constant 0 : i32
    %c0_i32_1 = arith.constant 0 : i32
    return %c0_i32, %c0_i32_0 : i32, i32
  }
  func.func @transform_7(%arg0: i32) -> (i32, i32, i32) {
    %c0_i32 = arith.constant 0 : i32
    %c0_i32_0 = arith.constant 0 : i32
    %c0_i32_1 = arith.constant 0 : i32
    return %arg0, %c0_i32, %c0_i32_0 : i32, i32, i32
  }
  func.func @transform_8(%arg0: i32) -> (i32, i32, i32) {
    %c0_i32 = arith.constant 0 : i32
    %c0_i32_0 = arith.constant 0 : i32
    %c0_i32_1 = arith.constant 0 : i32
    return %arg0, %c0_i32, %c0_i32_0 : i32, i32, i32
  }
}

</mosaic_0001>

<llo_original>
// kernel: resnet_null_forward.1
$region0: #{resnet_null_forward.1}
  #allocation0 [shape = 'u32[]', space=smem, size = 0x4, offset = 0x4, fixed_abs, tag = 'smem constant byte address 0x4 - core index']
  #allocation1 [shape = 'u32[72,128]{1,0:T(1,128)}', space=vmem, size = 0x9000, scoped, tag = 'internal scratch']
  #allocation2 [shape = 'f32[1,18,32,64]{3,2,1,0:T(8,128)}', space=vmem, size = 0x48000, scoped, tag = 'scratch operand']
  #allocation3 [shape = 'f32[1,18,32,64]{3,2,1,0:T(8,128)}', space=vmem, size = 0x48000, scoped, tag = 'scratch operand']
  %s0 = inlined_call_operand.vmem [shape: f32[2,256,32], index: 0, kind: input, shape index: {}]
  %s1 = inlined_call_operand.vmem [shape: f32[32,64], index: 1, kind: input, shape index: {}]
  %s2 = inlined_call_operand.vmem [shape: f32[1,64], index: 2, kind: input, shape index: {}]
  %s3 = inlined_call_operand.vmem [shape: f32[4,9,64,64], index: 3, kind: input, shape index: {}]
  %s4 = inlined_call_operand.vmem [shape: f32[4,1,64], index: 4, kind: input, shape index: {}]
  %s5 = inlined_call_operand.vmem [shape: f32[64,32], index: 5, kind: input, shape index: {}]
  %s6 = inlined_call_operand.vmem [shape: f32[64,64], index: 6, kind: input, shape index: {}]
  %s7 = inlined_call_operand.vmem [shape: f32[2,64,256], index: 7, kind: output, shape index: {0}]
  %s8 = inlined_call_operand.hbm [shape: f32[2,1,32], index: 8, kind: output, shape index: {1}]
  %9 = xla_tuple %s7, %s8
  %s10 = sld [smem:[#allocation0]]
  $region69: #{resnet_null_forward.1} parent=0
    _
  %s12 = ssub.s32 1, %s10
  %s13 = scalar_select 0, %s12, %s10
  $region1: #{resnet_null_forward.1} parent=0
    #allocation4 [shape = 'u8[1024]{0}', space=vmem, size = 0x400, scoped, tag = 'output window, operand 1']
    #allocation5 [shape = 's32[2]{0}', space=sflag, size = 0x8, scoped, tag = 'scoped memory for resnet_null_forward.1']
    %14 = vsyncpa [#allocation5], 0
    %s15 = scalar_lea.sflag [#allocation5], 1
    %16 = vsyncpa %s15, 0
    loop: start=0, step=1, limit=4
    $region2: #{resnet_null_forward.1} parent=1 // loop_pre_header
      _
    $region3: #{resnet_null_forward.1} parent=1 // loop_header
      %s18 = sphi 0, %s22
      %p19 = scmp.ge.s32.totalorder %s18, 4
      %s28 = sphi 0, %s30
      %s31 = sphi 0, %s28
      %s32 = sphi 0, %s31
      %s48 = sphi 0, %s32
      %s52 = sphi 0, %s52
      %s54 = sphi 0, %s52
      %s55 = sphi 0, %s54
      %s69 = sphi 0, %s55
      %s73 = sphi 0, %s73
      %s75 = sphi 0, %s73
      %s76 = sphi 0, %s75
      %s90 = sphi 0, %s76
      %s94 = sphi 0, %s94
      %s96 = sphi 0, %s94
      %s97 = sphi 0, %s96
      %s111 = sphi 0, %s97
      %s115 = sphi 0, %s115
      %s117 = sphi 0, %s115
      %s118 = sphi 0, %s117
      %s132 = sphi 0, %s118
      %s136 = sphi 0, %s136
      %s138 = sphi 0, %s136
      %s139 = sphi 0, %s138
      %s153 = sphi 0, %s139
      %s157 = sphi 0, %s157
      %s159 = sphi 0, %s157
      %s160 = sphi 0, %s159
      %s174 = sphi 0, %s160
      %s180 = sphi 0, %s182
      %s183 = sphi 0, %s180
      %s184 = sphi 0, %s183
      %s200 = sphi 0, %s184
      %s206 = sphi 0, %s208
      %s209 = sphi 0, %s206
      %s210 = sphi 0, %s209
      %s226 = sphi 0, %s210
    $region4: #{resnet_null_forward.1} parent=1 // loop_header_branch
      %21 = sbr.rel (%p19) target = $region8
    $region5: #{resnet_null_forward.1} parent=1 // loop_body
      %s23 = ssub.s32 %s18, 1
      %s24 = ssub.s32 %s18, 2
      %s25 = sadd.s32 %s18, 1
      %s26 = ssub.s32 %s18, %s25
      %p27 = scmp.eq.s32.totalorder %s26, 0
      %s29 = sadd.s32 %s28, 1
      %s30 = scalar_select %p27, %s28, %s29
      %p33 = pneg %p27
      %p34 = scmp.eq.s32.totalorder %s18, 1
      %p35 = por %p33, %p34
      %p36 = scmp.ne.s32.totalorder %s28, %s31
      %p37 = scmp.eq.s32.totalorder %s18, 0
      %p38 = por %p36, %p37
      %p39 = scmp.ne.s32.totalorder %s28, %s31
      %p40 = scmp.eq.s32.totalorder %s23, 1
      %p41 = por %p39, %p40
      %p42 = scmp.ne.s32.totalorder %s31, %s32
      %p43 = scmp.eq.s32.totalorder %s23, 0
      %p44 = por %p42, %p43
      %p45 = scmp.ne.s32.totalorder %s31, %s32
      %p46 = scmp.eq.s32.totalorder %s24, 1
      %p47 = por %p45, %p46
      %p49 = scmp.ne.s32.totalorder %s32, %s48
      %p50 = scmp.eq.s32.totalorder %s24, 0
      %p51 = por %p49, %p50
      %s53 = sadd.s32 %s52, 1
      %p56 = scmp.eq.s32.totalorder %s18, 1
      %p57 = scmp.ne.s32.totalorder %s52, %s54
      %p58 = scmp.eq.s32.totalorder %s18, 0
      %p59 = por %p57, %p58
      %p60 = scmp.ne.s32.totalorder %s52, %s54
      %p61 = scmp.eq.s32.totalorder %s23, 1
      %p62 = por %p60, %p61
      %p63 = scmp.ne.s32.totalorder %s54, %s55
      %p64 = scmp.eq.s32.totalorder %s23, 0
      %p65 = por %p63, %p64
      %p66 = scmp.ne.s32.totalorder %s54, %s55
      %p67 = scmp.eq.s32.totalorder %s24, 1
      %p68 = por %p66, %p67
      %p70 = scmp.ne.s32.totalorder %s55, %s69
      %p71 = scmp.eq.s32.totalorder %s24, 0
      %p72 = por %p70, %p71
      %s74 = sadd.s32 %s73, 1
      %p77 = scmp.eq.s32.totalorder %s18, 1
      %p78 = scmp.ne.s32.totalorder %s73, %s75
      %p79 = scmp.eq.s32.totalorder %s18, 0
      %p80 = por %p78, %p79
      %p81 = scmp.ne.s32.totalorder %s73, %s75
      %p82 = scmp.eq.s32.totalorder %s23, 1
      %p83 = por %p81, %p82
      %p84 = scmp.ne.s32.totalorder %s75, %s76
      %p85 = scmp.eq.s32.totalorder %s23, 0
      %p86 = por %p84, %p85
      %p87 = scmp.ne.s32.totalorder %s75, %s76
      %p88 = scmp.eq.s32.totalorder %s24, 1
      %p89 = por %p87, %p88
      %p91 = scmp.ne.s32.totalorder %s76, %s90
      %p92 = scmp.eq.s32.totalorder %s24, 0
      %p93 = por %p91, %p92
      %s95 = sadd.s32 %s94, 1
      %p98 = scmp.eq.s32.totalorder %s18, 1
      %p99 = scmp.ne.s32.totalorder %s94, %s96
      %p100 = scmp.eq.s32.totalorder %s18, 0
      %p101 = por %p99, %p100
      %p102 = scmp.ne.s32.totalorder %s94, %s96
      %p103 = scmp.eq.s32.totalorder %s23, 1
      %p104 = por %p102, %p103
      %p105 = scmp.ne.s32.totalorder %s96, %s97
      %p106 = scmp.eq.s32.totalorder %s23, 0
      %p107 = por %p105, %p106
      %p108 = scmp.ne.s32.totalorder %s96, %s97
      %p109 = scmp.eq.s32.totalorder %s24, 1
      %p110 = por %p108, %p109
      %p112 = scmp.ne.s32.totalorder %s97, %s111
      %p113 = scmp.eq.s32.totalorder %s24, 0
      %p114 = por %p112, %p113
      %s116 = sadd.s32 %s115, 1
      %p119 = scmp.eq.s32.totalorder %s18, 1
      %p120 = scmp.ne.s32.totalorder %s115, %s117
      %p121 = scmp.eq.s32.totalorder %s18, 0
      %p122 = por %p120, %p121
      %p123 = scmp.ne.s32.totalorder %s115, %s117
      %p124 = scmp.eq.s32.totalorder %s23, 1
      %p125 = por %p123, %p124
      %p126 = scmp.ne.s32.totalorder %s117, %s118
      %p127 = scmp.eq.s32.totalorder %s23, 0
      %p128 = por %p126, %p127
      %p129 = scmp.ne.s32.totalorder %s117, %s118
      %p130 = scmp.eq.s32.totalorder %s24, 1
      %p131 = por %p129, %p130
      %p133 = scmp.ne.s32.totalorder %s118, %s132
      %p134 = scmp.eq.s32.totalorder %s24, 0
      %p135 = por %p133, %p134
      %s137 = sadd.s32 %s136, 1
      %p140 = scmp.eq.s32.totalorder %s18, 1
      %p141 = scmp.ne.s32.totalorder %s136, %s138
      %p142 = scmp.eq.s32.totalorder %s18, 0
      %p143 = por %p141, %p142
      %p144 = scmp.ne.s32.totalorder %s136, %s138
      %p145 = scmp.eq.s32.totalorder %s23, 1
      %p146 = por %p144, %p145
      %p147 = scmp.ne.s32.totalorder %s138, %s139
      %p148 = scmp.eq.s32.totalorder %s23, 0
      %p149 = por %p147, %p148
      %p150 = scmp.ne.s32.totalorder %s138, %s139
      %p151 = scmp.eq.s32.totalorder %s24, 1
      %p152 = por %p150, %p151
      %p154 = scmp.ne.s32.totalorder %s139, %s153
      %p155 = scmp.eq.s32.totalorder %s24, 0
      %p156 = por %p154, %p155
      %s158 = sadd.s32 %s157, 1
      %p161 = scmp.eq.s32.totalorder %s18, 1
      %p162 = scmp.ne.s32.totalorder %s157, %s159
      %p163 = scmp.eq.s32.totalorder %s18, 0
      %p164 = por %p162, %p163
      %p165 = scmp.ne.s32.totalorder %s157, %s159
      %p166 = scmp.eq.s32.totalorder %s23, 1
      %p167 = por %p165, %p166
      %p168 = scmp.ne.s32.totalorder %s159, %s160
      %p169 = scmp.eq.s32.totalorder %s23, 0
      %p170 = por %p168, %p169
      %p171 = scmp.ne.s32.totalorder %s159, %s160
      %p172 = scmp.eq.s32.totalorder %s24, 1
      %p173 = por %p171, %p172
      %p175 = scmp.ne.s32.totalorder %s160, %s174
      %p176 = scmp.eq.s32.totalorder %s24, 0
      %p177 = por %p175, %p176
      %s178 = ssub.s32 %s18, %s25
      %p179 = scmp.eq.s32.totalorder %s178, 0
      %s181 = sadd.s32 %s180, 1
      %s182 = scalar_select %p179, %s180, %s181
      %p185 = pneg %p179
      %p186 = scmp.eq.s32.totalorder %s18, 1
      %p187 = por %p185, %p186
      %p188 = scmp.ne.s32.totalorder %s180, %s183
      %p189 = scmp.eq.s32.totalorder %s18, 0
      %p190 = por %p188, %p189
      %p191 = scmp.ne.s32.totalorder %s180, %s183
      %p192 = scmp.eq.s32.totalorder %s23, 1
      %p193 = por %p191, %p192
      %p194 = scmp.ne.s32.totalorder %s183, %s184
      %p195 = scmp.eq.s32.totalorder %s23, 0
      %p196 = por %p194, %p195
      %p197 = scmp.ne.s32.totalorder %s183, %s184
      %p198 = scmp.eq.s32.totalorder %s24, 1
      %p199 = por %p197, %p198
      %p201 = scmp.ne.s32.totalorder %s184, %s200
      %p202 = scmp.eq.s32.totalorder %s24, 0
      %p203 = por %p201, %p202
      %s204 = ssub.s32 %s18, %s25
      %p205 = scmp.eq.s32.totalorder %s204, 0
      %s207 = sadd.s32 %s206, 1
      %s208 = scalar_select %p205, %s206, %s207
      %p211 = pneg %p205
      %p212 = scmp.eq.s32.totalorder %s18, 1
      %p213 = por %p211, %p212
      %p214 = scmp.ne.s32.totalorder %s206, %s209
      %p215 = scmp.eq.s32.totalorder %s18, 0
      %p216 = por %p214, %p215
      %p217 = scmp.ne.s32.totalorder %s206, %s209
      %p218 = scmp.eq.s32.totalorder %s23, 1
      %p219 = por %p217, %p218
      %p220 = scmp.ne.s32.totalorder %s209, %s210
      %p221 = scmp.eq.s32.totalorder %s23, 0
      %p222 = por %p220, %p221
      %p223 = scmp.ne.s32.totalorder %s209, %s210
      %p224 = scmp.eq.s32.totalorder %s24, 1
      %p225 = por %p223, %p224
      %p227 = scmp.ne.s32.totalorder %s210, %s226
      %p228 = scmp.eq.s32.totalorder %s24, 0
      %p229 = por %p227, %p228
      %p230 = scmp.le.s32.totalorder 1, %s18
      %p231 = scmp.lt.s32.totalorder %s18, 3
      %p232 = pnand %p230, %p231
      %p233 = pneg %p232
      // Predicated region
      $region9: #{resnet_null_forward.1} parent=5 // pred_check
        _
      $region10: #{resnet_null_forward.1} parent=5 // pred_check_branch
        %235 = sbr.rel (%p232) target = $region12
      $region11: #{resnet_null_forward.1} parent=5 // pred_region
        %s236 = ssub.s32 %s18, 1
        // Predicated region
        $region13: #{resnet_null_forward.1} parent=11 // pred_check
          %p237 = pneg %p65
        $region14: #{resnet_null_forward.1} parent=11 // pred_check_branch
          %239 = sbr.rel (%p237) target = $region16
        $region15: #{resnet_null_forward.1} parent=11 // pred_region
          _
        $region16: #{resnet_null_forward.1} parent=11 // pred_fallthru
          _
        // Predicated region
        $region17: #{resnet_null_forward.1} parent=11 // pred_check
          %p240 = pneg %p86
        $region18: #{resnet_null_forward.1} parent=11 // pred_check_branch
          %242 = sbr.rel (%p240) target = $region20
        $region19: #{resnet_null_forward.1} parent=11 // pred_region
          _
        $region20: #{resnet_null_forward.1} parent=11 // pred_fallthru
          _
        // Predicated region
        $region21: #{resnet_null_forward.1} parent=11 // pred_check
          %p243 = pneg %p107
        $region22: #{resnet_null_forward.1} parent=11 // pred_check_branch
          %245 = sbr.rel (%p243) target = $region24
        $region23: #{resnet_null_forward.1} parent=11 // pred_region
          _
        $region24: #{resnet_null_forward.1} parent=11 // pred_fallthru
          _
        // Predicated region
        $region25: #{resnet_null_forward.1} parent=11 // pred_check
          %p246 = pneg %p128
        $region26: #{resnet_null_forward.1} parent=11 // pred_check_branch
          %248 = sbr.rel (%p246) target = $region28
        $region27: #{resnet_null_forward.1} parent=11 // pred_region
          _
        $region28: #{resnet_null_forward.1} parent=11 // pred_fallthru
          _
        // Predicated region
        $region29: #{resnet_null_forward.1} parent=11 // pred_check
          %p249 = pneg %p149
        $region30: #{resnet_null_forward.1} parent=11 // pred_check_branch
          %251 = sbr.rel (%p249) target = $region32
        $region31: #{resnet_null_forward.1} parent=11 // pred_region
          _
        $region32: #{resnet_null_forward.1} parent=11 // pred_fallthru
          _
        // Predicated region
        $region33: #{resnet_null_forward.1} parent=11 // pred_check
          %p252 = pneg %p170
        $region34: #{resnet_null_forward.1} parent=11 // pred_check_branch
          %254 = sbr.rel (%p252) target = $region36
        $region35: #{resnet_null_forward.1} parent=11 // pred_region
          _
        $region36: #{resnet_null_forward.1} parent=11 // pred_fallthru
          _
      $region12: #{resnet_null_forward.1} parent=5 // pred_fallthru
        _
      %p255 = scmp.lt.s32.totalorder %s18, 2
      // Predicated region
      $region37: #{resnet_null_forward.1} parent=5 // pred_check
        %p256 = pneg %p255
      $region38: #{resnet_null_forward.1} parent=5 // pred_check_branch
        %258 = sbr.rel (%p256) target = $region40
      $region39: #{resnet_null_forward.1} parent=5 // pred_region
        // Predicated region
        $region41: #{resnet_null_forward.1} parent=39 // pred_check
          %p259 = pneg %p38
        $region42: #{resnet_null_forward.1} parent=39 // pred_check_branch
          %261 = sbr.rel (%p259) target = $region44
        $region43: #{resnet_null_forward.1} parent=39 // pred_region
          %p262 = scmp.lt.s32.totalorder %s18, 1
          %s263 = scalar_select %p262, %s18, 1
          %s264 = smul.addr %s263, 32
          %s265 = smul.addr %s264, 8
          %s266 = scalar_lea.vmem %s0, %s265
        $region44: #{resnet_null_forward.1} parent=39 // pred_fallthru
          _
      $region40: #{resnet_null_forward.1} parent=5 // pred_fallthru
        _
      %p267 = scmp.le.s32.totalorder 1, %s18
      %p268 = scmp.lt.s32.totalorder %s18, 3
      %p269 = pnand %p267, %p268
      %p270 = pneg %p269
      // Predicated region
      $region45: #{resnet_null_forward.1} parent=5 // pred_check
        _
      $region46: #{resnet_null_forward.1} parent=5 // pred_check_branch
        %272 = sbr.rel (%p269) target = $region48
      $region47: #{resnet_null_forward.1} parent=5 // pred_region
        %s273 = ssub.s32 %s18, 1
        %p274 = scmp.lt.s32.totalorder %s23, 1
        %s275 = scalar_select %p274, %s23, 1
        %s276 = smul.addr %s275, 32
        %s277 = smul.addr %s276, 8
        %s278 = scalar_lea.vmem %s0, %s277
        %p279 = pneg %p44
        %p280 = pneg %p41
        %p281 = pneg %p65
        %p282 = pneg %p62
        %p283 = pneg %p86
        %p284 = pneg %p83
        %p285 = pneg %p107
        %p286 = pneg %p104
        %p287 = pneg %p128
        %p288 = pneg %p125
        %p289 = pneg %p149
        %p290 = pneg %p146
        %p291 = pneg %p170
        %p292 = pneg %p167
        %p293 = pneg %p196
        %p294 = pneg %p193
        %p295 = scmp.lt.s32.totalorder %s23, 1
        %s296 = scalar_select %p295, %s23, 1
        %s297 = smul.addr %s296, 16
        %s298 = smul.addr %s297, 8
        %s299 = scalar_lea.vmem %s7, %s298
        %p300 = pneg %p222
        %p301 = pneg %p219
        %s302 = sand.u32 %s209, 1
        %s303 = scalar_lea.sflag [#allocation5], %s302
        %s304 = sand.u32 %s209, 1
        %s305 = scalar_lea.vmem [#allocation4], %s304
        %p306 = scmp.lt.s32.totalorder %s23, 1
        %s307 = scalar_select %p306, %s23, 1
        %s308 = smul.addr %s307, 32
        %s309 = smul.addr %s308, 8
        %s310 = scalar_lea.vmem %s0, %s309
        %p311 = scmp.lt.s32.totalorder %s23, 1
        %s312 = scalar_select %p311, %s23, 1
        %s313 = smul.addr %s312, 16
        %s314 = smul.addr %s313, 8
        %s315 = scalar_lea.vmem %s7, %s314
        %vm316 = vcmask 523264
        %317 = vst.msk [vmem:[#allocation2] sm:$0xff] %vm316, 0.0
        %318 = vst.msk [vmem:[#allocation2 + $0x8] sm:$0xff] %vm316, 0.0
        %319 = vst.msk [vmem:[#allocation2 + $0x10] sm:$0xff] %vm316, 0.0
        %320 = vst.msk [vmem:[#allocation2 + $0x18] sm:$0xff] %vm316, 0.0
        %s321 = scalar_lea.vmem [#allocation2], 544
        %322 = vst.msk [vmem:[%s321] sm:$0xff] %vm316, 0.0
        %323 = vst.msk [vmem:[%s321 + $0x8] sm:$0xff] %vm316, 0.0
        %324 = vst.msk [vmem:[%s321 + $0x10] sm:$0xff] %vm316, 0.0
        %325 = vst.msk [vmem:[%s321 + $0x18] sm:$0xff] %vm316, 0.0
        %s326 = scalar_lea.vmem [#allocation2], 32
        %vm327 = vcmask 516096
        %328 = vst.msk [vmem:[%s326 + $0x7] sm:$0x1] %vm327, 0.0
        %329 = vst.msk [vmem:[%s326 + $0x27] sm:$0x1] %vm327, 0.0
        %330 = vst.msk [vmem:[%s326 + $0x47] sm:$0x1] %vm327, 0.0
        %331 = vst.msk [vmem:[%s326 + $0x67] sm:$0x1] %vm327, 0.0
        %332 = vst.msk [vmem:[%s326 + $0x87] sm:$0x1] %vm327, 0.0
        %333 = vst.msk [vmem:[%s326 + $0xa7] sm:$0x1] %vm327, 0.0
        %334 = vst.msk [vmem:[%s326 + $0xc7] sm:$0x1] %vm327, 0.0
        %335 = vst.msk [vmem:[%s326 + $0xe7] sm:$0x1] %vm327, 0.0
        %336 = vst.msk [vmem:[%s326 + $0x107] sm:$0x1] %vm327, 0.0
        %337 = vst.msk [vmem:[%s326 + $0x127] sm:$0x1] %vm327, 0.0
        %338 = vst.msk [vmem:[%s326 + $0x147] sm:$0x1] %vm327, 0.0
        %339 = vst.msk [vmem:[%s326 + $0x167] sm:$0x1] %vm327, 0.0
        %340 = vst.msk [vmem:[%s326 + $0x187] sm:$0x1] %vm327, 0.0
        %341 = vst.msk [vmem:[%s326 + $0x1a7] sm:$0x1] %vm327, 0.0
        %342 = vst.msk [vmem:[%s326 + $0x1c7] sm:$0x1] %vm327, 0.0
        %343 = vst.msk [vmem:[%s326 + $0x1e7] sm:$0x1] %vm327, 0.0
        %344 = vst.msk [vmem:[%s326 + $0x18] sm:$0x1] %vm327, 0.0
        %345 = vst.msk [vmem:[%s326 + $0x38] sm:$0x1] %vm327, 0.0
        %346 = vst.msk [vmem:[%s326 + $0x58] sm:$0x1] %vm327, 0.0
        %347 = vst.msk [vmem:[%s326 + $0x78] sm:$0x1] %vm327, 0.0
        %348 = vst.msk [vmem:[%s326 + $0x98] sm:$0x1] %vm327, 0.0
        %349 = vst.msk [vmem:[%s326 + $0xb8] sm:$0x1] %vm327, 0.0
        %350 = vst.msk [vmem:[%s326 + $0xd8] sm:$0x1] %vm327, 0.0
        %351 = vst.msk [vmem:[%s326 + $0xf8] sm:$0x1] %vm327, 0.0
        %352 = vst.msk [vmem:[%s326 + $0x118] sm:$0x1] %vm327, 0.0
        %353 = vst.msk [vmem:[%s326 + $0x138] sm:$0x1] %vm327, 0.0
        %354 = vst.msk [vmem:[%s326 + $0x158] sm:$0x1] %vm327, 0.0
        %355 = vst.msk [vmem:[%s326 + $0x178] sm:$0x1] %vm327, 0.0
        %356 = vst.msk [vmem:[%s326 + $0x198] sm:$0x1] %vm327, 0.0
        %357 = vst.msk [vmem:[%s326 + $0x1b8] sm:$0x1] %vm327, 0.0
        %358 = vst.msk [vmem:[%s326 + $0x1d8] sm:$0x1] %vm327, 0.0
        %359 = vst.msk [vmem:[%s326 + $0x1f8] sm:$0x1] %vm327, 0.0
        %360 = vst.msk [vmem:[#allocation3] sm:$0xff] %vm316, 0.0
        %361 = vst.msk [vmem:[#allocation3 + $0x8] sm:$0xff] %vm316, 0.0
        %362 = vst.msk [vmem:[#allocation3 + $0x10] sm:$0xff] %vm316, 0.0
        %363 = vst.msk [vmem:[#allocation3 + $0x18] sm:$0xff] %vm316, 0.0
        %s364 = scalar_lea.vmem [#allocation3], 544
        %365 = vst.msk [vmem:[%s364] sm:$0xff] %vm316, 0.0
        %366 = vst.msk [vmem:[%s364 + $0x8] sm:$0xff] %vm316, 0.0
        %367 = vst.msk [vmem:[%s364 + $0x10] sm:$0xff] %vm316, 0.0
        %368 = vst.msk [vmem:[%s364 + $0x18] sm:$0xff] %vm316, 0.0
        %s369 = scalar_lea.vmem [#allocation3], 32
        %370 = vst.msk [vmem:[%s369 + $0x7] sm:$0x1] %vm327, 0.0
        %371 = vst.msk [vmem:[%s369 + $0x27] sm:$0x1] %vm327, 0.0
        %372 = vst.msk [vmem:[%s369 + $0x47] sm:$0x1] %vm327, 0.0
        %373 = vst.msk [vmem:[%s369 + $0x67] sm:$0x1] %vm327, 0.0
        %374 = vst.msk [vmem:[%s369 + $0x87] sm:$0x1] %vm327, 0.0
        %375 = vst.msk [vmem:[%s369 + $0xa7] sm:$0x1] %vm327, 0.0
        %376 = vst.msk [vmem:[%s369 + $0xc7] sm:$0x1] %vm327, 0.0
        %377 = vst.msk [vmem:[%s369 + $0xe7] sm:$0x1] %vm327, 0.0
        %378 = vst.msk [vmem:[%s369 + $0x107] sm:$0x1] %vm327, 0.0
        %379 = vst.msk [vmem:[%s369 + $0x127] sm:$0x1] %vm327, 0.0
        %380 = vst.msk [vmem:[%s369 + $0x147] sm:$0x1] %vm327, 0.0
        %381 = vst.msk [vmem:[%s369 + $0x167] sm:$0x1] %vm327, 0.0
        %382 = vst.msk [vmem:[%s369 + $0x187] sm:$0x1] %vm327, 0.0
        %383 = vst.msk [vmem:[%s369 + $0x1a7] sm:$0x1] %vm327, 0.0
        %384 = vst.msk [vmem:[%s369 + $0x1c7] sm:$0x1] %vm327, 0.0
        %385 = vst.msk [vmem:[%s369 + $0x1e7] sm:$0x1] %vm327, 0.0
        %386 = vst.msk [vmem:[%s369 + $0x18] sm:$0x1] %vm327, 0.0
        %387 = vst.msk [vmem:[%s369 + $0x38] sm:$0x1] %vm327, 0.0
        %388 = vst.msk [vmem:[%s369 + $0x58] sm:$0x1] %vm327, 0.0
        %389 = vst.msk [vmem:[%s369 + $0x78] sm:$0x1] %vm327, 0.0
        %390 = vst.msk [vmem:[%s369 + $0x98] sm:$0x1] %vm327, 0.0
        %391 = vst.msk [vmem:[%s369 + $0xb8] sm:$0x1] %vm327, 0.0
        %392 = vst.msk [vmem:[%s369 + $0xd8] sm:$0x1] %vm327, 0.0
        %393 = vst.msk [vmem:[%s369 + $0xf8] sm:$0x1] %vm327, 0.0
        %394 = vst.msk [vmem:[%s369 + $0x118] sm:$0x1] %vm327, 0.0
        %395 = vst.msk [vmem:[%s369 + $0x138] sm:$0x1] %vm327, 0.0
        %396 = vst.msk [vmem:[%s369 + $0x158] sm:$0x1] %vm327, 0.0
        %397 = vst.msk [vmem:[%s369 + $0x178] sm:$0x1] %vm327, 0.0
        %398 = vst.msk [vmem:[%s369 + $0x198] sm:$0x1] %vm327, 0.0
        %399 = vst.msk [vmem:[%s369 + $0x1b8] sm:$0x1] %vm327, 0.0
        %400 = vst.msk [vmem:[%s369 + $0x1d8] sm:$0x1] %vm327, 0.0
        %401 = vst.msk [vmem:[%s369 + $0x1f8] sm:$0x1] %vm327, 0.0
        %v402 = vld [vmem:[%s310] sm:$0xff]
        %v403 = vld [vmem:[%s310 + $0x8] sm:$0xff]
        %v404 = vld [vmem:[%s310 + $0x10] sm:$0xff]
        %v405 = vld [vmem:[%s310 + $0x18] sm:$0xff]
        %v406 = vld [vmem:[%s310 + $0x20] sm:$0xff]
        %v407 = vld [vmem:[%s310 + $0x28] sm:$0xff]
        %v408 = vld [vmem:[%s310 + $0x30] sm:$0xff]
        %v409 = vld [vmem:[%s310 + $0x38] sm:$0xff]
        %v410 = vld [vmem:[%s310 + $0x40] sm:$0xff]
        %v411 = vld [vmem:[%s310 + $0x48] sm:$0xff]
        %v412 = vld [vmem:[%s310 + $0x50] sm:$0xff]
        %v413 = vld [vmem:[%s310 + $0x58] sm:$0xff]
        %v414 = vld [vmem:[%s310 + $0x60] sm:$0xff]
        %v415 = vld [vmem:[%s310 + $0x68] sm:$0xff]
        %v416 = vld [vmem:[%s310 + $0x70] sm:$0xff]
        %v417 = vld [vmem:[%s310 + $0x78] sm:$0xff]
        %v418 = vld [vmem:[%s310 + $0x80] sm:$0xff]
        %v419 = vld [vmem:[%s310 + $0x88] sm:$0xff]
        %v420 = vld [vmem:[%s310 + $0x90] sm:$0xff]
        %v421 = vld [vmem:[%s310 + $0x98] sm:$0xff]
        %v422 = vld [vmem:[%s310 + $0xa0] sm:$0xff]
        %v423 = vld [vmem:[%s310 + $0xa8] sm:$0xff]
        %v424 = vld [vmem:[%s310 + $0xb0] sm:$0xff]
        %v425 = vld [vmem:[%s310 + $0xb8] sm:$0xff]
        %v426 = vld [vmem:[%s310 + $0xc0] sm:$0xff]
        %v427 = vld [vmem:[%s310 + $0xc8] sm:$0xff]
        %v428 = vld [vmem:[%s310 + $0xd0] sm:$0xff]
        %v429 = vld [vmem:[%s310 + $0xd8] sm:$0xff]
        %v430 = vld [vmem:[%s310 + $0xe0] sm:$0xff]
        %v431 = vld [vmem:[%s310 + $0xe8] sm:$0xff]
        %v432 = vld [vmem:[%s310 + $0xf0] sm:$0xff]
        %v433 = vld [vmem:[%s310 + $0xf8] sm:$0xff]
        %v434 = vld [vmem:[%s1] sm:$0xff]
        %v435 = vld [vmem:[%s1 + $0x8] sm:$0xff]
        %v436 = vld [vmem:[%s1 + $0x10] sm:$0xff]
        %v437 = vld [vmem:[%s1 + $0x18] sm:$0xff]
        %v438 = vld [vmem:[%s2] sm:$0x1]
        %v440 = vperm.slane %v438, 0
        %vm442 = vcmask 261120
        %v444 = vsel %vm442, %v402, 0
        %v447 = vsel %vm442, %v403, 0
        %v450 = vsel %vm442, %v404, 0
        %v453 = vsel %vm442, %v405, 0
        %v456 = vsel %vm442, %v406, 0
        %v459 = vsel %vm442, %v407, 0
        %v462 = vsel %vm442, %v408, 0
        %v465 = vsel %vm442, %v409, 0
        %v468 = vsel %vm442, %v410, 0
        %v471 = vsel %vm442, %v411, 0
        %v474 = vsel %vm442, %v412, 0
        %v477 = vsel %vm442, %v413, 0
        %v480 = vsel %vm442, %v414, 0
        %v483 = vsel %vm442, %v415, 0
        %v486 = vsel %vm442, %v416, 0
        %v489 = vsel %vm442, %v417, 0
        %v492 = vsel %vm442, %v418, 0
        %v495 = vsel %vm442, %v419, 0
        %v498 = vsel %vm442, %v420, 0
        %v501 = vsel %vm442, %v421, 0
        %v504 = vsel %vm442, %v422, 0
        %v507 = vsel %vm442, %v423, 0
        %v510 = vsel %vm442, %v424, 0
        %v513 = vsel %vm442, %v425, 0
        %v516 = vsel %vm442, %v426, 0
        %v519 = vsel %vm442, %v427, 0
        %v522 = vsel %vm442, %v428, 0
        %v525 = vsel %vm442, %v429, 0
        %v528 = vsel %vm442, %v430, 0
        %v531 = vsel %vm442, %v431, 0
        %v534 = vsel %vm442, %v432, 0
        %v537 = vsel %vm442, %v433, 0
        %539 = vmatpush.msra.mxu0 0.0
        %540 = vmatpush.msra.mxu0 0.0
        %541 = vmatpush.msra.mxu0 0.0
        %542 = vmatpush.msra.mxu0 0.0
        %543 = vmatpush.msra.mxu0 0.0
        %544 = vmatpush.msra.mxu0 0.0
        %545 = vmatpush.msra.mxu0 0.0
        %546 = vmatpush.msra.mxu0 0.0
        %547 = vmatpush.msra.mxu0 0.0
        %548 = vmatpush.msra.mxu0 0.0
        %549 = vmatpush.msra.mxu0 0.0
        %550 = vmatpush.msra.mxu0 0.0
        %551 = vmatpush.msra.mxu0 %v437
        %552 = vmatpush.msra.mxu0 %v436
        %553 = vmatpush.msra.mxu0 %v435
        %554 = vmatpush.msra.mxu0 %v434
        %555 = vmatmul.f32.gmra.mxu0 %v444
        %v556 = vpop.f32.mrf.mxu0
        %v557 = vadd.f32 %v440, %v556
        %558 = vmatmul.f32.gmra.mxu0 %v447
        %v559 = vpop.f32.mrf.mxu0
        %v560 = vadd.f32 %v440, %v559
        %561 = vmatmul.f32.gmra.mxu0 %v450
        %v562 = vpop.f32.mrf.mxu0
        %v563 = vadd.f32 %v440, %v562
        %564 = vmatmul.f32.gmra.mxu0 %v453
        %v565 = vpop.f32.mrf.mxu0
        %v566 = vadd.f32 %v440, %v565
        %567 = vmatmul.f32.gmra.mxu0 %v456
        %v568 = vpop.f32.mrf.mxu0
        %v569 = vadd.f32 %v440, %v568
        %570 = vmatmul.f32.gmra.mxu0 %v459
        %v571 = vpop.f32.mrf.mxu0
        %v572 = vadd.f32 %v440, %v571
        %573 = vmatmul.f32.gmra.mxu0 %v462
        %v574 = vpop.f32.mrf.mxu0
        %v575 = vadd.f32 %v440, %v574
        %576 = vmatmul.f32.gmra.mxu0 %v465
        %v577 = vpop.f32.mrf.mxu0
        %v578 = vadd.f32 %v440, %v577
        %579 = vmatmul.f32.gmra.mxu0 %v468
        %v580 = vpop.f32.mrf.mxu0
        %v581 = vadd.f32 %v440, %v580
        %582 = vmatmul.f32.gmra.mxu0 %v471
        %v583 = vpop.f32.mrf.mxu0
        %v584 = vadd.f32 %v440, %v583
        %585 = vmatmul.f32.gmra.mxu0 %v474
        %v586 = vpop.f32.mrf.mxu0
        %v587 = vadd.f32 %v440, %v586
        %588 = vmatmul.f32.gmra.mxu0 %v477
        %v589 = vpop.f32.mrf.mxu0
        %v590 = vadd.f32 %v440, %v589
        %591 = vmatmul.f32.gmra.mxu0 %v480
        %v592 = vpop.f32.mrf.mxu0
        %v593 = vadd.f32 %v440, %v592
        %594 = vmatmul.f32.gmra.mxu0 %v483
        %v595 = vpop.f32.mrf.mxu0
        %v596 = vadd.f32 %v440, %v595
        %597 = vmatmul.f32.gmra.mxu0 %v486
        %v598 = vpop.f32.mrf.mxu0
        %v599 = vadd.f32 %v440, %v598
        %600 = vmatmul.f32.gmra.mxu0 %v489
        %v601 = vpop.f32.mrf.mxu0
        %v602 = vadd.f32 %v440, %v601
        %603 = vmatmul.f32.gmra.mxu0 %v492
        %v604 = vpop.f32.mrf.mxu0
        %v605 = vadd.f32 %v440, %v604
        %606 = vmatmul.f32.gmra.mxu0 %v495
        %v607 = vpop.f32.mrf.mxu0
        %v608 = vadd.f32 %v440, %v607
        %609 = vmatmul.f32.gmra.mxu0 %v498
        %v610 = vpop.f32.mrf.mxu0
        %v611 = vadd.f32 %v440, %v610
        %612 = vmatmul.f32.gmra.mxu0 %v501
        %v613 = vpop.f32.mrf.mxu0
        %v614 = vadd.f32 %v440, %v613
        %615 = vmatmul.f32.gmra.mxu0 %v504
        %v616 = vpop.f32.mrf.mxu0
        %v617 = vadd.f32 %v440, %v616
        %618 = vmatmul.f32.gmra.mxu0 %v507
        %v619 = vpop.f32.mrf.mxu0
        %v620 = vadd.f32 %v440, %v619
        %621 = vmatmul.f32.gmra.mxu0 %v510
        %v622 = vpop.f32.mrf.mxu0
        %v623 = vadd.f32 %v440, %v622
        %624 = vmatmul.f32.gmra.mxu0 %v513
        %v625 = vpop.f32.mrf.mxu0
        %v626 = vadd.f32 %v440, %v625
        %627 = vmatmul.f32.gmra.mxu0 %v516
        %v628 = vpop.f32.mrf.mxu0
        %v629 = vadd.f32 %v440, %v628
        %630 = vmatmul.f32.gmra.mxu0 %v519
        %v631 = vpop.f32.mrf.mxu0
        %v632 = vadd.f32 %v440, %v631
        %633 = vmatmul.f32.gmra.mxu0 %v522
        %v634 = vpop.f32.mrf.mxu0
        %v635 = vadd.f32 %v440, %v634
        %636 = vmatmul.f32.gmra.mxu0 %v525
        %v637 = vpop.f32.mrf.mxu0
        %v638 = vadd.f32 %v440, %v637
        %639 = vmatmul.f32.gmra.mxu0 %v528
        %v640 = vpop.f32.mrf.mxu0
        %v641 = vadd.f32 %v440, %v640
        %642 = vmatmul.f32.gmra.mxu0 %v531
        %v643 = vpop.f32.mrf.mxu0
        %v644 = vadd.f32 %v440, %v643
        %645 = vmatmul.f32.gmra.mxu0 %v534
        %v646 = vpop.f32.mrf.mxu0
        %v647 = vadd.f32 %v440, %v646
        %648 = vmatmul.f32.gmra.mxu0 %v537
        %v649 = vpop.f32.mrf.mxu0
        %v650 = vadd.f32 %v440, %v649
        %651 = vdwg.mxu0
        %v652 = vmax.f32 %v557, 0.0
        %v653 = vmax.f32 %v560, 0.0
        %v654 = vmax.f32 %v563, 0.0
        %v655 = vmax.f32 %v566, 0.0
        %v656 = vmax.f32 %v569, 0.0
        %v657 = vmax.f32 %v572, 0.0
        %v658 = vmax.f32 %v575, 0.0
        %v659 = vmax.f32 %v578, 0.0
        %v660 = vmax.f32 %v581, 0.0
        %v661 = vmax.f32 %v584, 0.0
        %v662 = vmax.f32 %v587, 0.0
        %v663 = vmax.f32 %v590, 0.0
        %v664 = vmax.f32 %v593, 0.0
        %v665 = vmax.f32 %v596, 0.0
        %v666 = vmax.f32 %v599, 0.0
        %v667 = vmax.f32 %v602, 0.0
        %v668 = vmax.f32 %v605, 0.0
        %v669 = vmax.f32 %v608, 0.0
        %v670 = vmax.f32 %v611, 0.0
        %v671 = vmax.f32 %v614, 0.0
        %v672 = vmax.f32 %v617, 0.0
        %v673 = vmax.f32 %v620, 0.0
        %v674 = vmax.f32 %v623, 0.0
        %v675 = vmax.f32 %v626, 0.0
        %v676 = vmax.f32 %v629, 0.0
        %v677 = vmax.f32 %v632, 0.0
        %v678 = vmax.f32 %v635, 0.0
        %v679 = vmax.f32 %v638, 0.0
        %v680 = vmax.f32 %v641, 0.0
        %v681 = vmax.f32 %v644, 0.0
        %v682 = vmax.f32 %v647, 0.0
        %v683 = vmax.f32 %v650, 0.0
        %684 = vst.msk [vmem:[%s326 + $0x8] sm:$0xff] %vm316, %v652
        %685 = vst.msk [vmem:[%s326 + $0x10] sm:$0xff] %vm316, %v653
        %686 = vst.msk [vmem:[%s326 + $0x28] sm:$0xff] %vm316, %v654
        %687 = vst.msk [vmem:[%s326 + $0x30] sm:$0xff] %vm316, %v655
        %688 = vst.msk [vmem:[%s326 + $0x48] sm:$0xff] %vm316, %v656
        %689 = vst.msk [vmem:[%s326 + $0x50] sm:$0xff] %vm316, %v657
        %690 = vst.msk [vmem:[%s326 + $0x68] sm:$0xff] %vm316, %v658
        %691 = vst.msk [vmem:[%s326 + $0x70] sm:$0xff] %vm316, %v659
        %692 = vst.msk [vmem:[%s326 + $0x88] sm:$0xff] %vm316, %v660
        %693 = vst.msk [vmem:[%s326 + $0x90] sm:$0xff] %vm316, %v661
        %694 = vst.msk [vmem:[%s326 + $0xa8] sm:$0xff] %vm316, %v662
        %695 = vst.msk [vmem:[%s326 + $0xb0] sm:$0xff] %vm316, %v663
        %696 = vst.msk [vmem:[%s326 + $0xc8] sm:$0xff] %vm316, %v664
        %697 = vst.msk [vmem:[%s326 + $0xd0] sm:$0xff] %vm316, %v665
        %698 = vst.msk [vmem:[%s326 + $0xe8] sm:$0xff] %vm316, %v666
        %699 = vst.msk [vmem:[%s326 + $0xf0] sm:$0xff] %vm316, %v667
        %700 = vst.msk [vmem:[%s326 + $0x108] sm:$0xff] %vm316, %v668
        %701 = vst.msk [vmem:[%s326 + $0x110] sm:$0xff] %vm316, %v669
        %702 = vst.msk [vmem:[%s326 + $0x128] sm:$0xff] %vm316, %v670
        %703 = vst.msk [vmem:[%s326 + $0x130] sm:$0xff] %vm316, %v671
        %704 = vst.msk [vmem:[%s326 + $0x148] sm:$0xff] %vm316, %v672
        %705 = vst.msk [vmem:[%s326 + $0x150] sm:$0xff] %vm316, %v673
        %706 = vst.msk [vmem:[%s326 + $0x168] sm:$0xff] %vm316, %v674
        %707 = vst.msk [vmem:[%s326 + $0x170] sm:$0xff] %vm316, %v675
        %708 = vst.msk [vmem:[%s326 + $0x188] sm:$0xff] %vm316, %v676
        %709 = vst.msk [vmem:[%s326 + $0x190] sm:$0xff] %vm316, %v677
        %710 = vst.msk [vmem:[%s326 + $0x1a8] sm:$0xff] %vm316, %v678
        %711 = vst.msk [vmem:[%s326 + $0x1b0] sm:$0xff] %vm316, %v679
        %712 = vst.msk [vmem:[%s326 + $0x1c8] sm:$0xff] %vm316, %v680
        %713 = vst.msk [vmem:[%s326 + $0x1d0] sm:$0xff] %vm316, %v681
        %714 = vst.msk [vmem:[%s326 + $0x1e8] sm:$0xff] %vm316, %v682
        %715 = vst.msk [vmem:[%s326 + $0x1f0] sm:$0xff] %vm316, %v683
        %v716 = vld [vmem:[#allocation2 + $0x7] sm:$0xff]
        %v717 = vld [vmem:[#allocation2 + $0xf] sm:$0xff]
        %v718 = vld [vmem:[#allocation2 + $0x27] sm:$0xff]
        %v719 = vld [vmem:[#allocation2 + $0x2f] sm:$0xff]
        %v720 = vld [vmem:[#allocation2 + $0x47] sm:$0xff]
        %v721 = vld [vmem:[#allocation2 + $0x4f] sm:$0xff]
        %v722 = vld [vmem:[#allocation2 + $0x67] sm:$0xff]
        %v723 = vld [vmem:[#allocation2 + $0x6f] sm:$0xff]
        %v724 = vld [vmem:[#allocation2 + $0x87] sm:$0xff]
        %v725 = vld [vmem:[#allocation2 + $0x8f] sm:$0xff]
        %v726 = vld [vmem:[#allocation2 + $0xa7] sm:$0xff]
        %v727 = vld [vmem:[#allocation2 + $0xaf] sm:$0xff]
        %v728 = vld [vmem:[#allocation2 + $0xc7] sm:$0xff]
        %v729 = vld [vmem:[#allocation2 + $0xcf] sm:$0xff]
        %v730 = vld [vmem:[#allocation2 + $0xe7] sm:$0xff]
        %v731 = vld [vmem:[#allocation2 + $0xef] sm:$0xff]
        %v732 = vld [vmem:[#allocation2 + $0x107] sm:$0xff]
        %v733 = vld [vmem:[#allocation2 + $0x10f] sm:$0xff]
        %v734 = vld [vmem:[#allocation2 + $0x127] sm:$0xff]
        %v735 = vld [vmem:[#allocation2 + $0x12f] sm:$0xff]
        %v736 = vld [vmem:[#allocation2 + $0x147] sm:$0xff]
        %v737 = vld [vmem:[#allocation2 + $0x14f] sm:$0xff]
        %v738 = vld [vmem:[#allocation2 + $0x167] sm:$0xff]
        %v739 = vld [vmem:[#allocation2 + $0x16f] sm:$0xff]
        %v740 = vld [vmem:[#allocation2 + $0x187] sm:$0xff]
        %v741 = vld [vmem:[#allocation2 + $0x18f] sm:$0xff]
        %v742 = vld [vmem:[#allocation2 + $0x1a7] sm:$0xff]
        %v743 = vld [vmem:[#allocation2 + $0x1af] sm:$0xff]
        %v744 = vld [vmem:[#allocation2 + $0x1c7] sm:$0xff]
        %v745 = vld [vmem:[#allocation2 + $0x1cf] sm:$0xff]
        %v746 = vld [vmem:[#allocation2 + $0x1e7] sm:$0xff]
        %v747 = vld [vmem:[#allocation2 + $0x1ef] sm:$0xff]
        %v748 = vld [vmem:[%s3] sm:$0xff]
        %v749 = vld [vmem:[%s3 + $0x8] sm:$0xff]
        %v750 = vld [vmem:[%s3 + $0x10] sm:$0xff]
        %v751 = vld [vmem:[%s3 + $0x18] sm:$0xff]
        %v752 = vld [vmem:[%s3 + $0x20] sm:$0xff]
        %v753 = vld [vmem:[%s3 + $0x28] sm:$0xff]
        %v754 = vld [vmem:[%s3 + $0x30] sm:$0xff]
        %v755 = vld [vmem:[%s3 + $0x38] sm:$0xff]
        %v756 = vld [vmem:[#allocation2 + $0x8] sm:$0xff]
        %v757 = vld [vmem:[#allocation2 + $0x10] sm:$0xff]
        %v758 = vld [vmem:[#allocation2 + $0x28] sm:$0xff]
        %v759 = vld [vmem:[#allocation2 + $0x30] sm:$0xff]
        %v760 = vld [vmem:[#allocation2 + $0x48] sm:$0xff]
        %v761 = vld [vmem:[#allocation2 + $0x50] sm:$0xff]
        %v762 = vld [vmem:[#allocation2 + $0x68] sm:$0xff]
        %v763 = vld [vmem:[#allocation2 + $0x70] sm:$0xff]
        %v764 = vld [vmem:[#allocation2 + $0x88] sm:$0xff]
        %v765 = vld [vmem:[#allocation2 + $0x90] sm:$0xff]
        %v766 = vld [vmem:[#allocation2 + $0xa8] sm:$0xff]
        %v767 = vld [vmem:[#allocation2 + $0xb0] sm:$0xff]
        %v768 = vld [vmem:[#allocation2 + $0xc8] sm:$0xff]
        %v769 = vld [vmem:[#allocation2 + $0xd0] sm:$0xff]
        %v770 = vld [vmem:[#allocation2 + $0xe8] sm:$0xff]
        %v771 = vld [vmem:[#allocation2 + $0xf0] sm:$0xff]
        %v772 = vld [vmem:[#allocation2 + $0x108] sm:$0xff]
        %v773 = vld [vmem:[#allocation2 + $0x110] sm:$0xff]
        %v774 = vld [vmem:[#allocation2 + $0x128] sm:$0xff]
        %v775 = vld [vmem:[#allocation2 + $0x130] sm:$0xff]
        %v776 = vld [vmem:[#allocation2 + $0x148] sm:$0xff]
        %v777 = vld [vmem:[#allocation2 + $0x150] sm:$0xff]
        %v778 = vld [vmem:[#allocation2 + $0x168] sm:$0xff]
        %v779 = vld [vmem:[#allocation2 + $0x170] sm:$0xff]
        %v780 = vld [vmem:[#allocation2 + $0x188] sm:$0xff]
        %v781 = vld [vmem:[#allocation2 + $0x190] sm:$0xff]
        %v782 = vld [vmem:[#allocation2 + $0x1a8] sm:$0xff]
        %v783 = vld [vmem:[#allocation2 + $0x1b0] sm:$0xff]
        %v784 = vld [vmem:[#allocation2 + $0x1c8] sm:$0xff]
        %v785 = vld [vmem:[#allocation2 + $0x1d0] sm:$0xff]
        %v786 = vld [vmem:[#allocation2 + $0x1e8] sm:$0xff]
        %v787 = vld [vmem:[#allocation2 + $0x1f0] sm:$0xff]
        %s788 = scalar_lea.vmem %s3, 64
        %v789 = vld [vmem:[%s788] sm:$0xff]
        %v790 = vld [vmem:[%s788 + $0x8] sm:$0xff]
        %v791 = vld [vmem:[%s788 + $0x10] sm:$0xff]
        %v792 = vld [vmem:[%s788 + $0x18] sm:$0xff]
        %v793 = vld [vmem:[%s788 + $0x20] sm:$0xff]
        %v794 = vld [vmem:[%s788 + $0x28] sm:$0xff]
        %v795 = vld [vmem:[%s788 + $0x30] sm:$0xff]
        %v796 = vld [vmem:[%s788 + $0x38] sm:$0xff]
        %v798 = vsel %vm316, %v756, 0
        %v801 = vsel %vm316, %v757, 0
        %v804 = vsel %vm316, %v758, 0
        %v807 = vsel %vm316, %v759, 0
        %v810 = vsel %vm316, %v760, 0
        %v813 = vsel %vm316, %v761, 0
        %v816 = vsel %vm316, %v762, 0
        %v819 = vsel %vm316, %v763, 0
        %v822 = vsel %vm316, %v764, 0
        %v825 = vsel %vm316, %v765, 0
        %v828 = vsel %vm316, %v766, 0
        %v831 = vsel %vm316, %v767, 0
        %v834 = vsel %vm316, %v768, 0
        %v837 = vsel %vm316, %v769, 0
        %v840 = vsel %vm316, %v770, 0
        %v843 = vsel %vm316, %v771, 0
        %v846 = vsel %vm316, %v772, 0
        %v849 = vsel %vm316, %v773, 0
        %v852 = vsel %vm316, %v774, 0
        %v855 = vsel %vm316, %v775, 0
        %v858 = vsel %vm316, %v776, 0
        %v861 = vsel %vm316, %v777, 0
        %v864 = vsel %vm316, %v778, 0
        %v867 = vsel %vm316, %v779, 0
        %v870 = vsel %vm316, %v780, 0
        %v873 = vsel %vm316, %v781, 0
        %v876 = vsel %vm316, %v782, 0
        %v879 = vsel %vm316, %v783, 0
        %v882 = vsel %vm316, %v784, 0
        %v885 = vsel %vm316, %v785, 0
        %v888 = vsel %vm316, %v786, 0
        %v891 = vsel %vm316, %v787, 0
        %893 = vmatpush.msra.mxu0 0.0
        %894 = vmatpush.msra.mxu0 0.0
        %895 = vmatpush.msra.mxu0 0.0
        %896 = vmatpush.msra.mxu0 0.0
        %897 = vmatpush.msra.mxu0 0.0
        %898 = vmatpush.msra.mxu0 0.0
        %899 = vmatpush.msra.mxu0 0.0
        %900 = vmatpush.msra.mxu0 0.0
        %901 = vmatpush.msra.mxu0 %v796
        %902 = vmatpush.msra.mxu0 %v795
        %903 = vmatpush.msra.mxu0 %v794
        %904 = vmatpush.msra.mxu0 %v793
        %905 = vmatpush.msra.mxu0 %v792
        %906 = vmatpush.msra.mxu0 %v791
        %907 = vmatpush.msra.mxu0 %v790
        %908 = vmatpush.msra.mxu0 %v789
        %909 = vmatmul.f32.gmra.mxu0 %v798
        %v910 = vpop.f32.mrf.mxu0
        %v911 = vadd.f32 0.0, %v910
        %912 = vmatmul.f32.gmra.mxu0 %v801
        %v913 = vpop.f32.mrf.mxu0
        %v914 = vadd.f32 0.0, %v913
        %915 = vmatmul.f32.gmra.mxu0 %v804
        %v916 = vpop.f32.mrf.mxu0
        %v917 = vadd.f32 0.0, %v916
        %918 = vmatmul.f32.gmra.mxu0 %v807
        %v919 = vpop.f32.mrf.mxu0
        %v920 = vadd.f32 0.0, %v919
        %921 = vmatmul.f32.gmra.mxu0 %v810
        %v922 = vpop.f32.mrf.mxu0
        %v923 = vadd.f32 0.0, %v922
        %924 = vmatmul.f32.gmra.mxu0 %v813
        %v925 = vpop.f32.mrf.mxu0
        %v926 = vadd.f32 0.0, %v925
        %927 = vmatmul.f32.gmra.mxu0 %v816
        %v928 = vpop.f32.mrf.mxu0
        %v929 = vadd.f32 0.0, %v928
        %930 = vmatmul.f32.gmra.mxu0 %v819
        %v931 = vpop.f32.mrf.mxu0
        %v932 = vadd.f32 0.0, %v931
        %933 = vmatmul.f32.gmra.mxu0 %v822
        %v934 = vpop.f32.mrf.mxu0
        %v935 = vadd.f32 0.0, %v934
        %936 = vmatmul.f32.gmra.mxu0 %v825
        %v937 = vpop.f32.mrf.mxu0
        %v938 = vadd.f32 0.0, %v937
        %939 = vmatmul.f32.gmra.mxu0 %v828
        %v940 = vpop.f32.mrf.mxu0
        %v941 = vadd.f32 0.0, %v940
        %942 = vmatmul.f32.gmra.mxu0 %v831
        %v943 = vpop.f32.mrf.mxu0
        %v944 = vadd.f32 0.0, %v943
        %945 = vmatmul.f32.gmra.mxu0 %v834
        %v946 = vpop.f32.mrf.mxu0
        %v947 = vadd.f32 0.0, %v946
        %948 = vmatmul.f32.gmra.mxu0 %v837
        %v949 = vpop.f32.mrf.mxu0
        %v950 = vadd.f32 0.0, %v949
        %951 = vmatmul.f32.gmra.mxu0 %v840
        %v952 = vpop.f32.mrf.mxu0
        %v953 = vadd.f32 0.0, %v952
        %954 = vmatmul.f32.gmra.mxu0 %v843
        %v955 = vpop.f32.mrf.mxu0
        %v956 = vadd.f32 0.0, %v955
        %957 = vmatmul.f32.gmra.mxu0 %v846
        %v958 = vpop.f32.mrf.mxu0
        %v959 = vadd.f32 0.0, %v958
        %960 = vmatmul.f32.gmra.mxu0 %v849
        %v961 = vpop.f32.mrf.mxu0
        %v962 = vadd.f32 0.0, %v961
        %963 = vmatmul.f32.gmra.mxu0 %v852
        %v964 = vpop.f32.mrf.mxu0
        %v965 = vadd.f32 0.0, %v964
        %966 = vmatmul.f32.gmra.mxu0 %v855
        %v967 = vpop.f32.mrf.mxu0
        %v968 = vadd.f32 0.0, %v967
        %969 = vmatmul.f32.gmra.mxu0 %v858
        %v970 = vpop.f32.mrf.mxu0
        %v971 = vadd.f32 0.0, %v970
        %972 = vmatmul.f32.gmra.mxu0 %v861
        %v973 = vpop.f32.mrf.mxu0
        %v974 = vadd.f32 0.0, %v973
        %975 = vmatmul.f32.gmra.mxu0 %v864
        %v976 = vpop.f32.mrf.mxu0
        %v977 = vadd.f32 0.0, %v976
        %978 = vmatmul.f32.gmra.mxu0 %v867
        %v979 = vpop.f32.mrf.mxu0
        %v980 = vadd.f32 0.0, %v979
        %981 = vmatmul.f32.gmra.mxu0 %v870
        %v982 = vpop.f32.mrf.mxu0
        %v983 = vadd.f32 0.0, %v982
        %984 = vmatmul.f32.gmra.mxu0 %v873
        %v985 = vpop.f32.mrf.mxu0
        %v986 = vadd.f32 0.0, %v985
        %987 = vmatmul.f32.gmra.mxu0 %v876
        %v988 = vpop.f32.mrf.mxu0
        %v989 = vadd.f32 0.0, %v988
        %990 = vmatmul.f32.gmra.mxu0 %v879
        %v991 = vpop.f32.mrf.mxu0
        %v992 = vadd.f32 0.0, %v991
        %993 = vmatmul.f32.gmra.mxu0 %v882
        %v994 = vpop.f32.mrf.mxu0
        %v995 = vadd.f32 0.0, %v994
        %996 = vmatmul.f32.gmra.mxu0 %v885
        %v997 = vpop.f32.mrf.mxu0
        %v998 = vadd.f32 0.0, %v997
        %999 = vmatmul.f32.gmra.mxu0 %v888
        %v1000 = vpop.f32.mrf.mxu0
        %v1001 = vadd.f32 0.0, %v1000
        %1002 = vmatmul.f32.gmra.mxu0 %v891
        %v1003 = vpop.f32.mrf.mxu0
        %v1004 = vadd.f32 0.0, %v1003
        %1005 = vdwg.mxu0
        %v1007 = vsel %vm316, %v716, 0
        %v1010 = vsel %vm316, %v717, 0
        %v1013 = vsel %vm316, %v718, 0
        %v1016 = vsel %vm316, %v719, 0
        %v1019 = vsel %vm316, %v720, 0
        %v1022 = vsel %vm316, %v721, 0
        %v1025 = vsel %vm316, %v722, 0
        %v1028 = vsel %vm316, %v723, 0
        %v1031 = vsel %vm316, %v724, 0
        %v1034 = vsel %vm316, %v725, 0
        %v1037 = vsel %vm316, %v726, 0
        %v1040 = vsel %vm316, %v727, 0
        %v1043 = vsel %vm316, %v728, 0
        %v1046 = vsel %vm316, %v729, 0
        %v1049 = vsel %vm316, %v730, 0
        %v1052 = vsel %vm316, %v731, 0
        %v1055 = vsel %vm316, %v732, 0
        %v1058 = vsel %vm316, %v733, 0
        %v1061 = vsel %vm316, %v734, 0
        %v1064 = vsel %vm316, %v735, 0
        %v1067 = vsel %vm316, %v736, 0
        %v1070 = vsel %vm316, %v737, 0
        %v1073 = vsel %vm316, %v738, 0
        %v1076 = vsel %vm316, %v739, 0
        %v1079 = vsel %vm316, %v740, 0
        %v1082 = vsel %vm316, %v741, 0
        %v1085 = vsel %vm316, %v742, 0
        %v1088 = vsel %vm316, %v743, 0
        %v1091 = vsel %vm316, %v744, 0
        %v1094 = vsel %vm316, %v745, 0
        %v1097 = vsel %vm316, %v746, 0
        %v1100 = vsel %vm316, %v747, 0
        %1102 = vmatpush.msra.mxu0 0.0
        %1103 = vmatpush.msra.mxu0 0.0
        %1104 = vmatpush.msra.mxu0 0.0
        %1105 = vmatpush.msra.mxu0 0.0
        %1106 = vmatpush.msra.mxu0 0.0
        %1107 = vmatpush.msra.mxu0 0.0
        %1108 = vmatpush.msra.mxu0 0.0
        %1109 = vmatpush.msra.mxu0 0.0
        %1110 = vmatpush.msra.mxu0 %v755
        %1111 = vmatpush.msra.mxu0 %v754
        %1112 = vmatpush.msra.mxu0 %v753
        %1113 = vmatpush.msra.mxu0 %v752
        %1114 = vmatpush.msra.mxu0 %v751
        %1115 = vmatpush.msra.mxu0 %v750
        %1116 = vmatpush.msra.mxu0 %v749
        %1117 = vmatpush.msra.mxu0 %v748
        %1118 = vmatmul.f32.gmra.mxu0 %v1007
        %v1119 = vpop.f32.mrf.mxu0
        %v1120 = vadd.f32 %v911, %v1119
        %1121 = vmatmul.f32.gmra.mxu0 %v1010
        %v1122 = vpop.f32.mrf.mxu0
        %v1123 = vadd.f32 %v914, %v1122
        %1124 = vmatmul.f32.gmra.mxu0 %v1013
        %v1125 = vpop.f32.mrf.mxu0
        %v1126 = vadd.f32 %v917, %v1125
        %1127 = vmatmul.f32.gmra.mxu0 %v1016
        %v1128 = vpop.f32.mrf.mxu0
        %v1129 = vadd.f32 %v920, %v1128
        %1130 = vmatmul.f32.gmra.mxu0 %v1019
        %v1131 = vpop.f32.mrf.mxu0
        %v1132 = vadd.f32 %v923, %v1131
        %1133 = vmatmul.f32.gmra.mxu0 %v1022
        %v1134 = vpop.f32.mrf.mxu0
        %v1135 = vadd.f32 %v926, %v1134
        %1136 = vmatmul.f32.gmra.mxu0 %v1025
        %v1137 = vpop.f32.mrf.mxu0
        %v1138 = vadd.f32 %v929, %v1137
        %1139 = vmatmul.f32.gmra.mxu0 %v1028
        %v1140 = vpop.f32.mrf.mxu0
        %v1141 = vadd.f32 %v932, %v1140
        %1142 = vmatmul.f32.gmra.mxu0 %v1031
        %v1143 = vpop.f32.mrf.mxu0
        %v1144 = vadd.f32 %v935, %v1143
        %1145 = vmatmul.f32.gmra.mxu0 %v1034
        %v1146 = vpop.f32.mrf.mxu0
        %v1147 = vadd.f32 %v938, %v1146
        %1148 = vmatmul.f32.gmra.mxu0 %v1037
        %v1149 = vpop.f32.mrf.mxu0
        %v1150 = vadd.f32 %v941, %v1149
        %1151 = vmatmul.f32.gmra.mxu0 %v1040
        %v1152 = vpop.f32.mrf.mxu0
        %v1153 = vadd.f32 %v944, %v1152
        %1154 = vmatmul.f32.gmra.mxu0 %v1043
        %v1155 = vpop.f32.mrf.mxu0
        %v1156 = vadd.f32 %v947, %v1155
        %1157 = vmatmul.f32.gmra.mxu0 %v1046
        %v1158 = vpop.f32.mrf.mxu0
        %v1159 = vadd.f32 %v950, %v1158
        %1160 = vmatmul.f32.gmra.mxu0 %v1049
        %v1161 = vpop.f32.mrf.mxu0
        %v1162 = vadd.f32 %v953, %v1161
        %1163 = vmatmul.f32.gmra.mxu0 %v1052
        %v1164 = vpop.f32.mrf.mxu0
        %v1165 = vadd.f32 %v956, %v1164
        %1166 = vmatmul.f32.gmra.mxu0 %v1055
        %v1167 = vpop.f32.mrf.mxu0
        %v1168 = vadd.f32 %v959, %v1167
        %1169 = vmatmul.f32.gmra.mxu0 %v1058
        %v1170 = vpop.f32.mrf.mxu0
        %v1171 = vadd.f32 %v962, %v1170
        %1172 = vmatmul.f32.gmra.mxu0 %v1061
        %v1173 = vpop.f32.mrf.mxu0
        %v1174 = vadd.f32 %v965, %v1173
        %1175 = vmatmul.f32.gmra.mxu0 %v1064
        %v1176 = vpop.f32.mrf.mxu0
        %v1177 = vadd.f32 %v968, %v1176
        %1178 = vmatmul.f32.gmra.mxu0 %v1067
        %v1179 = vpop.f32.mrf.mxu0
        %v1180 = vadd.f32 %v971, %v1179
        %1181 = vmatmul.f32.gmra.mxu0 %v1070
        %v1182 = vpop.f32.mrf.mxu0
        %v1183 = vadd.f32 %v974, %v1182
        %1184 = vmatmul.f32.gmra.mxu0 %v1073
        %v1185 = vpop.f32.mrf.mxu0
        %v1186 = vadd.f32 %v977, %v1185
        %1187 = vmatmul.f32.gmra.mxu0 %v1076
        %v1188 = vpop.f32.mrf.mxu0
        %v1189 = vadd.f32 %v980, %v1188
        %1190 = vmatmul.f32.gmra.mxu0 %v1079
        %v1191 = vpop.f32.mrf.mxu0
        %v1192 = vadd.f32 %v983, %v1191
        %1193 = vmatmul.f32.gmra.mxu0 %v1082
        %v1194 = vpop.f32.mrf.mxu0
        %v1195 = vadd.f32 %v986, %v1194
        %1196 = vmatmul.f32.gmra.mxu0 %v1085
        %v1197 = vpop.f32.mrf.mxu0
        %v1198 = vadd.f32 %v989, %v1197
        %1199 = vmatmul.f32.gmra.mxu0 %v1088
        %v1200 = vpop.f32.mrf.mxu0
        %v1201 = vadd.f32 %v992, %v1200
        %1202 = vmatmul.f32.gmra.mxu0 %v1091
        %v1203 = vpop.f32.mrf.mxu0
        %v1204 = vadd.f32 %v995, %v1203
        %1205 = vmatmul.f32.gmra.mxu0 %v1094
        %v1206 = vpop.f32.mrf.mxu0
        %v1207 = vadd.f32 %v998, %v1206
        %1208 = vmatmul.f32.gmra.mxu0 %v1097
        %v1209 = vpop.f32.mrf.mxu0
        %v1210 = vadd.f32 %v1001, %v1209
        %1211 = vmatmul.f32.gmra.mxu0 %v1100
        %v1212 = vpop.f32.mrf.mxu0
        %v1213 = vadd.f32 %v1004, %v1212
        %1214 = vdwg.mxu0
        %v1215 = vld [vmem:[#allocation2 + $0x9] sm:$0xff]
        %v1216 = vld [vmem:[#allocation2 + $0x11] sm:$0xff]
        %v1217 = vld [vmem:[#allocation2 + $0x29] sm:$0xff]
        %v1218 = vld [vmem:[#allocation2 + $0x31] sm:$0xff]
        %v1219 = vld [vmem:[#allocation2 + $0x49] sm:$0xff]
        %v1220 = vld [vmem:[#allocation2 + $0x51] sm:$0xff]
        %v1221 = vld [vmem:[#allocation2 + $0x69] sm:$0xff]
        %v1222 = vld [vmem:[#allocation2 + $0x71] sm:$0xff]
        %v1223 = vld [vmem:[#allocation2 + $0x89] sm:$0xff]
        %v1224 = vld [vmem:[#allocation2 + $0x91] sm:$0xff]
        %v1225 = vld [vmem:[#allocation2 + $0xa9] sm:$0xff]
        %v1226 = vld [vmem:[#allocation2 + $0xb1] sm:$0xff]
        %v1227 = vld [vmem:[#allocation2 + $0xc9] sm:$0xff]
        %v1228 = vld [vmem:[#allocation2 + $0xd1] sm:$0xff]
        %v1229 = vld [vmem:[#allocation2 + $0xe9] sm:$0xff]
        %v1230 = vld [vmem:[#allocation2 + $0xf1] sm:$0xff]
        %v1231 = vld [vmem:[#allocation2 + $0x109] sm:$0xff]
        %v1232 = vld [vmem:[#allocation2 + $0x111] sm:$0xff]
        %v1233 = vld [vmem:[#allocation2 + $0x129] sm:$0xff]
        %v1234 = vld [vmem:[#allocation2 + $0x131] sm:$0xff]
        %v1235 = vld [vmem:[#allocation2 + $0x149] sm:$0xff]
        %v1236 = vld [vmem:[#allocation2 + $0x151] sm:$0xff]
        %v1237 = vld [vmem:[#allocation2 + $0x169] sm:$0xff]
        %v1238 = vld [vmem:[#allocation2 + $0x171] sm:$0xff]
        %v1239 = vld [vmem:[#allocation2 + $0x189] sm:$0xff]
        %v1240 = vld [vmem:[#allocation2 + $0x191] sm:$0xff]
        %v1241 = vld [vmem:[#allocation2 + $0x1a9] sm:$0xff]
        %v1242 = vld [vmem:[#allocation2 + $0x1b1] sm:$0xff]
        %v1243 = vld [vmem:[#allocation2 + $0x1c9] sm:$0xff]
        %v1244 = vld [vmem:[#allocation2 + $0x1d1] sm:$0xff]
        %v1245 = vld [vmem:[#allocation2 + $0x1e9] sm:$0xff]
        %v1246 = vld [vmem:[#allocation2 + $0x1f1] sm:$0xff]
        %s1247 = scalar_lea.vmem %s3, 128
        %v1248 = vld [vmem:[%s1247] sm:$0xff]
        %v1249 = vld [vmem:[%s1247 + $0x8] sm:$0xff]
        %v1250 = vld [vmem:[%s1247 + $0x10] sm:$0xff]
        %v1251 = vld [vmem:[%s1247 + $0x18] sm:$0xff]
        %v1252 = vld [vmem:[%s1247 + $0x20] sm:$0xff]
        %v1253 = vld [vmem:[%s1247 + $0x28] sm:$0xff]
        %v1254 = vld [vmem:[%s1247 + $0x30] sm:$0xff]
        %v1255 = vld [vmem:[%s1247 + $0x38] sm:$0xff]
        %v1257 = vsel %vm316, %v1215, 0
        %v1260 = vsel %vm316, %v1216, 0
        %v1263 = vsel %vm316, %v1217, 0
        %v1266 = vsel %vm316, %v1218, 0
        %v1269 = vsel %vm316, %v1219, 0
        %v1272 = vsel %vm316, %v1220, 0
        %v1275 = vsel %vm316, %v1221, 0
        %v1278 = vsel %vm316, %v1222, 0
        %v1281 = vsel %vm316, %v1223, 0
        %v1284 = vsel %vm316, %v1224, 0
        %v1287 = vsel %vm316, %v1225, 0
        %v1290 = vsel %vm316, %v1226, 0
        %v1293 = vsel %vm316, %v1227, 0
        %v1296 = vsel %vm316, %v1228, 0
        %v1299 = vsel %vm316, %v1229, 0
        %v1302 = vsel %vm316, %v1230, 0
        %v1305 = vsel %vm316, %v1231, 0
        %v1308 = vsel %vm316, %v1232, 0
        %v1311 = vsel %vm316, %v1233, 0
        %v1314 = vsel %vm316, %v1234, 0
        %v1317 = vsel %vm316, %v1235, 0
        %v1320 = vsel %vm316, %v1236, 0
        %v1323 = vsel %vm316, %v1237, 0
        %v1326 = vsel %vm316, %v1238, 0
        %v1329 = vsel %vm316, %v1239, 0
        %v1332 = vsel %vm316, %v1240, 0
        %v1335 = vsel %vm316, %v1241, 0
        %v1338 = vsel %vm316, %v1242, 0
        %v1341 = vsel %vm316, %v1243, 0
        %v1344 = vsel %vm316, %v1244, 0
        %v1347 = vsel %vm316, %v1245, 0
        %v1350 = vsel %vm316, %v1246, 0
        %1352 = vmatpush.msra.mxu0 0.0
        %1353 = vmatpush.msra.mxu0 0.0
        %1354 = vmatpush.msra.mxu0 0.0
        %1355 = vmatpush.msra.mxu0 0.0
        %1356 = vmatpush.msra.mxu0 0.0
        %1357 = vmatpush.msra.mxu0 0.0
        %1358 = vmatpush.msra.mxu0 0.0
        %1359 = vmatpush.msra.mxu0 0.0
        %1360 = vmatpush.msra.mxu0 %v1255
        %1361 = vmatpush.msra.mxu0 %v1254
        %1362 = vmatpush.msra.mxu0 %v1253
        %1363 = vmatpush.msra.mxu0 %v1252
        %1364 = vmatpush.msra.mxu0 %v1251
        %1365 = vmatpush.msra.mxu0 %v1250
        %1366 = vmatpush.msra.mxu0 %v1249
        %1367 = vmatpush.msra.mxu0 %v1248
        %1368 = vmatmul.f32.gmra.mxu0 %v1257
        %v1369 = vpop.f32.mrf.mxu0
        %v1370 = vadd.f32 0.0, %v1369
        %1371 = vmatmul.f32.gmra.mxu0 %v1260
        %v1372 = vpop.f32.mrf.mxu0
        %v1373 = vadd.f32 0.0, %v1372
        %1374 = vmatmul.f32.gmra.mxu0 %v1263
        %v1375 = vpop.f32.mrf.mxu0
        %v1376 = vadd.f32 0.0, %v1375
        %1377 = vmatmul.f32.gmra.mxu0 %v1266
        %v1378 = vpop.f32.mrf.mxu0
        %v1379 = vadd.f32 0.0, %v1378
        %1380 = vmatmul.f32.gmra.mxu0 %v1269
        %v1381 = vpop.f32.mrf.mxu0
        %v1382 = vadd.f32 0.0, %v1381
        %1383 = vmatmul.f32.gmra.mxu0 %v1272
        %v1384 = vpop.f32.mrf.mxu0
        %v1385 = vadd.f32 0.0, %v1384
        %1386 = vmatmul.f32.gmra.mxu0 %v1275
        %v1387 = vpop.f32.mrf.mxu0
        %v1388 = vadd.f32 0.0, %v1387
        %1389 = vmatmul.f32.gmra.mxu0 %v1278
        %v1390 = vpop.f32.mrf.mxu0
        %v1391 = vadd.f32 0.0, %v1390
        %1392 = vmatmul.f32.gmra.mxu0 %v1281
        %v1393 = vpop.f32.mrf.mxu0
        %v1394 = vadd.f32 0.0, %v1393
        %1395 = vmatmul.f32.gmra.mxu0 %v1284
        %v1396 = vpop.f32.mrf.mxu0
        %v1397 = vadd.f32 0.0, %v1396
        %1398 = vmatmul.f32.gmra.mxu0 %v1287
        %v1399 = vpop.f32.mrf.mxu0
        %v1400 = vadd.f32 0.0, %v1399
        %1401 = vmatmul.f32.gmra.mxu0 %v1290
        %v1402 = vpop.f32.mrf.mxu0
        %v1403 = vadd.f32 0.0, %v1402
        %1404 = vmatmul.f32.gmra.mxu0 %v1293
        %v1405 = vpop.f32.mrf.mxu0
        %v1406 = vadd.f32 0.0, %v1405
        %1407 = vmatmul.f32.gmra.mxu0 %v1296
        %v1408 = vpop.f32.mrf.mxu0
        %v1409 = vadd.f32 0.0, %v1408
        %1410 = vmatmul.f32.gmra.mxu0 %v1299
        %v1411 = vpop.f32.mrf.mxu0
        %v1412 = vadd.f32 0.0, %v1411
        %1413 = vmatmul.f32.gmra.mxu0 %v1302
        %v1414 = vpop.f32.mrf.mxu0
        %v1415 = vadd.f32 0.0, %v1414
        %1416 = vmatmul.f32.gmra.mxu0 %v1305
        %v1417 = vpop.f32.mrf.mxu0
        %v1418 = vadd.f32 0.0, %v1417
        %1419 = vmatmul.f32.gmra.mxu0 %v1308
        %v1420 = vpop.f32.mrf.mxu0
        %v1421 = vadd.f32 0.0, %v1420
        %1422 = vmatmul.f32.gmra.mxu0 %v1311
        %v1423 = vpop.f32.mrf.mxu0
        %v1424 = vadd.f32 0.0, %v1423
        %1425 = vmatmul.f32.gmra.mxu0 %v1314
        %v1426 = vpop.f32.mrf.mxu0
        %v1427 = vadd.f32 0.0, %v1426
        %1428 = vmatmul.f32.gmra.mxu0 %v1317
        %v1429 = vpop.f32.mrf.mxu0
        %v1430 = vadd.f32 0.0, %v1429
        %1431 = vmatmul.f32.gmra.mxu0 %v1320
        %v1432 = vpop.f32.mrf.mxu0
        %v1433 = vadd.f32 0.0, %v1432
        %1434 = vmatmul.f32.gmra.mxu0 %v1323
        %v1435 = vpop.f32.mrf.mxu0
        %v1436 = vadd.f32 0.0, %v1435
        %1437 = vmatmul.f32.gmra.mxu0 %v1326
        %v1438 = vpop.f32.mrf.mxu0
        %v1439 = vadd.f32 0.0, %v1438
        %1440 = vmatmul.f32.gmra.mxu0 %v1329
        %v1441 = vpop.f32.mrf.mxu0
        %v1442 = vadd.f32 0.0, %v1441
        %1443 = vmatmul.f32.gmra.mxu0 %v1332
        %v1444 = vpop.f32.mrf.mxu0
        %v1445 = vadd.f32 0.0, %v1444
        %1446 = vmatmul.f32.gmra.mxu0 %v1335
        %v1447 = vpop.f32.mrf.mxu0
        %v1448 = vadd.f32 0.0, %v1447
        %1449 = vmatmul.f32.gmra.mxu0 %v1338
        %v1450 = vpop.f32.mrf.mxu0
        %v1451 = vadd.f32 0.0, %v1450
        %1452 = vmatmul.f32.gmra.mxu0 %v1341
        %v1453 = vpop.f32.mrf.mxu0
        %v1454 = vadd.f32 0.0, %v1453
        %1455 = vmatmul.f32.gmra.mxu0 %v1344
        %v1456 = vpop.f32.mrf.mxu0
        %v1457 = vadd.f32 0.0, %v1456
        %1458 = vmatmul.f32.gmra.mxu0 %v1347
        %v1459 = vpop.f32.mrf.mxu0
        %v1460 = vadd.f32 0.0, %v1459
        %1461 = vmatmul.f32.gmra.mxu0 %v1350
        %v1462 = vpop.f32.mrf.mxu0
        %v1463 = vadd.f32 0.0, %v1462
        %1464 = vdwg.mxu0
        %v1465 = vadd.f32 %v1120, %v1370
        %v1466 = vadd.f32 %v1123, %v1373
        %v1467 = vadd.f32 %v1126, %v1376
        %v1468 = vadd.f32 %v1129, %v1379
        %v1469 = vadd.f32 %v1132, %v1382
        %v1470 = vadd.f32 %v1135, %v1385
        %v1471 = vadd.f32 %v1138, %v1388
        %v1472 = vadd.f32 %v1141, %v1391
        %v1473 = vadd.f32 %v1144, %v1394
        %v1474 = vadd.f32 %v1147, %v1397
        %v1475 = vadd.f32 %v1150, %v1400
        %v1476 = vadd.f32 %v1153, %v1403
        %v1477 = vadd.f32 %v1156, %v1406
        %v1478 = vadd.f32 %v1159, %v1409
        %v1479 = vadd.f32 %v1162, %v1412
        %v1480 = vadd.f32 %v1165, %v1415
        %v1481 = vadd.f32 %v1168, %v1418
        %v1482 = vadd.f32 %v1171, %v1421
        %v1483 = vadd.f32 %v1174, %v1424
        %v1484 = vadd.f32 %v1177, %v1427
        %v1485 = vadd.f32 %v1180, %v1430
        %v1486 = vadd.f32 %v1183, %v1433
        %v1487 = vadd.f32 %v1186, %v1436
        %v1488 = vadd.f32 %v1189, %v1439
        %v1489 = vadd.f32 %v1192, %v1442
        %v1490 = vadd.f32 %v1195, %v1445
        %v1491 = vadd.f32 %v1198, %v1448
        %v1492 = vadd.f32 %v1201, %v1451
        %v1493 = vadd.f32 %v1204, %v1454
        %v1494 = vadd.f32 %v1207, %v1457
        %v1495 = vadd.f32 %v1210, %v1460
        %v1496 = vadd.f32 %v1213, %v1463
        %v1497 = vld [vmem:[%s326 + $0x7] sm:$0xff]
        %v1498 = vld [vmem:[%s326 + $0xf] sm:$0xff]
        %v1499 = vld [vmem:[%s326 + $0x27] sm:$0xff]
        %v1500 = vld [vmem:[%s326 + $0x2f] sm:$0xff]
        %v1501 = vld [vmem:[%s326 + $0x47] sm:$0xff]
        %v1502 = vld [vmem:[%s326 + $0x4f] sm:$0xff]
        %v1503 = vld [vmem:[%s326 + $0x67] sm:$0xff]
        %v1504 = vld [vmem:[%s326 + $0x6f] sm:$0xff]
        %v1505 = vld [vmem:[%s326 + $0x87] sm:$0xff]
        %v1506 = vld [vmem:[%s326 + $0x8f] sm:$0xff]
        %v1507 = vld [vmem:[%s326 + $0xa7] sm:$0xff]
        %v1508 = vld [vmem:[%s326 + $0xaf] sm:$0xff]
        %v1509 = vld [vmem:[%s326 + $0xc7] sm:$0xff]
        %v1510 = vld [vmem:[%s326 + $0xcf] sm:$0xff]
        %v1511 = vld [vmem:[%s326 + $0xe7] sm:$0xff]
        %v1512 = vld [vmem:[%s326 + $0xef] sm:$0xff]
        %v1513 = vld [vmem:[%s326 + $0x107] sm:$0xff]
        %v1514 = vld [vmem:[%s326 + $0x10f] sm:$0xff]
        %v1515 = vld [vmem:[%s326 + $0x127] sm:$0xff]
        %v1516 = vld [vmem:[%s326 + $0x12f] sm:$0xff]
        %v1517 = vld [vmem:[%s326 + $0x147] sm:$0xff]
        %v1518 = vld [vmem:[%s326 + $0x14f] sm:$0xff]
        %v1519 = vld [vmem:[%s326 + $0x167] sm:$0xff]
        %v1520 = vld [vmem:[%s326 + $0x16f] sm:$0xff]
        %v1521 = vld [vmem:[%s326 + $0x187] sm:$0xff]
        %v1522 = vld [vmem:[%s326 + $0x18f] sm:$0xff]
        %v1523 = vld [vmem:[%s326 + $0x1a7] sm:$0xff]
        %v1524 = vld [vmem:[%s326 + $0x1af] sm:$0xff]
        %v1525 = vld [vmem:[%s326 + $0x1c7] sm:$0xff]
        %v1526 = vld [vmem:[%s326 + $0x1cf] sm:$0xff]
        %v1527 = vld [vmem:[%s326 + $0x1e7] sm:$0xff]
        %v1528 = vld [vmem:[%s326 + $0x1ef] sm:$0xff]
        %s1529 = scalar_lea.vmem %s3, 192
        %v1530 = vld [vmem:[%s1529] sm:$0xff]
        %v1531 = vld [vmem:[%s1529 + $0x8] sm:$0xff]
        %v1532 = vld [vmem:[%s1529 + $0x10] sm:$0xff]
        %v1533 = vld [vmem:[%s1529 + $0x18] sm:$0xff]
        %v1534 = vld [vmem:[%s1529 + $0x20] sm:$0xff]
        %v1535 = vld [vmem:[%s1529 + $0x28] sm:$0xff]
        %v1536 = vld [vmem:[%s1529 + $0x30] sm:$0xff]
        %v1537 = vld [vmem:[%s1529 + $0x38] sm:$0xff]
        %v1539 = vsel %vm316, %v1497, 0
        %v1542 = vsel %vm316, %v1498, 0
        %v1545 = vsel %vm316, %v1499, 0
        %v1548 = vsel %vm316, %v1500, 0
        %v1551 = vsel %vm316, %v1501, 0
        %v1554 = vsel %vm316, %v1502, 0
        %v1557 = vsel %vm316, %v1503, 0
        %v1560 = vsel %vm316, %v1504, 0
        %v1563 = vsel %vm316, %v1505, 0
        %v1566 = vsel %vm316, %v1506, 0
        %v1569 = vsel %vm316, %v1507, 0
        %v1572 = vsel %vm316, %v1508, 0
        %v1575 = vsel %vm316, %v1509, 0
        %v1578 = vsel %vm316, %v1510, 0
        %v1581 = vsel %vm316, %v1511, 0
        %v1584 = vsel %vm316, %v1512, 0
        %v1587 = vsel %vm316, %v1513, 0
        %v1590 = vsel %vm316, %v1514, 0
        %v1593 = vsel %vm316, %v1515, 0
        %v1596 = vsel %vm316, %v1516, 0
        %v1599 = vsel %vm316, %v1517, 0
        %v1602 = vsel %vm316, %v1518, 0
        %v1605 = vsel %vm316, %v1519, 0
        %v1608 = vsel %vm316, %v1520, 0
        %v1611 = vsel %vm316, %v1521, 0
        %v1614 = vsel %vm316, %v1522, 0
        %v1617 = vsel %vm316, %v1523, 0
        %v1620 = vsel %vm316, %v1524, 0
        %v1623 = vsel %vm316, %v1525, 0
        %v1626 = vsel %vm316, %v1526, 0
        %v1629 = vsel %vm316, %v1527, 0
        %v1632 = vsel %vm316, %v1528, 0
        %1634 = vmatpush.msra.mxu0 0.0
        %1635 = vmatpush.msra.mxu0 0.0
        %1636 = vmatpush.msra.mxu0 0.0
        %1637 = vmatpush.msra.mxu0 0.0
        %1638 = vmatpush.msra.mxu0 0.0
        %1639 = vmatpush.msra.mxu0 0.0
        %1640 = vmatpush.msra.mxu0 0.0
        %1641 = vmatpush.msra.mxu0 0.0
        %1642 = vmatpush.msra.mxu0 %v1537
        %1643 = vmatpush.msra.mxu0 %v1536
        %1644 = vmatpush.msra.mxu0 %v1535
        %1645 = vmatpush.msra.mxu0 %v1534
        %1646 = vmatpush.msra.mxu0 %v1533
        %1647 = vmatpush.msra.mxu0 %v1532
        %1648 = vmatpush.msra.mxu0 %v1531
        %1649 = vmatpush.msra.mxu0 %v1530
        %1650 = vmatmul.f32.gmra.mxu0 %v1539
        %v1651 = vpop.f32.mrf.mxu0
        %v1652 = vadd.f32 0.0, %v1651
        %1653 = vmatmul.f32.gmra.mxu0 %v1542
        %v1654 = vpop.f32.mrf.mxu0
        %v1655 = vadd.f32 0.0, %v1654
        %1656 = vmatmul.f32.gmra.mxu0 %v1545
        %v1657 = vpop.f32.mrf.mxu0
        %v1658 = vadd.f32 0.0, %v1657
        %1659 = vmatmul.f32.gmra.mxu0 %v1548
        %v1660 = vpop.f32.mrf.mxu0
        %v1661 = vadd.f32 0.0, %v1660
        %1662 = vmatmul.f32.gmra.mxu0 %v1551
        %v1663 = vpop.f32.mrf.mxu0
        %v1664 = vadd.f32 0.0, %v1663
        %1665 = vmatmul.f32.gmra.mxu0 %v1554
        %v1666 = vpop.f32.mrf.mxu0
        %v1667 = vadd.f32 0.0, %v1666
        %1668 = vmatmul.f32.gmra.mxu0 %v1557
        %v1669 = vpop.f32.mrf.mxu0
        %v1670 = vadd.f32 0.0, %v1669
        %1671 = vmatmul.f32.gmra.mxu0 %v1560
        %v1672 = vpop.f32.mrf.mxu0
        %v1673 = vadd.f32 0.0, %v1672
        %1674 = vmatmul.f32.gmra.mxu0 %v1563
        %v1675 = vpop.f32.mrf.mxu0
        %v1676 = vadd.f32 0.0, %v1675
        %1677 = vmatmul.f32.gmra.mxu0 %v1566
        %v1678 = vpop.f32.mrf.mxu0
        %v1679 = vadd.f32 0.0, %v1678
        %1680 = vmatmul.f32.gmra.mxu0 %v1569
        %v1681 = vpop.f32.mrf.mxu0
        %v1682 = vadd.f32 0.0, %v1681
        %1683 = vmatmul.f32.gmra.mxu0 %v1572
        %v1684 = vpop.f32.mrf.mxu0
        %v1685 = vadd.f32 0.0, %v1684
        %1686 = vmatmul.f32.gmra.mxu0 %v1575
        %v1687 = vpop.f32.mrf.mxu0
        %v1688 = vadd.f32 0.0, %v1687
        %1689 = vmatmul.f32.gmra.mxu0 %v1578
        %v1690 = vpop.f32.mrf.mxu0
        %v1691 = vadd.f32 0.0, %v1690
        %1692 = vmatmul.f32.gmra.mxu0 %v1581
        %v1693 = vpop.f32.mrf.mxu0
        %v1694 = vadd.f32 0.0, %v1693
        %1695 = vmatmul.f32.gmra.mxu0 %v1584
        %v1696 = vpop.f32.mrf.mxu0
        %v1697 = vadd.f32 0.0, %v1696
        %1698 = vmatmul.f32.gmra.mxu0 %v1587
        %v1699 = vpop.f32.mrf.mxu0
        %v1700 = vadd.f32 0.0, %v1699
        %1701 = vmatmul.f32.gmra.mxu0 %v1590
        %v1702 = vpop.f32.mrf.mxu0
        %v1703 = vadd.f32 0.0, %v1702
        %1704 = vmatmul.f32.gmra.mxu0 %v1593
        %v1705 = vpop.f32.mrf.mxu0
        %v1706 = vadd.f32 0.0, %v1705
        %1707 = vmatmul.f32.gmra.mxu0 %v1596
        %v1708 = vpop.f32.mrf.mxu0
        %v1709 = vadd.f32 0.0, %v1708
        %1710 = vmatmul.f32.gmra.mxu0 %v1599
        %v1711 = vpop.f32.mrf.mxu0
        %v1712 = vadd.f32 0.0, %v1711
        %1713 = vmatmul.f32.gmra.mxu0 %v1602
        %v1714 = vpop.f32.mrf.mxu0
        %v1715 = vadd.f32 0.0, %v1714
        %1716 = vmatmul.f32.gmra.mxu0 %v1605
        %v1717 = vpop.f32.mrf.mxu0
        %v1718 = vadd.f32 0.0, %v1717
        %1719 = vmatmul.f32.gmra.mxu0 %v1608
        %v1720 = vpop.f32.mrf.mxu0
        %v1721 = vadd.f32 0.0, %v1720
        %1722 = vmatmul.f32.gmra.mxu0 %v1611
        %v1723 = vpop.f32.mrf.mxu0
        %v1724 = vadd.f32 0.0, %v1723
        %1725 = vmatmul.f32.gmra.mxu0 %v1614
        %v1726 = vpop.f32.mrf.mxu0
        %v1727 = vadd.f32 0.0, %v1726
        %1728 = vmatmul.f32.gmra.mxu0 %v1617
        %v1729 = vpop.f32.mrf.mxu0
        %v1730 = vadd.f32 0.0, %v1729
        %1731 = vmatmul.f32.gmra.mxu0 %v1620
        %v1732 = vpop.f32.mrf.mxu0
        %v1733 = vadd.f32 0.0, %v1732
        %1734 = vmatmul.f32.gmra.mxu0 %v1623
        %v1735 = vpop.f32.mrf.mxu0
        %v1736 = vadd.f32 0.0, %v1735
        %1737 = vmatmul.f32.gmra.mxu0 %v1626
        %v1738 = vpop.f32.mrf.mxu0
        %v1739 = vadd.f32 0.0, %v1738
        %1740 = vmatmul.f32.gmra.mxu0 %v1629
        %v1741 = vpop.f32.mrf.mxu0
        %v1742 = vadd.f32 0.0, %v1741
        %1743 = vmatmul.f32.gmra.mxu0 %v1632
        %v1744 = vpop.f32.mrf.mxu0
        %v1745 = vadd.f32 0.0, %v1744
        %1746 = vdwg.mxu0
        %v1747 = vadd.f32 %v1465, %v1652
        %v1748 = vadd.f32 %v1466, %v1655
        %v1749 = vadd.f32 %v1467, %v1658
        %v1750 = vadd.f32 %v1468, %v1661
        %v1751 = vadd.f32 %v1469, %v1664
        %v1752 = vadd.f32 %v1470, %v1667
        %v1753 = vadd.f32 %v1471, %v1670
        %v1754 = vadd.f32 %v1472, %v1673
        %v1755 = vadd.f32 %v1473, %v1676
        %v1756 = vadd.f32 %v1474, %v1679
        %v1757 = vadd.f32 %v1475, %v1682
        %v1758 = vadd.f32 %v1476, %v1685
        %v1759 = vadd.f32 %v1477, %v1688
        %v1760 = vadd.f32 %v1478, %v1691
        %v1761 = vadd.f32 %v1479, %v1694
        %v1762 = vadd.f32 %v1480, %v1697
        %v1763 = vadd.f32 %v1481, %v1700
        %v1764 = vadd.f32 %v1482, %v1703
        %v1765 = vadd.f32 %v1483, %v1706
        %v1766 = vadd.f32 %v1484, %v1709
        %v1767 = vadd.f32 %v1485, %v1712
        %v1768 = vadd.f32 %v1486, %v1715
        %v1769 = vadd.f32 %v1487, %v1718
        %v1770 = vadd.f32 %v1488, %v1721
        %v1771 = vadd.f32 %v1489, %v1724
        %v1772 = vadd.f32 %v1490, %v1727
        %v1773 = vadd.f32 %v1491, %v1730
        %v1774 = vadd.f32 %v1492, %v1733
        %v1775 = vadd.f32 %v1493, %v1736
        %v1776 = vadd.f32 %v1494, %v1739
        %v1777 = vadd.f32 %v1495, %v1742
        %v1778 = vadd.f32 %v1496, %v1745
        %v1779 = vld [vmem:[%s326 + $0x8] sm:$0xff]
        %v1780 = vld [vmem:[%s326 + $0x10] sm:$0xff]
        %v1781 = vld [vmem:[%s326 + $0x28] sm:$0xff]
        %v1782 = vld [vmem:[%s326 + $0x30] sm:$0xff]
        %v1783 = vld [vmem:[%s326 + $0x48] sm:$0xff]
        %v1784 = vld [vmem:[%s326 + $0x50] sm:$0xff]
        %v1785 = vld [vmem:[%s326 + $0x68] sm:$0xff]
        %v1786 = vld [vmem:[%s326 + $0x70] sm:$0xff]
        %v1787 = vld [vmem:[%s326 + $0x88] sm:$0xff]
        %v1788 = vld [vmem:[%s326 + $0x90] sm:$0xff]
        %v1789 = vld [vmem:[%s326 + $0xa8] sm:$0xff]
        %v1790 = vld [vmem:[%s326 + $0xb0] sm:$0xff]
        %v1791 = vld [vmem:[%s326 + $0xc8] sm:$0xff]
        %v1792 = vld [vmem:[%s326 + $0xd0] sm:$0xff]
        %v1793 = vld [vmem:[%s326 + $0xe8] sm:$0xff]
        %v1794 = vld [vmem:[%s326 + $0xf0] sm:$0xff]
        %v1795 = vld [vmem:[%s326 + $0x108] sm:$0xff]
        %v1796 = vld [vmem:[%s326 + $0x110] sm:$0xff]
        %v1797 = vld [vmem:[%s326 + $0x128] sm:$0xff]
        %v1798 = vld [vmem:[%s326 + $0x130] sm:$0xff]
        %v1799 = vld [vmem:[%s326 + $0x148] sm:$0xff]
        %v1800 = vld [vmem:[%s326 + $0x150] sm:$0xff]
        %v1801 = vld [vmem:[%s326 + $0x168] sm:$0xff]
        %v1802 = vld [vmem:[%s326 + $0x170] sm:$0xff]
        %v1803 = vld [vmem:[%s326 + $0x188] sm:$0xff]
        %v1804 = vld [vmem:[%s326 + $0x190] sm:$0xff]
        %v1805 = vld [vmem:[%s326 + $0x1a8] sm:$0xff]
        %v1806 = vld [vmem:[%s326 + $0x1b0] sm:$0xff]
        %v1807 = vld [vmem:[%s326 + $0x1c8] sm:$0xff]
        %v1808 = vld [vmem:[%s326 + $0x1d0] sm:$0xff]
        %v1809 = vld [vmem:[%s326 + $0x1e8] sm:$0xff]
        %v1810 = vld [vmem:[%s326 + $0x1f0] sm:$0xff]
        %s1811 = scalar_lea.vmem %s3, 256
        %v1812 = vld [vmem:[%s1811] sm:$0xff]
        %v1813 = vld [vmem:[%s1811 + $0x8] sm:$0xff]
        %v1814 = vld [vmem:[%s1811 + $0x10] sm:$0xff]
        %v1815 = vld [vmem:[%s1811 + $0x18] sm:$0xff]
        %v1816 = vld [vmem:[%s1811 + $0x20] sm:$0xff]
        %v1817 = vld [vmem:[%s1811 + $0x28] sm:$0xff]
        %v1818 = vld [vmem:[%s1811 + $0x30] sm:$0xff]
        %v1819 = vld [vmem:[%s1811 + $0x38] sm:$0xff]
        %v1821 = vsel %vm316, %v1779, 0
        %v1824 = vsel %vm316, %v1780, 0
        %v1827 = vsel %vm316, %v1781, 0
        %v1830 = vsel %vm316, %v1782, 0
        %v1833 = vsel %vm316, %v1783, 0
        %v1836 = vsel %vm316, %v1784, 0
        %v1839 = vsel %vm316, %v1785, 0
        %v1842 = vsel %vm316, %v1786, 0
        %v1845 = vsel %vm316, %v1787, 0
        %v1848 = vsel %vm316, %v1788, 0
        %v1851 = vsel %vm316, %v1789, 0
        %v1854 = vsel %vm316, %v1790, 0
        %v1857 = vsel %vm316, %v1791, 0
        %v1860 = vsel %vm316, %v1792, 0
        %v1863 = vsel %vm316, %v1793, 0
        %v1866 = vsel %vm316, %v1794, 0
        %v1869 = vsel %vm316, %v1795, 0
        %v1872 = vsel %vm316, %v1796, 0
        %v1875 = vsel %vm316, %v1797, 0
        %v1878 = vsel %vm316, %v1798, 0
        %v1881 = vsel %vm316, %v1799, 0
        %v1884 = vsel %vm316, %v1800, 0
        %v1887 = vsel %vm316, %v1801, 0
        %v1890 = vsel %vm316, %v1802, 0
        %v1893 = vsel %vm316, %v1803, 0
        %v1896 = vsel %vm316, %v1804, 0
        %v1899 = vsel %vm316, %v1805, 0
        %v1902 = vsel %vm316, %v1806, 0
        %v1905 = vsel %vm316, %v1807, 0
        %v1908 = vsel %vm316, %v1808, 0
        %v1911 = vsel %vm316, %v1809, 0
        %v1914 = vsel %vm316, %v1810, 0
        %1916 = vmatpush.msra.mxu0 0.0
        %1917 = vmatpush.msra.mxu0 0.0
        %1918 = vmatpush.msra.mxu0 0.0
        %1919 = vmatpush.msra.mxu0 0.0
        %1920 = vmatpush.msra.mxu0 0.0
        %1921 = vmatpush.msra.mxu0 0.0
        %1922 = vmatpush.msra.mxu0 0.0
        %1923 = vmatpush.msra.mxu0 0.0
        %1924 = vmatpush.msra.mxu0 %v1819
        %1925 = vmatpush.msra.mxu0 %v1818
        %1926 = vmatpush.msra.mxu0 %v1817
        %1927 = vmatpush.msra.mxu0 %v1816
        %1928 = vmatpush.msra.mxu0 %v1815
        %1929 = vmatpush.msra.mxu0 %v1814
        %1930 = vmatpush.msra.mxu0 %v1813
        %1931 = vmatpush.msra.mxu0 %v1812
        %1932 = vmatmul.f32.gmra.mxu0 %v1821
        %v1933 = vpop.f32.mrf.mxu0
        %v1934 = vadd.f32 0.0, %v1933
        %1935 = vmatmul.f32.gmra.mxu0 %v1824
        %v1936 = vpop.f32.mrf.mxu0
        %v1937 = vadd.f32 0.0, %v1936
        %1938 = vmatmul.f32.gmra.mxu0 %v1827
        %v1939 = vpop.f32.mrf.mxu0
        %v1940 = vadd.f32 0.0, %v1939
        %1941 = vmatmul.f32.gmra.mxu0 %v1830
        %v1942 = vpop.f32.mrf.mxu0
        %v1943 = vadd.f32 0.0, %v1942
        %1944 = vmatmul.f32.gmra.mxu0 %v1833
        %v1945 = vpop.f32.mrf.mxu0
        %v1946 = vadd.f32 0.0, %v1945
        %1947 = vmatmul.f32.gmra.mxu0 %v1836
        %v1948 = vpop.f32.mrf.mxu0
        %v1949 = vadd.f32 0.0, %v1948
        %1950 = vmatmul.f32.gmra.mxu0 %v1839
        %v1951 = vpop.f32.mrf.mxu0
        %v1952 = vadd.f32 0.0, %v1951
        %1953 = vmatmul.f32.gmra.mxu0 %v1842
        %v1954 = vpop.f32.mrf.mxu0
        %v1955 = vadd.f32 0.0, %v1954
        %1956 = vmatmul.f32.gmra.mxu0 %v1845
        %v1957 = vpop.f32.mrf.mxu0
        %v1958 = vadd.f32 0.0, %v1957
        %1959 = vmatmul.f32.gmra.mxu0 %v1848
        %v1960 = vpop.f32.mrf.mxu0
        %v1961 = vadd.f32 0.0, %v1960
        %1962 = vmatmul.f32.gmra.mxu0 %v1851
        %v1963 = vpop.f32.mrf.mxu0
        %v1964 = vadd.f32 0.0, %v1963
        %1965 = vmatmul.f32.gmra.mxu0 %v1854
        %v1966 = vpop.f32.mrf.mxu0
        %v1967 = vadd.f32 0.0, %v1966
        %1968 = vmatmul.f32.gmra.mxu0 %v1857
        %v1969 = vpop.f32.mrf.mxu0
        %v1970 = vadd.f32 0.0, %v1969
        %1971 = vmatmul.f32.gmra.mxu0 %v1860
        %v1972 = vpop.f32.mrf.mxu0
        %v1973 = vadd.f32 0.0, %v1972
        %1974 = vmatmul.f32.gmra.mxu0 %v1863
        %v1975 = vpop.f32.mrf.mxu0
        %v1976 = vadd.f32 0.0, %v1975
        %1977 = vmatmul.f32.gmra.mxu0 %v1866
        %v1978 = vpop.f32.mrf.mxu0
        %v1979 = vadd.f32 0.0, %v1978
        %1980 = vmatmul.f32.gmra.mxu0 %v1869
        %v1981 = vpop.f32.mrf.mxu0
        %v1982 = vadd.f32 0.0, %v1981
        %1983 = vmatmul.f32.gmra.mxu0 %v1872
        %v1984 = vpop.f32.mrf.mxu0
        %v1985 = vadd.f32 0.0, %v1984
        %1986 = vmatmul.f32.gmra.mxu0 %v1875
        %v1987 = vpop.f32.mrf.mxu0
        %v1988 = vadd.f32 0.0, %v1987
        %1989 = vmatmul.f32.gmra.mxu0 %v1878
        %v1990 = vpop.f32.mrf.mxu0
        %v1991 = vadd.f32 0.0, %v1990
        %1992 = vmatmul.f32.gmra.mxu0 %v1881
        %v1993 = vpop.f32.mrf.mxu0
        %v1994 = vadd.f32 0.0, %v1993
        %1995 = vmatmul.f32.gmra.mxu0 %v1884
        %v1996 = vpop.f32.mrf.mxu0
        %v1997 = vadd.f32 0.0, %v1996
        %1998 = vmatmul.f32.gmra.mxu0 %v1887
        %v1999 = vpop.f32.mrf.mxu0
        %v2000 = vadd.f32 0.0, %v1999
        %2001 = vmatmul.f32.gmra.mxu0 %v1890
        %v2002 = vpop.f32.mrf.mxu0
        %v2003 = vadd.f32 0.0, %v2002
        %2004 = vmatmul.f32.gmra.mxu0 %v1893
        %v2005 = vpop.f32.mrf.mxu0
        %v2006 = vadd.f32 0.0, %v2005
        %2007 = vmatmul.f32.gmra.mxu0 %v1896
        %v2008 = vpop.f32.mrf.mxu0
        %v2009 = vadd.f32 0.0, %v2008
        %2010 = vmatmul.f32.gmra.mxu0 %v1899
        %v2011 = vpop.f32.mrf.mxu0
        %v2012 = vadd.f32 0.0, %v2011
        %2013 = vmatmul.f32.gmra.mxu0 %v1902
        %v2014 = vpop.f32.mrf.mxu0
        %v2015 = vadd.f32 0.0, %v2014
        %2016 = vmatmul.f32.gmra.mxu0 %v1905
        %v2017 = vpop.f32.mrf.mxu0
        %v2018 = vadd.f32 0.0, %v2017
        %2019 = vmatmul.f32.gmra.mxu0 %v1908
        %v2020 = vpop.f32.mrf.mxu0
        %v2021 = vadd.f32 0.0, %v2020
        %2022 = vmatmul.f32.gmra.mxu0 %v1911
        %v2023 = vpop.f32.mrf.mxu0
        %v2024 = vadd.f32 0.0, %v2023
        %2025 = vmatmul.f32.gmra.mxu0 %v1914
        %v2026 = vpop.f32.mrf.mxu0
        %v2027 = vadd.f32 0.0, %v2026
        %2028 = vdwg.mxu0
        %v2029 = vadd.f32 %v1747, %v1934
        %v2030 = vadd.f32 %v1748, %v1937
        %v2031 = vadd.f32 %v1749, %v1940
        %v2032 = vadd.f32 %v1750, %v1943
        %v2033 = vadd.f32 %v1751, %v1946
        %v2034 = vadd.f32 %v1752, %v1949
        %v2035 = vadd.f32 %v1753, %v1952
        %v2036 = vadd.f32 %v1754, %v1955
        %v2037 = vadd.f32 %v1755, %v1958
        %v2038 = vadd.f32 %v1756, %v1961
        %v2039 = vadd.f32 %v1757, %v1964
        %v2040 = vadd.f32 %v1758, %v1967
        %v2041 = vadd.f32 %v1759, %v1970
        %v2042 = vadd.f32 %v1760, %v1973
        %v2043 = vadd.f32 %v1761, %v1976
        %v2044 = vadd.f32 %v1762, %v1979
        %v2045 = vadd.f32 %v1763, %v1982
        %v2046 = vadd.f32 %v1764, %v1985
        %v2047 = vadd.f32 %v1765, %v1988
        %v2048 = vadd.f32 %v1766, %v1991
        %v2049 = vadd.f32 %v1767, %v1994
        %v2050 = vadd.f32 %v1768, %v1997
        %v2051 = vadd.f32 %v1769, %v2000
        %v2052 = vadd.f32 %v1770, %v2003
        %v2053 = vadd.f32 %v1771, %v2006
        %v2054 = vadd.f32 %v1772, %v2009
        %v2055 = vadd.f32 %v1773, %v2012
        %v2056 = vadd.f32 %v1774, %v2015
        %v2057 = vadd.f32 %v1775, %v2018
        %v2058 = vadd.f32 %v1776, %v2021
        %v2059 = vadd.f32 %v1777, %v2024
        %v2060 = vadd.f32 %v1778, %v2027
        %v2061 = vld [vmem:[%s326 + $0x9] sm:$0xff]
        %v2062 = vld [vmem:[%s326 + $0x11] sm:$0xff]
        %v2063 = vld [vmem:[%s326 + $0x29] sm:$0xff]
        %v2064 = vld [vmem:[%s326 + $0x31] sm:$0xff]
        %v2065 = vld [vmem:[%s326 + $0x49] sm:$0xff]
        %v2066 = vld [vmem:[%s326 + $0x51] sm:$0xff]
        %v2067 = vld [vmem:[%s326 + $0x69] sm:$0xff]
        %v2068 = vld [vmem:[%s326 + $0x71] sm:$0xff]
        %v2069 = vld [vmem:[%s326 + $0x89] sm:$0xff]
        %v2070 = vld [vmem:[%s326 + $0x91] sm:$0xff]
        %v2071 = vld [vmem:[%s326 + $0xa9] sm:$0xff]
        %v2072 = vld [vmem:[%s326 + $0xb1] sm:$0xff]
        %v2073 = vld [vmem:[%s326 + $0xc9] sm:$0xff]
        %v2074 = vld [vmem:[%s326 + $0xd1] sm:$0xff]
        %v2075 = vld [vmem:[%s326 + $0xe9] sm:$0xff]
        %v2076 = vld [vmem:[%s326 + $0xf1] sm:$0xff]
        %v2077 = vld [vmem:[%s326 + $0x109] sm:$0xff]
        %v2078 = vld [vmem:[%s326 + $0x111] sm:$0xff]
        %v2079 = vld [vmem:[%s326 + $0x129] sm:$0xff]
        %v2080 = vld [vmem:[%s326 + $0x131] sm:$0xff]
        %v2081 = vld [vmem:[%s326 + $0x149] sm:$0xff]
        %v2082 = vld [vmem:[%s326 + $0x151] sm:$0xff]
        %v2083 = vld [vmem:[%s326 + $0x169] sm:$0xff]
        %v2084 = vld [vmem:[%s326 + $0x171] sm:$0xff]
        %v2085 = vld [vmem:[%s326 + $0x189] sm:$0xff]
        %v2086 = vld [vmem:[%s326 + $0x191] sm:$0xff]
        %v2087 = vld [vmem:[%s326 + $0x1a9] sm:$0xff]
        %v2088 = vld [vmem:[%s326 + $0x1b1] sm:$0xff]
        %v2089 = vld [vmem:[%s326 + $0x1c9] sm:$0xff]
        %v2090 = vld [vmem:[%s326 + $0x1d1] sm:$0xff]
        %v2091 = vld [vmem:[%s326 + $0x1e9] sm:$0xff]
        %v2092 = vld [vmem:[%s326 + $0x1f1] sm:$0xff]
        %s2093 = scalar_lea.vmem %s3, 320
        %v2094 = vld [vmem:[%s2093] sm:$0xff]
        %v2095 = vld [vmem:[%s2093 + $0x8] sm:$0xff]
        %v2096 = vld [vmem:[%s2093 + $0x10] sm:$0xff]
        %v2097 = vld [vmem:[%s2093 + $0x18] sm:$0xff]
        %v2098 = vld [vmem:[%s2093 + $0x20] sm:$0xff]
        %v2099 = vld [vmem:[%s2093 + $0x28] sm:$0xff]
        %v2100 = vld [vmem:[%s2093 + $0x30] sm:$0xff]
        %v2101 = vld [vmem:[%s2093 + $0x38] sm:$0xff]
        %v2103 = vsel %vm316, %v2061, 0
        %v2106 = vsel %vm316, %v2062, 0
        %v2109 = vsel %vm316, %v2063, 0
        %v2112 = vsel %vm316, %v2064, 0
        %v2115 = vsel %vm316, %v2065, 0
        %v2118 = vsel %vm316, %v2066, 0
        %v2121 = vsel %vm316, %v2067, 0
        %v2124 = vsel %vm316, %v2068, 0
        %v2127 = vsel %vm316, %v2069, 0
        %v2130 = vsel %vm316, %v2070, 0
        %v2133 = vsel %vm316, %v2071, 0
        %v2136 = vsel %vm316, %v2072, 0
        %v2139 = vsel %vm316, %v2073, 0
        %v2142 = vsel %vm316, %v2074, 0
        %v2145 = vsel %vm316, %v2075, 0
        %v2148 = vsel %vm316, %v2076, 0
        %v2151 = vsel %vm316, %v2077, 0
        %v2154 = vsel %vm316, %v2078, 0
        %v2157 = vsel %vm316, %v2079, 0
        %v2160 = vsel %vm316, %v2080, 0
        %v2163 = vsel %vm316, %v2081, 0
        %v2166 = vsel %vm316, %v2082, 0
        %v2169 = vsel %vm316, %v2083, 0
        %v2172 = vsel %vm316, %v2084, 0
        %v2175 = vsel %vm316, %v2085, 0
        %v2178 = vsel %vm316, %v2086, 0
        %v2181 = vsel %vm316, %v2087, 0
        %v2184 = vsel %vm316, %v2088, 0
        %v2187 = vsel %vm316, %v2089, 0
        %v2190 = vsel %vm316, %v2090, 0
        %v2193 = vsel %vm316, %v2091, 0
        %v2196 = vsel %vm316, %v2092, 0
        %2198 = vmatpush.msra.mxu0 0.0
        %2199 = vmatpush.msra.mxu0 0.0
        %2200 = vmatpush.msra.mxu0 0.0
        %2201 = vmatpush.msra.mxu0 0.0
        %2202 = vmatpush.msra.mxu0 0.0
        %2203 = vmatpush.msra.mxu0 0.0
        %2204 = vmatpush.msra.mxu0 0.0
        %2205 = vmatpush.msra.mxu0 0.0
        %2206 = vmatpush.msra.mxu0 %v2101
        %2207 = vmatpush.msra.mxu0 %v2100
        %2208 = vmatpush.msra.mxu0 %v2099
        %2209 = vmatpush.msra.mxu0 %v2098
        %2210 = vmatpush.msra.mxu0 %v2097
        %2211 = vmatpush.msra.mxu0 %v2096
        %2212 = vmatpush.msra.mxu0 %v2095
        %2213 = vmatpush.msra.mxu0 %v2094
        %2214 = vmatmul.f32.gmra.mxu0 %v2103
        %v2215 = vpop.f32.mrf.mxu0
        %v2216 = vadd.f32 0.0, %v2215
        %2217 = vmatmul.f32.gmra.mxu0 %v2106
        %v2218 = vpop.f32.mrf.mxu0
        %v2219 = vadd.f32 0.0, %v2218
        %2220 = vmatmul.f32.gmra.mxu0 %v2109
        %v2221 = vpop.f32.mrf.mxu0
        %v2222 = vadd.f32 0.0, %v2221
        %2223 = vmatmul.f32.gmra.mxu0 %v2112
        %v2224 = vpop.f32.mrf.mxu0
        %v2225 = vadd.f32 0.0, %v2224
        %2226 = vmatmul.f32.gmra.mxu0 %v2115
        %v2227 = vpop.f32.mrf.mxu0
        %v2228 = vadd.f32 0.0, %v2227
        %2229 = vmatmul.f32.gmra.mxu0 %v2118
        %v2230 = vpop.f32.mrf.mxu0
        %v2231 = vadd.f32 0.0, %v2230
        %2232 = vmatmul.f32.gmra.mxu0 %v2121
        %v2233 = vpop.f32.mrf.mxu0
        %v2234 = vadd.f32 0.0, %v2233
        %2235 = vmatmul.f32.gmra.mxu0 %v2124
        %v2236 = vpop.f32.mrf.mxu0
        %v2237 = vadd.f32 0.0, %v2236
        %2238 = vmatmul.f32.gmra.mxu0 %v2127
        %v2239 = vpop.f32.mrf.mxu0
        %v2240 = vadd.f32 0.0, %v2239
        %2241 = vmatmul.f32.gmra.mxu0 %v2130
        %v2242 = vpop.f32.mrf.mxu0
        %v2243 = vadd.f32 0.0, %v2242
        %2244 = vmatmul.f32.gmra.mxu0 %v2133
        %v2245 = vpop.f32.mrf.mxu0
        %v2246 = vadd.f32 0.0, %v2245
        %2247 = vmatmul.f32.gmra.mxu0 %v2136
        %v2248 = vpop.f32.mrf.mxu0
        %v2249 = vadd.f32 0.0, %v2248
        %2250 = vmatmul.f32.gmra.mxu0 %v2139
        %v2251 = vpop.f32.mrf.mxu0
        %v2252 = vadd.f32 0.0, %v2251
        %2253 = vmatmul.f32.gmra.mxu0 %v2142
        %v2254 = vpop.f32.mrf.mxu0
        %v2255 = vadd.f32 0.0, %v2254
        %2256 = vmatmul.f32.gmra.mxu0 %v2145
        %v2257 = vpop.f32.mrf.mxu0
        %v2258 = vadd.f32 0.0, %v2257
        %2259 = vmatmul.f32.gmra.mxu0 %v2148
        %v2260 = vpop.f32.mrf.mxu0
        %v2261 = vadd.f32 0.0, %v2260
        %2262 = vmatmul.f32.gmra.mxu0 %v2151
        %v2263 = vpop.f32.mrf.mxu0
        %v2264 = vadd.f32 0.0, %v2263
        %2265 = vmatmul.f32.gmra.mxu0 %v2154
        %v2266 = vpop.f32.mrf.mxu0
        %v2267 = vadd.f32 0.0, %v2266
        %2268 = vmatmul.f32.gmra.mxu0 %v2157
        %v2269 = vpop.f32.mrf.mxu0
        %v2270 = vadd.f32 0.0, %v2269
        %2271 = vmatmul.f32.gmra.mxu0 %v2160
        %v2272 = vpop.f32.mrf.mxu0
        %v2273 = vadd.f32 0.0, %v2272
        %2274 = vmatmul.f32.gmra.mxu0 %v2163
        %v2275 = vpop.f32.mrf.mxu0
        %v2276 = vadd.f32 0.0, %v2275
        %2277 = vmatmul.f32.gmra.mxu0 %v2166
        %v2278 = vpop.f32.mrf.mxu0
        %v2279 = vadd.f32 0.0, %v2278
        %2280 = vmatmul.f32.gmra.mxu0 %v2169
        %v2281 = vpop.f32.mrf.mxu0
        %v2282 = vadd.f32 0.0, %v2281
        %2283 = vmatmul.f32.gmra.mxu0 %v2172
        %v2284 = vpop.f32.mrf.mxu0
        %v2285 = vadd.f32 0.0, %v2284
        %2286 = vmatmul.f32.gmra.mxu0 %v2175
        %v2287 = vpop.f32.mrf.mxu0
        %v2288 = vadd.f32 0.0, %v2287
        %2289 = vmatmul.f32.gmra.mxu0 %v2178
        %v2290 = vpop.f32.mrf.mxu0
        %v2291 = vadd.f32 0.0, %v2290
        %2292 = vmatmul.f32.gmra.mxu0 %v2181
        %v2293 = vpop.f32.mrf.mxu0
        %v2294 = vadd.f32 0.0, %v2293
        %2295 = vmatmul.f32.gmra.mxu0 %v2184
        %v2296 = vpop.f32.mrf.mxu0
        %v2297 = vadd.f32 0.0, %v2296
        %2298 = vmatmul.f32.gmra.mxu0 %v2187
        %v2299 = vpop.f32.mrf.mxu0
        %v2300 = vadd.f32 0.0, %v2299
        %2301 = vmatmul.f32.gmra.mxu0 %v2190
        %v2302 = vpop.f32.mrf.mxu0
        %v2303 = vadd.f32 0.0, %v2302
        %2304 = vmatmul.f32.gmra.mxu0 %v2193
        %v2305 = vpop.f32.mrf.mxu0
        %v2306 = vadd.f32 0.0, %v2305
        %2307 = vmatmul.f32.gmra.mxu0 %v2196
        %v2308 = vpop.f32.mrf.mxu0
        %v2309 = vadd.f32 0.0, %v2308
        %2310 = vdwg.mxu0
        %v2311 = vadd.f32 %v2029, %v2216
        %v2312 = vadd.f32 %v2030, %v2219
        %v2313 = vadd.f32 %v2031, %v2222
        %v2314 = vadd.f32 %v2032, %v2225
        %v2315 = vadd.f32 %v2033, %v2228
        %v2316 = vadd.f32 %v2034, %v2231
        %v2317 = vadd.f32 %v2035, %v2234
        %v2318 = vadd.f32 %v2036, %v2237
        %v2319 = vadd.f32 %v2037, %v2240
        %v2320 = vadd.f32 %v2038, %v2243
        %v2321 = vadd.f32 %v2039, %v2246
        %v2322 = vadd.f32 %v2040, %v2249
        %v2323 = vadd.f32 %v2041, %v2252
        %v2324 = vadd.f32 %v2042, %v2255
        %v2325 = vadd.f32 %v2043, %v2258
        %v2326 = vadd.f32 %v2044, %v2261
        %v2327 = vadd.f32 %v2045, %v2264
        %v2328 = vadd.f32 %v2046, %v2267
        %v2329 = vadd.f32 %v2047, %v2270
        %v2330 = vadd.f32 %v2048, %v2273
        %v2331 = vadd.f32 %v2049, %v2276
        %v2332 = vadd.f32 %v2050, %v2279
        %v2333 = vadd.f32 %v2051, %v2282
        %v2334 = vadd.f32 %v2052, %v2285
        %v2335 = vadd.f32 %v2053, %v2288
        %v2336 = vadd.f32 %v2054, %v2291
        %v2337 = vadd.f32 %v2055, %v2294
        %v2338 = vadd.f32 %v2056, %v2297
        %v2339 = vadd.f32 %v2057, %v2300
        %v2340 = vadd.f32 %v2058, %v2303
        %v2341 = vadd.f32 %v2059, %v2306
        %v2342 = vadd.f32 %v2060, %v2309
        %s2343 = scalar_lea.vmem [#allocation2], 64
        %v2344 = vld [vmem:[%s2343 + $0x7] sm:$0xff]
        %v2345 = vld [vmem:[%s2343 + $0xf] sm:$0xff]
        %v2346 = vld [vmem:[%s2343 + $0x27] sm:$0xff]
        %v2347 = vld [vmem:[%s2343 + $0x2f] sm:$0xff]
        %v2348 = vld [vmem:[%s2343 + $0x47] sm:$0xff]
        %v2349 = vld [vmem:[%s2343 + $0x4f] sm:$0xff]
        %v2350 = vld [vmem:[%s2343 + $0x67] sm:$0xff]
        %v2351 = vld [vmem:[%s2343 + $0x6f] sm:$0xff]
        %v2352 = vld [vmem:[%s2343 + $0x87] sm:$0xff]
        %v2353 = vld [vmem:[%s2343 + $0x8f] sm:$0xff]
        %v2354 = vld [vmem:[%s2343 + $0xa7] sm:$0xff]
        %v2355 = vld [vmem:[%s2343 + $0xaf] sm:$0xff]
        %v2356 = vld [vmem:[%s2343 + $0xc7] sm:$0xff]
        %v2357 = vld [vmem:[%s2343 + $0xcf] sm:$0xff]
        %v2358 = vld [vmem:[%s2343 + $0xe7] sm:$0xff]
        %v2359 = vld [vmem:[%s2343 + $0xef] sm:$0xff]
        %v2360 = vld [vmem:[%s2343 + $0x107] sm:$0xff]
        %v2361 = vld [vmem:[%s2343 + $0x10f] sm:$0xff]
        %v2362 = vld [vmem:[%s2343 + $0x127] sm:$0xff]
        %v2363 = vld [vmem:[%s2343 + $0x12f] sm:$0xff]
        %v2364 = vld [vmem:[%s2343 + $0x147] sm:$0xff]
        %v2365 = vld [vmem:[%s2343 + $0x14f] sm:$0xff]
        %v2366 = vld [vmem:[%s2343 + $0x167] sm:$0xff]
        %v2367 = vld [vmem:[%s2343 + $0x16f] sm:$0xff]
        %v2368 = vld [vmem:[%s2343 + $0x187] sm:$0xff]
        %v2369 = vld [vmem:[%s2343 + $0x18f] sm:$0xff]
        %v2370 = vld [vmem:[%s2343 + $0x1a7] sm:$0xff]
        %v2371 = vld [vmem:[%s2343 + $0x1af] sm:$0xff]
        %v2372 = vld [vmem:[%s2343 + $0x1c7] sm:$0xff]
        %v2373 = vld [vmem:[%s2343 + $0x1cf] sm:$0xff]
        %v2374 = vld [vmem:[%s2343 + $0x1e7] sm:$0xff]
        %v2375 = vld [vmem:[%s2343 + $0x1ef] sm:$0xff]
        %s2376 = scalar_lea.vmem %s3, 384
        %v2377 = vld [vmem:[%s2376] sm:$0xff]
        %v2378 = vld [vmem:[%s2376 + $0x8] sm:$0xff]
        %v2379 = vld [vmem:[%s2376 + $0x10] sm:$0xff]
        %v2380 = vld [vmem:[%s2376 + $0x18] sm:$0xff]
        %v2381 = vld [vmem:[%s2376 + $0x20] sm:$0xff]
        %v2382 = vld [vmem:[%s2376 + $0x28] sm:$0xff]
        %v2383 = vld [vmem:[%s2376 + $0x30] sm:$0xff]
        %v2384 = vld [vmem:[%s2376 + $0x38] sm:$0xff]
        %v2386 = vsel %vm316, %v2344, 0
        %v2389 = vsel %vm316, %v2345, 0
        %v2392 = vsel %vm316, %v2346, 0
        %v2395 = vsel %vm316, %v2347, 0
        %v2398 = vsel %vm316, %v2348, 0
        %v2401 = vsel %vm316, %v2349, 0
        %v2404 = vsel %vm316, %v2350, 0
        %v2407 = vsel %vm316, %v2351, 0
        %v2410 = vsel %vm316, %v2352, 0
        %v2413 = vsel %vm316, %v2353, 0
        %v2416 = vsel %vm316, %v2354, 0
        %v2419 = vsel %vm316, %v2355, 0
        %v2422 = vsel %vm316, %v2356, 0
        %v2425 = vsel %vm316, %v2357, 0
        %v2428 = vsel %vm316, %v2358, 0
        %v2431 = vsel %vm316, %v2359, 0
        %v2434 = vsel %vm316, %v2360, 0
        %v2437 = vsel %vm316, %v2361, 0
        %v2440 = vsel %vm316, %v2362, 0
        %v2443 = vsel %vm316, %v2363, 0
        %v2446 = vsel %vm316, %v2364, 0
        %v2449 = vsel %vm316, %v2365, 0
        %v2452 = vsel %vm316, %v2366, 0
        %v2455 = vsel %vm316, %v2367, 0
        %v2458 = vsel %vm316, %v2368, 0
        %v2461 = vsel %vm316, %v2369, 0
        %v2464 = vsel %vm316, %v2370, 0
        %v2467 = vsel %vm316, %v2371, 0
        %v2470 = vsel %vm316, %v2372, 0
        %v2473 = vsel %vm316, %v2373, 0
        %v2476 = vsel %vm316, %v2374, 0
        %v2479 = vsel %vm316, %v2375, 0
        %2481 = vmatpush.msra.mxu0 0.0
        %2482 = vmatpush.msra.mxu0 0.0
        %2483 = vmatpush.msra.mxu0 0.0
        %2484 = vmatpush.msra.mxu0 0.0
        %2485 = vmatpush.msra.mxu0 0.0
        %2486 = vmatpush.msra.mxu0 0.0
        %2487 = vmatpush.msra.mxu0 0.0
        %2488 = vmatpush.msra.mxu0 0.0
        %2489 = vmatpush.msra.mxu0 %v2384
        %2490 = vmatpush.msra.mxu0 %v2383
        %2491 = vmatpush.msra.mxu0 %v2382
        %2492 = vmatpush.msra.mxu0 %v2381
        %2493 = vmatpush.msra.mxu0 %v2380
        %2494 = vmatpush.msra.mxu0 %v2379
        %2495 = vmatpush.msra.mxu0 %v2378
        %2496 = vmatpush.msra.mxu0 %v2377
        %2497 = vmatmul.f32.gmra.mxu0 %v2386
        %v2498 = vpop.f32.mrf.mxu0
        %v2499 = vadd.f32 0.0, %v2498
        %2500 = vmatmul.f32.gmra.mxu0 %v2389
        %v2501 = vpop.f32.mrf.mxu0
        %v2502 = vadd.f32 0.0, %v2501
        %2503 = vmatmul.f32.gmra.mxu0 %v2392
        %v2504 = vpop.f32.mrf.mxu0
        %v2505 = vadd.f32 0.0, %v2504
        %2506 = vmatmul.f32.gmra.mxu0 %v2395
        %v2507 = vpop.f32.mrf.mxu0
        %v2508 = vadd.f32 0.0, %v2507
        %2509 = vmatmul.f32.gmra.mxu0 %v2398
        %v2510 = vpop.f32.mrf.mxu0
        %v2511 = vadd.f32 0.0, %v2510
        %2512 = vmatmul.f32.gmra.mxu0 %v2401
        %v2513 = vpop.f32.mrf.mxu0
        %v2514 = vadd.f32 0.0, %v2513
        %2515 = vmatmul.f32.gmra.mxu0 %v2404
        %v2516 = vpop.f32.mrf.mxu0
        %v2517 = vadd.f32 0.0, %v2516
        %2518 = vmatmul.f32.gmra.mxu0 %v2407
        %v2519 = vpop.f32.mrf.mxu0
        %v2520 = vadd.f32 0.0, %v2519
        %2521 = vmatmul.f32.gmra.mxu0 %v2410
        %v2522 = vpop.f32.mrf.mxu0
        %v2523 = vadd.f32 0.0, %v2522
        %2524 = vmatmul.f32.gmra.mxu0 %v2413
        %v2525 = vpop.f32.mrf.mxu0
        %v2526 = vadd.f32 0.0, %v2525
        %2527 = vmatmul.f32.gmra.mxu0 %v2416
        %v2528 = vpop.f32.mrf.mxu0
        %v2529 = vadd.f32 0.0, %v2528
        %2530 = vmatmul.f32.gmra.mxu0 %v2419
        %v2531 = vpop.f32.mrf.mxu0
        %v2532 = vadd.f32 0.0, %v2531
        %2533 = vmatmul.f32.gmra.mxu0 %v2422
        %v2534 = vpop.f32.mrf.mxu0
        %v2535 = vadd.f32 0.0, %v2534
        %2536 = vmatmul.f32.gmra.mxu0 %v2425
        %v2537 = vpop.f32.mrf.mxu0
        %v2538 = vadd.f32 0.0, %v2537
        %2539 = vmatmul.f32.gmra.mxu0 %v2428
        %v2540 = vpop.f32.mrf.mxu0
        %v2541 = vadd.f32 0.0, %v2540
        %2542 = vmatmul.f32.gmra.mxu0 %v2431
        %v2543 = vpop.f32.mrf.mxu0
        %v2544 = vadd.f32 0.0, %v2543
        %2545 = vmatmul.f32.gmra.mxu0 %v2434
        %v2546 = vpop.f32.mrf.mxu0
        %v2547 = vadd.f32 0.0, %v2546
        %2548 = vmatmul.f32.gmra.mxu0 %v2437
        %v2549 = vpop.f32.mrf.mxu0
        %v2550 = vadd.f32 0.0, %v2549
        %2551 = vmatmul.f32.gmra.mxu0 %v2440
        %v2552 = vpop.f32.mrf.mxu0
        %v2553 = vadd.f32 0.0, %v2552
        %2554 = vmatmul.f32.gmra.mxu0 %v2443
        %v2555 = vpop.f32.mrf.mxu0
        %v2556 = vadd.f32 0.0, %v2555
        %2557 = vmatmul.f32.gmra.mxu0 %v2446
        %v2558 = vpop.f32.mrf.mxu0
        %v2559 = vadd.f32 0.0, %v2558
        %2560 = vmatmul.f32.gmra.mxu0 %v2449
        %v2561 = vpop.f32.mrf.mxu0
        %v2562 = vadd.f32 0.0, %v2561
        %2563 = vmatmul.f32.gmra.mxu0 %v2452
        %v2564 = vpop.f32.mrf.mxu0
        %v2565 = vadd.f32 0.0, %v2564
        %2566 = vmatmul.f32.gmra.mxu0 %v2455
        %v2567 = vpop.f32.mrf.mxu0
        %v2568 = vadd.f32 0.0, %v2567
        %2569 = vmatmul.f32.gmra.mxu0 %v2458
        %v2570 = vpop.f32.mrf.mxu0
        %v2571 = vadd.f32 0.0, %v2570
        %2572 = vmatmul.f32.gmra.mxu0 %v2461
        %v2573 = vpop.f32.mrf.mxu0
        %v2574 = vadd.f32 0.0, %v2573
        %2575 = vmatmul.f32.gmra.mxu0 %v2464
        %v2576 = vpop.f32.mrf.mxu0
        %v2577 = vadd.f32 0.0, %v2576
        %2578 = vmatmul.f32.gmra.mxu0 %v2467
        %v2579 = vpop.f32.mrf.mxu0
        %v2580 = vadd.f32 0.0, %v2579
        %2581 = vmatmul.f32.gmra.mxu0 %v2470
        %v2582 = vpop.f32.mrf.mxu0
        %v2583 = vadd.f32 0.0, %v2582
        %2584 = vmatmul.f32.gmra.mxu0 %v2473
        %v2585 = vpop.f32.mrf.mxu0
        %v2586 = vadd.f32 0.0, %v2585
        %2587 = vmatmul.f32.gmra.mxu0 %v2476
        %v2588 = vpop.f32.mrf.mxu0
        %v2589 = vadd.f32 0.0, %v2588
        %2590 = vmatmul.f32.gmra.mxu0 %v2479
        %v2591 = vpop.f32.mrf.mxu0
        %v2592 = vadd.f32 0.0, %v2591
        %2593 = vdwg.mxu0
        %v2594 = vadd.f32 %v2311, %v2499
        %v2595 = vadd.f32 %v2312, %v2502
        %v2596 = vadd.f32 %v2313, %v2505
        %v2597 = vadd.f32 %v2314, %v2508
        %v2598 = vadd.f32 %v2315, %v2511
        %v2599 = vadd.f32 %v2316, %v2514
        %v2600 = vadd.f32 %v2317, %v2517
        %v2601 = vadd.f32 %v2318, %v2520
        %v2602 = vadd.f32 %v2319, %v2523
        %v2603 = vadd.f32 %v2320, %v2526
        %v2604 = vadd.f32 %v2321, %v2529
        %v2605 = vadd.f32 %v2322, %v2532
        %v2606 = vadd.f32 %v2323, %v2535
        %v2607 = vadd.f32 %v2324, %v2538
        %v2608 = vadd.f32 %v2325, %v2541
        %v2609 = vadd.f32 %v2326, %v2544
        %v2610 = vadd.f32 %v2327, %v2547
        %v2611 = vadd.f32 %v2328, %v2550
        %v2612 = vadd.f32 %v2329, %v2553
        %v2613 = vadd.f32 %v2330, %v2556
        %v2614 = vadd.f32 %v2331, %v2559
        %v2615 = vadd.f32 %v2332, %v2562
        %v2616 = vadd.f32 %v2333, %v2565
        %v2617 = vadd.f32 %v2334, %v2568
        %v2618 = vadd.f32 %v2335, %v2571
        %v2619 = vadd.f32 %v2336, %v2574
        %v2620 = vadd.f32 %v2337, %v2577
        %v2621 = vadd.f32 %v2338, %v2580
        %v2622 = vadd.f32 %v2339, %v2583
        %v2623 = vadd.f32 %v2340, %v2586
        %v2624 = vadd.f32 %v2341, %v2589
        %v2625 = vadd.f32 %v2342, %v2592
        %v2626 = vld [vmem:[%s2343 + $0x8] sm:$0xff]
        %v2627 = vld [vmem:[%s2343 + $0x10] sm:$0xff]
        %v2628 = vld [vmem:[%s2343 + $0x28] sm:$0xff]
        %v2629 = vld [vmem:[%s2343 + $0x30] sm:$0xff]
        %v2630 = vld [vmem:[%s2343 + $0x48] sm:$0xff]
        %v2631 = vld [vmem:[%s2343 + $0x50] sm:$0xff]
        %v2632 = vld [vmem:[%s2343 + $0x68] sm:$0xff]
        %v2633 = vld [vmem:[%s2343 + $0x70] sm:$0xff]
        %v2634 = vld [vmem:[%s2343 + $0x88] sm:$0xff]
        %v2635 = vld [vmem:[%s2343 + $0x90] sm:$0xff]
        %v2636 = vld [vmem:[%s2343 + $0xa8] sm:$0xff]
        %v2637 = vld [vmem:[%s2343 + $0xb0] sm:$0xff]
        %v2638 = vld [vmem:[%s2343 + $0xc8] sm:$0xff]
        %v2639 = vld [vmem:[%s2343 + $0xd0] sm:$0xff]
        %v2640 = vld [vmem:[%s2343 + $0xe8] sm:$0xff]
        %v2641 = vld [vmem:[%s2343 + $0xf0] sm:$0xff]
        %v2642 = vld [vmem:[%s2343 + $0x108] sm:$0xff]
        %v2643 = vld [vmem:[%s2343 + $0x110] sm:$0xff]
        %v2644 = vld [vmem:[%s2343 + $0x128] sm:$0xff]
        %v2645 = vld [vmem:[%s2343 + $0x130] sm:$0xff]
        %v2646 = vld [vmem:[%s2343 + $0x148] sm:$0xff]
        %v2647 = vld [vmem:[%s2343 + $0x150] sm:$0xff]
        %v2648 = vld [vmem:[%s2343 + $0x168] sm:$0xff]
        %v2649 = vld [vmem:[%s2343 + $0x170] sm:$0xff]
        %v2650 = vld [vmem:[%s2343 + $0x188] sm:$0xff]
        %v2651 = vld [vmem:[%s2343 + $0x190] sm:$0xff]
        %v2652 = vld [vmem:[%s2343 + $0x1a8] sm:$0xff]
        %v2653 = vld [vmem:[%s2343 + $0x1b0] sm:$0xff]
        %v2654 = vld [vmem:[%s2343 + $0x1c8] sm:$0xff]
        %v2655 = vld [vmem:[%s2343 + $0x1d0] sm:$0xff]
        %v2656 = vld [vmem:[%s2343 + $0x1e8] sm:$0xff]
        %v2657 = vld [vmem:[%s2343 + $0x1f0] sm:$0xff]
        %s2658 = scalar_lea.vmem %s3, 448
        %v2659 = vld [vmem:[%s2658] sm:$0xff]
        %v2660 = vld [vmem:[%s2658 + $0x8] sm:$0xff]
        %v2661 = vld [vmem:[%s2658 + $0x10] sm:$0xff]
        %v2662 = vld [vmem:[%s2658 + $0x18] sm:$0xff]
        %v2663 = vld [vmem:[%s2658 + $0x20] sm:$0xff]
        %v2664 = vld [vmem:[%s2658 + $0x28] sm:$0xff]
        %v2665 = vld [vmem:[%s2658 + $0x30] sm:$0xff]
        %v2666 = vld [vmem:[%s2658 + $0x38] sm:$0xff]
        %v2668 = vsel %vm316, %v2626, 0
        %v2671 = vsel %vm316, %v2627, 0
        %v2674 = vsel %vm316, %v2628, 0
        %v2677 = vsel %vm316, %v2629, 0
        %v2680 = vsel %vm316, %v2630, 0
        %v2683 = vsel %vm316, %v2631, 0
        %v2686 = vsel %vm316, %v2632, 0
        %v2689 = vsel %vm316, %v2633, 0
        %v2692 = vsel %vm316, %v2634, 0
        %v2695 = vsel %vm316, %v2635, 0
        %v2698 = vsel %vm316, %v2636, 0
        %v2701 = vsel %vm316, %v2637, 0
        %v2704 = vsel %vm316, %v2638, 0
        %v2707 = vsel %vm316, %v2639, 0
        %v2710 = vsel %vm316, %v2640, 0
        %v2713 = vsel %vm316, %v2641, 0
        %v2716 = vsel %vm316, %v2642, 0
        %v2719 = vsel %vm316, %v2643, 0
        %v2722 = vsel %vm316, %v2644, 0
        %v2725 = vsel %vm316, %v2645, 0
        %v2728 = vsel %vm316, %v2646, 0
        %v2731 = vsel %vm316, %v2647, 0
        %v2734 = vsel %vm316, %v2648, 0
        %v2737 = vsel %vm316, %v2649, 0
        %v2740 = vsel %vm316, %v2650, 0
        %v2743 = vsel %vm316, %v2651, 0
        %v2746 = vsel %vm316, %v2652, 0
        %v2749 = vsel %vm316, %v2653, 0
        %v2752 = vsel %vm316, %v2654, 0
        %v2755 = vsel %vm316, %v2655, 0
        %v2758 = vsel %vm316, %v2656, 0
        %v2761 = vsel %vm316, %v2657, 0
        %2763 = vmatpush.msra.mxu0 0.0
        %2764 = vmatpush.msra.mxu0 0.0
        %2765 = vmatpush.msra.mxu0 0.0
        %2766 = vmatpush.msra.mxu0 0.0
        %2767 = vmatpush.msra.mxu0 0.0
        %2768 = vmatpush.msra.mxu0 0.0
        %2769 = vmatpush.msra.mxu0 0.0
        %2770 = vmatpush.msra.mxu0 0.0
        %2771 = vmatpush.msra.mxu0 %v2666
        %2772 = vmatpush.msra.mxu0 %v2665
        %2773 = vmatpush.msra.mxu0 %v2664
        %2774 = vmatpush.msra.mxu0 %v2663
        %2775 = vmatpush.msra.mxu0 %v2662
        %2776 = vmatpush.msra.mxu0 %v2661
        %2777 = vmatpush.msra.mxu0 %v2660
        %2778 = vmatpush.msra.mxu0 %v2659
        %2779 = vmatmul.f32.gmra.mxu0 %v2668
        %v2780 = vpop.f32.mrf.mxu0
        %v2781 = vadd.f32 0.0, %v2780
        %2782 = vmatmul.f32.gmra.mxu0 %v2671
        %v2783 = vpop.f32.mrf.mxu0
        %v2784 = vadd.f32 0.0, %v2783
        %2785 = vmatmul.f32.gmra.mxu0 %v2674
        %v2786 = vpop.f32.mrf.mxu0
        %v2787 = vadd.f32 0.0, %v2786
        %2788 = vmatmul.f32.gmra.mxu0 %v2677
        %v2789 = vpop.f32.mrf.mxu0
        %v2790 = vadd.f32 0.0, %v2789
        %2791 = vmatmul.f32.gmra.mxu0 %v2680
        %v2792 = vpop.f32.mrf.mxu0
        %v2793 = vadd.f32 0.0, %v2792
        %2794 = vmatmul.f32.gmra.mxu0 %v2683
        %v2795 = vpop.f32.mrf.mxu0
        %v2796 = vadd.f32 0.0, %v2795
        %2797 = vmatmul.f32.gmra.mxu0 %v2686
        %v2798 = vpop.f32.mrf.mxu0
        %v2799 = vadd.f32 0.0, %v2798
        %2800 = vmatmul.f32.gmra.mxu0 %v2689
        %v2801 = vpop.f32.mrf.mxu0
        %v2802 = vadd.f32 0.0, %v2801
        %2803 = vmatmul.f32.gmra.mxu0 %v2692
        %v2804 = vpop.f32.mrf.mxu0
        %v2805 = vadd.f32 0.0, %v2804
        %2806 = vmatmul.f32.gmra.mxu0 %v2695
        %v2807 = vpop.f32.mrf.mxu0
        %v2808 = vadd.f32 0.0, %v2807
        %2809 = vmatmul.f32.gmra.mxu0 %v2698
        %v2810 = vpop.f32.mrf.mxu0
        %v2811 = vadd.f32 0.0, %v2810
        %2812 = vmatmul.f32.gmra.mxu0 %v2701
        %v2813 = vpop.f32.mrf.mxu0
        %v2814 = vadd.f32 0.0, %v2813
        %2815 = vmatmul.f32.gmra.mxu0 %v2704
        %v2816 = vpop.f32.mrf.mxu0
        %v2817 = vadd.f32 0.0, %v2816
        %2818 = vmatmul.f32.gmra.mxu0 %v2707
        %v2819 = vpop.f32.mrf.mxu0
        %v2820 = vadd.f32 0.0, %v2819
        %2821 = vmatmul.f32.gmra.mxu0 %v2710
        %v2822 = vpop.f32.mrf.mxu0
        %v2823 = vadd.f32 0.0, %v2822
        %2824 = vmatmul.f32.gmra.mxu0 %v2713
        %v2825 = vpop.f32.mrf.mxu0
        %v2826 = vadd.f32 0.0, %v2825
        %2827 = vmatmul.f32.gmra.mxu0 %v2716
        %v2828 = vpop.f32.mrf.mxu0
        %v2829 = vadd.f32 0.0, %v2828
        %2830 = vmatmul.f32.gmra.mxu0 %v2719
        %v2831 = vpop.f32.mrf.mxu0
        %v2832 = vadd.f32 0.0, %v2831
        %2833 = vmatmul.f32.gmra.mxu0 %v2722
        %v2834 = vpop.f32.mrf.mxu0
        %v2835 = vadd.f32 0.0, %v2834
        %2836 = vmatmul.f32.gmra.mxu0 %v2725
        %v2837 = vpop.f32.mrf.mxu0
        %v2838 = vadd.f32 0.0, %v2837
        %2839 = vmatmul.f32.gmra.mxu0 %v2728
        %v2840 = vpop.f32.mrf.mxu0
        %v2841 = vadd.f32 0.0, %v2840
        %2842 = vmatmul.f32.gmra.mxu0 %v2731
        %v2843 = vpop.f32.mrf.mxu0
        %v2844 = vadd.f32 0.0, %v2843
        %2845 = vmatmul.f32.gmra.mxu0 %v2734
        %v2846 = vpop.f32.mrf.mxu0
        %v2847 = vadd.f32 0.0, %v2846
        %2848 = vmatmul.f32.gmra.mxu0 %v2737
        %v2849 = vpop.f32.mrf.mxu0
        %v2850 = vadd.f32 0.0, %v2849
        %2851 = vmatmul.f32.gmra.mxu0 %v2740
        %v2852 = vpop.f32.mrf.mxu0
        %v2853 = vadd.f32 0.0, %v2852
        %2854 = vmatmul.f32.gmra.mxu0 %v2743
        %v2855 = vpop.f32.mrf.mxu0
        %v2856 = vadd.f32 0.0, %v2855
        %2857 = vmatmul.f32.gmra.mxu0 %v2746
        %v2858 = vpop.f32.mrf.mxu0
        %v2859 = vadd.f32 0.0, %v2858
        %2860 = vmatmul.f32.gmra.mxu0 %v2749
        %v2861 = vpop.f32.mrf.mxu0
        %v2862 = vadd.f32 0.0, %v2861
        %2863 = vmatmul.f32.gmra.mxu0 %v2752
        %v2864 = vpop.f32.mrf.mxu0
        %v2865 = vadd.f32 0.0, %v2864
        %2866 = vmatmul.f32.gmra.mxu0 %v2755
        %v2867 = vpop.f32.mrf.mxu0
        %v2868 = vadd.f32 0.0, %v2867
        %2869 = vmatmul.f32.gmra.mxu0 %v2758
        %v2870 = vpop.f32.mrf.mxu0
        %v2871 = vadd.f32 0.0, %v2870
        %2872 = vmatmul.f32.gmra.mxu0 %v2761
        %v2873 = vpop.f32.mrf.mxu0
        %v2874 = vadd.f32 0.0, %v2873
        %2875 = vdwg.mxu0
        %v2876 = vadd.f32 %v2594, %v2781
        %v2877 = vadd.f32 %v2595, %v2784
        %v2878 = vadd.f32 %v2596, %v2787
        %v2879 = vadd.f32 %v2597, %v2790
        %v2880 = vadd.f32 %v2598, %v2793
        %v2881 = vadd.f32 %v2599, %v2796
        %v2882 = vadd.f32 %v2600, %v2799
        %v2883 = vadd.f32 %v2601, %v2802
        %v2884 = vadd.f32 %v2602, %v2805
        %v2885 = vadd.f32 %v2603, %v2808
        %v2886 = vadd.f32 %v2604, %v2811
        %v2887 = vadd.f32 %v2605, %v2814
        %v2888 = vadd.f32 %v2606, %v2817
        %v2889 = vadd.f32 %v2607, %v2820
        %v2890 = vadd.f32 %v2608, %v2823
        %v2891 = vadd.f32 %v2609, %v2826
        %v2892 = vadd.f32 %v2610, %v2829
        %v2893 = vadd.f32 %v2611, %v2832
        %v2894 = vadd.f32 %v2612, %v2835
        %v2895 = vadd.f32 %v2613, %v2838
        %v2896 = vadd.f32 %v2614, %v2841
        %v2897 = vadd.f32 %v2615, %v2844
        %v2898 = vadd.f32 %v2616, %v2847
        %v2899 = vadd.f32 %v2617, %v2850
        %v2900 = vadd.f32 %v2618, %v2853
        %v2901 = vadd.f32 %v2619, %v2856
        %v2902 = vadd.f32 %v2620, %v2859
        %v2903 = vadd.f32 %v2621, %v2862
        %v2904 = vadd.f32 %v2622, %v2865
        %v2905 = vadd.f32 %v2623, %v2868
        %v2906 = vadd.f32 %v2624, %v2871
        %v2907 = vadd.f32 %v2625, %v2874
        %v2908 = vld [vmem:[%s2343 + $0x9] sm:$0xff]
        %v2909 = vld [vmem:[%s2343 + $0x11] sm:$0xff]
        %v2910 = vld [vmem:[%s2343 + $0x29] sm:$0xff]
        %v2911 = vld [vmem:[%s2343 + $0x31] sm:$0xff]
        %v2912 = vld [vmem:[%s2343 + $0x49] sm:$0xff]
        %v2913 = vld [vmem:[%s2343 + $0x51] sm:$0xff]
        %v2914 = vld [vmem:[%s2343 + $0x69] sm:$0xff]
        %v2915 = vld [vmem:[%s2343 + $0x71] sm:$0xff]
        %v2916 = vld [vmem:[%s2343 + $0x89] sm:$0xff]
        %v2917 = vld [vmem:[%s2343 + $0x91] sm:$0xff]
        %v2918 = vld [vmem:[%s2343 + $0xa9] sm:$0xff]
        %v2919 = vld [vmem:[%s2343 + $0xb1] sm:$0xff]
        %v2920 = vld [vmem:[%s2343 + $0xc9] sm:$0xff]
        %v2921 = vld [vmem:[%s2343 + $0xd1] sm:$0xff]
        %v2922 = vld [vmem:[%s2343 + $0xe9] sm:$0xff]
        %v2923 = vld [vmem:[%s2343 + $0xf1] sm:$0xff]
        %v2924 = vld [vmem:[%s2343 + $0x109] sm:$0xff]
        %v2925 = vld [vmem:[%s2343 + $0x111] sm:$0xff]
        %v2926 = vld [vmem:[%s2343 + $0x129] sm:$0xff]
        %v2927 = vld [vmem:[%s2343 + $0x131] sm:$0xff]
        %v2928 = vld [vmem:[%s2343 + $0x149] sm:$0xff]
        %v2929 = vld [vmem:[%s2343 + $0x151] sm:$0xff]
        %v2930 = vld [vmem:[%s2343 + $0x169] sm:$0xff]
        %v2931 = vld [vmem:[%s2343 + $0x171] sm:$0xff]
        %v2932 = vld [vmem:[%s2343 + $0x189] sm:$0xff]
        %v2933 = vld [vmem:[%s2343 + $0x191] sm:$0xff]
        %v2934 = vld [vmem:[%s2343 + $0x1a9] sm:$0xff]
        %v2935 = vld [vmem:[%s2343 + $0x1b1] sm:$0xff]
        %v2936 = vld [vmem:[%s2343 + $0x1c9] sm:$0xff]
        %v2937 = vld [vmem:[%s2343 + $0x1d1] sm:$0xff]
        %v2938 = vld [vmem:[%s2343 + $0x1e9] sm:$0xff]
        %v2939 = vld [vmem:[%s2343 + $0x1f1] sm:$0xff]
        %s2940 = scalar_lea.vmem %s3, 512
        %v2941 = vld [vmem:[%s2940] sm:$0xff]
        %v2942 = vld [vmem:[%s2940 + $0x8] sm:$0xff]
        %v2943 = vld [vmem:[%s2940 + $0x10] sm:$0xff]
        %v2944 = vld [vmem:[%s2940 + $0x18] sm:$0xff]
        %v2945 = vld [vmem:[%s2940 + $0x20] sm:$0xff]
        %v2946 = vld [vmem:[%s2940 + $0x28] sm:$0xff]
        %v2947 = vld [vmem:[%s2940 + $0x30] sm:$0xff]
        %v2948 = vld [vmem:[%s2940 + $0x38] sm:$0xff]
        %v2950 = vsel %vm316, %v2908, 0
        %v2953 = vsel %vm316, %v2909, 0
        %v2956 = vsel %vm316, %v2910, 0
        %v2959 = vsel %vm316, %v2911, 0
        %v2962 = vsel %vm316, %v2912, 0
        %v2965 = vsel %vm316, %v2913, 0
        %v2968 = vsel %vm316, %v2914, 0
        %v2971 = vsel %vm316, %v2915, 0
        %v2974 = vsel %vm316, %v2916, 0
        %v2977 = vsel %vm316, %v2917, 0
        %v2980 = vsel %vm316, %v2918, 0
        %v2983 = vsel %vm316, %v2919, 0
        %v2986 = vsel %vm316, %v2920, 0
        %v2989 = vsel %vm316, %v2921, 0
        %v2992 = vsel %vm316, %v2922, 0
        %v2995 = vsel %vm316, %v2923, 0
        %v2998 = vsel %vm316, %v2924, 0
        %v3001 = vsel %vm316, %v2925, 0
        %v3004 = vsel %vm316, %v2926, 0
        %v3007 = vsel %vm316, %v2927, 0
        %v3010 = vsel %vm316, %v2928, 0
        %v3013 = vsel %vm316, %v2929, 0
        %v3016 = vsel %vm316, %v2930, 0
        %v3019 = vsel %vm316, %v2931, 0
        %v3022 = vsel %vm316, %v2932, 0
        %v3025 = vsel %vm316, %v2933, 0
        %v3028 = vsel %vm316, %v2934, 0
        %v3031 = vsel %vm316, %v2935, 0
        %v3034 = vsel %vm316, %v2936, 0
        %v3037 = vsel %vm316, %v2937, 0
        %v3040 = vsel %vm316, %v2938, 0
        %v3043 = vsel %vm316, %v2939, 0
        %3045 = vmatpush.msra.mxu0 0.0
        %3046 = vmatpush.msra.mxu0 0.0
        %3047 = vmatpush.msra.mxu0 0.0
        %3048 = vmatpush.msra.mxu0 0.0
        %3049 = vmatpush.msra.mxu0 0.0
        %3050 = vmatpush.msra.mxu0 0.0
        %3051 = vmatpush.msra.mxu0 0.0
        %3052 = vmatpush.msra.mxu0 0.0
        %3053 = vmatpush.msra.mxu0 %v2948
        %3054 = vmatpush.msra.mxu0 %v2947
        %3055 = vmatpush.msra.mxu0 %v2946
        %3056 = vmatpush.msra.mxu0 %v2945
        %3057 = vmatpush.msra.mxu0 %v2944
        %3058 = vmatpush.msra.mxu0 %v2943
        %3059 = vmatpush.msra.mxu0 %v2942
        %3060 = vmatpush.msra.mxu0 %v2941
        %3061 = vmatmul.f32.gmra.mxu0 %v2950
        %v3062 = vpop.f32.mrf.mxu0
        %v3063 = vadd.f32 0.0, %v3062
        %3064 = vmatmul.f32.gmra.mxu0 %v2953
        %v3065 = vpop.f32.mrf.mxu0
        %v3066 = vadd.f32 0.0, %v3065
        %3067 = vmatmul.f32.gmra.mxu0 %v2956
        %v3068 = vpop.f32.mrf.mxu0
        %v3069 = vadd.f32 0.0, %v3068
        %3070 = vmatmul.f32.gmra.mxu0 %v2959
        %v3071 = vpop.f32.mrf.mxu0
        %v3072 = vadd.f32 0.0, %v3071
        %3073 = vmatmul.f32.gmra.mxu0 %v2962
        %v3074 = vpop.f32.mrf.mxu0
        %v3075 = vadd.f32 0.0, %v3074
        %3076 = vmatmul.f32.gmra.mxu0 %v2965
        %v3077 = vpop.f32.mrf.mxu0
        %v3078 = vadd.f32 0.0, %v3077
        %3079 = vmatmul.f32.gmra.mxu0 %v2968
        %v3080 = vpop.f32.mrf.mxu0
        %v3081 = vadd.f32 0.0, %v3080
        %3082 = vmatmul.f32.gmra.mxu0 %v2971
        %v3083 = vpop.f32.mrf.mxu0
        %v3084 = vadd.f32 0.0, %v3083
        %3085 = vmatmul.f32.gmra.mxu0 %v2974
        %v3086 = vpop.f32.mrf.mxu0
        %v3087 = vadd.f32 0.0, %v3086
        %3088 = vmatmul.f32.gmra.mxu0 %v2977
        %v3089 = vpop.f32.mrf.mxu0
        %v3090 = vadd.f32 0.0, %v3089
        %3091 = vmatmul.f32.gmra.mxu0 %v2980
        %v3092 = vpop.f32.mrf.mxu0
        %v3093 = vadd.f32 0.0, %v3092
        %3094 = vmatmul.f32.gmra.mxu0 %v2983
        %v3095 = vpop.f32.mrf.mxu0
        %v3096 = vadd.f32 0.0, %v3095
        %3097 = vmatmul.f32.gmra.mxu0 %v2986
        %v3098 = vpop.f32.mrf.mxu0
        %v3099 = vadd.f32 0.0, %v3098
        %3100 = vmatmul.f32.gmra.mxu0 %v2989
        %v3101 = vpop.f32.mrf.mxu0
        %v3102 = vadd.f32 0.0, %v3101
        %3103 = vmatmul.f32.gmra.mxu0 %v2992
        %v3104 = vpop.f32.mrf.mxu0
        %v3105 = vadd.f32 0.0, %v3104
        %3106 = vmatmul.f32.gmra.mxu0 %v2995
        %v3107 = vpop.f32.mrf.mxu0
        %v3108 = vadd.f32 0.0, %v3107
        %3109 = vmatmul.f32.gmra.mxu0 %v2998
        %v3110 = vpop.f32.mrf.mxu0
        %v3111 = vadd.f32 0.0, %v3110
        %3112 = vmatmul.f32.gmra.mxu0 %v3001
        %v3113 = vpop.f32.mrf.mxu0
        %v3114 = vadd.f32 0.0, %v3113
        %3115 = vmatmul.f32.gmra.mxu0 %v3004
        %v3116 = vpop.f32.mrf.mxu0
        %v3117 = vadd.f32 0.0, %v3116
        %3118 = vmatmul.f32.gmra.mxu0 %v3007
        %v3119 = vpop.f32.mrf.mxu0
        %v3120 = vadd.f32 0.0, %v3119
        %3121 = vmatmul.f32.gmra.mxu0 %v3010
        %v3122 = vpop.f32.mrf.mxu0
        %v3123 = vadd.f32 0.0, %v3122
        %3124 = vmatmul.f32.gmra.mxu0 %v3013
        %v3125 = vpop.f32.mrf.mxu0
        %v3126 = vadd.f32 0.0, %v3125
        %3127 = vmatmul.f32.gmra.mxu0 %v3016
        %v3128 = vpop.f32.mrf.mxu0
        %v3129 = vadd.f32 0.0, %v3128
        %3130 = vmatmul.f32.gmra.mxu0 %v3019
        %v3131 = vpop.f32.mrf.mxu0
        %v3132 = vadd.f32 0.0, %v3131
        %3133 = vmatmul.f32.gmra.mxu0 %v3022
        %v3134 = vpop.f32.mrf.mxu0
        %v3135 = vadd.f32 0.0, %v3134
        %3136 = vmatmul.f32.gmra.mxu0 %v3025
        %v3137 = vpop.f32.mrf.mxu0
        %v3138 = vadd.f32 0.0, %v3137
        %3139 = vmatmul.f32.gmra.mxu0 %v3028
        %v3140 = vpop.f32.mrf.mxu0
        %v3141 = vadd.f32 0.0, %v3140
        %3142 = vmatmul.f32.gmra.mxu0 %v3031
        %v3143 = vpop.f32.mrf.mxu0
        %v3144 = vadd.f32 0.0, %v3143
        %3145 = vmatmul.f32.gmra.mxu0 %v3034
        %v3146 = vpop.f32.mrf.mxu0
        %v3147 = vadd.f32 0.0, %v3146
        %3148 = vmatmul.f32.gmra.mxu0 %v3037
        %v3149 = vpop.f32.mrf.mxu0
        %v3150 = vadd.f32 0.0, %v3149
        %3151 = vmatmul.f32.gmra.mxu0 %v3040
        %v3152 = vpop.f32.mrf.mxu0
        %v3153 = vadd.f32 0.0, %v3152
        %3154 = vmatmul.f32.gmra.mxu0 %v3043
        %v3155 = vpop.f32.mrf.mxu0
        %v3156 = vadd.f32 0.0, %v3155
        %3157 = vdwg.mxu0
        %v3158 = vadd.f32 %v2876, %v3063
        %v3159 = vadd.f32 %v2877, %v3066
        %v3160 = vadd.f32 %v2878, %v3069
        %v3161 = vadd.f32 %v2879, %v3072
        %v3162 = vadd.f32 %v2880, %v3075
        %v3163 = vadd.f32 %v2881, %v3078
        %v3164 = vadd.f32 %v2882, %v3081
        %v3165 = vadd.f32 %v2883, %v3084
        %v3166 = vadd.f32 %v2884, %v3087
        %v3167 = vadd.f32 %v2885, %v3090
        %v3168 = vadd.f32 %v2886, %v3093
        %v3169 = vadd.f32 %v2887, %v3096
        %v3170 = vadd.f32 %v2888, %v3099
        %v3171 = vadd.f32 %v2889, %v3102
        %v3172 = vadd.f32 %v2890, %v3105
        %v3173 = vadd.f32 %v2891, %v3108
        %v3174 = vadd.f32 %v2892, %v3111
        %v3175 = vadd.f32 %v2893, %v3114
        %v3176 = vadd.f32 %v2894, %v3117
        %v3177 = vadd.f32 %v2895, %v3120
        %v3178 = vadd.f32 %v2896, %v3123
        %v3179 = vadd.f32 %v2897, %v3126
        %v3180 = vadd.f32 %v2898, %v3129
        %v3181 = vadd.f32 %v2899, %v3132
        %v3182 = vadd.f32 %v2900, %v3135
        %v3183 = vadd.f32 %v2901, %v3138
        %v3184 = vadd.f32 %v2902, %v3141
        %v3185 = vadd.f32 %v2903, %v3144
        %v3186 = vadd.f32 %v2904, %v3147
        %v3187 = vadd.f32 %v2905, %v3150
        %v3188 = vadd.f32 %v2906, %v3153
        %v3189 = vadd.f32 %v2907, %v3156
        %v3190 = vld [vmem:[%s4] sm:$0x1]
        %v3192 = vperm.slane %v3190, 0
        %v3194 = vadd.f32 %v3158, %v3192
        %v3195 = vadd.f32 %v3159, %v3192
        %v3196 = vadd.f32 %v3160, %v3192
        %v3197 = vadd.f32 %v3161, %v3192
        %v3198 = vadd.f32 %v3162, %v3192
        %v3199 = vadd.f32 %v3163, %v3192
        %v3200 = vadd.f32 %v3164, %v3192
        %v3201 = vadd.f32 %v3165, %v3192
        %v3202 = vadd.f32 %v3166, %v3192
        %v3203 = vadd.f32 %v3167, %v3192
        %v3204 = vadd.f32 %v3168, %v3192
        %v3205 = vadd.f32 %v3169, %v3192
        %v3206 = vadd.f32 %v3170, %v3192
        %v3207 = vadd.f32 %v3171, %v3192
        %v3208 = vadd.f32 %v3172, %v3192
        %v3209 = vadd.f32 %v3173, %v3192
        %v3210 = vadd.f32 %v3174, %v3192
        %v3211 = vadd.f32 %v3175, %v3192
        %v3212 = vadd.f32 %v3176, %v3192
        %v3213 = vadd.f32 %v3177, %v3192
        %v3214 = vadd.f32 %v3178, %v3192
        %v3215 = vadd.f32 %v3179, %v3192
        %v3216 = vadd.f32 %v3180, %v3192
        %v3217 = vadd.f32 %v3181, %v3192
        %v3218 = vadd.f32 %v3182, %v3192
        %v3219 = vadd.f32 %v3183, %v3192
        %v3220 = vadd.f32 %v3184, %v3192
        %v3221 = vadd.f32 %v3185, %v3192
        %v3222 = vadd.f32 %v3186, %v3192
        %v3223 = vadd.f32 %v3187, %v3192
        %v3224 = vadd.f32 %v3188, %v3192
        %v3225 = vadd.f32 %v3189, %v3192
        %v3226 = vmax.f32 %v3194, 0.0
        %v3227 = vmax.f32 %v3195, 0.0
        %v3228 = vmax.f32 %v3196, 0.0
        %v3229 = vmax.f32 %v3197, 0.0
        %v3230 = vmax.f32 %v3198, 0.0
        %v3231 = vmax.f32 %v3199, 0.0
        %v3232 = vmax.f32 %v3200, 0.0
        %v3233 = vmax.f32 %v3201, 0.0
        %v3234 = vmax.f32 %v3202, 0.0
        %v3235 = vmax.f32 %v3203, 0.0
        %v3236 = vmax.f32 %v3204, 0.0
        %v3237 = vmax.f32 %v3205, 0.0
        %v3238 = vmax.f32 %v3206, 0.0
        %v3239 = vmax.f32 %v3207, 0.0
        %v3240 = vmax.f32 %v3208, 0.0
        %v3241 = vmax.f32 %v3209, 0.0
        %v3242 = vmax.f32 %v3210, 0.0
        %v3243 = vmax.f32 %v3211, 0.0
        %v3244 = vmax.f32 %v3212, 0.0
        %v3245 = vmax.f32 %v3213, 0.0
        %v3246 = vmax.f32 %v3214, 0.0
        %v3247 = vmax.f32 %v3215, 0.0
        %v3248 = vmax.f32 %v3216, 0.0
        %v3249 = vmax.f32 %v3217, 0.0
        %v3250 = vmax.f32 %v3218, 0.0
        %v3251 = vmax.f32 %v3219, 0.0
        %v3252 = vmax.f32 %v3220, 0.0
        %v3253 = vmax.f32 %v3221, 0.0
        %v3254 = vmax.f32 %v3222, 0.0
        %v3255 = vmax.f32 %v3223, 0.0
        %v3256 = vmax.f32 %v3224, 0.0
        %v3257 = vmax.f32 %v3225, 0.0
        %3258 = vst.msk [vmem:[%s369 + $0x8] sm:$0xff] %vm316, %v3226
        %3259 = vst.msk [vmem:[%s369 + $0x10] sm:$0xff] %vm316, %v3227
        %3260 = vst.msk [vmem:[%s369 + $0x28] sm:$0xff] %vm316, %v3228
        %3261 = vst.msk [vmem:[%s369 + $0x30] sm:$0xff] %vm316, %v3229
        %3262 = vst.msk [vmem:[%s369 + $0x48] sm:$0xff] %vm316, %v3230
        %3263 = vst.msk [vmem:[%s369 + $0x50] sm:$0xff] %vm316, %v3231
        %3264 = vst.msk [vmem:[%s369 + $0x68] sm:$0xff] %vm316, %v3232
        %3265 = vst.msk [vmem:[%s369 + $0x70] sm:$0xff] %vm316, %v3233
        %3266 = vst.msk [vmem:[%s369 + $0x88] sm:$0xff] %vm316, %v3234
        %3267 = vst.msk [vmem:[%s369 + $0x90] sm:$0xff] %vm316, %v3235
        %3268 = vst.msk [vmem:[%s369 + $0xa8] sm:$0xff] %vm316, %v3236
        %3269 = vst.msk [vmem:[%s369 + $0xb0] sm:$0xff] %vm316, %v3237
        %3270 = vst.msk [vmem:[%s369 + $0xc8] sm:$0xff] %vm316, %v3238
        %3271 = vst.msk [vmem:[%s369 + $0xd0] sm:$0xff] %vm316, %v3239
        %3272 = vst.msk [vmem:[%s369 + $0xe8] sm:$0xff] %vm316, %v3240
        %3273 = vst.msk [vmem:[%s369 + $0xf0] sm:$0xff] %vm316, %v3241
        %3274 = vst.msk [vmem:[%s369 + $0x108] sm:$0xff] %vm316, %v3242
        %3275 = vst.msk [vmem:[%s369 + $0x110] sm:$0xff] %vm316, %v3243
        %3276 = vst.msk [vmem:[%s369 + $0x128] sm:$0xff] %vm316, %v3244
        %3277 = vst.msk [vmem:[%s369 + $0x130] sm:$0xff] %vm316, %v3245
        %3278 = vst.msk [vmem:[%s369 + $0x148] sm:$0xff] %vm316, %v3246
        %3279 = vst.msk [vmem:[%s369 + $0x150] sm:$0xff] %vm316, %v3247
        %3280 = vst.msk [vmem:[%s369 + $0x168] sm:$0xff] %vm316, %v3248
        %3281 = vst.msk [vmem:[%s369 + $0x170] sm:$0xff] %vm316, %v3249
        %3282 = vst.msk [vmem:[%s369 + $0x188] sm:$0xff] %vm316, %v3250
        %3283 = vst.msk [vmem:[%s369 + $0x190] sm:$0xff] %vm316, %v3251
        %3284 = vst.msk [vmem:[%s369 + $0x1a8] sm:$0xff] %vm316, %v3252
        %3285 = vst.msk [vmem:[%s369 + $0x1b0] sm:$0xff] %vm316, %v3253
        %3286 = vst.msk [vmem:[%s369 + $0x1c8] sm:$0xff] %vm316, %v3254
        %3287 = vst.msk [vmem:[%s369 + $0x1d0] sm:$0xff] %vm316, %v3255
        %3288 = vst.msk [vmem:[%s369 + $0x1e8] sm:$0xff] %vm316, %v3256
        %3289 = vst.msk [vmem:[%s369 + $0x1f0] sm:$0xff] %vm316, %v3257
        %v3290 = vld [vmem:[#allocation3 + $0x7] sm:$0xff]
        %v3291 = vld [vmem:[#allocation3 + $0xf] sm:$0xff]
        %v3292 = vld [vmem:[#allocation3 + $0x27] sm:$0xff]
        %v3293 = vld [vmem:[#allocation3 + $0x2f] sm:$0xff]
        %v3294 = vld [vmem:[#allocation3 + $0x47] sm:$0xff]
        %v3295 = vld [vmem:[#allocation3 + $0x4f] sm:$0xff]
        %v3296 = vld [vmem:[#allocation3 + $0x67] sm:$0xff]
        %v3297 = vld [vmem:[#allocation3 + $0x6f] sm:$0xff]
        %v3298 = vld [vmem:[#allocation3 + $0x87] sm:$0xff]
        %v3299 = vld [vmem:[#allocation3 + $0x8f] sm:$0xff]
        %v3300 = vld [vmem:[#allocation3 + $0xa7] sm:$0xff]
        %v3301 = vld [vmem:[#allocation3 + $0xaf] sm:$0xff]
        %v3302 = vld [vmem:[#allocation3 + $0xc7] sm:$0xff]
        %v3303 = vld [vmem:[#allocation3 + $0xcf] sm:$0xff]
        %v3304 = vld [vmem:[#allocation3 + $0xe7] sm:$0xff]
        %v3305 = vld [vmem:[#allocation3 + $0xef] sm:$0xff]
        %v3306 = vld [vmem:[#allocation3 + $0x107] sm:$0xff]
        %v3307 = vld [vmem:[#allocation3 + $0x10f] sm:$0xff]
        %v3308 = vld [vmem:[#allocation3 + $0x127] sm:$0xff]
        %v3309 = vld [vmem:[#allocation3 + $0x12f] sm:$0xff]
        %v3310 = vld [vmem:[#allocation3 + $0x147] sm:$0xff]
        %v3311 = vld [vmem:[#allocation3 + $0x14f] sm:$0xff]
        %v3312 = vld [vmem:[#allocation3 + $0x167] sm:$0xff]
        %v3313 = vld [vmem:[#allocation3 + $0x16f] sm:$0xff]
        %v3314 = vld [vmem:[#allocation3 + $0x187] sm:$0xff]
        %v3315 = vld [vmem:[#allocation3 + $0x18f] sm:$0xff]
        %v3316 = vld [vmem:[#allocation3 + $0x1a7] sm:$0xff]
        %v3317 = vld [vmem:[#allocation3 + $0x1af] sm:$0xff]
        %v3318 = vld [vmem:[#allocation3 + $0x1c7] sm:$0xff]
        %v3319 = vld [vmem:[#allocation3 + $0x1cf] sm:$0xff]
        %v3320 = vld [vmem:[#allocation3 + $0x1e7] sm:$0xff]
        %v3321 = vld [vmem:[#allocation3 + $0x1ef] sm:$0xff]
        %s3322 = scalar_lea.vmem %s3, 576
        %v3323 = vld [vmem:[%s3322] sm:$0xff]
        %v3324 = vld [vmem:[%s3322 + $0x8] sm:$0xff]
        %v3325 = vld [vmem:[%s3322 + $0x10] sm:$0xff]
        %v3326 = vld [vmem:[%s3322 + $0x18] sm:$0xff]
        %v3327 = vld [vmem:[%s3322 + $0x20] sm:$0xff]
        %v3328 = vld [vmem:[%s3322 + $0x28] sm:$0xff]
        %v3329 = vld [vmem:[%s3322 + $0x30] sm:$0xff]
        %v3330 = vld [vmem:[%s3322 + $0x38] sm:$0xff]
        %v3331 = vld [vmem:[#allocation3 + $0x8] sm:$0xff]
        %v3332 = vld [vmem:[#allocation3 + $0x10] sm:$0xff]
        %v3333 = vld [vmem:[#allocation3 + $0x28] sm:$0xff]
        %v3334 = vld [vmem:[#allocation3 + $0x30] sm:$0xff]
        %v3335 = vld [vmem:[#allocation3 + $0x48] sm:$0xff]
        %v3336 = vld [vmem:[#allocation3 + $0x50] sm:$0xff]
        %v3337 = vld [vmem:[#allocation3 + $0x68] sm:$0xff]
        %v3338 = vld [vmem:[#allocation3 + $0x70] sm:$0xff]
        %v3339 = vld [vmem:[#allocation3 + $0x88] sm:$0xff]
        %v3340 = vld [vmem:[#allocation3 + $0x90] sm:$0xff]
        %v3341 = vld [vmem:[#allocation3 + $0xa8] sm:$0xff]
        %v3342 = vld [vmem:[#allocation3 + $0xb0] sm:$0xff]
        %v3343 = vld [vmem:[#allocation3 + $0xc8] sm:$0xff]
        %v3344 = vld [vmem:[#allocation3 + $0xd0] sm:$0xff]
        %v3345 = vld [vmem:[#allocation3 + $0xe8] sm:$0xff]
        %v3346 = vld [vmem:[#allocation3 + $0xf0] sm:$0xff]
        %v3347 = vld [vmem:[#allocation3 + $0x108] sm:$0xff]
        %v3348 = vld [vmem:[#allocation3 + $0x110] sm:$0xff]
        %v3349 = vld [vmem:[#allocation3 + $0x128] sm:$0xff]
        %v3350 = vld [vmem:[#allocation3 + $0x130] sm:$0xff]
        %v3351 = vld [vmem:[#allocation3 + $0x148] sm:$0xff]
        %v3352 = vld [vmem:[#allocation3 + $0x150] sm:$0xff]
        %v3353 = vld [vmem:[#allocation3 + $0x168] sm:$0xff]
        %v3354 = vld [vmem:[#allocation3 + $0x170] sm:$0xff]
        %v3355 = vld [vmem:[#allocation3 + $0x188] sm:$0xff]
        %v3356 = vld [vmem:[#allocation3 + $0x190] sm:$0xff]
        %v3357 = vld [vmem:[#allocation3 + $0x1a8] sm:$0xff]
        %v3358 = vld [vmem:[#allocation3 + $0x1b0] sm:$0xff]
        %v3359 = vld [vmem:[#allocation3 + $0x1c8] sm:$0xff]
        %v3360 = vld [vmem:[#allocation3 + $0x1d0] sm:$0xff]
        %v3361 = vld [vmem:[#allocation3 + $0x1e8] sm:$0xff]
        %v3362 = vld [vmem:[#allocation3 + $0x1f0] sm:$0xff]
        %s3363 = scalar_lea.vmem %s3, 640
        %v3364 = vld [vmem:[%s3363] sm:$0xff]
        %v3365 = vld [vmem:[%s3363 + $0x8] sm:$0xff]
        %v3366 = vld [vmem:[%s3363 + $0x10] sm:$0xff]
        %v3367 = vld [vmem:[%s3363 + $0x18] sm:$0xff]
        %v3368 = vld [vmem:[%s3363 + $0x20] sm:$0xff]
        %v3369 = vld [vmem:[%s3363 + $0x28] sm:$0xff]
        %v3370 = vld [vmem:[%s3363 + $0x30] sm:$0xff]
        %v3371 = vld [vmem:[%s3363 + $0x38] sm:$0xff]
        %v3373 = vsel %vm316, %v3331, 0
        %v3376 = vsel %vm316, %v3332, 0
        %v3379 = vsel %vm316, %v3333, 0
        %v3382 = vsel %vm316, %v3334, 0
        %v3385 = vsel %vm316, %v3335, 0
        %v3388 = vsel %vm316, %v3336, 0
        %v3391 = vsel %vm316, %v3337, 0
        %v3394 = vsel %vm316, %v3338, 0
        %v3397 = vsel %vm316, %v3339, 0
        %v3400 = vsel %vm316, %v3340, 0
        %v3403 = vsel %vm316, %v3341, 0
        %v3406 = vsel %vm316, %v3342, 0
        %v3409 = vsel %vm316, %v3343, 0
        %v3412 = vsel %vm316, %v3344, 0
        %v3415 = vsel %vm316, %v3345, 0
        %v3418 = vsel %vm316, %v3346, 0
        %v3421 = vsel %vm316, %v3347, 0
        %v3424 = vsel %vm316, %v3348, 0
        %v3427 = vsel %vm316, %v3349, 0
        %v3430 = vsel %vm316, %v3350, 0
        %v3433 = vsel %vm316, %v3351, 0
        %v3436 = vsel %vm316, %v3352, 0
        %v3439 = vsel %vm316, %v3353, 0
        %v3442 = vsel %vm316, %v3354, 0
        %v3445 = vsel %vm316, %v3355, 0
        %v3448 = vsel %vm316, %v3356, 0
        %v3451 = vsel %vm316, %v3357, 0
        %v3454 = vsel %vm316, %v3358, 0
        %v3457 = vsel %vm316, %v3359, 0
        %v3460 = vsel %vm316, %v3360, 0
        %v3463 = vsel %vm316, %v3361, 0
        %v3466 = vsel %vm316, %v3362, 0
        %3468 = vmatpush.msra.mxu0 0.0
        %3469 = vmatpush.msra.mxu0 0.0
        %3470 = vmatpush.msra.mxu0 0.0
        %3471 = vmatpush.msra.mxu0 0.0
        %3472 = vmatpush.msra.mxu0 0.0
        %3473 = vmatpush.msra.mxu0 0.0
        %3474 = vmatpush.msra.mxu0 0.0
        %3475 = vmatpush.msra.mxu0 0.0
        %3476 = vmatpush.msra.mxu0 %v3371
        %3477 = vmatpush.msra.mxu0 %v3370
        %3478 = vmatpush.msra.mxu0 %v3369
        %3479 = vmatpush.msra.mxu0 %v3368
        %3480 = vmatpush.msra.mxu0 %v3367
        %3481 = vmatpush.msra.mxu0 %v3366
        %3482 = vmatpush.msra.mxu0 %v3365
        %3483 = vmatpush.msra.mxu0 %v3364
        %3484 = vmatmul.f32.gmra.mxu0 %v3373
        %v3485 = vpop.f32.mrf.mxu0
        %v3486 = vadd.f32 0.0, %v3485
        %3487 = vmatmul.f32.gmra.mxu0 %v3376
        %v3488 = vpop.f32.mrf.mxu0
        %v3489 = vadd.f32 0.0, %v3488
        %3490 = vmatmul.f32.gmra.mxu0 %v3379
        %v3491 = vpop.f32.mrf.mxu0
        %v3492 = vadd.f32 0.0, %v3491
        %3493 = vmatmul.f32.gmra.mxu0 %v3382
        %v3494 = vpop.f32.mrf.mxu0
        %v3495 = vadd.f32 0.0, %v3494
        %3496 = vmatmul.f32.gmra.mxu0 %v3385
        %v3497 = vpop.f32.mrf.mxu0
        %v3498 = vadd.f32 0.0, %v3497
        %3499 = vmatmul.f32.gmra.mxu0 %v3388
        %v3500 = vpop.f32.mrf.mxu0
        %v3501 = vadd.f32 0.0, %v3500
        %3502 = vmatmul.f32.gmra.mxu0 %v3391
        %v3503 = vpop.f32.mrf.mxu0
        %v3504 = vadd.f32 0.0, %v3503
        %3505 = vmatmul.f32.gmra.mxu0 %v3394
        %v3506 = vpop.f32.mrf.mxu0
        %v3507 = vadd.f32 0.0, %v3506
        %3508 = vmatmul.f32.gmra.mxu0 %v3397
        %v3509 = vpop.f32.mrf.mxu0
        %v3510 = vadd.f32 0.0, %v3509
        %3511 = vmatmul.f32.gmra.mxu0 %v3400
        %v3512 = vpop.f32.mrf.mxu0
        %v3513 = vadd.f32 0.0, %v3512
        %3514 = vmatmul.f32.gmra.mxu0 %v3403
        %v3515 = vpop.f32.mrf.mxu0
        %v3516 = vadd.f32 0.0, %v3515
        %3517 = vmatmul.f32.gmra.mxu0 %v3406
        %v3518 = vpop.f32.mrf.mxu0
        %v3519 = vadd.f32 0.0, %v3518
        %3520 = vmatmul.f32.gmra.mxu0 %v3409
        %v3521 = vpop.f32.mrf.mxu0
        %v3522 = vadd.f32 0.0, %v3521
        %3523 = vmatmul.f32.gmra.mxu0 %v3412
        %v3524 = vpop.f32.mrf.mxu0
        %v3525 = vadd.f32 0.0, %v3524
        %3526 = vmatmul.f32.gmra.mxu0 %v3415
        %v3527 = vpop.f32.mrf.mxu0
        %v3528 = vadd.f32 0.0, %v3527
        %3529 = vmatmul.f32.gmra.mxu0 %v3418
        %v3530 = vpop.f32.mrf.mxu0
        %v3531 = vadd.f32 0.0, %v3530
        %3532 = vmatmul.f32.gmra.mxu0 %v3421
        %v3533 = vpop.f32.mrf.mxu0
        %v3534 = vadd.f32 0.0, %v3533
        %3535 = vmatmul.f32.gmra.mxu0 %v3424
        %v3536 = vpop.f32.mrf.mxu0
        %v3537 = vadd.f32 0.0, %v3536
        %3538 = vmatmul.f32.gmra.mxu0 %v3427
        %v3539 = vpop.f32.mrf.mxu0
        %v3540 = vadd.f32 0.0, %v3539
        %3541 = vmatmul.f32.gmra.mxu0 %v3430
        %v3542 = vpop.f32.mrf.mxu0
        %v3543 = vadd.f32 0.0, %v3542
        %3544 = vmatmul.f32.gmra.mxu0 %v3433
        %v3545 = vpop.f32.mrf.mxu0
        %v3546 = vadd.f32 0.0, %v3545
        %3547 = vmatmul.f32.gmra.mxu0 %v3436
        %v3548 = vpop.f32.mrf.mxu0
        %v3549 = vadd.f32 0.0, %v3548
        %3550 = vmatmul.f32.gmra.mxu0 %v3439
        %v3551 = vpop.f32.mrf.mxu0
        %v3552 = vadd.f32 0.0, %v3551
        %3553 = vmatmul.f32.gmra.mxu0 %v3442
        %v3554 = vpop.f32.mrf.mxu0
        %v3555 = vadd.f32 0.0, %v3554
        %3556 = vmatmul.f32.gmra.mxu0 %v3445
        %v3557 = vpop.f32.mrf.mxu0
        %v3558 = vadd.f32 0.0, %v3557
        %3559 = vmatmul.f32.gmra.mxu0 %v3448
        %v3560 = vpop.f32.mrf.mxu0
        %v3561 = vadd.f32 0.0, %v3560
        %3562 = vmatmul.f32.gmra.mxu0 %v3451
        %v3563 = vpop.f32.mrf.mxu0
        %v3564 = vadd.f32 0.0, %v3563
        %3565 = vmatmul.f32.gmra.mxu0 %v3454
        %v3566 = vpop.f32.mrf.mxu0
        %v3567 = vadd.f32 0.0, %v3566
        %3568 = vmatmul.f32.gmra.mxu0 %v3457
        %v3569 = vpop.f32.mrf.mxu0
        %v3570 = vadd.f32 0.0, %v3569
        %3571 = vmatmul.f32.gmra.mxu0 %v3460
        %v3572 = vpop.f32.mrf.mxu0
        %v3573 = vadd.f32 0.0, %v3572
        %3574 = vmatmul.f32.gmra.mxu0 %v3463
        %v3575 = vpop.f32.mrf.mxu0
        %v3576 = vadd.f32 0.0, %v3575
        %3577 = vmatmul.f32.gmra.mxu0 %v3466
        %v3578 = vpop.f32.mrf.mxu0
        %v3579 = vadd.f32 0.0, %v3578
        %3580 = vdwg.mxu0
        %v3582 = vsel %vm316, %v3290, 0
        %v3585 = vsel %vm316, %v3291, 0
        %v3588 = vsel %vm316, %v3292, 0
        %v3591 = vsel %vm316, %v3293, 0
        %v3594 = vsel %vm316, %v3294, 0
        %v3597 = vsel %vm316, %v3295, 0
        %v3600 = vsel %vm316, %v3296, 0
        %v3603 = vsel %vm316, %v3297, 0
        %v3606 = vsel %vm316, %v3298, 0
        %v3609 = vsel %vm316, %v3299, 0
        %v3612 = vsel %vm316, %v3300, 0
        %v3615 = vsel %vm316, %v3301, 0
        %v3618 = vsel %vm316, %v3302, 0
        %v3621 = vsel %vm316, %v3303, 0
        %v3624 = vsel %vm316, %v3304, 0
        %v3627 = vsel %vm316, %v3305, 0
        %v3630 = vsel %vm316, %v3306, 0
        %v3633 = vsel %vm316, %v3307, 0
        %v3636 = vsel %vm316, %v3308, 0
        %v3639 = vsel %vm316, %v3309, 0
        %v3642 = vsel %vm316, %v3310, 0
        %v3645 = vsel %vm316, %v3311, 0
        %v3648 = vsel %vm316, %v3312, 0
        %v3651 = vsel %vm316, %v3313, 0
        %v3654 = vsel %vm316, %v3314, 0
        %v3657 = vsel %vm316, %v3315, 0
        %v3660 = vsel %vm316, %v3316, 0
        %v3663 = vsel %vm316, %v3317, 0
        %v3666 = vsel %vm316, %v3318, 0
        %v3669 = vsel %vm316, %v3319, 0
        %v3672 = vsel %vm316, %v3320, 0
        %v3675 = vsel %vm316, %v3321, 0
        %3677 = vmatpush.msra.mxu0 0.0
        %3678 = vmatpush.msra.mxu0 0.0
        %3679 = vmatpush.msra.mxu0 0.0
        %3680 = vmatpush.msra.mxu0 0.0
        %3681 = vmatpush.msra.mxu0 0.0
        %3682 = vmatpush.msra.mxu0 0.0
        %3683 = vmatpush.msra.mxu0 0.0
        %3684 = vmatpush.msra.mxu0 0.0
        %3685 = vmatpush.msra.mxu0 %v3330
        %3686 = vmatpush.msra.mxu0 %v3329
        %3687 = vmatpush.msra.mxu0 %v3328
        %3688 = vmatpush.msra.mxu0 %v3327
        %3689 = vmatpush.msra.mxu0 %v3326
        %3690 = vmatpush.msra.mxu0 %v3325
        %3691 = vmatpush.msra.mxu0 %v3324
        %3692 = vmatpush.msra.mxu0 %v3323
        %3693 = vmatmul.f32.gmra.mxu0 %v3582
        %v3694 = vpop.f32.mrf.mxu0
        %v3695 = vadd.f32 %v3486, %v3694
        %3696 = vmatmul.f32.gmra.mxu0 %v3585
        %v3697 = vpop.f32.mrf.mxu0
        %v3698 = vadd.f32 %v3489, %v3697
        %3699 = vmatmul.f32.gmra.mxu0 %v3588
        %v3700 = vpop.f32.mrf.mxu0
        %v3701 = vadd.f32 %v3492, %v3700
        %3702 = vmatmul.f32.gmra.mxu0 %v3591
        %v3703 = vpop.f32.mrf.mxu0
        %v3704 = vadd.f32 %v3495, %v3703
        %3705 = vmatmul.f32.gmra.mxu0 %v3594
        %v3706 = vpop.f32.mrf.mxu0
        %v3707 = vadd.f32 %v3498, %v3706
        %3708 = vmatmul.f32.gmra.mxu0 %v3597
        %v3709 = vpop.f32.mrf.mxu0
        %v3710 = vadd.f32 %v3501, %v3709
        %3711 = vmatmul.f32.gmra.mxu0 %v3600
        %v3712 = vpop.f32.mrf.mxu0
        %v3713 = vadd.f32 %v3504, %v3712
        %3714 = vmatmul.f32.gmra.mxu0 %v3603
        %v3715 = vpop.f32.mrf.mxu0
        %v3716 = vadd.f32 %v3507, %v3715
        %3717 = vmatmul.f32.gmra.mxu0 %v3606
        %v3718 = vpop.f32.mrf.mxu0
        %v3719 = vadd.f32 %v3510, %v3718
        %3720 = vmatmul.f32.gmra.mxu0 %v3609
        %v3721 = vpop.f32.mrf.mxu0
        %v3722 = vadd.f32 %v3513, %v3721
        %3723 = vmatmul.f32.gmra.mxu0 %v3612
        %v3724 = vpop.f32.mrf.mxu0
        %v3725 = vadd.f32 %v3516, %v3724
        %3726 = vmatmul.f32.gmra.mxu0 %v3615
        %v3727 = vpop.f32.mrf.mxu0
        %v3728 = vadd.f32 %v3519, %v3727
        %3729 = vmatmul.f32.gmra.mxu0 %v3618
        %v3730 = vpop.f32.mrf.mxu0
        %v3731 = vadd.f32 %v3522, %v3730
        %3732 = vmatmul.f32.gmra.mxu0 %v3621
        %v3733 = vpop.f32.mrf.mxu0
        %v3734 = vadd.f32 %v3525, %v3733
        %3735 = vmatmul.f32.gmra.mxu0 %v3624
        %v3736 = vpop.f32.mrf.mxu0
        %v3737 = vadd.f32 %v3528, %v3736
        %3738 = vmatmul.f32.gmra.mxu0 %v3627
        %v3739 = vpop.f32.mrf.mxu0
        %v3740 = vadd.f32 %v3531, %v3739
        %3741 = vmatmul.f32.gmra.mxu0 %v3630
        %v3742 = vpop.f32.mrf.mxu0
        %v3743 = vadd.f32 %v3534, %v3742
        %3744 = vmatmul.f32.gmra.mxu0 %v3633
        %v3745 = vpop.f32.mrf.mxu0
        %v3746 = vadd.f32 %v3537, %v3745
        %3747 = vmatmul.f32.gmra.mxu0 %v3636
        %v3748 = vpop.f32.mrf.mxu0
        %v3749 = vadd.f32 %v3540, %v3748
        %3750 = vmatmul.f32.gmra.mxu0 %v3639
        %v3751 = vpop.f32.mrf.mxu0
        %v3752 = vadd.f32 %v3543, %v3751
        %3753 = vmatmul.f32.gmra.mxu0 %v3642
        %v3754 = vpop.f32.mrf.mxu0
        %v3755 = vadd.f32 %v3546, %v3754
        %3756 = vmatmul.f32.gmra.mxu0 %v3645
        %v3757 = vpop.f32.mrf.mxu0
        %v3758 = vadd.f32 %v3549, %v3757
        %3759 = vmatmul.f32.gmra.mxu0 %v3648
        %v3760 = vpop.f32.mrf.mxu0
        %v3761 = vadd.f32 %v3552, %v3760
        %3762 = vmatmul.f32.gmra.mxu0 %v3651
        %v3763 = vpop.f32.mrf.mxu0
        %v3764 = vadd.f32 %v3555, %v3763
        %3765 = vmatmul.f32.gmra.mxu0 %v3654
        %v3766 = vpop.f32.mrf.mxu0
        %v3767 = vadd.f32 %v3558, %v3766
        %3768 = vmatmul.f32.gmra.mxu0 %v3657
        %v3769 = vpop.f32.mrf.mxu0
        %v3770 = vadd.f32 %v3561, %v3769
        %3771 = vmatmul.f32.gmra.mxu0 %v3660
        %v3772 = vpop.f32.mrf.mxu0
        %v3773 = vadd.f32 %v3564, %v3772
        %3774 = vmatmul.f32.gmra.mxu0 %v3663
        %v3775 = vpop.f32.mrf.mxu0
        %v3776 = vadd.f32 %v3567, %v3775
        %3777 = vmatmul.f32.gmra.mxu0 %v3666
        %v3778 = vpop.f32.mrf.mxu0
        %v3779 = vadd.f32 %v3570, %v3778
        %3780 = vmatmul.f32.gmra.mxu0 %v3669
        %v3781 = vpop.f32.mrf.mxu0
        %v3782 = vadd.f32 %v3573, %v3781
        %3783 = vmatmul.f32.gmra.mxu0 %v3672
        %v3784 = vpop.f32.mrf.mxu0
        %v3785 = vadd.f32 %v3576, %v3784
        %3786 = vmatmul.f32.gmra.mxu0 %v3675
        %v3787 = vpop.f32.mrf.mxu0
        %v3788 = vadd.f32 %v3579, %v3787
        %3789 = vdwg.mxu0
        %v3790 = vld [vmem:[#allocation3 + $0x9] sm:$0xff]
        %v3791 = vld [vmem:[#allocation3 + $0x11] sm:$0xff]
        %v3792 = vld [vmem:[#allocation3 + $0x29] sm:$0xff]
        %v3793 = vld [vmem:[#allocation3 + $0x31] sm:$0xff]
        %v3794 = vld [vmem:[#allocation3 + $0x49] sm:$0xff]
        %v3795 = vld [vmem:[#allocation3 + $0x51] sm:$0xff]
        %v3796 = vld [vmem:[#allocation3 + $0x69] sm:$0xff]
        %v3797 = vld [vmem:[#allocation3 + $0x71] sm:$0xff]
        %v3798 = vld [vmem:[#allocation3 + $0x89] sm:$0xff]
        %v3799 = vld [vmem:[#allocation3 + $0x91] sm:$0xff]
        %v3800 = vld [vmem:[#allocation3 + $0xa9] sm:$0xff]
        %v3801 = vld [vmem:[#allocation3 + $0xb1] sm:$0xff]
        %v3802 = vld [vmem:[#allocation3 + $0xc9] sm:$0xff]
        %v3803 = vld [vmem:[#allocation3 + $0xd1] sm:$0xff]
        %v3804 = vld [vmem:[#allocation3 + $0xe9] sm:$0xff]
        %v3805 = vld [vmem:[#allocation3 + $0xf1] sm:$0xff]
        %v3806 = vld [vmem:[#allocation3 + $0x109] sm:$0xff]
        %v3807 = vld [vmem:[#allocation3 + $0x111] sm:$0xff]
        %v3808 = vld [vmem:[#allocation3 + $0x129] sm:$0xff]
        %v3809 = vld [vmem:[#allocation3 + $0x131] sm:$0xff]
        %v3810 = vld [vmem:[#allocation3 + $0x149] sm:$0xff]
        %v3811 = vld [vmem:[#allocation3 + $0x151] sm:$0xff]
        %v3812 = vld [vmem:[#allocation3 + $0x169] sm:$0xff]
        %v3813 = vld [vmem:[#allocation3 + $0x171] sm:$0xff]
        %v3814 = vld [vmem:[#allocation3 + $0x189] sm:$0xff]
        %v3815 = vld [vmem:[#allocation3 + $0x191] sm:$0xff]
        %v3816 = vld [vmem:[#allocation3 + $0x1a9] sm:$0xff]
        %v3817 = vld [vmem:[#allocation3 + $0x1b1] sm:$0xff]
        %v3818 = vld [vmem:[#allocation3 + $0x1c9] sm:$0xff]
        %v3819 = vld [vmem:[#allocation3 + $0x1d1] sm:$0xff]
        %v3820 = vld [vmem:[#allocation3 + $0x1e9] sm:$0xff]
        %v3821 = vld [vmem:[#allocation3 + $0x1f1] sm:$0xff]
        %s3822 = scalar_lea.vmem %s3, 704
        %v3823 = vld [vmem:[%s3822] sm:$0xff]
        %v3824 = vld [vmem:[%s3822 + $0x8] sm:$0xff]
        %v3825 = vld [vmem:[%s3822 + $0x10] sm:$0xff]
        %v3826 = vld [vmem:[%s3822 + $0x18] sm:$0xff]
        %v3827 = vld [vmem:[%s3822 + $0x20] sm:$0xff]
        %v3828 = vld [vmem:[%s3822 + $0x28] sm:$0xff]
        %v3829 = vld [vmem:[%s3822 + $0x30] sm:$0xff]
        %v3830 = vld [vmem:[%s3822 + $0x38] sm:$0xff]
        %v3832 = vsel %vm316, %v3790, 0
        %v3835 = vsel %vm316, %v3791, 0
        %v3838 = vsel %vm316, %v3792, 0
        %v3841 = vsel %vm316, %v3793, 0
        %v3844 = vsel %vm316, %v3794, 0
        %v3847 = vsel %vm316, %v3795, 0
        %v3850 = vsel %vm316, %v3796, 0
        %v3853 = vsel %vm316, %v3797, 0
        %v3856 = vsel %vm316, %v3798, 0
        %v3859 = vsel %vm316, %v3799, 0
        %v3862 = vsel %vm316, %v3800, 0
        %v3865 = vsel %vm316, %v3801, 0
        %v3868 = vsel %vm316, %v3802, 0
        %v3871 = vsel %vm316, %v3803, 0
        %v3874 = vsel %vm316, %v3804, 0
        %v3877 = vsel %vm316, %v3805, 0
        %v3880 = vsel %vm316, %v3806, 0
        %v3883 = vsel %vm316, %v3807, 0
        %v3886 = vsel %vm316, %v3808, 0
        %v3889 = vsel %vm316, %v3809, 0
        %v3892 = vsel %vm316, %v3810, 0
        %v3895 = vsel %vm316, %v3811, 0
        %v3898 = vsel %vm316, %v3812, 0
        %v3901 = vsel %vm316, %v3813, 0
        %v3904 = vsel %vm316, %v3814, 0
        %v3907 = vsel %vm316, %v3815, 0
        %v3910 = vsel %vm316, %v3816, 0
        %v3913 = vsel %vm316, %v3817, 0
        %v3916 = vsel %vm316, %v3818, 0
        %v3919 = vsel %vm316, %v3819, 0
        %v3922 = vsel %vm316, %v3820, 0
        %v3925 = vsel %vm316, %v3821, 0
        %3927 = vmatpush.msra.mxu0 0.0
        %3928 = vmatpush.msra.mxu0 0.0
        %3929 = vmatpush.msra.mxu0 0.0
        %3930 = vmatpush.msra.mxu0 0.0
        %3931 = vmatpush.msra.mxu0 0.0
        %3932 = vmatpush.msra.mxu0 0.0
        %3933 = vmatpush.msra.mxu0 0.0
        %3934 = vmatpush.msra.mxu0 0.0
        %3935 = vmatpush.msra.mxu0 %v3830
        %3936 = vmatpush.msra.mxu0 %v3829
        %3937 = vmatpush.msra.mxu0 %v3828
        %3938 = vmatpush.msra.mxu0 %v3827
        %3939 = vmatpush.msra.mxu0 %v3826
        %3940 = vmatpush.msra.mxu0 %v3825
        %3941 = vmatpush.msra.mxu0 %v3824
        %3942 = vmatpush.msra.mxu0 %v3823
        %3943 = vmatmul.f32.gmra.mxu0 %v3832
        %v3944 = vpop.f32.mrf.mxu0
        %v3945 = vadd.f32 0.0, %v3944
        %3946 = vmatmul.f32.gmra.mxu0 %v3835
        %v3947 = vpop.f32.mrf.mxu0
        %v3948 = vadd.f32 0.0, %v3947
        %3949 = vmatmul.f32.gmra.mxu0 %v3838
        %v3950 = vpop.f32.mrf.mxu0
        %v3951 = vadd.f32 0.0, %v3950
        %3952 = vmatmul.f32.gmra.mxu0 %v3841
        %v3953 = vpop.f32.mrf.mxu0
        %v3954 = vadd.f32 0.0, %v3953
        %3955 = vmatmul.f32.gmra.mxu0 %v3844
        %v3956 = vpop.f32.mrf.mxu0
        %v3957 = vadd.f32 0.0, %v3956
        %3958 = vmatmul.f32.gmra.mxu0 %v3847
        %v3959 = vpop.f32.mrf.mxu0
        %v3960 = vadd.f32 0.0, %v3959
        %3961 = vmatmul.f32.gmra.mxu0 %v3850
        %v3962 = vpop.f32.mrf.mxu0
        %v3963 = vadd.f32 0.0, %v3962
        %3964 = vmatmul.f32.gmra.mxu0 %v3853
        %v3965 = vpop.f32.mrf.mxu0
        %v3966 = vadd.f32 0.0, %v3965
        %3967 = vmatmul.f32.gmra.mxu0 %v3856
        %v3968 = vpop.f32.mrf.mxu0
        %v3969 = vadd.f32 0.0, %v3968
        %3970 = vmatmul.f32.gmra.mxu0 %v3859
        %v3971 = vpop.f32.mrf.mxu0
        %v3972 = vadd.f32 0.0, %v3971
        %3973 = vmatmul.f32.gmra.mxu0 %v3862
        %v3974 = vpop.f32.mrf.mxu0
        %v3975 = vadd.f32 0.0, %v3974
        %3976 = vmatmul.f32.gmra.mxu0 %v3865
        %v3977 = vpop.f32.mrf.mxu0
        %v3978 = vadd.f32 0.0, %v3977
        %3979 = vmatmul.f32.gmra.mxu0 %v3868
        %v3980 = vpop.f32.mrf.mxu0
        %v3981 = vadd.f32 0.0, %v3980
        %3982 = vmatmul.f32.gmra.mxu0 %v3871
        %v3983 = vpop.f32.mrf.mxu0
        %v3984 = vadd.f32 0.0, %v3983
        %3985 = vmatmul.f32.gmra.mxu0 %v3874
        %v3986 = vpop.f32.mrf.mxu0
        %v3987 = vadd.f32 0.0, %v3986
        %3988 = vmatmul.f32.gmra.mxu0 %v3877
        %v3989 = vpop.f32.mrf.mxu0
        %v3990 = vadd.f32 0.0, %v3989
        %3991 = vmatmul.f32.gmra.mxu0 %v3880
        %v3992 = vpop.f32.mrf.mxu0
        %v3993 = vadd.f32 0.0, %v3992
        %3994 = vmatmul.f32.gmra.mxu0 %v3883
        %v3995 = vpop.f32.mrf.mxu0
        %v3996 = vadd.f32 0.0, %v3995
        %3997 = vmatmul.f32.gmra.mxu0 %v3886
        %v3998 = vpop.f32.mrf.mxu0
        %v3999 = vadd.f32 0.0, %v3998
        %4000 = vmatmul.f32.gmra.mxu0 %v3889
        %v4001 = vpop.f32.mrf.mxu0
        %v4002 = vadd.f32 0.0, %v4001
        %4003 = vmatmul.f32.gmra.mxu0 %v3892
        %v4004 = vpop.f32.mrf.mxu0
        %v4005 = vadd.f32 0.0, %v4004
        %4006 = vmatmul.f32.gmra.mxu0 %v3895
        %v4007 = vpop.f32.mrf.mxu0
        %v4008 = vadd.f32 0.0, %v4007
        %4009 = vmatmul.f32.gmra.mxu0 %v3898
        %v4010 = vpop.f32.mrf.mxu0
        %v4011 = vadd.f32 0.0, %v4010
        %4012 = vmatmul.f32.gmra.mxu0 %v3901
        %v4013 = vpop.f32.mrf.mxu0
        %v4014 = vadd.f32 0.0, %v4013
        %4015 = vmatmul.f32.gmra.mxu0 %v3904
        %v4016 = vpop.f32.mrf.mxu0
        %v4017 = vadd.f32 0.0, %v4016
        %4018 = vmatmul.f32.gmra.mxu0 %v3907
        %v4019 = vpop.f32.mrf.mxu0
        %v4020 = vadd.f32 0.0, %v4019
        %4021 = vmatmul.f32.gmra.mxu0 %v3910
        %v4022 = vpop.f32.mrf.mxu0
        %v4023 = vadd.f32 0.0, %v4022
        %4024 = vmatmul.f32.gmra.mxu0 %v3913
        %v4025 = vpop.f32.mrf.mxu0
        %v4026 = vadd.f32 0.0, %v4025
        %4027 = vmatmul.f32.gmra.mxu0 %v3916
        %v4028 = vpop.f32.mrf.mxu0
        %v4029 = vadd.f32 0.0, %v4028
        %4030 = vmatmul.f32.gmra.mxu0 %v3919
        %v4031 = vpop.f32.mrf.mxu0
        %v4032 = vadd.f32 0.0, %v4031
        %4033 = vmatmul.f32.gmra.mxu0 %v3922
        %v4034 = vpop.f32.mrf.mxu0
        %v4035 = vadd.f32 0.0, %v4034
        %4036 = vmatmul.f32.gmra.mxu0 %v3925
        %v4037 = vpop.f32.mrf.mxu0
        %v4038 = vadd.f32 0.0, %v4037
        %4039 = vdwg.mxu0
        %v4040 = vadd.f32 %v3695, %v3945
        %v4041 = vadd.f32 %v3698, %v3948
        %v4042 = vadd.f32 %v3701, %v3951
        %v4043 = vadd.f32 %v3704, %v3954
        %v4044 = vadd.f32 %v3707, %v3957
        %v4045 = vadd.f32 %v3710, %v3960
        %v4046 = vadd.f32 %v3713, %v3963
        %v4047 = vadd.f32 %v3716, %v3966
        %v4048 = vadd.f32 %v3719, %v3969
        %v4049 = vadd.f32 %v3722, %v3972
        %v4050 = vadd.f32 %v3725, %v3975
        %v4051 = vadd.f32 %v3728, %v3978
        %v4052 = vadd.f32 %v3731, %v3981
        %v4053 = vadd.f32 %v3734, %v3984
        %v4054 = vadd.f32 %v3737, %v3987
        %v4055 = vadd.f32 %v3740, %v3990
        %v4056 = vadd.f32 %v3743, %v3993
        %v4057 = vadd.f32 %v3746, %v3996
        %v4058 = vadd.f32 %v3749, %v3999
        %v4059 = vadd.f32 %v3752, %v4002
        %v4060 = vadd.f32 %v3755, %v4005
        %v4061 = vadd.f32 %v3758, %v4008
        %v4062 = vadd.f32 %v3761, %v4011
        %v4063 = vadd.f32 %v3764, %v4014
        %v4064 = vadd.f32 %v3767, %v4017
        %v4065 = vadd.f32 %v3770, %v4020
        %v4066 = vadd.f32 %v3773, %v4023
        %v4067 = vadd.f32 %v3776, %v4026
        %v4068 = vadd.f32 %v3779, %v4029
        %v4069 = vadd.f32 %v3782, %v4032
        %v4070 = vadd.f32 %v3785, %v4035
        %v4071 = vadd.f32 %v3788, %v4038
        %v4072 = vld [vmem:[%s369 + $0x7] sm:$0xff]
        %v4073 = vld [vmem:[%s369 + $0xf] sm:$0xff]
        %v4074 = vld [vmem:[%s369 + $0x27] sm:$0xff]
        %v4075 = vld [vmem:[%s369 + $0x2f] sm:$0xff]
        %v4076 = vld [vmem:[%s369 + $0x47] sm:$0xff]
        %v4077 = vld [vmem:[%s369 + $0x4f] sm:$0xff]
        %v4078 = vld [vmem:[%s369 + $0x67] sm:$0xff]
        %v4079 = vld [vmem:[%s369 + $0x6f] sm:$0xff]
        %v4080 = vld [vmem:[%s369 + $0x87] sm:$0xff]
        %v4081 = vld [vmem:[%s369 + $0x8f] sm:$0xff]
        %v4082 = vld [vmem:[%s369 + $0xa7] sm:$0xff]
        %v4083 = vld [vmem:[%s369 + $0xaf] sm:$0xff]
        %v4084 = vld [vmem:[%s369 + $0xc7] sm:$0xff]
        %v4085 = vld [vmem:[%s369 + $0xcf] sm:$0xff]
        %v4086 = vld [vmem:[%s369 + $0xe7] sm:$0xff]
        %v4087 = vld [vmem:[%s369 + $0xef] sm:$0xff]
        %v4088 = vld [vmem:[%s369 + $0x107] sm:$0xff]
        %v4089 = vld [vmem:[%s369 + $0x10f] sm:$0xff]
        %v4090 = vld [vmem:[%s369 + $0x127] sm:$0xff]
        %v4091 = vld [vmem:[%s369 + $0x12f] sm:$0xff]
        %v4092 = vld [vmem:[%s369 + $0x147] sm:$0xff]
        %v4093 = vld [vmem:[%s369 + $0x14f] sm:$0xff]
        %v4094 = vld [vmem:[%s369 + $0x167] sm:$0xff]
        %v4095 = vld [vmem:[%s369 + $0x16f] sm:$0xff]
        %v4096 = vld [vmem:[%s369 + $0x187] sm:$0xff]
        %v4097 = vld [vmem:[%s369 + $0x18f] sm:$0xff]
        %v4098 = vld [vmem:[%s369 + $0x1a7] sm:$0xff]
        %v4099 = vld [vmem:[%s369 + $0x1af] sm:$0xff]
        %v4100 = vld [vmem:[%s369 + $0x1c7] sm:$0xff]
        %v4101 = vld [vmem:[%s369 + $0x1cf] sm:$0xff]
        %v4102 = vld [vmem:[%s369 + $0x1e7] sm:$0xff]
        %v4103 = vld [vmem:[%s369 + $0x1ef] sm:$0xff]
        %s4104 = scalar_lea.vmem %s3, 768
        %v4105 = vld [vmem:[%s4104] sm:$0xff]
        %v4106 = vld [vmem:[%s4104 + $0x8] sm:$0xff]
        %v4107 = vld [vmem:[%s4104 + $0x10] sm:$0xff]
        %v4108 = vld [vmem:[%s4104 + $0x18] sm:$0xff]
        %v4109 = vld [vmem:[%s4104 + $0x20] sm:$0xff]
        %v4110 = vld [vmem:[%s4104 + $0x28] sm:$0xff]
        %v4111 = vld [vmem:[%s4104 + $0x30] sm:$0xff]
        %v4112 = vld [vmem:[%s4104 + $0x38] sm:$0xff]
        %v4114 = vsel %vm316, %v4072, 0
        %v4117 = vsel %vm316, %v4073, 0
        %v4120 = vsel %vm316, %v4074, 0
        %v4123 = vsel %vm316, %v4075, 0
        %v4126 = vsel %vm316, %v4076, 0
        %v4129 = vsel %vm316, %v4077, 0
        %v4132 = vsel %vm316, %v4078, 0
        %v4135 = vsel %vm316, %v4079, 0
        %v4138 = vsel %vm316, %v4080, 0
        %v4141 = vsel %vm316, %v4081, 0
        %v4144 = vsel %vm316, %v4082, 0
        %v4147 = vsel %vm316, %v4083, 0
        %v4150 = vsel %vm316, %v4084, 0
        %v4153 = vsel %vm316, %v4085, 0
        %v4156 = vsel %vm316, %v4086, 0
        %v4159 = vsel %vm316, %v4087, 0
        %v4162 = vsel %vm316, %v4088, 0
        %v4165 = vsel %vm316, %v4089, 0
        %v4168 = vsel %vm316, %v4090, 0
        %v4171 = vsel %vm316, %v4091, 0
        %v4174 = vsel %vm316, %v4092, 0
        %v4177 = vsel %vm316, %v4093, 0
        %v4180 = vsel %vm316, %v4094, 0
        %v4183 = vsel %vm316, %v4095, 0
        %v4186 = vsel %vm316, %v4096, 0
        %v4189 = vsel %vm316, %v4097, 0
        %v4192 = vsel %vm316, %v4098, 0
        %v4195 = vsel %vm316, %v4099, 0
        %v4198 = vsel %vm316, %v4100, 0
        %v4201 = vsel %vm316, %v4101, 0
        %v4204 = vsel %vm316, %v4102, 0
        %v4207 = vsel %vm316, %v4103, 0
        %4209 = vmatpush.msra.mxu0 0.0
        %4210 = vmatpush.msra.mxu0 0.0
        %4211 = vmatpush.msra.mxu0 0.0
        %4212 = vmatpush.msra.mxu0 0.0
        %4213 = vmatpush.msra.mxu0 0.0
        %4214 = vmatpush.msra.mxu0 0.0
        %4215 = vmatpush.msra.mxu0 0.0
        %4216 = vmatpush.msra.mxu0 0.0
        %4217 = vmatpush.msra.mxu0 %v4112
        %4218 = vmatpush.msra.mxu0 %v4111
        %4219 = vmatpush.msra.mxu0 %v4110
        %4220 = vmatpush.msra.mxu0 %v4109
        %4221 = vmatpush.msra.mxu0 %v4108
        %4222 = vmatpush.msra.mxu0 %v4107
        %4223 = vmatpush.msra.mxu0 %v4106
        %4224 = vmatpush.msra.mxu0 %v4105
        %4225 = vmatmul.f32.gmra.mxu0 %v4114
        %v4226 = vpop.f32.mrf.mxu0
        %v4227 = vadd.f32 0.0, %v4226
        %4228 = vmatmul.f32.gmra.mxu0 %v4117
        %v4229 = vpop.f32.mrf.mxu0
        %v4230 = vadd.f32 0.0, %v4229
        %4231 = vmatmul.f32.gmra.mxu0 %v4120
        %v4232 = vpop.f32.mrf.mxu0
        %v4233 = vadd.f32 0.0, %v4232
        %4234 = vmatmul.f32.gmra.mxu0 %v4123
        %v4235 = vpop.f32.mrf.mxu0
        %v4236 = vadd.f32 0.0, %v4235
        %4237 = vmatmul.f32.gmra.mxu0 %v4126
        %v4238 = vpop.f32.mrf.mxu0
        %v4239 = vadd.f32 0.0, %v4238
        %4240 = vmatmul.f32.gmra.mxu0 %v4129
        %v4241 = vpop.f32.mrf.mxu0
        %v4242 = vadd.f32 0.0, %v4241
        %4243 = vmatmul.f32.gmra.mxu0 %v4132
        %v4244 = vpop.f32.mrf.mxu0
        %v4245 = vadd.f32 0.0, %v4244
        %4246 = vmatmul.f32.gmra.mxu0 %v4135
        %v4247 = vpop.f32.mrf.mxu0
        %v4248 = vadd.f32 0.0, %v4247
        %4249 = vmatmul.f32.gmra.mxu0 %v4138
        %v4250 = vpop.f32.mrf.mxu0
        %v4251 = vadd.f32 0.0, %v4250
        %4252 = vmatmul.f32.gmra.mxu0 %v4141
        %v4253 = vpop.f32.mrf.mxu0
        %v4254 = vadd.f32 0.0, %v4253
        %4255 = vmatmul.f32.gmra.mxu0 %v4144
        %v4256 = vpop.f32.mrf.mxu0
        %v4257 = vadd.f32 0.0, %v4256
        %4258 = vmatmul.f32.gmra.mxu0 %v4147
        %v4259 = vpop.f32.mrf.mxu0
        %v4260 = vadd.f32 0.0, %v4259
        %4261 = vmatmul.f32.gmra.mxu0 %v4150
        %v4262 = vpop.f32.mrf.mxu0
        %v4263 = vadd.f32 0.0, %v4262
        %4264 = vmatmul.f32.gmra.mxu0 %v4153
        %v4265 = vpop.f32.mrf.mxu0
        %v4266 = vadd.f32 0.0, %v4265
        %4267 = vmatmul.f32.gmra.mxu0 %v4156
        %v4268 = vpop.f32.mrf.mxu0
        %v4269 = vadd.f32 0.0, %v4268
        %4270 = vmatmul.f32.gmra.mxu0 %v4159
        %v4271 = vpop.f32.mrf.mxu0
        %v4272 = vadd.f32 0.0, %v4271
        %4273 = vmatmul.f32.gmra.mxu0 %v4162
        %v4274 = vpop.f32.mrf.mxu0
        %v4275 = vadd.f32 0.0, %v4274
        %4276 = vmatmul.f32.gmra.mxu0 %v4165
        %v4277 = vpop.f32.mrf.mxu0
        %v4278 = vadd.f32 0.0, %v4277
        %4279 = vmatmul.f32.gmra.mxu0 %v4168
        %v4280 = vpop.f32.mrf.mxu0
        %v4281 = vadd.f32 0.0, %v4280
        %4282 = vmatmul.f32.gmra.mxu0 %v4171
        %v4283 = vpop.f32.mrf.mxu0
        %v4284 = vadd.f32 0.0, %v4283
        %4285 = vmatmul.f32.gmra.mxu0 %v4174
        %v4286 = vpop.f32.mrf.mxu0
        %v4287 = vadd.f32 0.0, %v4286
        %4288 = vmatmul.f32.gmra.mxu0 %v4177
        %v4289 = vpop.f32.mrf.mxu0
        %v4290 = vadd.f32 0.0, %v4289
        %4291 = vmatmul.f32.gmra.mxu0 %v4180
        %v4292 = vpop.f32.mrf.mxu0
        %v4293 = vadd.f32 0.0, %v4292
        %4294 = vmatmul.f32.gmra.mxu0 %v4183
        %v4295 = vpop.f32.mrf.mxu0
        %v4296 = vadd.f32 0.0, %v4295
        %4297 = vmatmul.f32.gmra.mxu0 %v4186
        %v4298 = vpop.f32.mrf.mxu0
        %v4299 = vadd.f32 0.0, %v4298
        %4300 = vmatmul.f32.gmra.mxu0 %v4189
        %v4301 = vpop.f32.mrf.mxu0
        %v4302 = vadd.f32 0.0, %v4301
        %4303 = vmatmul.f32.gmra.mxu0 %v4192
        %v4304 = vpop.f32.mrf.mxu0
        %v4305 = vadd.f32 0.0, %v4304
        %4306 = vmatmul.f32.gmra.mxu0 %v4195
        %v4307 = vpop.f32.mrf.mxu0
        %v4308 = vadd.f32 0.0, %v4307
        %4309 = vmatmul.f32.gmra.mxu0 %v4198
        %v4310 = vpop.f32.mrf.mxu0
        %v4311 = vadd.f32 0.0, %v4310
        %4312 = vmatmul.f32.gmra.mxu0 %v4201
        %v4313 = vpop.f32.mrf.mxu0
        %v4314 = vadd.f32 0.0, %v4313
        %4315 = vmatmul.f32.gmra.mxu0 %v4204
        %v4316 = vpop.f32.mrf.mxu0
        %v4317 = vadd.f32 0.0, %v4316
        %4318 = vmatmul.f32.gmra.mxu0 %v4207
        %v4319 = vpop.f32.mrf.mxu0
        %v4320 = vadd.f32 0.0, %v4319
        %4321 = vdwg.mxu0
        %v4322 = vadd.f32 %v4040, %v4227
        %v4323 = vadd.f32 %v4041, %v4230
        %v4324 = vadd.f32 %v4042, %v4233
        %v4325 = vadd.f32 %v4043, %v4236
        %v4326 = vadd.f32 %v4044, %v4239
        %v4327 = vadd.f32 %v4045, %v4242
        %v4328 = vadd.f32 %v4046, %v4245
        %v4329 = vadd.f32 %v4047, %v4248
        %v4330 = vadd.f32 %v4048, %v4251
        %v4331 = vadd.f32 %v4049, %v4254
        %v4332 = vadd.f32 %v4050, %v4257
        %v4333 = vadd.f32 %v4051, %v4260
        %v4334 = vadd.f32 %v4052, %v4263
        %v4335 = vadd.f32 %v4053, %v4266
        %v4336 = vadd.f32 %v4054, %v4269
        %v4337 = vadd.f32 %v4055, %v4272
        %v4338 = vadd.f32 %v4056, %v4275
        %v4339 = vadd.f32 %v4057, %v4278
        %v4340 = vadd.f32 %v4058, %v4281
        %v4341 = vadd.f32 %v4059, %v4284
        %v4342 = vadd.f32 %v4060, %v4287
        %v4343 = vadd.f32 %v4061, %v4290
        %v4344 = vadd.f32 %v4062, %v4293
        %v4345 = vadd.f32 %v4063, %v4296
        %v4346 = vadd.f32 %v4064, %v4299
        %v4347 = vadd.f32 %v4065, %v4302
        %v4348 = vadd.f32 %v4066, %v4305
        %v4349 = vadd.f32 %v4067, %v4308
        %v4350 = vadd.f32 %v4068, %v4311
        %v4351 = vadd.f32 %v4069, %v4314
        %v4352 = vadd.f32 %v4070, %v4317
        %v4353 = vadd.f32 %v4071, %v4320
        %v4354 = vld [vmem:[%s369 + $0x8] sm:$0xff]
        %v4355 = vld [vmem:[%s369 + $0x10] sm:$0xff]
        %v4356 = vld [vmem:[%s369 + $0x28] sm:$0xff]
        %v4357 = vld [vmem:[%s369 + $0x30] sm:$0xff]
        %v4358 = vld [vmem:[%s369 + $0x48] sm:$0xff]
        %v4359 = vld [vmem:[%s369 + $0x50] sm:$0xff]
        %v4360 = vld [vmem:[%s369 + $0x68] sm:$0xff]
        %v4361 = vld [vmem:[%s369 + $0x70] sm:$0xff]
        %v4362 = vld [vmem:[%s369 + $0x88] sm:$0xff]
        %v4363 = vld [vmem:[%s369 + $0x90] sm:$0xff]
        %v4364 = vld [vmem:[%s369 + $0xa8] sm:$0xff]
        %v4365 = vld [vmem:[%s369 + $0xb0] sm:$0xff]
        %v4366 = vld [vmem:[%s369 + $0xc8] sm:$0xff]
        %v4367 = vld [vmem:[%s369 + $0xd0] sm:$0xff]
        %v4368 = vld [vmem:[%s369 + $0xe8] sm:$0xff]
        %v4369 = vld [vmem:[%s369 + $0xf0] sm:$0xff]
        %v4370 = vld [vmem:[%s369 + $0x108] sm:$0xff]
        %v4371 = vld [vmem:[%s369 + $0x110] sm:$0xff]
        %v4372 = vld [vmem:[%s369 + $0x128] sm:$0xff]
        %v4373 = vld [vmem:[%s369 + $0x130] sm:$0xff]
        %v4374 = vld [vmem:[%s369 + $0x148] sm:$0xff]
        %v4375 = vld [vmem:[%s369 + $0x150] sm:$0xff]
        %v4376 = vld [vmem:[%s369 + $0x168] sm:$0xff]
        %v4377 = vld [vmem:[%s369 + $0x170] sm:$0xff]
        %v4378 = vld [vmem:[%s369 + $0x188] sm:$0xff]
        %v4379 = vld [vmem:[%s369 + $0x190] sm:$0xff]
        %v4380 = vld [vmem:[%s369 + $0x1a8] sm:$0xff]
        %v4381 = vld [vmem:[%s369 + $0x1b0] sm:$0xff]
        %v4382 = vld [vmem:[%s369 + $0x1c8] sm:$0xff]
        %v4383 = vld [vmem:[%s369 + $0x1d0] sm:$0xff]
        %v4384 = vld [vmem:[%s369 + $0x1e8] sm:$0xff]
        %v4385 = vld [vmem:[%s369 + $0x1f0] sm:$0xff]
        %s4386 = scalar_lea.vmem %s3, 832
        %v4387 = vld [vmem:[%s4386] sm:$0xff]
        %v4388 = vld [vmem:[%s4386 + $0x8] sm:$0xff]
        %v4389 = vld [vmem:[%s4386 + $0x10] sm:$0xff]
        %v4390 = vld [vmem:[%s4386 + $0x18] sm:$0xff]
        %v4391 = vld [vmem:[%s4386 + $0x20] sm:$0xff]
        %v4392 = vld [vmem:[%s4386 + $0x28] sm:$0xff]
        %v4393 = vld [vmem:[%s4386 + $0x30] sm:$0xff]
        %v4394 = vld [vmem:[%s4386 + $0x38] sm:$0xff]
        %v4396 = vsel %vm316, %v4354, 0
        %v4399 = vsel %vm316, %v4355, 0
        %v4402 = vsel %vm316, %v4356, 0
        %v4405 = vsel %vm316, %v4357, 0
        %v4408 = vsel %vm316, %v4358, 0
        %v4411 = vsel %vm316, %v4359, 0
        %v4414 = vsel %vm316, %v4360, 0
        %v4417 = vsel %vm316, %v4361, 0
        %v4420 = vsel %vm316, %v4362, 0
        %v4423 = vsel %vm316, %v4363, 0
        %v4426 = vsel %vm316, %v4364, 0
        %v4429 = vsel %vm316, %v4365, 0
        %v4432 = vsel %vm316, %v4366, 0
        %v4435 = vsel %vm316, %v4367, 0
        %v4438 = vsel %vm316, %v4368, 0
        %v4441 = vsel %vm316, %v4369, 0
        %v4444 = vsel %vm316, %v4370, 0
        %v4447 = vsel %vm316, %v4371, 0
        %v4450 = vsel %vm316, %v4372, 0
        %v4453 = vsel %vm316, %v4373, 0
        %v4456 = vsel %vm316, %v4374, 0
        %v4459 = vsel %vm316, %v4375, 0
        %v4462 = vsel %vm316, %v4376, 0
        %v4465 = vsel %vm316, %v4377, 0
        %v4468 = vsel %vm316, %v4378, 0
        %v4471 = vsel %vm316, %v4379, 0
        %v4474 = vsel %vm316, %v4380, 0
        %v4477 = vsel %vm316, %v4381, 0
        %v4480 = vsel %vm316, %v4382, 0
        %v4483 = vsel %vm316, %v4383, 0
        %v4486 = vsel %vm316, %v4384, 0
        %v4489 = vsel %vm316, %v4385, 0
        %4491 = vmatpush.msra.mxu0 0.0
        %4492 = vmatpush.msra.mxu0 0.0
        %4493 = vmatpush.msra.mxu0 0.0
        %4494 = vmatpush.msra.mxu0 0.0
        %4495 = vmatpush.msra.mxu0 0.0
        %4496 = vmatpush.msra.mxu0 0.0
        %4497 = vmatpush.msra.mxu0 0.0
        %4498 = vmatpush.msra.mxu0 0.0
        %4499 = vmatpush.msra.mxu0 %v4394
        %4500 = vmatpush.msra.mxu0 %v4393
        %4501 = vmatpush.msra.mxu0 %v4392
        %4502 = vmatpush.msra.mxu0 %v4391
        %4503 = vmatpush.msra.mxu0 %v4390
        %4504 = vmatpush.msra.mxu0 %v4389
        %4505 = vmatpush.msra.mxu0 %v4388
        %4506 = vmatpush.msra.mxu0 %v4387
        %4507 = vmatmul.f32.gmra.mxu0 %v4396
        %v4508 = vpop.f32.mrf.mxu0
        %v4509 = vadd.f32 0.0, %v4508
        %4510 = vmatmul.f32.gmra.mxu0 %v4399
        %v4511 = vpop.f32.mrf.mxu0
        %v4512 = vadd.f32 0.0, %v4511
        %4513 = vmatmul.f32.gmra.mxu0 %v4402
        %v4514 = vpop.f32.mrf.mxu0
        %v4515 = vadd.f32 0.0, %v4514
        %4516 = vmatmul.f32.gmra.mxu0 %v4405
        %v4517 = vpop.f32.mrf.mxu0
        %v4518 = vadd.f32 0.0, %v4517
        %4519 = vmatmul.f32.gmra.mxu0 %v4408
        %v4520 = vpop.f32.mrf.mxu0
        %v4521 = vadd.f32 0.0, %v4520
        %4522 = vmatmul.f32.gmra.mxu0 %v4411
        %v4523 = vpop.f32.mrf.mxu0
        %v4524 = vadd.f32 0.0, %v4523
        %4525 = vmatmul.f32.gmra.mxu0 %v4414
        %v4526 = vpop.f32.mrf.mxu0
        %v4527 = vadd.f32 0.0, %v4526
        %4528 = vmatmul.f32.gmra.mxu0 %v4417
        %v4529 = vpop.f32.mrf.mxu0
        %v4530 = vadd.f32 0.0, %v4529
        %4531 = vmatmul.f32.gmra.mxu0 %v4420
        %v4532 = vpop.f32.mrf.mxu0
        %v4533 = vadd.f32 0.0, %v4532
        %4534 = vmatmul.f32.gmra.mxu0 %v4423
        %v4535 = vpop.f32.mrf.mxu0
        %v4536 = vadd.f32 0.0, %v4535
        %4537 = vmatmul.f32.gmra.mxu0 %v4426
        %v4538 = vpop.f32.mrf.mxu0
        %v4539 = vadd.f32 0.0, %v4538
        %4540 = vmatmul.f32.gmra.mxu0 %v4429
        %v4541 = vpop.f32.mrf.mxu0
        %v4542 = vadd.f32 0.0, %v4541
        %4543 = vmatmul.f32.gmra.mxu0 %v4432
        %v4544 = vpop.f32.mrf.mxu0
        %v4545 = vadd.f32 0.0, %v4544
        %4546 = vmatmul.f32.gmra.mxu0 %v4435
        %v4547 = vpop.f32.mrf.mxu0
        %v4548 = vadd.f32 0.0, %v4547
        %4549 = vmatmul.f32.gmra.mxu0 %v4438
        %v4550 = vpop.f32.mrf.mxu0
        %v4551 = vadd.f32 0.0, %v4550
        %4552 = vmatmul.f32.gmra.mxu0 %v4441
        %v4553 = vpop.f32.mrf.mxu0
        %v4554 = vadd.f32 0.0, %v4553
        %4555 = vmatmul.f32.gmra.mxu0 %v4444
        %v4556 = vpop.f32.mrf.mxu0
        %v4557 = vadd.f32 0.0, %v4556
        %4558 = vmatmul.f32.gmra.mxu0 %v4447
        %v4559 = vpop.f32.mrf.mxu0
        %v4560 = vadd.f32 0.0, %v4559
        %4561 = vmatmul.f32.gmra.mxu0 %v4450
        %v4562 = vpop.f32.mrf.mxu0
        %v4563 = vadd.f32 0.0, %v4562
        %4564 = vmatmul.f32.gmra.mxu0 %v4453
        %v4565 = vpop.f32.mrf.mxu0
        %v4566 = vadd.f32 0.0, %v4565
        %4567 = vmatmul.f32.gmra.mxu0 %v4456
        %v4568 = vpop.f32.mrf.mxu0
        %v4569 = vadd.f32 0.0, %v4568
        %4570 = vmatmul.f32.gmra.mxu0 %v4459
        %v4571 = vpop.f32.mrf.mxu0
        %v4572 = vadd.f32 0.0, %v4571
        %4573 = vmatmul.f32.gmra.mxu0 %v4462
        %v4574 = vpop.f32.mrf.mxu0
        %v4575 = vadd.f32 0.0, %v4574
        %4576 = vmatmul.f32.gmra.mxu0 %v4465
        %v4577 = vpop.f32.mrf.mxu0
        %v4578 = vadd.f32 0.0, %v4577
        %4579 = vmatmul.f32.gmra.mxu0 %v4468
        %v4580 = vpop.f32.mrf.mxu0
        %v4581 = vadd.f32 0.0, %v4580
        %4582 = vmatmul.f32.gmra.mxu0 %v4471
        %v4583 = vpop.f32.mrf.mxu0
        %v4584 = vadd.f32 0.0, %v4583
        %4585 = vmatmul.f32.gmra.mxu0 %v4474
        %v4586 = vpop.f32.mrf.mxu0
        %v4587 = vadd.f32 0.0, %v4586
        %4588 = vmatmul.f32.gmra.mxu0 %v4477
        %v4589 = vpop.f32.mrf.mxu0
        %v4590 = vadd.f32 0.0, %v4589
        %4591 = vmatmul.f32.gmra.mxu0 %v4480
        %v4592 = vpop.f32.mrf.mxu0
        %v4593 = vadd.f32 0.0, %v4592
        %4594 = vmatmul.f32.gmra.mxu0 %v4483
        %v4595 = vpop.f32.mrf.mxu0
        %v4596 = vadd.f32 0.0, %v4595
        %4597 = vmatmul.f32.gmra.mxu0 %v4486
        %v4598 = vpop.f32.mrf.mxu0
        %v4599 = vadd.f32 0.0, %v4598
        %4600 = vmatmul.f32.gmra.mxu0 %v4489
        %v4601 = vpop.f32.mrf.mxu0
        %v4602 = vadd.f32 0.0, %v4601
        %4603 = vdwg.mxu0
        %v4604 = vadd.f32 %v4322, %v4509
        %v4605 = vadd.f32 %v4323, %v4512
        %v4606 = vadd.f32 %v4324, %v4515
        %v4607 = vadd.f32 %v4325, %v4518
        %v4608 = vadd.f32 %v4326, %v4521
        %v4609 = vadd.f32 %v4327, %v4524
        %v4610 = vadd.f32 %v4328, %v4527
        %v4611 = vadd.f32 %v4329, %v4530
        %v4612 = vadd.f32 %v4330, %v4533
        %v4613 = vadd.f32 %v4331, %v4536
        %v4614 = vadd.f32 %v4332, %v4539
        %v4615 = vadd.f32 %v4333, %v4542
        %v4616 = vadd.f32 %v4334, %v4545
        %v4617 = vadd.f32 %v4335, %v4548
        %v4618 = vadd.f32 %v4336, %v4551
        %v4619 = vadd.f32 %v4337, %v4554
        %v4620 = vadd.f32 %v4338, %v4557
        %v4621 = vadd.f32 %v4339, %v4560
        %v4622 = vadd.f32 %v4340, %v4563
        %v4623 = vadd.f32 %v4341, %v4566
        %v4624 = vadd.f32 %v4342, %v4569
        %v4625 = vadd.f32 %v4343, %v4572
        %v4626 = vadd.f32 %v4344, %v4575
        %v4627 = vadd.f32 %v4345, %v4578
        %v4628 = vadd.f32 %v4346, %v4581
        %v4629 = vadd.f32 %v4347, %v4584
        %v4630 = vadd.f32 %v4348, %v4587
        %v4631 = vadd.f32 %v4349, %v4590
        %v4632 = vadd.f32 %v4350, %v4593
        %v4633 = vadd.f32 %v4351, %v4596
        %v4634 = vadd.f32 %v4352, %v4599
        %v4635 = vadd.f32 %v4353, %v4602
        %v4636 = vld [vmem:[%s369 + $0x9] sm:$0xff]
        %v4637 = vld [vmem:[%s369 + $0x11] sm:$0xff]
        %v4638 = vld [vmem:[%s369 + $0x29] sm:$0xff]
        %v4639 = vld [vmem:[%s369 + $0x31] sm:$0xff]
        %v4640 = vld [vmem:[%s369 + $0x49] sm:$0xff]
        %v4641 = vld [vmem:[%s369 + $0x51] sm:$0xff]
        %v4642 = vld [vmem:[%s369 + $0x69] sm:$0xff]
        %v4643 = vld [vmem:[%s369 + $0x71] sm:$0xff]
        %v4644 = vld [vmem:[%s369 + $0x89] sm:$0xff]
        %v4645 = vld [vmem:[%s369 + $0x91] sm:$0xff]
        %v4646 = vld [vmem:[%s369 + $0xa9] sm:$0xff]
        %v4647 = vld [vmem:[%s369 + $0xb1] sm:$0xff]
        %v4648 = vld [vmem:[%s369 + $0xc9] sm:$0xff]
        %v4649 = vld [vmem:[%s369 + $0xd1] sm:$0xff]
        %v4650 = vld [vmem:[%s369 + $0xe9] sm:$0xff]
        %v4651 = vld [vmem:[%s369 + $0xf1] sm:$0xff]
        %v4652 = vld [vmem:[%s369 + $0x109] sm:$0xff]
        %v4653 = vld [vmem:[%s369 + $0x111] sm:$0xff]
        %v4654 = vld [vmem:[%s369 + $0x129] sm:$0xff]
        %v4655 = vld [vmem:[%s369 + $0x131] sm:$0xff]
        %v4656 = vld [vmem:[%s369 + $0x149] sm:$0xff]
        %v4657 = vld [vmem:[%s369 + $0x151] sm:$0xff]
        %v4658 = vld [vmem:[%s369 + $0x169] sm:$0xff]
        %v4659 = vld [vmem:[%s369 + $0x171] sm:$0xff]
        %v4660 = vld [vmem:[%s369 + $0x189] sm:$0xff]
        %v4661 = vld [vmem:[%s369 + $0x191] sm:$0xff]
        %v4662 = vld [vmem:[%s369 + $0x1a9] sm:$0xff]
        %v4663 = vld [vmem:[%s369 + $0x1b1] sm:$0xff]
        %v4664 = vld [vmem:[%s369 + $0x1c9] sm:$0xff]
        %v4665 = vld [vmem:[%s369 + $0x1d1] sm:$0xff]
        %v4666 = vld [vmem:[%s369 + $0x1e9] sm:$0xff]
        %v4667 = vld [vmem:[%s369 + $0x1f1] sm:$0xff]
        %s4668 = scalar_lea.vmem %s3, 896
        %v4669 = vld [vmem:[%s4668] sm:$0xff]
        %v4670 = vld [vmem:[%s4668 + $0x8] sm:$0xff]
        %v4671 = vld [vmem:[%s4668 + $0x10] sm:$0xff]
        %v4672 = vld [vmem:[%s4668 + $0x18] sm:$0xff]
        %v4673 = vld [vmem:[%s4668 + $0x20] sm:$0xff]
        %v4674 = vld [vmem:[%s4668 + $0x28] sm:$0xff]
        %v4675 = vld [vmem:[%s4668 + $0x30] sm:$0xff]
        %v4676 = vld [vmem:[%s4668 + $0x38] sm:$0xff]
        %v4678 = vsel %vm316, %v4636, 0
        %v4681 = vsel %vm316, %v4637, 0
        %v4684 = vsel %vm316, %v4638, 0
        %v4687 = vsel %vm316, %v4639, 0
        %v4690 = vsel %vm316, %v4640, 0
        %v4693 = vsel %vm316, %v4641, 0
        %v4696 = vsel %vm316, %v4642, 0
        %v4699 = vsel %vm316, %v4643, 0
        %v4702 = vsel %vm316, %v4644, 0
        %v4705 = vsel %vm316, %v4645, 0
        %v4708 = vsel %vm316, %v4646, 0
        %v4711 = vsel %vm316, %v4647, 0
        %v4714 = vsel %vm316, %v4648, 0
        %v4717 = vsel %vm316, %v4649, 0
        %v4720 = vsel %vm316, %v4650, 0
        %v4723 = vsel %vm316, %v4651, 0
        %v4726 = vsel %vm316, %v4652, 0
        %v4729 = vsel %vm316, %v4653, 0
        %v4732 = vsel %vm316, %v4654, 0
        %v4735 = vsel %vm316, %v4655, 0
        %v4738 = vsel %vm316, %v4656, 0
        %v4741 = vsel %vm316, %v4657, 0
        %v4744 = vsel %vm316, %v4658, 0
        %v4747 = vsel %vm316, %v4659, 0
        %v4750 = vsel %vm316, %v4660, 0
        %v4753 = vsel %vm316, %v4661, 0
        %v4756 = vsel %vm316, %v4662, 0
        %v4759 = vsel %vm316, %v4663, 0
        %v4762 = vsel %vm316, %v4664, 0
        %v4765 = vsel %vm316, %v4665, 0
        %v4768 = vsel %vm316, %v4666, 0
        %v4771 = vsel %vm316, %v4667, 0
        %4773 = vmatpush.msra.mxu0 0.0
        %4774 = vmatpush.msra.mxu0 0.0
        %4775 = vmatpush.msra.mxu0 0.0
        %4776 = vmatpush.msra.mxu0 0.0
        %4777 = vmatpush.msra.mxu0 0.0
        %4778 = vmatpush.msra.mxu0 0.0
        %4779 = vmatpush.msra.mxu0 0.0
        %4780 = vmatpush.msra.mxu0 0.0
        %4781 = vmatpush.msra.mxu0 %v4676
        %4782 = vmatpush.msra.mxu0 %v4675
        %4783 = vmatpush.msra.mxu0 %v4674
        %4784 = vmatpush.msra.mxu0 %v4673
        %4785 = vmatpush.msra.mxu0 %v4672
        %4786 = vmatpush.msra.mxu0 %v4671
        %4787 = vmatpush.msra.mxu0 %v4670
        %4788 = vmatpush.msra.mxu0 %v4669
        %4789 = vmatmul.f32.gmra.mxu0 %v4678
        %v4790 = vpop.f32.mrf.mxu0
        %v4791 = vadd.f32 0.0, %v4790
        %4792 = vmatmul.f32.gmra.mxu0 %v4681
        %v4793 = vpop.f32.mrf.mxu0
        %v4794 = vadd.f32 0.0, %v4793
        %4795 = vmatmul.f32.gmra.mxu0 %v4684
        %v4796 = vpop.f32.mrf.mxu0
        %v4797 = vadd.f32 0.0, %v4796
        %4798 = vmatmul.f32.gmra.mxu0 %v4687
        %v4799 = vpop.f32.mrf.mxu0
        %v4800 = vadd.f32 0.0, %v4799
        %4801 = vmatmul.f32.gmra.mxu0 %v4690
        %v4802 = vpop.f32.mrf.mxu0
        %v4803 = vadd.f32 0.0, %v4802
        %4804 = vmatmul.f32.gmra.mxu0 %v4693
        %v4805 = vpop.f32.mrf.mxu0
        %v4806 = vadd.f32 0.0, %v4805
        %4807 = vmatmul.f32.gmra.mxu0 %v4696
        %v4808 = vpop.f32.mrf.mxu0
        %v4809 = vadd.f32 0.0, %v4808
        %4810 = vmatmul.f32.gmra.mxu0 %v4699
        %v4811 = vpop.f32.mrf.mxu0
        %v4812 = vadd.f32 0.0, %v4811
        %4813 = vmatmul.f32.gmra.mxu0 %v4702
        %v4814 = vpop.f32.mrf.mxu0
        %v4815 = vadd.f32 0.0, %v4814
        %4816 = vmatmul.f32.gmra.mxu0 %v4705
        %v4817 = vpop.f32.mrf.mxu0
        %v4818 = vadd.f32 0.0, %v4817
        %4819 = vmatmul.f32.gmra.mxu0 %v4708
        %v4820 = vpop.f32.mrf.mxu0
        %v4821 = vadd.f32 0.0, %v4820
        %4822 = vmatmul.f32.gmra.mxu0 %v4711
        %v4823 = vpop.f32.mrf.mxu0
        %v4824 = vadd.f32 0.0, %v4823
        %4825 = vmatmul.f32.gmra.mxu0 %v4714
        %v4826 = vpop.f32.mrf.mxu0
        %v4827 = vadd.f32 0.0, %v4826
        %4828 = vmatmul.f32.gmra.mxu0 %v4717
        %v4829 = vpop.f32.mrf.mxu0
        %v4830 = vadd.f32 0.0, %v4829
        %4831 = vmatmul.f32.gmra.mxu0 %v4720
        %v4832 = vpop.f32.mrf.mxu0
        %v4833 = vadd.f32 0.0, %v4832
        %4834 = vmatmul.f32.gmra.mxu0 %v4723
        %v4835 = vpop.f32.mrf.mxu0
        %v4836 = vadd.f32 0.0, %v4835
        %4837 = vmatmul.f32.gmra.mxu0 %v4726
        %v4838 = vpop.f32.mrf.mxu0
        %v4839 = vadd.f32 0.0, %v4838
        %4840 = vmatmul.f32.gmra.mxu0 %v4729
        %v4841 = vpop.f32.mrf.mxu0
        %v4842 = vadd.f32 0.0, %v4841
        %4843 = vmatmul.f32.gmra.mxu0 %v4732
        %v4844 = vpop.f32.mrf.mxu0
        %v4845 = vadd.f32 0.0, %v4844
        %4846 = vmatmul.f32.gmra.mxu0 %v4735
        %v4847 = vpop.f32.mrf.mxu0
        %v4848 = vadd.f32 0.0, %v4847
        %4849 = vmatmul.f32.gmra.mxu0 %v4738
        %v4850 = vpop.f32.mrf.mxu0
        %v4851 = vadd.f32 0.0, %v4850
        %4852 = vmatmul.f32.gmra.mxu0 %v4741
        %v4853 = vpop.f32.mrf.mxu0
        %v4854 = vadd.f32 0.0, %v4853
        %4855 = vmatmul.f32.gmra.mxu0 %v4744
        %v4856 = vpop.f32.mrf.mxu0
        %v4857 = vadd.f32 0.0, %v4856
        %4858 = vmatmul.f32.gmra.mxu0 %v4747
        %v4859 = vpop.f32.mrf.mxu0
        %v4860 = vadd.f32 0.0, %v4859
        %4861 = vmatmul.f32.gmra.mxu0 %v4750
        %v4862 = vpop.f32.mrf.mxu0
        %v4863 = vadd.f32 0.0, %v4862
        %4864 = vmatmul.f32.gmra.mxu0 %v4753
        %v4865 = vpop.f32.mrf.mxu0
        %v4866 = vadd.f32 0.0, %v4865
        %4867 = vmatmul.f32.gmra.mxu0 %v4756
        %v4868 = vpop.f32.mrf.mxu0
        %v4869 = vadd.f32 0.0, %v4868
        %4870 = vmatmul.f32.gmra.mxu0 %v4759
        %v4871 = vpop.f32.mrf.mxu0
        %v4872 = vadd.f32 0.0, %v4871
        %4873 = vmatmul.f32.gmra.mxu0 %v4762
        %v4874 = vpop.f32.mrf.mxu0
        %v4875 = vadd.f32 0.0, %v4874
        %4876 = vmatmul.f32.gmra.mxu0 %v4765
        %v4877 = vpop.f32.mrf.mxu0
        %v4878 = vadd.f32 0.0, %v4877
        %4879 = vmatmul.f32.gmra.mxu0 %v4768
        %v4880 = vpop.f32.mrf.mxu0
        %v4881 = vadd.f32 0.0, %v4880
        %4882 = vmatmul.f32.gmra.mxu0 %v4771
        %v4883 = vpop.f32.mrf.mxu0
        %v4884 = vadd.f32 0.0, %v4883
        %4885 = vdwg.mxu0
        %v4886 = vadd.f32 %v4604, %v4791
        %v4887 = vadd.f32 %v4605, %v4794
        %v4888 = vadd.f32 %v4606, %v4797
        %v4889 = vadd.f32 %v4607, %v4800
        %v4890 = vadd.f32 %v4608, %v4803
        %v4891 = vadd.f32 %v4609, %v4806
        %v4892 = vadd.f32 %v4610, %v4809
        %v4893 = vadd.f32 %v4611, %v4812
        %v4894 = vadd.f32 %v4612, %v4815
        %v4895 = vadd.f32 %v4613, %v4818
        %v4896 = vadd.f32 %v4614, %v4821
        %v4897 = vadd.f32 %v4615, %v4824
        %v4898 = vadd.f32 %v4616, %v4827
        %v4899 = vadd.f32 %v4617, %v4830
        %v4900 = vadd.f32 %v4618, %v4833
        %v4901 = vadd.f32 %v4619, %v4836
        %v4902 = vadd.f32 %v4620, %v4839
        %v4903 = vadd.f32 %v4621, %v4842
        %v4904 = vadd.f32 %v4622, %v4845
        %v4905 = vadd.f32 %v4623, %v4848
        %v4906 = vadd.f32 %v4624, %v4851
        %v4907 = vadd.f32 %v4625, %v4854
        %v4908 = vadd.f32 %v4626, %v4857
        %v4909 = vadd.f32 %v4627, %v4860
        %v4910 = vadd.f32 %v4628, %v4863
        %v4911 = vadd.f32 %v4629, %v4866
        %v4912 = vadd.f32 %v4630, %v4869
        %v4913 = vadd.f32 %v4631, %v4872
        %v4914 = vadd.f32 %v4632, %v4875
        %v4915 = vadd.f32 %v4633, %v4878
        %v4916 = vadd.f32 %v4634, %v4881
        %v4917 = vadd.f32 %v4635, %v4884
        %s4918 = scalar_lea.vmem [#allocation3], 64
        %v4919 = vld [vmem:[%s4918 + $0x7] sm:$0xff]
        %v4920 = vld [vmem:[%s4918 + $0xf] sm:$0xff]
        %v4921 = vld [vmem:[%s4918 + $0x27] sm:$0xff]
        %v4922 = vld [vmem:[%s4918 + $0x2f] sm:$0xff]
        %v4923 = vld [vmem:[%s4918 + $0x47] sm:$0xff]
        %v4924 = vld [vmem:[%s4918 + $0x4f] sm:$0xff]
        %v4925 = vld [vmem:[%s4918 + $0x67] sm:$0xff]
        %v4926 = vld [vmem:[%s4918 + $0x6f] sm:$0xff]
        %v4927 = vld [vmem:[%s4918 + $0x87] sm:$0xff]
        %v4928 = vld [vmem:[%s4918 + $0x8f] sm:$0xff]
        %v4929 = vld [vmem:[%s4918 + $0xa7] sm:$0xff]
        %v4930 = vld [vmem:[%s4918 + $0xaf] sm:$0xff]
        %v4931 = vld [vmem:[%s4918 + $0xc7] sm:$0xff]
        %v4932 = vld [vmem:[%s4918 + $0xcf] sm:$0xff]
        %v4933 = vld [vmem:[%s4918 + $0xe7] sm:$0xff]
        %v4934 = vld [vmem:[%s4918 + $0xef] sm:$0xff]
        %v4935 = vld [vmem:[%s4918 + $0x107] sm:$0xff]
        %v4936 = vld [vmem:[%s4918 + $0x10f] sm:$0xff]
        %v4937 = vld [vmem:[%s4918 + $0x127] sm:$0xff]
        %v4938 = vld [vmem:[%s4918 + $0x12f] sm:$0xff]
        %v4939 = vld [vmem:[%s4918 + $0x147] sm:$0xff]
        %v4940 = vld [vmem:[%s4918 + $0x14f] sm:$0xff]
        %v4941 = vld [vmem:[%s4918 + $0x167] sm:$0xff]
        %v4942 = vld [vmem:[%s4918 + $0x16f] sm:$0xff]
        %v4943 = vld [vmem:[%s4918 + $0x187] sm:$0xff]
        %v4944 = vld [vmem:[%s4918 + $0x18f] sm:$0xff]
        %v4945 = vld [vmem:[%s4918 + $0x1a7] sm:$0xff]
        %v4946 = vld [vmem:[%s4918 + $0x1af] sm:$0xff]
        %v4947 = vld [vmem:[%s4918 + $0x1c7] sm:$0xff]
        %v4948 = vld [vmem:[%s4918 + $0x1cf] sm:$0xff]
        %v4949 = vld [vmem:[%s4918 + $0x1e7] sm:$0xff]
        %v4950 = vld [vmem:[%s4918 + $0x1ef] sm:$0xff]
        %s4951 = scalar_lea.vmem %s3, 960
        %v4952 = vld [vmem:[%s4951] sm:$0xff]
        %v4953 = vld [vmem:[%s4951 + $0x8] sm:$0xff]
        %v4954 = vld [vmem:[%s4951 + $0x10] sm:$0xff]
        %v4955 = vld [vmem:[%s4951 + $0x18] sm:$0xff]
        %v4956 = vld [vmem:[%s4951 + $0x20] sm:$0xff]
        %v4957 = vld [vmem:[%s4951 + $0x28] sm:$0xff]
        %v4958 = vld [vmem:[%s4951 + $0x30] sm:$0xff]
        %v4959 = vld [vmem:[%s4951 + $0x38] sm:$0xff]
        %v4961 = vsel %vm316, %v4919, 0
        %v4964 = vsel %vm316, %v4920, 0
        %v4967 = vsel %vm316, %v4921, 0
        %v4970 = vsel %vm316, %v4922, 0
        %v4973 = vsel %vm316, %v4923, 0
        %v4976 = vsel %vm316, %v4924, 0
        %v4979 = vsel %vm316, %v4925, 0
        %v4982 = vsel %vm316, %v4926, 0
        %v4985 = vsel %vm316, %v4927, 0
        %v4988 = vsel %vm316, %v4928, 0
        %v4991 = vsel %vm316, %v4929, 0
        %v4994 = vsel %vm316, %v4930, 0
        %v4997 = vsel %vm316, %v4931, 0
        %v5000 = vsel %vm316, %v4932, 0
        %v5003 = vsel %vm316, %v4933, 0
        %v5006 = vsel %vm316, %v4934, 0
        %v5009 = vsel %vm316, %v4935, 0
        %v5012 = vsel %vm316, %v4936, 0
        %v5015 = vsel %vm316, %v4937, 0
        %v5018 = vsel %vm316, %v4938, 0
        %v5021 = vsel %vm316, %v4939, 0
        %v5024 = vsel %vm316, %v4940, 0
        %v5027 = vsel %vm316, %v4941, 0
        %v5030 = vsel %vm316, %v4942, 0
        %v5033 = vsel %vm316, %v4943, 0
        %v5036 = vsel %vm316, %v4944, 0
        %v5039 = vsel %vm316, %v4945, 0
        %v5042 = vsel %vm316, %v4946, 0
        %v5045 = vsel %vm316, %v4947, 0
        %v5048 = vsel %vm316, %v4948, 0
        %v5051 = vsel %vm316, %v4949, 0
        %v5054 = vsel %vm316, %v4950, 0
        %5056 = vmatpush.msra.mxu0 0.0
        %5057 = vmatpush.msra.mxu0 0.0
        %5058 = vmatpush.msra.mxu0 0.0
        %5059 = vmatpush.msra.mxu0 0.0
        %5060 = vmatpush.msra.mxu0 0.0
        %5061 = vmatpush.msra.mxu0 0.0
        %5062 = vmatpush.msra.mxu0 0.0
        %5063 = vmatpush.msra.mxu0 0.0
        %5064 = vmatpush.msra.mxu0 %v4959
        %5065 = vmatpush.msra.mxu0 %v4958
        %5066 = vmatpush.msra.mxu0 %v4957
        %5067 = vmatpush.msra.mxu0 %v4956
        %5068 = vmatpush.msra.mxu0 %v4955
        %5069 = vmatpush.msra.mxu0 %v4954
        %5070 = vmatpush.msra.mxu0 %v4953
        %5071 = vmatpush.msra.mxu0 %v4952
        %5072 = vmatmul.f32.gmra.mxu0 %v4961
        %v5073 = vpop.f32.mrf.mxu0
        %v5074 = vadd.f32 0.0, %v5073
        %5075 = vmatmul.f32.gmra.mxu0 %v4964
        %v5076 = vpop.f32.mrf.mxu0
        %v5077 = vadd.f32 0.0, %v5076
        %5078 = vmatmul.f32.gmra.mxu0 %v4967
        %v5079 = vpop.f32.mrf.mxu0
        %v5080 = vadd.f32 0.0, %v5079
        %5081 = vmatmul.f32.gmra.mxu0 %v4970
        %v5082 = vpop.f32.mrf.mxu0
        %v5083 = vadd.f32 0.0, %v5082
        %5084 = vmatmul.f32.gmra.mxu0 %v4973
        %v5085 = vpop.f32.mrf.mxu0
        %v5086 = vadd.f32 0.0, %v5085
        %5087 = vmatmul.f32.gmra.mxu0 %v4976
        %v5088 = vpop.f32.mrf.mxu0
        %v5089 = vadd.f32 0.0, %v5088
        %5090 = vmatmul.f32.gmra.mxu0 %v4979
        %v5091 = vpop.f32.mrf.mxu0
        %v5092 = vadd.f32 0.0, %v5091
        %5093 = vmatmul.f32.gmra.mxu0 %v4982
        %v5094 = vpop.f32.mrf.mxu0
        %v5095 = vadd.f32 0.0, %v5094
        %5096 = vmatmul.f32.gmra.mxu0 %v4985
        %v5097 = vpop.f32.mrf.mxu0
        %v5098 = vadd.f32 0.0, %v5097
        %5099 = vmatmul.f32.gmra.mxu0 %v4988
        %v5100 = vpop.f32.mrf.mxu0
        %v5101 = vadd.f32 0.0, %v5100
        %5102 = vmatmul.f32.gmra.mxu0 %v4991
        %v5103 = vpop.f32.mrf.mxu0
        %v5104 = vadd.f32 0.0, %v5103
        %5105 = vmatmul.f32.gmra.mxu0 %v4994
        %v5106 = vpop.f32.mrf.mxu0
        %v5107 = vadd.f32 0.0, %v5106
        %5108 = vmatmul.f32.gmra.mxu0 %v4997
        %v5109 = vpop.f32.mrf.mxu0
        %v5110 = vadd.f32 0.0, %v5109
        %5111 = vmatmul.f32.gmra.mxu0 %v5000
        %v5112 = vpop.f32.mrf.mxu0
        %v5113 = vadd.f32 0.0, %v5112
        %5114 = vmatmul.f32.gmra.mxu0 %v5003
        %v5115 = vpop.f32.mrf.mxu0
        %v5116 = vadd.f32 0.0, %v5115
        %5117 = vmatmul.f32.gmra.mxu0 %v5006
        %v5118 = vpop.f32.mrf.mxu0
        %v5119 = vadd.f32 0.0, %v5118
        %5120 = vmatmul.f32.gmra.mxu0 %v5009
        %v5121 = vpop.f32.mrf.mxu0
        %v5122 = vadd.f32 0.0, %v5121
        %5123 = vmatmul.f32.gmra.mxu0 %v5012
        %v5124 = vpop.f32.mrf.mxu0
        %v5125 = vadd.f32 0.0, %v5124
        %5126 = vmatmul.f32.gmra.mxu0 %v5015
        %v5127 = vpop.f32.mrf.mxu0
        %v5128 = vadd.f32 0.0, %v5127
        %5129 = vmatmul.f32.gmra.mxu0 %v5018
        %v5130 = vpop.f32.mrf.mxu0
        %v5131 = vadd.f32 0.0, %v5130
        %5132 = vmatmul.f32.gmra.mxu0 %v5021
        %v5133 = vpop.f32.mrf.mxu0
        %v5134 = vadd.f32 0.0, %v5133
        %5135 = vmatmul.f32.gmra.mxu0 %v5024
        %v5136 = vpop.f32.mrf.mxu0
        %v5137 = vadd.f32 0.0, %v5136
        %5138 = vmatmul.f32.gmra.mxu0 %v5027
        %v5139 = vpop.f32.mrf.mxu0
        %v5140 = vadd.f32 0.0, %v5139
        %5141 = vmatmul.f32.gmra.mxu0 %v5030
        %v5142 = vpop.f32.mrf.mxu0
        %v5143 = vadd.f32 0.0, %v5142
        %5144 = vmatmul.f32.gmra.mxu0 %v5033
        %v5145 = vpop.f32.mrf.mxu0
        %v5146 = vadd.f32 0.0, %v5145
        %5147 = vmatmul.f32.gmra.mxu0 %v5036
        %v5148 = vpop.f32.mrf.mxu0
        %v5149 = vadd.f32 0.0, %v5148
        %5150 = vmatmul.f32.gmra.mxu0 %v5039
        %v5151 = vpop.f32.mrf.mxu0
        %v5152 = vadd.f32 0.0, %v5151
        %5153 = vmatmul.f32.gmra.mxu0 %v5042
        %v5154 = vpop.f32.mrf.mxu0
        %v5155 = vadd.f32 0.0, %v5154
        %5156 = vmatmul.f32.gmra.mxu0 %v5045
        %v5157 = vpop.f32.mrf.mxu0
        %v5158 = vadd.f32 0.0, %v5157
        %5159 = vmatmul.f32.gmra.mxu0 %v5048
        %v5160 = vpop.f32.mrf.mxu0
        %v5161 = vadd.f32 0.0, %v5160
        %5162 = vmatmul.f32.gmra.mxu0 %v5051
        %v5163 = vpop.f32.mrf.mxu0
        %v5164 = vadd.f32 0.0, %v5163
        %5165 = vmatmul.f32.gmra.mxu0 %v5054
        %v5166 = vpop.f32.mrf.mxu0
        %v5167 = vadd.f32 0.0, %v5166
        %5168 = vdwg.mxu0
        %v5169 = vadd.f32 %v4886, %v5074
        %v5170 = vadd.f32 %v4887, %v5077
        %v5171 = vadd.f32 %v4888, %v5080
        %v5172 = vadd.f32 %v4889, %v5083
        %v5173 = vadd.f32 %v4890, %v5086
        %v5174 = vadd.f32 %v4891, %v5089
        %v5175 = vadd.f32 %v4892, %v5092
        %v5176 = vadd.f32 %v4893, %v5095
        %v5177 = vadd.f32 %v4894, %v5098
        %v5178 = vadd.f32 %v4895, %v5101
        %v5179 = vadd.f32 %v4896, %v5104
        %v5180 = vadd.f32 %v4897, %v5107
        %v5181 = vadd.f32 %v4898, %v5110
        %v5182 = vadd.f32 %v4899, %v5113
        %v5183 = vadd.f32 %v4900, %v5116
        %v5184 = vadd.f32 %v4901, %v5119
        %v5185 = vadd.f32 %v4902, %v5122
        %v5186 = vadd.f32 %v4903, %v5125
        %v5187 = vadd.f32 %v4904, %v5128
        %v5188 = vadd.f32 %v4905, %v5131
        %v5189 = vadd.f32 %v4906, %v5134
        %v5190 = vadd.f32 %v4907, %v5137
        %v5191 = vadd.f32 %v4908, %v5140
        %v5192 = vadd.f32 %v4909, %v5143
        %v5193 = vadd.f32 %v4910, %v5146
        %v5194 = vadd.f32 %v4911, %v5149
        %v5195 = vadd.f32 %v4912, %v5152
        %v5196 = vadd.f32 %v4913, %v5155
        %v5197 = vadd.f32 %v4914, %v5158
        %v5198 = vadd.f32 %v4915, %v5161
        %v5199 = vadd.f32 %v4916, %v5164
        %v5200 = vadd.f32 %v4917, %v5167
        %v5201 = vld [vmem:[%s4918 + $0x8] sm:$0xff]
        %v5202 = vld [vmem:[%s4918 + $0x10] sm:$0xff]
        %v5203 = vld [vmem:[%s4918 + $0x28] sm:$0xff]
        %v5204 = vld [vmem:[%s4918 + $0x30] sm:$0xff]
        %v5205 = vld [vmem:[%s4918 + $0x48] sm:$0xff]
        %v5206 = vld [vmem:[%s4918 + $0x50] sm:$0xff]
        %v5207 = vld [vmem:[%s4918 + $0x68] sm:$0xff]
        %v5208 = vld [vmem:[%s4918 + $0x70] sm:$0xff]
        %v5209 = vld [vmem:[%s4918 + $0x88] sm:$0xff]
        %v5210 = vld [vmem:[%s4918 + $0x90] sm:$0xff]
        %v5211 = vld [vmem:[%s4918 + $0xa8] sm:$0xff]
        %v5212 = vld [vmem:[%s4918 + $0xb0] sm:$0xff]
        %v5213 = vld [vmem:[%s4918 + $0xc8] sm:$0xff]
        %v5214 = vld [vmem:[%s4918 + $0xd0] sm:$0xff]
        %v5215 = vld [vmem:[%s4918 + $0xe8] sm:$0xff]
        %v5216 = vld [vmem:[%s4918 + $0xf0] sm:$0xff]
        %v5217 = vld [vmem:[%s4918 + $0x108] sm:$0xff]
        %v5218 = vld [vmem:[%s4918 + $0x110] sm:$0xff]
        %v5219 = vld [vmem:[%s4918 + $0x128] sm:$0xff]
        %v5220 = vld [vmem:[%s4918 + $0x130] sm:$0xff]
        %v5221 = vld [vmem:[%s4918 + $0x148] sm:$0xff]
        %v5222 = vld [vmem:[%s4918 + $0x150] sm:$0xff]
        %v5223 = vld [vmem:[%s4918 + $0x168] sm:$0xff]
        %v5224 = vld [vmem:[%s4918 + $0x170] sm:$0xff]
        %v5225 = vld [vmem:[%s4918 + $0x188] sm:$0xff]
        %v5226 = vld [vmem:[%s4918 + $0x190] sm:$0xff]
        %v5227 = vld [vmem:[%s4918 + $0x1a8] sm:$0xff]
        %v5228 = vld [vmem:[%s4918 + $0x1b0] sm:$0xff]
        %v5229 = vld [vmem:[%s4918 + $0x1c8] sm:$0xff]
        %v5230 = vld [vmem:[%s4918 + $0x1d0] sm:$0xff]
        %v5231 = vld [vmem:[%s4918 + $0x1e8] sm:$0xff]
        %v5232 = vld [vmem:[%s4918 + $0x1f0] sm:$0xff]
        %s5233 = scalar_lea.vmem %s3, 1024
        %v5234 = vld [vmem:[%s5233] sm:$0xff]
        %v5235 = vld [vmem:[%s5233 + $0x8] sm:$0xff]
        %v5236 = vld [vmem:[%s5233 + $0x10] sm:$0xff]
        %v5237 = vld [vmem:[%s5233 + $0x18] sm:$0xff]
        %v5238 = vld [vmem:[%s5233 + $0x20] sm:$0xff]
        %v5239 = vld [vmem:[%s5233 + $0x28] sm:$0xff]
        %v5240 = vld [vmem:[%s5233 + $0x30] sm:$0xff]
        %v5241 = vld [vmem:[%s5233 + $0x38] sm:$0xff]
        %v5243 = vsel %vm316, %v5201, 0
        %v5246 = vsel %vm316, %v5202, 0
        %v5249 = vsel %vm316, %v5203, 0
        %v5252 = vsel %vm316, %v5204, 0
        %v5255 = vsel %vm316, %v5205, 0
        %v5258 = vsel %vm316, %v5206, 0
        %v5261 = vsel %vm316, %v5207, 0
        %v5264 = vsel %vm316, %v5208, 0
        %v5267 = vsel %vm316, %v5209, 0
        %v5270 = vsel %vm316, %v5210, 0
        %v5273 = vsel %vm316, %v5211, 0
        %v5276 = vsel %vm316, %v5212, 0
        %v5279 = vsel %vm316, %v5213, 0
        %v5282 = vsel %vm316, %v5214, 0
        %v5285 = vsel %vm316, %v5215, 0
        %v5288 = vsel %vm316, %v5216, 0
        %v5291 = vsel %vm316, %v5217, 0
        %v5294 = vsel %vm316, %v5218, 0
        %v5297 = vsel %vm316, %v5219, 0
        %v5300 = vsel %vm316, %v5220, 0
        %v5303 = vsel %vm316, %v5221, 0
        %v5306 = vsel %vm316, %v5222, 0
        %v5309 = vsel %vm316, %v5223, 0
        %v5312 = vsel %vm316, %v5224, 0
        %v5315 = vsel %vm316, %v5225, 0
        %v5318 = vsel %vm316, %v5226, 0
        %v5321 = vsel %vm316, %v5227, 0
        %v5324 = vsel %vm316, %v5228, 0
        %v5327 = vsel %vm316, %v5229, 0
        %v5330 = vsel %vm316, %v5230, 0
        %v5333 = vsel %vm316, %v5231, 0
        %v5336 = vsel %vm316, %v5232, 0
        %5338 = vmatpush.msra.mxu0 0.0
        %5339 = vmatpush.msra.mxu0 0.0
        %5340 = vmatpush.msra.mxu0 0.0
        %5341 = vmatpush.msra.mxu0 0.0
        %5342 = vmatpush.msra.mxu0 0.0
        %5343 = vmatpush.msra.mxu0 0.0
        %5344 = vmatpush.msra.mxu0 0.0
        %5345 = vmatpush.msra.mxu0 0.0
        %5346 = vmatpush.msra.mxu0 %v5241
        %5347 = vmatpush.msra.mxu0 %v5240
        %5348 = vmatpush.msra.mxu0 %v5239
        %5349 = vmatpush.msra.mxu0 %v5238
        %5350 = vmatpush.msra.mxu0 %v5237
        %5351 = vmatpush.msra.mxu0 %v5236
        %5352 = vmatpush.msra.mxu0 %v5235
        %5353 = vmatpush.msra.mxu0 %v5234
        %5354 = vmatmul.f32.gmra.mxu0 %v5243
        %v5355 = vpop.f32.mrf.mxu0
        %v5356 = vadd.f32 0.0, %v5355
        %5357 = vmatmul.f32.gmra.mxu0 %v5246
        %v5358 = vpop.f32.mrf.mxu0
        %v5359 = vadd.f32 0.0, %v5358
        %5360 = vmatmul.f32.gmra.mxu0 %v5249
        %v5361 = vpop.f32.mrf.mxu0
        %v5362 = vadd.f32 0.0, %v5361
        %5363 = vmatmul.f32.gmra.mxu0 %v5252
        %v5364 = vpop.f32.mrf.mxu0
        %v5365 = vadd.f32 0.0, %v5364
        %5366 = vmatmul.f32.gmra.mxu0 %v5255
        %v5367 = vpop.f32.mrf.mxu0
        %v5368 = vadd.f32 0.0, %v5367
        %5369 = vmatmul.f32.gmra.mxu0 %v5258
        %v5370 = vpop.f32.mrf.mxu0
        %v5371 = vadd.f32 0.0, %v5370
        %5372 = vmatmul.f32.gmra.mxu0 %v5261
        %v5373 = vpop.f32.mrf.mxu0
        %v5374 = vadd.f32 0.0, %v5373
        %5375 = vmatmul.f32.gmra.mxu0 %v5264
        %v5376 = vpop.f32.mrf.mxu0
        %v5377 = vadd.f32 0.0, %v5376
        %5378 = vmatmul.f32.gmra.mxu0 %v5267
        %v5379 = vpop.f32.mrf.mxu0
        %v5380 = vadd.f32 0.0, %v5379
        %5381 = vmatmul.f32.gmra.mxu0 %v5270
        %v5382 = vpop.f32.mrf.mxu0
        %v5383 = vadd.f32 0.0, %v5382
        %5384 = vmatmul.f32.gmra.mxu0 %v5273
        %v5385 = vpop.f32.mrf.mxu0
        %v5386 = vadd.f32 0.0, %v5385
        %5387 = vmatmul.f32.gmra.mxu0 %v5276
        %v5388 = vpop.f32.mrf.mxu0
        %v5389 = vadd.f32 0.0, %v5388
        %5390 = vmatmul.f32.gmra.mxu0 %v5279
        %v5391 = vpop.f32.mrf.mxu0
        %v5392 = vadd.f32 0.0, %v5391
        %5393 = vmatmul.f32.gmra.mxu0 %v5282
        %v5394 = vpop.f32.mrf.mxu0
        %v5395 = vadd.f32 0.0, %v5394
        %5396 = vmatmul.f32.gmra.mxu0 %v5285
        %v5397 = vpop.f32.mrf.mxu0
        %v5398 = vadd.f32 0.0, %v5397
        %5399 = vmatmul.f32.gmra.mxu0 %v5288
        %v5400 = vpop.f32.mrf.mxu0
        %v5401 = vadd.f32 0.0, %v5400
        %5402 = vmatmul.f32.gmra.mxu0 %v5291
        %v5403 = vpop.f32.mrf.mxu0
        %v5404 = vadd.f32 0.0, %v5403
        %5405 = vmatmul.f32.gmra.mxu0 %v5294
        %v5406 = vpop.f32.mrf.mxu0
        %v5407 = vadd.f32 0.0, %v5406
        %5408 = vmatmul.f32.gmra.mxu0 %v5297
        %v5409 = vpop.f32.mrf.mxu0
        %v5410 = vadd.f32 0.0, %v5409
        %5411 = vmatmul.f32.gmra.mxu0 %v5300
        %v5412 = vpop.f32.mrf.mxu0
        %v5413 = vadd.f32 0.0, %v5412
        %5414 = vmatmul.f32.gmra.mxu0 %v5303
        %v5415 = vpop.f32.mrf.mxu0
        %v5416 = vadd.f32 0.0, %v5415
        %5417 = vmatmul.f32.gmra.mxu0 %v5306
        %v5418 = vpop.f32.mrf.mxu0
        %v5419 = vadd.f32 0.0, %v5418
        %5420 = vmatmul.f32.gmra.mxu0 %v5309
        %v5421 = vpop.f32.mrf.mxu0
        %v5422 = vadd.f32 0.0, %v5421
        %5423 = vmatmul.f32.gmra.mxu0 %v5312
        %v5424 = vpop.f32.mrf.mxu0
        %v5425 = vadd.f32 0.0, %v5424
        %5426 = vmatmul.f32.gmra.mxu0 %v5315
        %v5427 = vpop.f32.mrf.mxu0
        %v5428 = vadd.f32 0.0, %v5427
        %5429 = vmatmul.f32.gmra.mxu0 %v5318
        %v5430 = vpop.f32.mrf.mxu0
        %v5431 = vadd.f32 0.0, %v5430
        %5432 = vmatmul.f32.gmra.mxu0 %v5321
        %v5433 = vpop.f32.mrf.mxu0
        %v5434 = vadd.f32 0.0, %v5433
        %5435 = vmatmul.f32.gmra.mxu0 %v5324
        %v5436 = vpop.f32.mrf.mxu0
        %v5437 = vadd.f32 0.0, %v5436
        %5438 = vmatmul.f32.gmra.mxu0 %v5327
        %v5439 = vpop.f32.mrf.mxu0
        %v5440 = vadd.f32 0.0, %v5439
        %5441 = vmatmul.f32.gmra.mxu0 %v5330
        %v5442 = vpop.f32.mrf.mxu0
        %v5443 = vadd.f32 0.0, %v5442
        %5444 = vmatmul.f32.gmra.mxu0 %v5333
        %v5445 = vpop.f32.mrf.mxu0
        %v5446 = vadd.f32 0.0, %v5445
        %5447 = vmatmul.f32.gmra.mxu0 %v5336
        %v5448 = vpop.f32.mrf.mxu0
        %v5449 = vadd.f32 0.0, %v5448
        %5450 = vdwg.mxu0
        %v5451 = vadd.f32 %v5169, %v5356
        %v5452 = vadd.f32 %v5170, %v5359
        %v5453 = vadd.f32 %v5171, %v5362
        %v5454 = vadd.f32 %v5172, %v5365
        %v5455 = vadd.f32 %v5173, %v5368
        %v5456 = vadd.f32 %v5174, %v5371
        %v5457 = vadd.f32 %v5175, %v5374
        %v5458 = vadd.f32 %v5176, %v5377
        %v5459 = vadd.f32 %v5177, %v5380
        %v5460 = vadd.f32 %v5178, %v5383
        %v5461 = vadd.f32 %v5179, %v5386
        %v5462 = vadd.f32 %v5180, %v5389
        %v5463 = vadd.f32 %v5181, %v5392
        %v5464 = vadd.f32 %v5182, %v5395
        %v5465 = vadd.f32 %v5183, %v5398
        %v5466 = vadd.f32 %v5184, %v5401
        %v5467 = vadd.f32 %v5185, %v5404
        %v5468 = vadd.f32 %v5186, %v5407
        %v5469 = vadd.f32 %v5187, %v5410
        %v5470 = vadd.f32 %v5188, %v5413
        %v5471 = vadd.f32 %v5189, %v5416
        %v5472 = vadd.f32 %v5190, %v5419
        %v5473 = vadd.f32 %v5191, %v5422
        %v5474 = vadd.f32 %v5192, %v5425
        %v5475 = vadd.f32 %v5193, %v5428
        %v5476 = vadd.f32 %v5194, %v5431
        %v5477 = vadd.f32 %v5195, %v5434
        %v5478 = vadd.f32 %v5196, %v5437
        %v5479 = vadd.f32 %v5197, %v5440
        %v5480 = vadd.f32 %v5198, %v5443
        %v5481 = vadd.f32 %v5199, %v5446
        %v5482 = vadd.f32 %v5200, %v5449
        %v5483 = vld [vmem:[%s4918 + $0x9] sm:$0xff]
        %v5484 = vld [vmem:[%s4918 + $0x11] sm:$0xff]
        %v5485 = vld [vmem:[%s4918 + $0x29] sm:$0xff]
        %v5486 = vld [vmem:[%s4918 + $0x31] sm:$0xff]
        %v5487 = vld [vmem:[%s4918 + $0x49] sm:$0xff]
        %v5488 = vld [vmem:[%s4918 + $0x51] sm:$0xff]
        %v5489 = vld [vmem:[%s4918 + $0x69] sm:$0xff]
        %v5490 = vld [vmem:[%s4918 + $0x71] sm:$0xff]
        %v5491 = vld [vmem:[%s4918 + $0x89] sm:$0xff]
        %v5492 = vld [vmem:[%s4918 + $0x91] sm:$0xff]
        %v5493 = vld [vmem:[%s4918 + $0xa9] sm:$0xff]
        %v5494 = vld [vmem:[%s4918 + $0xb1] sm:$0xff]
        %v5495 = vld [vmem:[%s4918 + $0xc9] sm:$0xff]
        %v5496 = vld [vmem:[%s4918 + $0xd1] sm:$0xff]
        %v5497 = vld [vmem:[%s4918 + $0xe9] sm:$0xff]
        %v5498 = vld [vmem:[%s4918 + $0xf1] sm:$0xff]
        %v5499 = vld [vmem:[%s4918 + $0x109] sm:$0xff]
        %v5500 = vld [vmem:[%s4918 + $0x111] sm:$0xff]
        %v5501 = vld [vmem:[%s4918 + $0x129] sm:$0xff]
        %v5502 = vld [vmem:[%s4918 + $0x131] sm:$0xff]
        %v5503 = vld [vmem:[%s4918 + $0x149] sm:$0xff]
        %v5504 = vld [vmem:[%s4918 + $0x151] sm:$0xff]
        %v5505 = vld [vmem:[%s4918 + $0x169] sm:$0xff]
        %v5506 = vld [vmem:[%s4918 + $0x171] sm:$0xff]
        %v5507 = vld [vmem:[%s4918 + $0x189] sm:$0xff]
        %v5508 = vld [vmem:[%s4918 + $0x191] sm:$0xff]
        %v5509 = vld [vmem:[%s4918 + $0x1a9] sm:$0xff]
        %v5510 = vld [vmem:[%s4918 + $0x1b1] sm:$0xff]
        %v5511 = vld [vmem:[%s4918 + $0x1c9] sm:$0xff]
        %v5512 = vld [vmem:[%s4918 + $0x1d1] sm:$0xff]
        %v5513 = vld [vmem:[%s4918 + $0x1e9] sm:$0xff]
        %v5514 = vld [vmem:[%s4918 + $0x1f1] sm:$0xff]
        %s5515 = scalar_lea.vmem %s3, 1088
        %v5516 = vld [vmem:[%s5515] sm:$0xff]
        %v5517 = vld [vmem:[%s5515 + $0x8] sm:$0xff]
        %v5518 = vld [vmem:[%s5515 + $0x10] sm:$0xff]
        %v5519 = vld [vmem:[%s5515 + $0x18] sm:$0xff]
        %v5520 = vld [vmem:[%s5515 + $0x20] sm:$0xff]
        %v5521 = vld [vmem:[%s5515 + $0x28] sm:$0xff]
        %v5522 = vld [vmem:[%s5515 + $0x30] sm:$0xff]
        %v5523 = vld [vmem:[%s5515 + $0x38] sm:$0xff]
        %v5525 = vsel %vm316, %v5483, 0
        %v5528 = vsel %vm316, %v5484, 0
        %v5531 = vsel %vm316, %v5485, 0
        %v5534 = vsel %vm316, %v5486, 0
        %v5537 = vsel %vm316, %v5487, 0
        %v5540 = vsel %vm316, %v5488, 0
        %v5543 = vsel %vm316, %v5489, 0
        %v5546 = vsel %vm316, %v5490, 0
        %v5549 = vsel %vm316, %v5491, 0
        %v5552 = vsel %vm316, %v5492, 0
        %v5555 = vsel %vm316, %v5493, 0
        %v5558 = vsel %vm316, %v5494, 0
        %v5561 = vsel %vm316, %v5495, 0
        %v5564 = vsel %vm316, %v5496, 0
        %v5567 = vsel %vm316, %v5497, 0
        %v5570 = vsel %vm316, %v5498, 0
        %v5573 = vsel %vm316, %v5499, 0
        %v5576 = vsel %vm316, %v5500, 0
        %v5579 = vsel %vm316, %v5501, 0
        %v5582 = vsel %vm316, %v5502, 0
        %v5585 = vsel %vm316, %v5503, 0
        %v5588 = vsel %vm316, %v5504, 0
        %v5591 = vsel %vm316, %v5505, 0
        %v5594 = vsel %vm316, %v5506, 0
        %v5597 = vsel %vm316, %v5507, 0
        %v5600 = vsel %vm316, %v5508, 0
        %v5603 = vsel %vm316, %v5509, 0
        %v5606 = vsel %vm316, %v5510, 0
        %v5609 = vsel %vm316, %v5511, 0
        %v5612 = vsel %vm316, %v5512, 0
        %v5615 = vsel %vm316, %v5513, 0
        %v5618 = vsel %vm316, %v5514, 0
        %5620 = vmatpush.msra.mxu0 0.0
        %5621 = vmatpush.msra.mxu0 0.0
        %5622 = vmatpush.msra.mxu0 0.0
        %5623 = vmatpush.msra.mxu0 0.0
        %5624 = vmatpush.msra.mxu0 0.0
        %5625 = vmatpush.msra.mxu0 0.0
        %5626 = vmatpush.msra.mxu0 0.0
        %5627 = vmatpush.msra.mxu0 0.0
        %5628 = vmatpush.msra.mxu0 %v5523
        %5629 = vmatpush.msra.mxu0 %v5522
        %5630 = vmatpush.msra.mxu0 %v5521
        %5631 = vmatpush.msra.mxu0 %v5520
        %5632 = vmatpush.msra.mxu0 %v5519
        %5633 = vmatpush.msra.mxu0 %v5518
        %5634 = vmatpush.msra.mxu0 %v5517
        %5635 = vmatpush.msra.mxu0 %v5516
        %5636 = vmatmul.f32.gmra.mxu0 %v5525
        %v5637 = vpop.f32.mrf.mxu0
        %v5638 = vadd.f32 0.0, %v5637
        %5639 = vmatmul.f32.gmra.mxu0 %v5528
        %v5640 = vpop.f32.mrf.mxu0
        %v5641 = vadd.f32 0.0, %v5640
        %5642 = vmatmul.f32.gmra.mxu0 %v5531
        %v5643 = vpop.f32.mrf.mxu0
        %v5644 = vadd.f32 0.0, %v5643
        %5645 = vmatmul.f32.gmra.mxu0 %v5534
        %v5646 = vpop.f32.mrf.mxu0
        %v5647 = vadd.f32 0.0, %v5646
        %5648 = vmatmul.f32.gmra.mxu0 %v5537
        %v5649 = vpop.f32.mrf.mxu0
        %v5650 = vadd.f32 0.0, %v5649
        %5651 = vmatmul.f32.gmra.mxu0 %v5540
        %v5652 = vpop.f32.mrf.mxu0
        %v5653 = vadd.f32 0.0, %v5652
        %5654 = vmatmul.f32.gmra.mxu0 %v5543
        %v5655 = vpop.f32.mrf.mxu0
        %v5656 = vadd.f32 0.0, %v5655
        %5657 = vmatmul.f32.gmra.mxu0 %v5546
        %v5658 = vpop.f32.mrf.mxu0
        %v5659 = vadd.f32 0.0, %v5658
        %5660 = vmatmul.f32.gmra.mxu0 %v5549
        %v5661 = vpop.f32.mrf.mxu0
        %v5662 = vadd.f32 0.0, %v5661
        %5663 = vmatmul.f32.gmra.mxu0 %v5552
        %v5664 = vpop.f32.mrf.mxu0
        %v5665 = vadd.f32 0.0, %v5664
        %5666 = vmatmul.f32.gmra.mxu0 %v5555
        %v5667 = vpop.f32.mrf.mxu0
        %v5668 = vadd.f32 0.0, %v5667
        %5669 = vmatmul.f32.gmra.mxu0 %v5558
        %v5670 = vpop.f32.mrf.mxu0
        %v5671 = vadd.f32 0.0, %v5670
        %5672 = vmatmul.f32.gmra.mxu0 %v5561
        %v5673 = vpop.f32.mrf.mxu0
        %v5674 = vadd.f32 0.0, %v5673
        %5675 = vmatmul.f32.gmra.mxu0 %v5564
        %v5676 = vpop.f32.mrf.mxu0
        %v5677 = vadd.f32 0.0, %v5676
        %5678 = vmatmul.f32.gmra.mxu0 %v5567
        %v5679 = vpop.f32.mrf.mxu0
        %v5680 = vadd.f32 0.0, %v5679
        %5681 = vmatmul.f32.gmra.mxu0 %v5570
        %v5682 = vpop.f32.mrf.mxu0
        %v5683 = vadd.f32 0.0, %v5682
        %5684 = vmatmul.f32.gmra.mxu0 %v5573
        %v5685 = vpop.f32.mrf.mxu0
        %v5686 = vadd.f32 0.0, %v5685
        %5687 = vmatmul.f32.gmra.mxu0 %v5576
        %v5688 = vpop.f32.mrf.mxu0
        %v5689 = vadd.f32 0.0, %v5688
        %5690 = vmatmul.f32.gmra.mxu0 %v5579
        %v5691 = vpop.f32.mrf.mxu0
        %v5692 = vadd.f32 0.0, %v5691
        %5693 = vmatmul.f32.gmra.mxu0 %v5582
        %v5694 = vpop.f32.mrf.mxu0
        %v5695 = vadd.f32 0.0, %v5694
        %5696 = vmatmul.f32.gmra.mxu0 %v5585
        %v5697 = vpop.f32.mrf.mxu0
        %v5698 = vadd.f32 0.0, %v5697
        %5699 = vmatmul.f32.gmra.mxu0 %v5588
        %v5700 = vpop.f32.mrf.mxu0
        %v5701 = vadd.f32 0.0, %v5700
        %5702 = vmatmul.f32.gmra.mxu0 %v5591
        %v5703 = vpop.f32.mrf.mxu0
        %v5704 = vadd.f32 0.0, %v5703
        %5705 = vmatmul.f32.gmra.mxu0 %v5594
        %v5706 = vpop.f32.mrf.mxu0
        %v5707 = vadd.f32 0.0, %v5706
        %5708 = vmatmul.f32.gmra.mxu0 %v5597
        %v5709 = vpop.f32.mrf.mxu0
        %v5710 = vadd.f32 0.0, %v5709
        %5711 = vmatmul.f32.gmra.mxu0 %v5600
        %v5712 = vpop.f32.mrf.mxu0
        %v5713 = vadd.f32 0.0, %v5712
        %5714 = vmatmul.f32.gmra.mxu0 %v5603
        %v5715 = vpop.f32.mrf.mxu0
        %v5716 = vadd.f32 0.0, %v5715
        %5717 = vmatmul.f32.gmra.mxu0 %v5606
        %v5718 = vpop.f32.mrf.mxu0
        %v5719 = vadd.f32 0.0, %v5718
        %5720 = vmatmul.f32.gmra.mxu0 %v5609
        %v5721 = vpop.f32.mrf.mxu0
        %v5722 = vadd.f32 0.0, %v5721
        %5723 = vmatmul.f32.gmra.mxu0 %v5612
        %v5724 = vpop.f32.mrf.mxu0
        %v5725 = vadd.f32 0.0, %v5724
        %5726 = vmatmul.f32.gmra.mxu0 %v5615
        %v5727 = vpop.f32.mrf.mxu0
        %v5728 = vadd.f32 0.0, %v5727
        %5729 = vmatmul.f32.gmra.mxu0 %v5618
        %v5730 = vpop.f32.mrf.mxu0
        %v5731 = vadd.f32 0.0, %v5730
        %5732 = vdwg.mxu0
        %v5733 = vadd.f32 %v5451, %v5638
        %v5734 = vadd.f32 %v5452, %v5641
        %v5735 = vadd.f32 %v5453, %v5644
        %v5736 = vadd.f32 %v5454, %v5647
        %v5737 = vadd.f32 %v5455, %v5650
        %v5738 = vadd.f32 %v5456, %v5653
        %v5739 = vadd.f32 %v5457, %v5656
        %v5740 = vadd.f32 %v5458, %v5659
        %v5741 = vadd.f32 %v5459, %v5662
        %v5742 = vadd.f32 %v5460, %v5665
        %v5743 = vadd.f32 %v5461, %v5668
        %v5744 = vadd.f32 %v5462, %v5671
        %v5745 = vadd.f32 %v5463, %v5674
        %v5746 = vadd.f32 %v5464, %v5677
        %v5747 = vadd.f32 %v5465, %v5680
        %v5748 = vadd.f32 %v5466, %v5683
        %v5749 = vadd.f32 %v5467, %v5686
        %v5750 = vadd.f32 %v5468, %v5689
        %v5751 = vadd.f32 %v5469, %v5692
        %v5752 = vadd.f32 %v5470, %v5695
        %v5753 = vadd.f32 %v5471, %v5698
        %v5754 = vadd.f32 %v5472, %v5701
        %v5755 = vadd.f32 %v5473, %v5704
        %v5756 = vadd.f32 %v5474, %v5707
        %v5757 = vadd.f32 %v5475, %v5710
        %v5758 = vadd.f32 %v5476, %v5713
        %v5759 = vadd.f32 %v5477, %v5716
        %v5760 = vadd.f32 %v5478, %v5719
        %v5761 = vadd.f32 %v5479, %v5722
        %v5762 = vadd.f32 %v5480, %v5725
        %v5763 = vadd.f32 %v5481, %v5728
        %v5764 = vadd.f32 %v5482, %v5731
        %s5765 = scalar_lea.vmem %s4, 1
        %v5766 = vld [vmem:[%s5765] sm:$0x1]
        %v5768 = vperm.slane %v5766, 0
        %v5770 = vadd.f32 %v5733, %v5768
        %v5771 = vadd.f32 %v5734, %v5768
        %v5772 = vadd.f32 %v5735, %v5768
        %v5773 = vadd.f32 %v5736, %v5768
        %v5774 = vadd.f32 %v5737, %v5768
        %v5775 = vadd.f32 %v5738, %v5768
        %v5776 = vadd.f32 %v5739, %v5768
        %v5777 = vadd.f32 %v5740, %v5768
        %v5778 = vadd.f32 %v5741, %v5768
        %v5779 = vadd.f32 %v5742, %v5768
        %v5780 = vadd.f32 %v5743, %v5768
        %v5781 = vadd.f32 %v5744, %v5768
        %v5782 = vadd.f32 %v5745, %v5768
        %v5783 = vadd.f32 %v5746, %v5768
        %v5784 = vadd.f32 %v5747, %v5768
        %v5785 = vadd.f32 %v5748, %v5768
        %v5786 = vadd.f32 %v5749, %v5768
        %v5787 = vadd.f32 %v5750, %v5768
        %v5788 = vadd.f32 %v5751, %v5768
        %v5789 = vadd.f32 %v5752, %v5768
        %v5790 = vadd.f32 %v5753, %v5768
        %v5791 = vadd.f32 %v5754, %v5768
        %v5792 = vadd.f32 %v5755, %v5768
        %v5793 = vadd.f32 %v5756, %v5768
        %v5794 = vadd.f32 %v5757, %v5768
        %v5795 = vadd.f32 %v5758, %v5768
        %v5796 = vadd.f32 %v5759, %v5768
        %v5797 = vadd.f32 %v5760, %v5768
        %v5798 = vadd.f32 %v5761, %v5768
        %v5799 = vadd.f32 %v5762, %v5768
        %v5800 = vadd.f32 %v5763, %v5768
        %v5801 = vadd.f32 %v5764, %v5768
        %v5802 = vld [vmem:[%s326 + $0x8] sm:$0xff]
        %v5803 = vld [vmem:[%s326 + $0x10] sm:$0xff]
        %v5804 = vld [vmem:[%s326 + $0x28] sm:$0xff]
        %v5805 = vld [vmem:[%s326 + $0x30] sm:$0xff]
        %v5806 = vld [vmem:[%s326 + $0x48] sm:$0xff]
        %v5807 = vld [vmem:[%s326 + $0x50] sm:$0xff]
        %v5808 = vld [vmem:[%s326 + $0x68] sm:$0xff]
        %v5809 = vld [vmem:[%s326 + $0x70] sm:$0xff]
        %v5810 = vld [vmem:[%s326 + $0x88] sm:$0xff]
        %v5811 = vld [vmem:[%s326 + $0x90] sm:$0xff]
        %v5812 = vld [vmem:[%s326 + $0xa8] sm:$0xff]
        %v5813 = vld [vmem:[%s326 + $0xb0] sm:$0xff]
        %v5814 = vld [vmem:[%s326 + $0xc8] sm:$0xff]
        %v5815 = vld [vmem:[%s326 + $0xd0] sm:$0xff]
        %v5816 = vld [vmem:[%s326 + $0xe8] sm:$0xff]
        %v5817 = vld [vmem:[%s326 + $0xf0] sm:$0xff]
        %v5818 = vld [vmem:[%s326 + $0x108] sm:$0xff]
        %v5819 = vld [vmem:[%s326 + $0x110] sm:$0xff]
        %v5820 = vld [vmem:[%s326 + $0x128] sm:$0xff]
        %v5821 = vld [vmem:[%s326 + $0x130] sm:$0xff]
        %v5822 = vld [vmem:[%s326 + $0x148] sm:$0xff]
        %v5823 = vld [vmem:[%s326 + $0x150] sm:$0xff]
        %v5824 = vld [vmem:[%s326 + $0x168] sm:$0xff]
        %v5825 = vld [vmem:[%s326 + $0x170] sm:$0xff]
        %v5826 = vld [vmem:[%s326 + $0x188] sm:$0xff]
        %v5827 = vld [vmem:[%s326 + $0x190] sm:$0xff]
        %v5828 = vld [vmem:[%s326 + $0x1a8] sm:$0xff]
        %v5829 = vld [vmem:[%s326 + $0x1b0] sm:$0xff]
        %v5830 = vld [vmem:[%s326 + $0x1c8] sm:$0xff]
        %v5831 = vld [vmem:[%s326 + $0x1d0] sm:$0xff]
        %v5832 = vld [vmem:[%s326 + $0x1e8] sm:$0xff]
        %v5833 = vld [vmem:[%s326 + $0x1f0] sm:$0xff]
        %v5834 = vadd.f32 %v5770, %v5802
        %v5835 = vadd.f32 %v5771, %v5803
        %v5836 = vadd.f32 %v5772, %v5804
        %v5837 = vadd.f32 %v5773, %v5805
        %v5838 = vadd.f32 %v5774, %v5806
        %v5839 = vadd.f32 %v5775, %v5807
        %v5840 = vadd.f32 %v5776, %v5808
        %v5841 = vadd.f32 %v5777, %v5809
        %v5842 = vadd.f32 %v5778, %v5810
        %v5843 = vadd.f32 %v5779, %v5811
        %v5844 = vadd.f32 %v5780, %v5812
        %v5845 = vadd.f32 %v5781, %v5813
        %v5846 = vadd.f32 %v5782, %v5814
        %v5847 = vadd.f32 %v5783, %v5815
        %v5848 = vadd.f32 %v5784, %v5816
        %v5849 = vadd.f32 %v5785, %v5817
        %v5850 = vadd.f32 %v5786, %v5818
        %v5851 = vadd.f32 %v5787, %v5819
        %v5852 = vadd.f32 %v5788, %v5820
        %v5853 = vadd.f32 %v5789, %v5821
        %v5854 = vadd.f32 %v5790, %v5822
        %v5855 = vadd.f32 %v5791, %v5823
        %v5856 = vadd.f32 %v5792, %v5824
        %v5857 = vadd.f32 %v5793, %v5825
        %v5858 = vadd.f32 %v5794, %v5826
        %v5859 = vadd.f32 %v5795, %v5827
        %v5860 = vadd.f32 %v5796, %v5828
        %v5861 = vadd.f32 %v5797, %v5829
        %v5862 = vadd.f32 %v5798, %v5830
        %v5863 = vadd.f32 %v5799, %v5831
        %v5864 = vadd.f32 %v5800, %v5832
        %v5865 = vadd.f32 %v5801, %v5833
        %v5866 = vmax.f32 %v5834, 0.0
        %v5867 = vmax.f32 %v5835, 0.0
        %v5868 = vmax.f32 %v5836, 0.0
        %v5869 = vmax.f32 %v5837, 0.0
        %v5870 = vmax.f32 %v5838, 0.0
        %v5871 = vmax.f32 %v5839, 0.0
        %v5872 = vmax.f32 %v5840, 0.0
        %v5873 = vmax.f32 %v5841, 0.0
        %v5874 = vmax.f32 %v5842, 0.0
        %v5875 = vmax.f32 %v5843, 0.0
        %v5876 = vmax.f32 %v5844, 0.0
        %v5877 = vmax.f32 %v5845, 0.0
        %v5878 = vmax.f32 %v5846, 0.0
        %v5879 = vmax.f32 %v5847, 0.0
        %v5880 = vmax.f32 %v5848, 0.0
        %v5881 = vmax.f32 %v5849, 0.0
        %v5882 = vmax.f32 %v5850, 0.0
        %v5883 = vmax.f32 %v5851, 0.0
        %v5884 = vmax.f32 %v5852, 0.0
        %v5885 = vmax.f32 %v5853, 0.0
        %v5886 = vmax.f32 %v5854, 0.0
        %v5887 = vmax.f32 %v5855, 0.0
        %v5888 = vmax.f32 %v5856, 0.0
        %v5889 = vmax.f32 %v5857, 0.0
        %v5890 = vmax.f32 %v5858, 0.0
        %v5891 = vmax.f32 %v5859, 0.0
        %v5892 = vmax.f32 %v5860, 0.0
        %v5893 = vmax.f32 %v5861, 0.0
        %v5894 = vmax.f32 %v5862, 0.0
        %v5895 = vmax.f32 %v5863, 0.0
        %v5896 = vmax.f32 %v5864, 0.0
        %v5897 = vmax.f32 %v5865, 0.0
        %5898 = vst.msk [vmem:[%s326 + $0x8] sm:$0xff] %vm316, %v5866
        %5899 = vst.msk [vmem:[%s326 + $0x10] sm:$0xff] %vm316, %v5867
        %5900 = vst.msk [vmem:[%s326 + $0x28] sm:$0xff] %vm316, %v5868
        %5901 = vst.msk [vmem:[%s326 + $0x30] sm:$0xff] %vm316, %v5869
        %5902 = vst.msk [vmem:[%s326 + $0x48] sm:$0xff] %vm316, %v5870
        %5903 = vst.msk [vmem:[%s326 + $0x50] sm:$0xff] %vm316, %v5871
        %5904 = vst.msk [vmem:[%s326 + $0x68] sm:$0xff] %vm316, %v5872
        %5905 = vst.msk [vmem:[%s326 + $0x70] sm:$0xff] %vm316, %v5873
        %5906 = vst.msk [vmem:[%s326 + $0x88] sm:$0xff] %vm316, %v5874
        %5907 = vst.msk [vmem:[%s326 + $0x90] sm:$0xff] %vm316, %v5875
        %5908 = vst.msk [vmem:[%s326 + $0xa8] sm:$0xff] %vm316, %v5876
        %5909 = vst.msk [vmem:[%s326 + $0xb0] sm:$0xff] %vm316, %v5877
        %5910 = vst.msk [vmem:[%s326 + $0xc8] sm:$0xff] %vm316, %v5878
        %5911 = vst.msk [vmem:[%s326 + $0xd0] sm:$0xff] %vm316, %v5879
        %5912 = vst.msk [vmem:[%s326 + $0xe8] sm:$0xff] %vm316, %v5880
        %5913 = vst.msk [vmem:[%s326 + $0xf0] sm:$0xff] %vm316, %v5881
        %5914 = vst.msk [vmem:[%s326 + $0x108] sm:$0xff] %vm316, %v5882
        %5915 = vst.msk [vmem:[%s326 + $0x110] sm:$0xff] %vm316, %v5883
        %5916 = vst.msk [vmem:[%s326 + $0x128] sm:$0xff] %vm316, %v5884
        %5917 = vst.msk [vmem:[%s326 + $0x130] sm:$0xff] %vm316, %v5885
        %5918 = vst.msk [vmem:[%s326 + $0x148] sm:$0xff] %vm316, %v5886
        %5919 = vst.msk [vmem:[%s326 + $0x150] sm:$0xff] %vm316, %v5887
        %5920 = vst.msk [vmem:[%s326 + $0x168] sm:$0xff] %vm316, %v5888
        %5921 = vst.msk [vmem:[%s326 + $0x170] sm:$0xff] %vm316, %v5889
        %5922 = vst.msk [vmem:[%s326 + $0x188] sm:$0xff] %vm316, %v5890
        %5923 = vst.msk [vmem:[%s326 + $0x190] sm:$0xff] %vm316, %v5891
        %5924 = vst.msk [vmem:[%s326 + $0x1a8] sm:$0xff] %vm316, %v5892
        %5925 = vst.msk [vmem:[%s326 + $0x1b0] sm:$0xff] %vm316, %v5893
        %5926 = vst.msk [vmem:[%s326 + $0x1c8] sm:$0xff] %vm316, %v5894
        %5927 = vst.msk [vmem:[%s326 + $0x1d0] sm:$0xff] %vm316, %v5895
        %5928 = vst.msk [vmem:[%s326 + $0x1e8] sm:$0xff] %vm316, %v5896
        %5929 = vst.msk [vmem:[%s326 + $0x1f0] sm:$0xff] %vm316, %v5897
        %v5930 = vld [vmem:[#allocation2 + $0x7] sm:$0xff]
        %v5931 = vld [vmem:[#allocation2 + $0xf] sm:$0xff]
        %v5932 = vld [vmem:[#allocation2 + $0x27] sm:$0xff]
        %v5933 = vld [vmem:[#allocation2 + $0x2f] sm:$0xff]
        %v5934 = vld [vmem:[#allocation2 + $0x47] sm:$0xff]
        %v5935 = vld [vmem:[#allocation2 + $0x4f] sm:$0xff]
        %v5936 = vld [vmem:[#allocation2 + $0x67] sm:$0xff]
        %v5937 = vld [vmem:[#allocation2 + $0x6f] sm:$0xff]
        %v5938 = vld [vmem:[#allocation2 + $0x87] sm:$0xff]
        %v5939 = vld [vmem:[#allocation2 + $0x8f] sm:$0xff]
        %v5940 = vld [vmem:[#allocation2 + $0xa7] sm:$0xff]
        %v5941 = vld [vmem:[#allocation2 + $0xaf] sm:$0xff]
        %v5942 = vld [vmem:[#allocation2 + $0xc7] sm:$0xff]
        %v5943 = vld [vmem:[#allocation2 + $0xcf] sm:$0xff]
        %v5944 = vld [vmem:[#allocation2 + $0xe7] sm:$0xff]
        %v5945 = vld [vmem:[#allocation2 + $0xef] sm:$0xff]
        %v5946 = vld [vmem:[#allocation2 + $0x107] sm:$0xff]
        %v5947 = vld [vmem:[#allocation2 + $0x10f] sm:$0xff]
        %v5948 = vld [vmem:[#allocation2 + $0x127] sm:$0xff]
        %v5949 = vld [vmem:[#allocation2 + $0x12f] sm:$0xff]
        %v5950 = vld [vmem:[#allocation2 + $0x147] sm:$0xff]
        %v5951 = vld [vmem:[#allocation2 + $0x14f] sm:$0xff]
        %v5952 = vld [vmem:[#allocation2 + $0x167] sm:$0xff]
        %v5953 = vld [vmem:[#allocation2 + $0x16f] sm:$0xff]
        %v5954 = vld [vmem:[#allocation2 + $0x187] sm:$0xff]
        %v5955 = vld [vmem:[#allocation2 + $0x18f] sm:$0xff]
        %v5956 = vld [vmem:[#allocation2 + $0x1a7] sm:$0xff]
        %v5957 = vld [vmem:[#allocation2 + $0x1af] sm:$0xff]
        %v5958 = vld [vmem:[#allocation2 + $0x1c7] sm:$0xff]
        %v5959 = vld [vmem:[#allocation2 + $0x1cf] sm:$0xff]
        %v5960 = vld [vmem:[#allocation2 + $0x1e7] sm:$0xff]
        %v5961 = vld [vmem:[#allocation2 + $0x1ef] sm:$0xff]
        %s5962 = scalar_lea.vmem %s3, 1152
        %v5963 = vld [vmem:[%s5962] sm:$0xff]
        %v5964 = vld [vmem:[%s5962 + $0x8] sm:$0xff]
        %v5965 = vld [vmem:[%s5962 + $0x10] sm:$0xff]
        %v5966 = vld [vmem:[%s5962 + $0x18] sm:$0xff]
        %v5967 = vld [vmem:[%s5962 + $0x20] sm:$0xff]
        %v5968 = vld [vmem:[%s5962 + $0x28] sm:$0xff]
        %v5969 = vld [vmem:[%s5962 + $0x30] sm:$0xff]
        %v5970 = vld [vmem:[%s5962 + $0x38] sm:$0xff]
        %v5971 = vld [vmem:[#allocation2 + $0x8] sm:$0xff]
        %v5972 = vld [vmem:[#allocation2 + $0x10] sm:$0xff]
        %v5973 = vld [vmem:[#allocation2 + $0x28] sm:$0xff]
        %v5974 = vld [vmem:[#allocation2 + $0x30] sm:$0xff]
        %v5975 = vld [vmem:[#allocation2 + $0x48] sm:$0xff]
        %v5976 = vld [vmem:[#allocation2 + $0x50] sm:$0xff]
        %v5977 = vld [vmem:[#allocation2 + $0x68] sm:$0xff]
        %v5978 = vld [vmem:[#allocation2 + $0x70] sm:$0xff]
        %v5979 = vld [vmem:[#allocation2 + $0x88] sm:$0xff]
        %v5980 = vld [vmem:[#allocation2 + $0x90] sm:$0xff]
        %v5981 = vld [vmem:[#allocation2 + $0xa8] sm:$0xff]
        %v5982 = vld [vmem:[#allocation2 + $0xb0] sm:$0xff]
        %v5983 = vld [vmem:[#allocation2 + $0xc8] sm:$0xff]
        %v5984 = vld [vmem:[#allocation2 + $0xd0] sm:$0xff]
        %v5985 = vld [vmem:[#allocation2 + $0xe8] sm:$0xff]
        %v5986 = vld [vmem:[#allocation2 + $0xf0] sm:$0xff]
        %v5987 = vld [vmem:[#allocation2 + $0x108] sm:$0xff]
        %v5988 = vld [vmem:[#allocation2 + $0x110] sm:$0xff]
        %v5989 = vld [vmem:[#allocation2 + $0x128] sm:$0xff]
        %v5990 = vld [vmem:[#allocation2 + $0x130] sm:$0xff]
        %v5991 = vld [vmem:[#allocation2 + $0x148] sm:$0xff]
        %v5992 = vld [vmem:[#allocation2 + $0x150] sm:$0xff]
        %v5993 = vld [vmem:[#allocation2 + $0x168] sm:$0xff]
        %v5994 = vld [vmem:[#allocation2 + $0x170] sm:$0xff]
        %v5995 = vld [vmem:[#allocation2 + $0x188] sm:$0xff]
        %v5996 = vld [vmem:[#allocation2 + $0x190] sm:$0xff]
        %v5997 = vld [vmem:[#allocation2 + $0x1a8] sm:$0xff]
        %v5998 = vld [vmem:[#allocation2 + $0x1b0] sm:$0xff]
        %v5999 = vld [vmem:[#allocation2 + $0x1c8] sm:$0xff]
        %v6000 = vld [vmem:[#allocation2 + $0x1d0] sm:$0xff]
        %v6001 = vld [vmem:[#allocation2 + $0x1e8] sm:$0xff]
        %v6002 = vld [vmem:[#allocation2 + $0x1f0] sm:$0xff]
        %s6003 = scalar_lea.vmem %s3, 1216
        %v6004 = vld [vmem:[%s6003] sm:$0xff]
        %v6005 = vld [vmem:[%s6003 + $0x8] sm:$0xff]
        %v6006 = vld [vmem:[%s6003 + $0x10] sm:$0xff]
        %v6007 = vld [vmem:[%s6003 + $0x18] sm:$0xff]
        %v6008 = vld [vmem:[%s6003 + $0x20] sm:$0xff]
        %v6009 = vld [vmem:[%s6003 + $0x28] sm:$0xff]
        %v6010 = vld [vmem:[%s6003 + $0x30] sm:$0xff]
        %v6011 = vld [vmem:[%s6003 + $0x38] sm:$0xff]
        %v6013 = vsel %vm316, %v5971, 0
        %v6016 = vsel %vm316, %v5972, 0
        %v6019 = vsel %vm316, %v5973, 0
        %v6022 = vsel %vm316, %v5974, 0
        %v6025 = vsel %vm316, %v5975, 0
        %v6028 = vsel %vm316, %v5976, 0
        %v6031 = vsel %vm316, %v5977, 0
        %v6034 = vsel %vm316, %v5978, 0
        %v6037 = vsel %vm316, %v5979, 0
        %v6040 = vsel %vm316, %v5980, 0
        %v6043 = vsel %vm316, %v5981, 0
        %v6046 = vsel %vm316, %v5982, 0
        %v6049 = vsel %vm316, %v5983, 0
        %v6052 = vsel %vm316, %v5984, 0
        %v6055 = vsel %vm316, %v5985, 0
        %v6058 = vsel %vm316, %v5986, 0
        %v6061 = vsel %vm316, %v5987, 0
        %v6064 = vsel %vm316, %v5988, 0
        %v6067 = vsel %vm316, %v5989, 0
        %v6070 = vsel %vm316, %v5990, 0
        %v6073 = vsel %vm316, %v5991, 0
        %v6076 = vsel %vm316, %v5992, 0
        %v6079 = vsel %vm316, %v5993, 0
        %v6082 = vsel %vm316, %v5994, 0
        %v6085 = vsel %vm316, %v5995, 0
        %v6088 = vsel %vm316, %v5996, 0
        %v6091 = vsel %vm316, %v5997, 0
        %v6094 = vsel %vm316, %v5998, 0
        %v6097 = vsel %vm316, %v5999, 0
        %v6100 = vsel %vm316, %v6000, 0
        %v6103 = vsel %vm316, %v6001, 0
        %v6106 = vsel %vm316, %v6002, 0
        %6108 = vmatpush.msra.mxu0 0.0
        %6109 = vmatpush.msra.mxu0 0.0
        %6110 = vmatpush.msra.mxu0 0.0
        %6111 = vmatpush.msra.mxu0 0.0
        %6112 = vmatpush.msra.mxu0 0.0
        %6113 = vmatpush.msra.mxu0 0.0
        %6114 = vmatpush.msra.mxu0 0.0
        %6115 = vmatpush.msra.mxu0 0.0
        %6116 = vmatpush.msra.mxu0 %v6011
        %6117 = vmatpush.msra.mxu0 %v6010
        %6118 = vmatpush.msra.mxu0 %v6009
        %6119 = vmatpush.msra.mxu0 %v6008
        %6120 = vmatpush.msra.mxu0 %v6007
        %6121 = vmatpush.msra.mxu0 %v6006
        %6122 = vmatpush.msra.mxu0 %v6005
        %6123 = vmatpush.msra.mxu0 %v6004
        %6124 = vmatmul.f32.gmra.mxu0 %v6013
        %v6125 = vpop.f32.mrf.mxu0
        %v6126 = vadd.f32 0.0, %v6125
        %6127 = vmatmul.f32.gmra.mxu0 %v6016
        %v6128 = vpop.f32.mrf.mxu0
        %v6129 = vadd.f32 0.0, %v6128
        %6130 = vmatmul.f32.gmra.mxu0 %v6019
        %v6131 = vpop.f32.mrf.mxu0
        %v6132 = vadd.f32 0.0, %v6131
        %6133 = vmatmul.f32.gmra.mxu0 %v6022
        %v6134 = vpop.f32.mrf.mxu0
        %v6135 = vadd.f32 0.0, %v6134
        %6136 = vmatmul.f32.gmra.mxu0 %v6025
        %v6137 = vpop.f32.mrf.mxu0
        %v6138 = vadd.f32 0.0, %v6137
        %6139 = vmatmul.f32.gmra.mxu0 %v6028
        %v6140 = vpop.f32.mrf.mxu0
        %v6141 = vadd.f32 0.0, %v6140
        %6142 = vmatmul.f32.gmra.mxu0 %v6031
        %v6143 = vpop.f32.mrf.mxu0
        %v6144 = vadd.f32 0.0, %v6143
        %6145 = vmatmul.f32.gmra.mxu0 %v6034
        %v6146 = vpop.f32.mrf.mxu0
        %v6147 = vadd.f32 0.0, %v6146
        %6148 = vmatmul.f32.gmra.mxu0 %v6037
        %v6149 = vpop.f32.mrf.mxu0
        %v6150 = vadd.f32 0.0, %v6149
        %6151 = vmatmul.f32.gmra.mxu0 %v6040
        %v6152 = vpop.f32.mrf.mxu0
        %v6153 = vadd.f32 0.0, %v6152
        %6154 = vmatmul.f32.gmra.mxu0 %v6043
        %v6155 = vpop.f32.mrf.mxu0
        %v6156 = vadd.f32 0.0, %v6155
        %6157 = vmatmul.f32.gmra.mxu0 %v6046
        %v6158 = vpop.f32.mrf.mxu0
        %v6159 = vadd.f32 0.0, %v6158
        %6160 = vmatmul.f32.gmra.mxu0 %v6049
        %v6161 = vpop.f32.mrf.mxu0
        %v6162 = vadd.f32 0.0, %v6161
        %6163 = vmatmul.f32.gmra.mxu0 %v6052
        %v6164 = vpop.f32.mrf.mxu0
        %v6165 = vadd.f32 0.0, %v6164
        %6166 = vmatmul.f32.gmra.mxu0 %v6055
        %v6167 = vpop.f32.mrf.mxu0
        %v6168 = vadd.f32 0.0, %v6167
        %6169 = vmatmul.f32.gmra.mxu0 %v6058
        %v6170 = vpop.f32.mrf.mxu0
        %v6171 = vadd.f32 0.0, %v6170
        %6172 = vmatmul.f32.gmra.mxu0 %v6061
        %v6173 = vpop.f32.mrf.mxu0
        %v6174 = vadd.f32 0.0, %v6173
        %6175 = vmatmul.f32.gmra.mxu0 %v6064
        %v6176 = vpop.f32.mrf.mxu0
        %v6177 = vadd.f32 0.0, %v6176
        %6178 = vmatmul.f32.gmra.mxu0 %v6067
        %v6179 = vpop.f32.mrf.mxu0
        %v6180 = vadd.f32 0.0, %v6179
        %6181 = vmatmul.f32.gmra.mxu0 %v6070
        %v6182 = vpop.f32.mrf.mxu0
        %v6183 = vadd.f32 0.0, %v6182
        %6184 = vmatmul.f32.gmra.mxu0 %v6073
        %v6185 = vpop.f32.mrf.mxu0
        %v6186 = vadd.f32 0.0, %v6185
        %6187 = vmatmul.f32.gmra.mxu0 %v6076
        %v6188 = vpop.f32.mrf.mxu0
        %v6189 = vadd.f32 0.0, %v6188
        %6190 = vmatmul.f32.gmra.mxu0 %v6079
        %v6191 = vpop.f32.mrf.mxu0
        %v6192 = vadd.f32 0.0, %v6191
        %6193 = vmatmul.f32.gmra.mxu0 %v6082
        %v6194 = vpop.f32.mrf.mxu0
        %v6195 = vadd.f32 0.0, %v6194
        %6196 = vmatmul.f32.gmra.mxu0 %v6085
        %v6197 = vpop.f32.mrf.mxu0
        %v6198 = vadd.f32 0.0, %v6197
        %6199 = vmatmul.f32.gmra.mxu0 %v6088
        %v6200 = vpop.f32.mrf.mxu0
        %v6201 = vadd.f32 0.0, %v6200
        %6202 = vmatmul.f32.gmra.mxu0 %v6091
        %v6203 = vpop.f32.mrf.mxu0
        %v6204 = vadd.f32 0.0, %v6203
        %6205 = vmatmul.f32.gmra.mxu0 %v6094
        %v6206 = vpop.f32.mrf.mxu0
        %v6207 = vadd.f32 0.0, %v6206
        %6208 = vmatmul.f32.gmra.mxu0 %v6097
        %v6209 = vpop.f32.mrf.mxu0
        %v6210 = vadd.f32 0.0, %v6209
        %6211 = vmatmul.f32.gmra.mxu0 %v6100
        %v6212 = vpop.f32.mrf.mxu0
        %v6213 = vadd.f32 0.0, %v6212
        %6214 = vmatmul.f32.gmra.mxu0 %v6103
        %v6215 = vpop.f32.mrf.mxu0
        %v6216 = vadd.f32 0.0, %v6215
        %6217 = vmatmul.f32.gmra.mxu0 %v6106
        %v6218 = vpop.f32.mrf.mxu0
        %v6219 = vadd.f32 0.0, %v6218
        %6220 = vdwg.mxu0
        %v6222 = vsel %vm316, %v5930, 0
        %v6225 = vsel %vm316, %v5931, 0
        %v6228 = vsel %vm316, %v5932, 0
        %v6231 = vsel %vm316, %v5933, 0
        %v6234 = vsel %vm316, %v5934, 0
        %v6237 = vsel %vm316, %v5935, 0
        %v6240 = vsel %vm316, %v5936, 0
        %v6243 = vsel %vm316, %v5937, 0
        %v6246 = vsel %vm316, %v5938, 0
        %v6249 = vsel %vm316, %v5939, 0
        %v6252 = vsel %vm316, %v5940, 0
        %v6255 = vsel %vm316, %v5941, 0
        %v6258 = vsel %vm316, %v5942, 0
        %v6261 = vsel %vm316, %v5943, 0
        %v6264 = vsel %vm316, %v5944, 0
        %v6267 = vsel %vm316, %v5945, 0
        %v6270 = vsel %vm316, %v5946, 0
        %v6273 = vsel %vm316, %v5947, 0
        %v6276 = vsel %vm316, %v5948, 0
        %v6279 = vsel %vm316, %v5949, 0
        %v6282 = vsel %vm316, %v5950, 0
        %v6285 = vsel %vm316, %v5951, 0
        %v6288 = vsel %vm316, %v5952, 0
        %v6291 = vsel %vm316, %v5953, 0
        %v6294 = vsel %vm316, %v5954, 0
        %v6297 = vsel %vm316, %v5955, 0
        %v6300 = vsel %vm316, %v5956, 0
        %v6303 = vsel %vm316, %v5957, 0
        %v6306 = vsel %vm316, %v5958, 0
        %v6309 = vsel %vm316, %v5959, 0
        %v6312 = vsel %vm316, %v5960, 0
        %v6315 = vsel %vm316, %v5961, 0
        %6317 = vmatpush.msra.mxu0 0.0
        %6318 = vmatpush.msra.mxu0 0.0
        %6319 = vmatpush.msra.mxu0 0.0
        %6320 = vmatpush.msra.mxu0 0.0
        %6321 = vmatpush.msra.mxu0 0.0
        %6322 = vmatpush.msra.mxu0 0.0
        %6323 = vmatpush.msra.mxu0 0.0
        %6324 = vmatpush.msra.mxu0 0.0
        %6325 = vmatpush.msra.mxu0 %v5970
        %6326 = vmatpush.msra.mxu0 %v5969
        %6327 = vmatpush.msra.mxu0 %v5968
        %6328 = vmatpush.msra.mxu0 %v5967
        %6329 = vmatpush.msra.mxu0 %v5966
        %6330 = vmatpush.msra.mxu0 %v5965
        %6331 = vmatpush.msra.mxu0 %v5964
        %6332 = vmatpush.msra.mxu0 %v5963
        %6333 = vmatmul.f32.gmra.mxu0 %v6222
        %v6334 = vpop.f32.mrf.mxu0
        %v6335 = vadd.f32 %v6126, %v6334
        %6336 = vmatmul.f32.gmra.mxu0 %v6225
        %v6337 = vpop.f32.mrf.mxu0
        %v6338 = vadd.f32 %v6129, %v6337
        %6339 = vmatmul.f32.gmra.mxu0 %v6228
        %v6340 = vpop.f32.mrf.mxu0
        %v6341 = vadd.f32 %v6132, %v6340
        %6342 = vmatmul.f32.gmra.mxu0 %v6231
        %v6343 = vpop.f32.mrf.mxu0
        %v6344 = vadd.f32 %v6135, %v6343
        %6345 = vmatmul.f32.gmra.mxu0 %v6234
        %v6346 = vpop.f32.mrf.mxu0
        %v6347 = vadd.f32 %v6138, %v6346
        %6348 = vmatmul.f32.gmra.mxu0 %v6237
        %v6349 = vpop.f32.mrf.mxu0
        %v6350 = vadd.f32 %v6141, %v6349
        %6351 = vmatmul.f32.gmra.mxu0 %v6240
        %v6352 = vpop.f32.mrf.mxu0
        %v6353 = vadd.f32 %v6144, %v6352
        %6354 = vmatmul.f32.gmra.mxu0 %v6243
        %v6355 = vpop.f32.mrf.mxu0
        %v6356 = vadd.f32 %v6147, %v6355
        %6357 = vmatmul.f32.gmra.mxu0 %v6246
        %v6358 = vpop.f32.mrf.mxu0
        %v6359 = vadd.f32 %v6150, %v6358
        %6360 = vmatmul.f32.gmra.mxu0 %v6249
        %v6361 = vpop.f32.mrf.mxu0
        %v6362 = vadd.f32 %v6153, %v6361
        %6363 = vmatmul.f32.gmra.mxu0 %v6252
        %v6364 = vpop.f32.mrf.mxu0
        %v6365 = vadd.f32 %v6156, %v6364
        %6366 = vmatmul.f32.gmra.mxu0 %v6255
        %v6367 = vpop.f32.mrf.mxu0
        %v6368 = vadd.f32 %v6159, %v6367
        %6369 = vmatmul.f32.gmra.mxu0 %v6258
        %v6370 = vpop.f32.mrf.mxu0
        %v6371 = vadd.f32 %v6162, %v6370
        %6372 = vmatmul.f32.gmra.mxu0 %v6261
        %v6373 = vpop.f32.mrf.mxu0
        %v6374 = vadd.f32 %v6165, %v6373
        %6375 = vmatmul.f32.gmra.mxu0 %v6264
        %v6376 = vpop.f32.mrf.mxu0
        %v6377 = vadd.f32 %v6168, %v6376
        %6378 = vmatmul.f32.gmra.mxu0 %v6267
        %v6379 = vpop.f32.mrf.mxu0
        %v6380 = vadd.f32 %v6171, %v6379
        %6381 = vmatmul.f32.gmra.mxu0 %v6270
        %v6382 = vpop.f32.mrf.mxu0
        %v6383 = vadd.f32 %v6174, %v6382
        %6384 = vmatmul.f32.gmra.mxu0 %v6273
        %v6385 = vpop.f32.mrf.mxu0
        %v6386 = vadd.f32 %v6177, %v6385
        %6387 = vmatmul.f32.gmra.mxu0 %v6276
        %v6388 = vpop.f32.mrf.mxu0
        %v6389 = vadd.f32 %v6180, %v6388
        %6390 = vmatmul.f32.gmra.mxu0 %v6279
        %v6391 = vpop.f32.mrf.mxu0
        %v6392 = vadd.f32 %v6183, %v6391
        %6393 = vmatmul.f32.gmra.mxu0 %v6282
        %v6394 = vpop.f32.mrf.mxu0
        %v6395 = vadd.f32 %v6186, %v6394
        %6396 = vmatmul.f32.gmra.mxu0 %v6285
        %v6397 = vpop.f32.mrf.mxu0
        %v6398 = vadd.f32 %v6189, %v6397
        %6399 = vmatmul.f32.gmra.mxu0 %v6288
        %v6400 = vpop.f32.mrf.mxu0
        %v6401 = vadd.f32 %v6192, %v6400
        %6402 = vmatmul.f32.gmra.mxu0 %v6291
        %v6403 = vpop.f32.mrf.mxu0
        %v6404 = vadd.f32 %v6195, %v6403
        %6405 = vmatmul.f32.gmra.mxu0 %v6294
        %v6406 = vpop.f32.mrf.mxu0
        %v6407 = vadd.f32 %v6198, %v6406
        %6408 = vmatmul.f32.gmra.mxu0 %v6297
        %v6409 = vpop.f32.mrf.mxu0
        %v6410 = vadd.f32 %v6201, %v6409
        %6411 = vmatmul.f32.gmra.mxu0 %v6300
        %v6412 = vpop.f32.mrf.mxu0
        %v6413 = vadd.f32 %v6204, %v6412
        %6414 = vmatmul.f32.gmra.mxu0 %v6303
        %v6415 = vpop.f32.mrf.mxu0
        %v6416 = vadd.f32 %v6207, %v6415
        %6417 = vmatmul.f32.gmra.mxu0 %v6306
        %v6418 = vpop.f32.mrf.mxu0
        %v6419 = vadd.f32 %v6210, %v6418
        %6420 = vmatmul.f32.gmra.mxu0 %v6309
        %v6421 = vpop.f32.mrf.mxu0
        %v6422 = vadd.f32 %v6213, %v6421
        %6423 = vmatmul.f32.gmra.mxu0 %v6312
        %v6424 = vpop.f32.mrf.mxu0
        %v6425 = vadd.f32 %v6216, %v6424
        %6426 = vmatmul.f32.gmra.mxu0 %v6315
        %v6427 = vpop.f32.mrf.mxu0
        %v6428 = vadd.f32 %v6219, %v6427
        %6429 = vdwg.mxu0
        %v6430 = vld [vmem:[#allocation2 + $0x9] sm:$0xff]
        %v6431 = vld [vmem:[#allocation2 + $0x11] sm:$0xff]
        %v6432 = vld [vmem:[#allocation2 + $0x29] sm:$0xff]
        %v6433 = vld [vmem:[#allocation2 + $0x31] sm:$0xff]
        %v6434 = vld [vmem:[#allocation2 + $0x49] sm:$0xff]
        %v6435 = vld [vmem:[#allocation2 + $0x51] sm:$0xff]
        %v6436 = vld [vmem:[#allocation2 + $0x69] sm:$0xff]
        %v6437 = vld [vmem:[#allocation2 + $0x71] sm:$0xff]
        %v6438 = vld [vmem:[#allocation2 + $0x89] sm:$0xff]
        %v6439 = vld [vmem:[#allocation2 + $0x91] sm:$0xff]
        %v6440 = vld [vmem:[#allocation2 + $0xa9] sm:$0xff]
        %v6441 = vld [vmem:[#allocation2 + $0xb1] sm:$0xff]
        %v6442 = vld [vmem:[#allocation2 + $0xc9] sm:$0xff]
        %v6443 = vld [vmem:[#allocation2 + $0xd1] sm:$0xff]
        %v6444 = vld [vmem:[#allocation2 + $0xe9] sm:$0xff]
        %v6445 = vld [vmem:[#allocation2 + $0xf1] sm:$0xff]
        %v6446 = vld [vmem:[#allocation2 + $0x109] sm:$0xff]
        %v6447 = vld [vmem:[#allocation2 + $0x111] sm:$0xff]
        %v6448 = vld [vmem:[#allocation2 + $0x129] sm:$0xff]
        %v6449 = vld [vmem:[#allocation2 + $0x131] sm:$0xff]
        %v6450 = vld [vmem:[#allocation2 + $0x149] sm:$0xff]
        %v6451 = vld [vmem:[#allocation2 + $0x151] sm:$0xff]
        %v6452 = vld [vmem:[#allocation2 + $0x169] sm:$0xff]
        %v6453 = vld [vmem:[#allocation2 + $0x171] sm:$0xff]
        %v6454 = vld [vmem:[#allocation2 + $0x189] sm:$0xff]
        %v6455 = vld [vmem:[#allocation2 + $0x191] sm:$0xff]
        %v6456 = vld [vmem:[#allocation2 + $0x1a9] sm:$0xff]
        %v6457 = vld [vmem:[#allocation2 + $0x1b1] sm:$0xff]
        %v6458 = vld [vmem:[#allocation2 + $0x1c9] sm:$0xff]
        %v6459 = vld [vmem:[#allocation2 + $0x1d1] sm:$0xff]
        %v6460 = vld [vmem:[#allocation2 + $0x1e9] sm:$0xff]
        %v6461 = vld [vmem:[#allocation2 + $0x1f1] sm:$0xff]
        %s6462 = scalar_lea.vmem %s3, 1280
        %v6463 = vld [vmem:[%s6462] sm:$0xff]
        %v6464 = vld [vmem:[%s6462 + $0x8] sm:$0xff]
        %v6465 = vld [vmem:[%s6462 + $0x10] sm:$0xff]
        %v6466 = vld [vmem:[%s6462 + $0x18] sm:$0xff]
        %v6467 = vld [vmem:[%s6462 + $0x20] sm:$0xff]
        %v6468 = vld [vmem:[%s6462 + $0x28] sm:$0xff]
        %v6469 = vld [vmem:[%s6462 + $0x30] sm:$0xff]
        %v6470 = vld [vmem:[%s6462 + $0x38] sm:$0xff]
        %v6472 = vsel %vm316, %v6430, 0
        %v6475 = vsel %vm316, %v6431, 0
        %v6478 = vsel %vm316, %v6432, 0
        %v6481 = vsel %vm316, %v6433, 0
        %v6484 = vsel %vm316, %v6434, 0
        %v6487 = vsel %vm316, %v6435, 0
        %v6490 = vsel %vm316, %v6436, 0
        %v6493 = vsel %vm316, %v6437, 0
        %v6496 = vsel %vm316, %v6438, 0
        %v6499 = vsel %vm316, %v6439, 0
        %v6502 = vsel %vm316, %v6440, 0
        %v6505 = vsel %vm316, %v6441, 0
        %v6508 = vsel %vm316, %v6442, 0
        %v6511 = vsel %vm316, %v6443, 0
        %v6514 = vsel %vm316, %v6444, 0
        %v6517 = vsel %vm316, %v6445, 0
        %v6520 = vsel %vm316, %v6446, 0
        %v6523 = vsel %vm316, %v6447, 0
        %v6526 = vsel %vm316, %v6448, 0
        %v6529 = vsel %vm316, %v6449, 0
        %v6532 = vsel %vm316, %v6450, 0
        %v6535 = vsel %vm316, %v6451, 0
        %v6538 = vsel %vm316, %v6452, 0
        %v6541 = vsel %vm316, %v6453, 0
        %v6544 = vsel %vm316, %v6454, 0
        %v6547 = vsel %vm316, %v6455, 0
        %v6550 = vsel %vm316, %v6456, 0
        %v6553 = vsel %vm316, %v6457, 0
        %v6556 = vsel %vm316, %v6458, 0
        %v6559 = vsel %vm316, %v6459, 0
        %v6562 = vsel %vm316, %v6460, 0
        %v6565 = vsel %vm316, %v6461, 0
        %6567 = vmatpush.msra.mxu0 0.0
        %6568 = vmatpush.msra.mxu0 0.0
        %6569 = vmatpush.msra.mxu0 0.0
        %6570 = vmatpush.msra.mxu0 0.0
        %6571 = vmatpush.msra.mxu0 0.0
        %6572 = vmatpush.msra.mxu0 0.0
        %6573 = vmatpush.msra.mxu0 0.0
        %6574 = vmatpush.msra.mxu0 0.0
        %6575 = vmatpush.msra.mxu0 %v6470
        %6576 = vmatpush.msra.mxu0 %v6469
        %6577 = vmatpush.msra.mxu0 %v6468
        %6578 = vmatpush.msra.mxu0 %v6467
        %6579 = vmatpush.msra.mxu0 %v6466
        %6580 = vmatpush.msra.mxu0 %v6465
        %6581 = vmatpush.msra.mxu0 %v6464
        %6582 = vmatpush.msra.mxu0 %v6463
        %6583 = vmatmul.f32.gmra.mxu0 %v6472
        %v6584 = vpop.f32.mrf.mxu0
        %v6585 = vadd.f32 0.0, %v6584
        %6586 = vmatmul.f32.gmra.mxu0 %v6475
        %v6587 = vpop.f32.mrf.mxu0
        %v6588 = vadd.f32 0.0, %v6587
        %6589 = vmatmul.f32.gmra.mxu0 %v6478
        %v6590 = vpop.f32.mrf.mxu0
        %v6591 = vadd.f32 0.0, %v6590
        %6592 = vmatmul.f32.gmra.mxu0 %v6481
        %v6593 = vpop.f32.mrf.mxu0
        %v6594 = vadd.f32 0.0, %v6593
        %6595 = vmatmul.f32.gmra.mxu0 %v6484
        %v6596 = vpop.f32.mrf.mxu0
        %v6597 = vadd.f32 0.0, %v6596
        %6598 = vmatmul.f32.gmra.mxu0 %v6487
        %v6599 = vpop.f32.mrf.mxu0
        %v6600 = vadd.f32 0.0, %v6599
        %6601 = vmatmul.f32.gmra.mxu0 %v6490
        %v6602 = vpop.f32.mrf.mxu0
        %v6603 = vadd.f32 0.0, %v6602
        %6604 = vmatmul.f32.gmra.mxu0 %v6493
        %v6605 = vpop.f32.mrf.mxu0
        %v6606 = vadd.f32 0.0, %v6605
        %6607 = vmatmul.f32.gmra.mxu0 %v6496
        %v6608 = vpop.f32.mrf.mxu0
        %v6609 = vadd.f32 0.0, %v6608
        %6610 = vmatmul.f32.gmra.mxu0 %v6499
        %v6611 = vpop.f32.mrf.mxu0
        %v6612 = vadd.f32 0.0, %v6611
        %6613 = vmatmul.f32.gmra.mxu0 %v6502
        %v6614 = vpop.f32.mrf.mxu0
        %v6615 = vadd.f32 0.0, %v6614
        %6616 = vmatmul.f32.gmra.mxu0 %v6505
        %v6617 = vpop.f32.mrf.mxu0
        %v6618 = vadd.f32 0.0, %v6617
        %6619 = vmatmul.f32.gmra.mxu0 %v6508
        %v6620 = vpop.f32.mrf.mxu0
        %v6621 = vadd.f32 0.0, %v6620
        %6622 = vmatmul.f32.gmra.mxu0 %v6511
        %v6623 = vpop.f32.mrf.mxu0
        %v6624 = vadd.f32 0.0, %v6623
        %6625 = vmatmul.f32.gmra.mxu0 %v6514
        %v6626 = vpop.f32.mrf.mxu0
        %v6627 = vadd.f32 0.0, %v6626
        %6628 = vmatmul.f32.gmra.mxu0 %v6517
        %v6629 = vpop.f32.mrf.mxu0
        %v6630 = vadd.f32 0.0, %v6629
        %6631 = vmatmul.f32.gmra.mxu0 %v6520
        %v6632 = vpop.f32.mrf.mxu0
        %v6633 = vadd.f32 0.0, %v6632
        %6634 = vmatmul.f32.gmra.mxu0 %v6523
        %v6635 = vpop.f32.mrf.mxu0
        %v6636 = vadd.f32 0.0, %v6635
        %6637 = vmatmul.f32.gmra.mxu0 %v6526
        %v6638 = vpop.f32.mrf.mxu0
        %v6639 = vadd.f32 0.0, %v6638
        %6640 = vmatmul.f32.gmra.mxu0 %v6529
        %v6641 = vpop.f32.mrf.mxu0
        %v6642 = vadd.f32 0.0, %v6641
        %6643 = vmatmul.f32.gmra.mxu0 %v6532
        %v6644 = vpop.f32.mrf.mxu0
        %v6645 = vadd.f32 0.0, %v6644
        %6646 = vmatmul.f32.gmra.mxu0 %v6535
        %v6647 = vpop.f32.mrf.mxu0
        %v6648 = vadd.f32 0.0, %v6647
        %6649 = vmatmul.f32.gmra.mxu0 %v6538
        %v6650 = vpop.f32.mrf.mxu0
        %v6651 = vadd.f32 0.0, %v6650
        %6652 = vmatmul.f32.gmra.mxu0 %v6541
        %v6653 = vpop.f32.mrf.mxu0
        %v6654 = vadd.f32 0.0, %v6653
        %6655 = vmatmul.f32.gmra.mxu0 %v6544
        %v6656 = vpop.f32.mrf.mxu0
        %v6657 = vadd.f32 0.0, %v6656
        %6658 = vmatmul.f32.gmra.mxu0 %v6547
        %v6659 = vpop.f32.mrf.mxu0
        %v6660 = vadd.f32 0.0, %v6659
        %6661 = vmatmul.f32.gmra.mxu0 %v6550
        %v6662 = vpop.f32.mrf.mxu0
        %v6663 = vadd.f32 0.0, %v6662
        %6664 = vmatmul.f32.gmra.mxu0 %v6553
        %v6665 = vpop.f32.mrf.mxu0
        %v6666 = vadd.f32 0.0, %v6665
        %6667 = vmatmul.f32.gmra.mxu0 %v6556
        %v6668 = vpop.f32.mrf.mxu0
        %v6669 = vadd.f32 0.0, %v6668
        %6670 = vmatmul.f32.gmra.mxu0 %v6559
        %v6671 = vpop.f32.mrf.mxu0
        %v6672 = vadd.f32 0.0, %v6671
        %6673 = vmatmul.f32.gmra.mxu0 %v6562
        %v6674 = vpop.f32.mrf.mxu0
        %v6675 = vadd.f32 0.0, %v6674
        %6676 = vmatmul.f32.gmra.mxu0 %v6565
        %v6677 = vpop.f32.mrf.mxu0
        %v6678 = vadd.f32 0.0, %v6677
        %6679 = vdwg.mxu0
        %v6680 = vadd.f32 %v6335, %v6585
        %v6681 = vadd.f32 %v6338, %v6588
        %v6682 = vadd.f32 %v6341, %v6591
        %v6683 = vadd.f32 %v6344, %v6594
        %v6684 = vadd.f32 %v6347, %v6597
        %v6685 = vadd.f32 %v6350, %v6600
        %v6686 = vadd.f32 %v6353, %v6603
        %v6687 = vadd.f32 %v6356, %v6606
        %v6688 = vadd.f32 %v6359, %v6609
        %v6689 = vadd.f32 %v6362, %v6612
        %v6690 = vadd.f32 %v6365, %v6615
        %v6691 = vadd.f32 %v6368, %v6618
        %v6692 = vadd.f32 %v6371, %v6621
        %v6693 = vadd.f32 %v6374, %v6624
        %v6694 = vadd.f32 %v6377, %v6627
        %v6695 = vadd.f32 %v6380, %v6630
        %v6696 = vadd.f32 %v6383, %v6633
        %v6697 = vadd.f32 %v6386, %v6636
        %v6698 = vadd.f32 %v6389, %v6639
        %v6699 = vadd.f32 %v6392, %v6642
        %v6700 = vadd.f32 %v6395, %v6645
        %v6701 = vadd.f32 %v6398, %v6648
        %v6702 = vadd.f32 %v6401, %v6651
        %v6703 = vadd.f32 %v6404, %v6654
        %v6704 = vadd.f32 %v6407, %v6657
        %v6705 = vadd.f32 %v6410, %v6660
        %v6706 = vadd.f32 %v6413, %v6663
        %v6707 = vadd.f32 %v6416, %v6666
        %v6708 = vadd.f32 %v6419, %v6669
        %v6709 = vadd.f32 %v6422, %v6672
        %v6710 = vadd.f32 %v6425, %v6675
        %v6711 = vadd.f32 %v6428, %v6678
        %v6712 = vld [vmem:[%s326 + $0x7] sm:$0xff]
        %v6713 = vld [vmem:[%s326 + $0xf] sm:$0xff]
        %v6714 = vld [vmem:[%s326 + $0x27] sm:$0xff]
        %v6715 = vld [vmem:[%s326 + $0x2f] sm:$0xff]
        %v6716 = vld [vmem:[%s326 + $0x47] sm:$0xff]
        %v6717 = vld [vmem:[%s326 + $0x4f] sm:$0xff]
        %v6718 = vld [vmem:[%s326 + $0x67] sm:$0xff]
        %v6719 = vld [vmem:[%s326 + $0x6f] sm:$0xff]
        %v6720 = vld [vmem:[%s326 + $0x87] sm:$0xff]
        %v6721 = vld [vmem:[%s326 + $0x8f] sm:$0xff]
        %v6722 = vld [vmem:[%s326 + $0xa7] sm:$0xff]
        %v6723 = vld [vmem:[%s326 + $0xaf] sm:$0xff]
        %v6724 = vld [vmem:[%s326 + $0xc7] sm:$0xff]
        %v6725 = vld [vmem:[%s326 + $0xcf] sm:$0xff]
        %v6726 = vld [vmem:[%s326 + $0xe7] sm:$0xff]
        %v6727 = vld [vmem:[%s326 + $0xef] sm:$0xff]
        %v6728 = vld [vmem:[%s326 + $0x107] sm:$0xff]
        %v6729 = vld [vmem:[%s326 + $0x10f] sm:$0xff]
        %v6730 = vld [vmem:[%s326 + $0x127] sm:$0xff]
        %v6731 = vld [vmem:[%s326 + $0x12f] sm:$0xff]
        %v6732 = vld [vmem:[%s326 + $0x147] sm:$0xff]
        %v6733 = vld [vmem:[%s326 + $0x14f] sm:$0xff]
        %v6734 = vld [vmem:[%s326 + $0x167] sm:$0xff]
        %v6735 = vld [vmem:[%s326 + $0x16f] sm:$0xff]
        %v6736 = vld [vmem:[%s326 + $0x187] sm:$0xff]
        %v6737 = vld [vmem:[%s326 + $0x18f] sm:$0xff]
        %v6738 = vld [vmem:[%s326 + $0x1a7] sm:$0xff]
        %v6739 = vld [vmem:[%s326 + $0x1af] sm:$0xff]
        %v6740 = vld [vmem:[%s326 + $0x1c7] sm:$0xff]
        %v6741 = vld [vmem:[%s326 + $0x1cf] sm:$0xff]
        %v6742 = vld [vmem:[%s326 + $0x1e7] sm:$0xff]
        %v6743 = vld [vmem:[%s326 + $0x1ef] sm:$0xff]
        %s6744 = scalar_lea.vmem %s3, 1344
        %v6745 = vld [vmem:[%s6744] sm:$0xff]
        %v6746 = vld [vmem:[%s6744 + $0x8] sm:$0xff]
        %v6747 = vld [vmem:[%s6744 + $0x10] sm:$0xff]
        %v6748 = vld [vmem:[%s6744 + $0x18] sm:$0xff]
        %v6749 = vld [vmem:[%s6744 + $0x20] sm:$0xff]
        %v6750 = vld [vmem:[%s6744 + $0x28] sm:$0xff]
        %v6751 = vld [vmem:[%s6744 + $0x30] sm:$0xff]
        %v6752 = vld [vmem:[%s6744 + $0x38] sm:$0xff]
        %v6754 = vsel %vm316, %v6712, 0
        %v6757 = vsel %vm316, %v6713, 0
        %v6760 = vsel %vm316, %v6714, 0
        %v6763 = vsel %vm316, %v6715, 0
        %v6766 = vsel %vm316, %v6716, 0
        %v6769 = vsel %vm316, %v6717, 0
        %v6772 = vsel %vm316, %v6718, 0
        %v6775 = vsel %vm316, %v6719, 0
        %v6778 = vsel %vm316, %v6720, 0
        %v6781 = vsel %vm316, %v6721, 0
        %v6784 = vsel %vm316, %v6722, 0
        %v6787 = vsel %vm316, %v6723, 0
        %v6790 = vsel %vm316, %v6724, 0
        %v6793 = vsel %vm316, %v6725, 0
        %v6796 = vsel %vm316, %v6726, 0
        %v6799 = vsel %vm316, %v6727, 0
        %v6802 = vsel %vm316, %v6728, 0
        %v6805 = vsel %vm316, %v6729, 0
        %v6808 = vsel %vm316, %v6730, 0
        %v6811 = vsel %vm316, %v6731, 0
        %v6814 = vsel %vm316, %v6732, 0
        %v6817 = vsel %vm316, %v6733, 0
        %v6820 = vsel %vm316, %v6734, 0
        %v6823 = vsel %vm316, %v6735, 0
        %v6826 = vsel %vm316, %v6736, 0
        %v6829 = vsel %vm316, %v6737, 0
        %v6832 = vsel %vm316, %v6738, 0
        %v6835 = vsel %vm316, %v6739, 0
        %v6838 = vsel %vm316, %v6740, 0
        %v6841 = vsel %vm316, %v6741, 0
        %v6844 = vsel %vm316, %v6742, 0
        %v6847 = vsel %vm316, %v6743, 0
        %6849 = vmatpush.msra.mxu0 0.0
        %6850 = vmatpush.msra.mxu0 0.0
        %6851 = vmatpush.msra.mxu0 0.0
        %6852 = vmatpush.msra.mxu0 0.0
        %6853 = vmatpush.msra.mxu0 0.0
        %6854 = vmatpush.msra.mxu0 0.0
        %6855 = vmatpush.msra.mxu0 0.0
        %6856 = vmatpush.msra.mxu0 0.0
        %6857 = vmatpush.msra.mxu0 %v6752
        %6858 = vmatpush.msra.mxu0 %v6751
        %6859 = vmatpush.msra.mxu0 %v6750
        %6860 = vmatpush.msra.mxu0 %v6749
        %6861 = vmatpush.msra.mxu0 %v6748
        %6862 = vmatpush.msra.mxu0 %v6747
        %6863 = vmatpush.msra.mxu0 %v6746
        %6864 = vmatpush.msra.mxu0 %v6745
        %6865 = vmatmul.f32.gmra.mxu0 %v6754
        %v6866 = vpop.f32.mrf.mxu0
        %v6867 = vadd.f32 0.0, %v6866
        %6868 = vmatmul.f32.gmra.mxu0 %v6757
        %v6869 = vpop.f32.mrf.mxu0
        %v6870 = vadd.f32 0.0, %v6869
        %6871 = vmatmul.f32.gmra.mxu0 %v6760
        %v6872 = vpop.f32.mrf.mxu0
        %v6873 = vadd.f32 0.0, %v6872
        %6874 = vmatmul.f32.gmra.mxu0 %v6763
        %v6875 = vpop.f32.mrf.mxu0
        %v6876 = vadd.f32 0.0, %v6875
        %6877 = vmatmul.f32.gmra.mxu0 %v6766
        %v6878 = vpop.f32.mrf.mxu0
        %v6879 = vadd.f32 0.0, %v6878
        %6880 = vmatmul.f32.gmra.mxu0 %v6769
        %v6881 = vpop.f32.mrf.mxu0
        %v6882 = vadd.f32 0.0, %v6881
        %6883 = vmatmul.f32.gmra.mxu0 %v6772
        %v6884 = vpop.f32.mrf.mxu0
        %v6885 = vadd.f32 0.0, %v6884
        %6886 = vmatmul.f32.gmra.mxu0 %v6775
        %v6887 = vpop.f32.mrf.mxu0
        %v6888 = vadd.f32 0.0, %v6887
        %6889 = vmatmul.f32.gmra.mxu0 %v6778
        %v6890 = vpop.f32.mrf.mxu0
        %v6891 = vadd.f32 0.0, %v6890
        %6892 = vmatmul.f32.gmra.mxu0 %v6781
        %v6893 = vpop.f32.mrf.mxu0
        %v6894 = vadd.f32 0.0, %v6893
        %6895 = vmatmul.f32.gmra.mxu0 %v6784
        %v6896 = vpop.f32.mrf.mxu0
        %v6897 = vadd.f32 0.0, %v6896
        %6898 = vmatmul.f32.gmra.mxu0 %v6787
        %v6899 = vpop.f32.mrf.mxu0
        %v6900 = vadd.f32 0.0, %v6899
        %6901 = vmatmul.f32.gmra.mxu0 %v6790
        %v6902 = vpop.f32.mrf.mxu0
        %v6903 = vadd.f32 0.0, %v6902
        %6904 = vmatmul.f32.gmra.mxu0 %v6793
        %v6905 = vpop.f32.mrf.mxu0
        %v6906 = vadd.f32 0.0, %v6905
        %6907 = vmatmul.f32.gmra.mxu0 %v6796
        %v6908 = vpop.f32.mrf.mxu0
        %v6909 = vadd.f32 0.0, %v6908
        %6910 = vmatmul.f32.gmra.mxu0 %v6799
        %v6911 = vpop.f32.mrf.mxu0
        %v6912 = vadd.f32 0.0, %v6911
        %6913 = vmatmul.f32.gmra.mxu0 %v6802
        %v6914 = vpop.f32.mrf.mxu0
        %v6915 = vadd.f32 0.0, %v6914
        %6916 = vmatmul.f32.gmra.mxu0 %v6805
        %v6917 = vpop.f32.mrf.mxu0
        %v6918 = vadd.f32 0.0, %v6917
        %6919 = vmatmul.f32.gmra.mxu0 %v6808
        %v6920 = vpop.f32.mrf.mxu0
        %v6921 = vadd.f32 0.0, %v6920
        %6922 = vmatmul.f32.gmra.mxu0 %v6811
        %v6923 = vpop.f32.mrf.mxu0
        %v6924 = vadd.f32 0.0, %v6923
        %6925 = vmatmul.f32.gmra.mxu0 %v6814
        %v6926 = vpop.f32.mrf.mxu0
        %v6927 = vadd.f32 0.0, %v6926
        %6928 = vmatmul.f32.gmra.mxu0 %v6817
        %v6929 = vpop.f32.mrf.mxu0
        %v6930 = vadd.f32 0.0, %v6929
        %6931 = vmatmul.f32.gmra.mxu0 %v6820
        %v6932 = vpop.f32.mrf.mxu0
        %v6933 = vadd.f32 0.0, %v6932
        %6934 = vmatmul.f32.gmra.mxu0 %v6823
        %v6935 = vpop.f32.mrf.mxu0
        %v6936 = vadd.f32 0.0, %v6935
        %6937 = vmatmul.f32.gmra.mxu0 %v6826
        %v6938 = vpop.f32.mrf.mxu0
        %v6939 = vadd.f32 0.0, %v6938
        %6940 = vmatmul.f32.gmra.mxu0 %v6829
        %v6941 = vpop.f32.mrf.mxu0
        %v6942 = vadd.f32 0.0, %v6941
        %6943 = vmatmul.f32.gmra.mxu0 %v6832
        %v6944 = vpop.f32.mrf.mxu0
        %v6945 = vadd.f32 0.0, %v6944
        %6946 = vmatmul.f32.gmra.mxu0 %v6835
        %v6947 = vpop.f32.mrf.mxu0
        %v6948 = vadd.f32 0.0, %v6947
        %6949 = vmatmul.f32.gmra.mxu0 %v6838
        %v6950 = vpop.f32.mrf.mxu0
        %v6951 = vadd.f32 0.0, %v6950
        %6952 = vmatmul.f32.gmra.mxu0 %v6841
        %v6953 = vpop.f32.mrf.mxu0
        %v6954 = vadd.f32 0.0, %v6953
        %6955 = vmatmul.f32.gmra.mxu0 %v6844
        %v6956 = vpop.f32.mrf.mxu0
        %v6957 = vadd.f32 0.0, %v6956
        %6958 = vmatmul.f32.gmra.mxu0 %v6847
        %v6959 = vpop.f32.mrf.mxu0
        %v6960 = vadd.f32 0.0, %v6959
        %6961 = vdwg.mxu0
        %v6962 = vadd.f32 %v6680, %v6867
        %v6963 = vadd.f32 %v6681, %v6870
        %v6964 = vadd.f32 %v6682, %v6873
        %v6965 = vadd.f32 %v6683, %v6876
        %v6966 = vadd.f32 %v6684, %v6879
        %v6967 = vadd.f32 %v6685, %v6882
        %v6968 = vadd.f32 %v6686, %v6885
        %v6969 = vadd.f32 %v6687, %v6888
        %v6970 = vadd.f32 %v6688, %v6891
        %v6971 = vadd.f32 %v6689, %v6894
        %v6972 = vadd.f32 %v6690, %v6897
        %v6973 = vadd.f32 %v6691, %v6900
        %v6974 = vadd.f32 %v6692, %v6903
        %v6975 = vadd.f32 %v6693, %v6906
        %v6976 = vadd.f32 %v6694, %v6909
        %v6977 = vadd.f32 %v6695, %v6912
        %v6978 = vadd.f32 %v6696, %v6915
        %v6979 = vadd.f32 %v6697, %v6918
        %v6980 = vadd.f32 %v6698, %v6921
        %v6981 = vadd.f32 %v6699, %v6924
        %v6982 = vadd.f32 %v6700, %v6927
        %v6983 = vadd.f32 %v6701, %v6930
        %v6984 = vadd.f32 %v6702, %v6933
        %v6985 = vadd.f32 %v6703, %v6936
        %v6986 = vadd.f32 %v6704, %v6939
        %v6987 = vadd.f32 %v6705, %v6942
        %v6988 = vadd.f32 %v6706, %v6945
        %v6989 = vadd.f32 %v6707, %v6948
        %v6990 = vadd.f32 %v6708, %v6951
        %v6991 = vadd.f32 %v6709, %v6954
        %v6992 = vadd.f32 %v6710, %v6957
        %v6993 = vadd.f32 %v6711, %v6960
        %v6994 = vld [vmem:[%s326 + $0x8] sm:$0xff]
        %v6995 = vld [vmem:[%s326 + $0x10] sm:$0xff]
        %v6996 = vld [vmem:[%s326 + $0x28] sm:$0xff]
        %v6997 = vld [vmem:[%s326 + $0x30] sm:$0xff]
        %v6998 = vld [vmem:[%s326 + $0x48] sm:$0xff]
        %v6999 = vld [vmem:[%s326 + $0x50] sm:$0xff]
        %v7000 = vld [vmem:[%s326 + $0x68] sm:$0xff]
        %v7001 = vld [vmem:[%s326 + $0x70] sm:$0xff]
        %v7002 = vld [vmem:[%s326 + $0x88] sm:$0xff]
        %v7003 = vld [vmem:[%s326 + $0x90] sm:$0xff]
        %v7004 = vld [vmem:[%s326 + $0xa8] sm:$0xff]
        %v7005 = vld [vmem:[%s326 + $0xb0] sm:$0xff]
        %v7006 = vld [vmem:[%s326 + $0xc8] sm:$0xff]
        %v7007 = vld [vmem:[%s326 + $0xd0] sm:$0xff]
        %v7008 = vld [vmem:[%s326 + $0xe8] sm:$0xff]
        %v7009 = vld [vmem:[%s326 + $0xf0] sm:$0xff]
        %v7010 = vld [vmem:[%s326 + $0x108] sm:$0xff]
        %v7011 = vld [vmem:[%s326 + $0x110] sm:$0xff]
        %v7012 = vld [vmem:[%s326 + $0x128] sm:$0xff]
        %v7013 = vld [vmem:[%s326 + $0x130] sm:$0xff]
        %v7014 = vld [vmem:[%s326 + $0x148] sm:$0xff]
        %v7015 = vld [vmem:[%s326 + $0x150] sm:$0xff]
        %v7016 = vld [vmem:[%s326 + $0x168] sm:$0xff]
        %v7017 = vld [vmem:[%s326 + $0x170] sm:$0xff]
        %v7018 = vld [vmem:[%s326 + $0x188] sm:$0xff]
        %v7019 = vld [vmem:[%s326 + $0x190] sm:$0xff]
        %v7020 = vld [vmem:[%s326 + $0x1a8] sm:$0xff]
        %v7021 = vld [vmem:[%s326 + $0x1b0] sm:$0xff]
        %v7022 = vld [vmem:[%s326 + $0x1c8] sm:$0xff]
        %v7023 = vld [vmem:[%s326 + $0x1d0] sm:$0xff]
        %v7024 = vld [vmem:[%s326 + $0x1e8] sm:$0xff]
        %v7025 = vld [vmem:[%s326 + $0x1f0] sm:$0xff]
        %s7026 = scalar_lea.vmem %s3, 1408
        %v7027 = vld [vmem:[%s7026] sm:$0xff]
        %v7028 = vld [vmem:[%s7026 + $0x8] sm:$0xff]
        %v7029 = vld [vmem:[%s7026 + $0x10] sm:$0xff]
        %v7030 = vld [vmem:[%s7026 + $0x18] sm:$0xff]
        %v7031 = vld [vmem:[%s7026 + $0x20] sm:$0xff]
        %v7032 = vld [vmem:[%s7026 + $0x28] sm:$0xff]
        %v7033 = vld [vmem:[%s7026 + $0x30] sm:$0xff]
        %v7034 = vld [vmem:[%s7026 + $0x38] sm:$0xff]
        %v7036 = vsel %vm316, %v6994, 0
        %v7039 = vsel %vm316, %v6995, 0
        %v7042 = vsel %vm316, %v6996, 0
        %v7045 = vsel %vm316, %v6997, 0
        %v7048 = vsel %vm316, %v6998, 0
        %v7051 = vsel %vm316, %v6999, 0
        %v7054 = vsel %vm316, %v7000, 0
        %v7057 = vsel %vm316, %v7001, 0
        %v7060 = vsel %vm316, %v7002, 0
        %v7063 = vsel %vm316, %v7003, 0
        %v7066 = vsel %vm316, %v7004, 0
        %v7069 = vsel %vm316, %v7005, 0
        %v7072 = vsel %vm316, %v7006, 0
        %v7075 = vsel %vm316, %v7007, 0
        %v7078 = vsel %vm316, %v7008, 0
        %v7081 = vsel %vm316, %v7009, 0
        %v7084 = vsel %vm316, %v7010, 0
        %v7087 = vsel %vm316, %v7011, 0
        %v7090 = vsel %vm316, %v7012, 0
        %v7093 = vsel %vm316, %v7013, 0
        %v7096 = vsel %vm316, %v7014, 0
        %v7099 = vsel %vm316, %v7015, 0
        %v7102 = vsel %vm316, %v7016, 0
        %v7105 = vsel %vm316, %v7017, 0
        %v7108 = vsel %vm316, %v7018, 0
        %v7111 = vsel %vm316, %v7019, 0
        %v7114 = vsel %vm316, %v7020, 0
        %v7117 = vsel %vm316, %v7021, 0
        %v7120 = vsel %vm316, %v7022, 0
        %v7123 = vsel %vm316, %v7023, 0
        %v7126 = vsel %vm316, %v7024, 0
        %v7129 = vsel %vm316, %v7025, 0
        %7131 = vmatpush.msra.mxu0 0.0
        %7132 = vmatpush.msra.mxu0 0.0
        %7133 = vmatpush.msra.mxu0 0.0
        %7134 = vmatpush.msra.mxu0 0.0
        %7135 = vmatpush.msra.mxu0 0.0
        %7136 = vmatpush.msra.mxu0 0.0
        %7137 = vmatpush.msra.mxu0 0.0
        %7138 = vmatpush.msra.mxu0 0.0
        %7139 = vmatpush.msra.mxu0 %v7034
        %7140 = vmatpush.msra.mxu0 %v7033
        %7141 = vmatpush.msra.mxu0 %v7032
        %7142 = vmatpush.msra.mxu0 %v7031
        %7143 = vmatpush.msra.mxu0 %v7030
        %7144 = vmatpush.msra.mxu0 %v7029
        %7145 = vmatpush.msra.mxu0 %v7028
        %7146 = vmatpush.msra.mxu0 %v7027
        %7147 = vmatmul.f32.gmra.mxu0 %v7036
        %v7148 = vpop.f32.mrf.mxu0
        %v7149 = vadd.f32 0.0, %v7148
        %7150 = vmatmul.f32.gmra.mxu0 %v7039
        %v7151 = vpop.f32.mrf.mxu0
        %v7152 = vadd.f32 0.0, %v7151
        %7153 = vmatmul.f32.gmra.mxu0 %v7042
        %v7154 = vpop.f32.mrf.mxu0
        %v7155 = vadd.f32 0.0, %v7154
        %7156 = vmatmul.f32.gmra.mxu0 %v7045
        %v7157 = vpop.f32.mrf.mxu0
        %v7158 = vadd.f32 0.0, %v7157
        %7159 = vmatmul.f32.gmra.mxu0 %v7048
        %v7160 = vpop.f32.mrf.mxu0
        %v7161 = vadd.f32 0.0, %v7160
        %7162 = vmatmul.f32.gmra.mxu0 %v7051
        %v7163 = vpop.f32.mrf.mxu0
        %v7164 = vadd.f32 0.0, %v7163
        %7165 = vmatmul.f32.gmra.mxu0 %v7054
        %v7166 = vpop.f32.mrf.mxu0
        %v7167 = vadd.f32 0.0, %v7166
        %7168 = vmatmul.f32.gmra.mxu0 %v7057
        %v7169 = vpop.f32.mrf.mxu0
        %v7170 = vadd.f32 0.0, %v7169
        %7171 = vmatmul.f32.gmra.mxu0 %v7060
        %v7172 = vpop.f32.mrf.mxu0
        %v7173 = vadd.f32 0.0, %v7172
        %7174 = vmatmul.f32.gmra.mxu0 %v7063
        %v7175 = vpop.f32.mrf.mxu0
        %v7176 = vadd.f32 0.0, %v7175
        %7177 = vmatmul.f32.gmra.mxu0 %v7066
        %v7178 = vpop.f32.mrf.mxu0
        %v7179 = vadd.f32 0.0, %v7178
        %7180 = vmatmul.f32.gmra.mxu0 %v7069
        %v7181 = vpop.f32.mrf.mxu0
        %v7182 = vadd.f32 0.0, %v7181
        %7183 = vmatmul.f32.gmra.mxu0 %v7072
        %v7184 = vpop.f32.mrf.mxu0
        %v7185 = vadd.f32 0.0, %v7184
        %7186 = vmatmul.f32.gmra.mxu0 %v7075
        %v7187 = vpop.f32.mrf.mxu0
        %v7188 = vadd.f32 0.0, %v7187
        %7189 = vmatmul.f32.gmra.mxu0 %v7078
        %v7190 = vpop.f32.mrf.mxu0
        %v7191 = vadd.f32 0.0, %v7190
        %7192 = vmatmul.f32.gmra.mxu0 %v7081
        %v7193 = vpop.f32.mrf.mxu0
        %v7194 = vadd.f32 0.0, %v7193
        %7195 = vmatmul.f32.gmra.mxu0 %v7084
        %v7196 = vpop.f32.mrf.mxu0
        %v7197 = vadd.f32 0.0, %v7196
        %7198 = vmatmul.f32.gmra.mxu0 %v7087
        %v7199 = vpop.f32.mrf.mxu0
        %v7200 = vadd.f32 0.0, %v7199
        %7201 = vmatmul.f32.gmra.mxu0 %v7090
        %v7202 = vpop.f32.mrf.mxu0
        %v7203 = vadd.f32 0.0, %v7202
        %7204 = vmatmul.f32.gmra.mxu0 %v7093
        %v7205 = vpop.f32.mrf.mxu0
        %v7206 = vadd.f32 0.0, %v7205
        %7207 = vmatmul.f32.gmra.mxu0 %v7096
        %v7208 = vpop.f32.mrf.mxu0
        %v7209 = vadd.f32 0.0, %v7208
        %7210 = vmatmul.f32.gmra.mxu0 %v7099
        %v7211 = vpop.f32.mrf.mxu0
        %v7212 = vadd.f32 0.0, %v7211
        %7213 = vmatmul.f32.gmra.mxu0 %v7102
        %v7214 = vpop.f32.mrf.mxu0
        %v7215 = vadd.f32 0.0, %v7214
        %7216 = vmatmul.f32.gmra.mxu0 %v7105
        %v7217 = vpop.f32.mrf.mxu0
        %v7218 = vadd.f32 0.0, %v7217
        %7219 = vmatmul.f32.gmra.mxu0 %v7108
        %v7220 = vpop.f32.mrf.mxu0
        %v7221 = vadd.f32 0.0, %v7220
        %7222 = vmatmul.f32.gmra.mxu0 %v7111
        %v7223 = vpop.f32.mrf.mxu0
        %v7224 = vadd.f32 0.0, %v7223
        %7225 = vmatmul.f32.gmra.mxu0 %v7114
        %v7226 = vpop.f32.mrf.mxu0
        %v7227 = vadd.f32 0.0, %v7226
        %7228 = vmatmul.f32.gmra.mxu0 %v7117
        %v7229 = vpop.f32.mrf.mxu0
        %v7230 = vadd.f32 0.0, %v7229
        %7231 = vmatmul.f32.gmra.mxu0 %v7120
        %v7232 = vpop.f32.mrf.mxu0
        %v7233 = vadd.f32 0.0, %v7232
        %7234 = vmatmul.f32.gmra.mxu0 %v7123
        %v7235 = vpop.f32.mrf.mxu0
        %v7236 = vadd.f32 0.0, %v7235
        %7237 = vmatmul.f32.gmra.mxu0 %v7126
        %v7238 = vpop.f32.mrf.mxu0
        %v7239 = vadd.f32 0.0, %v7238
        %7240 = vmatmul.f32.gmra.mxu0 %v7129
        %v7241 = vpop.f32.mrf.mxu0
        %v7242 = vadd.f32 0.0, %v7241
        %7243 = vdwg.mxu0
        %v7244 = vadd.f32 %v6962, %v7149
        %v7245 = vadd.f32 %v6963, %v7152
        %v7246 = vadd.f32 %v6964, %v7155
        %v7247 = vadd.f32 %v6965, %v7158
        %v7248 = vadd.f32 %v6966, %v7161
        %v7249 = vadd.f32 %v6967, %v7164
        %v7250 = vadd.f32 %v6968, %v7167
        %v7251 = vadd.f32 %v6969, %v7170
        %v7252 = vadd.f32 %v6970, %v7173
        %v7253 = vadd.f32 %v6971, %v7176
        %v7254 = vadd.f32 %v6972, %v7179
        %v7255 = vadd.f32 %v6973, %v7182
        %v7256 = vadd.f32 %v6974, %v7185
        %v7257 = vadd.f32 %v6975, %v7188
        %v7258 = vadd.f32 %v6976, %v7191
        %v7259 = vadd.f32 %v6977, %v7194
        %v7260 = vadd.f32 %v6978, %v7197
        %v7261 = vadd.f32 %v6979, %v7200
        %v7262 = vadd.f32 %v6980, %v7203
        %v7263 = vadd.f32 %v6981, %v7206
        %v7264 = vadd.f32 %v6982, %v7209
        %v7265 = vadd.f32 %v6983, %v7212
        %v7266 = vadd.f32 %v6984, %v7215
        %v7267 = vadd.f32 %v6985, %v7218
        %v7268 = vadd.f32 %v6986, %v7221
        %v7269 = vadd.f32 %v6987, %v7224
        %v7270 = vadd.f32 %v6988, %v7227
        %v7271 = vadd.f32 %v6989, %v7230
        %v7272 = vadd.f32 %v6990, %v7233
        %v7273 = vadd.f32 %v6991, %v7236
        %v7274 = vadd.f32 %v6992, %v7239
        %v7275 = vadd.f32 %v6993, %v7242
        %v7276 = vld [vmem:[%s326 + $0x9] sm:$0xff]
        %v7277 = vld [vmem:[%s326 + $0x11] sm:$0xff]
        %v7278 = vld [vmem:[%s326 + $0x29] sm:$0xff]
        %v7279 = vld [vmem:[%s326 + $0x31] sm:$0xff]
        %v7280 = vld [vmem:[%s326 + $0x49] sm:$0xff]
        %v7281 = vld [vmem:[%s326 + $0x51] sm:$0xff]
        %v7282 = vld [vmem:[%s326 + $0x69] sm:$0xff]
        %v7283 = vld [vmem:[%s326 + $0x71] sm:$0xff]
        %v7284 = vld [vmem:[%s326 + $0x89] sm:$0xff]
        %v7285 = vld [vmem:[%s326 + $0x91] sm:$0xff]
        %v7286 = vld [vmem:[%s326 + $0xa9] sm:$0xff]
        %v7287 = vld [vmem:[%s326 + $0xb1] sm:$0xff]
        %v7288 = vld [vmem:[%s326 + $0xc9] sm:$0xff]
        %v7289 = vld [vmem:[%s326 + $0xd1] sm:$0xff]
        %v7290 = vld [vmem:[%s326 + $0xe9] sm:$0xff]
        %v7291 = vld [vmem:[%s326 + $0xf1] sm:$0xff]
        %v7292 = vld [vmem:[%s326 + $0x109] sm:$0xff]
        %v7293 = vld [vmem:[%s326 + $0x111] sm:$0xff]
        %v7294 = vld [vmem:[%s326 + $0x129] sm:$0xff]
        %v7295 = vld [vmem:[%s326 + $0x131] sm:$0xff]
        %v7296 = vld [vmem:[%s326 + $0x149] sm:$0xff]
        %v7297 = vld [vmem:[%s326 + $0x151] sm:$0xff]
        %v7298 = vld [vmem:[%s326 + $0x169] sm:$0xff]
        %v7299 = vld [vmem:[%s326 + $0x171] sm:$0xff]
        %v7300 = vld [vmem:[%s326 + $0x189] sm:$0xff]
        %v7301 = vld [vmem:[%s326 + $0x191] sm:$0xff]
        %v7302 = vld [vmem:[%s326 + $0x1a9] sm:$0xff]
        %v7303 = vld [vmem:[%s326 + $0x1b1] sm:$0xff]
        %v7304 = vld [vmem:[%s326 + $0x1c9] sm:$0xff]
        %v7305 = vld [vmem:[%s326 + $0x1d1] sm:$0xff]
        %v7306 = vld [vmem:[%s326 + $0x1e9] sm:$0xff]
        %v7307 = vld [vmem:[%s326 + $0x1f1] sm:$0xff]
        %s7308 = scalar_lea.vmem %s3, 1472
        %v7309 = vld [vmem:[%s7308] sm:$0xff]
        %v7310 = vld [vmem:[%s7308 + $0x8] sm:$0xff]
        %v7311 = vld [vmem:[%s7308 + $0x10] sm:$0xff]
        %v7312 = vld [vmem:[%s7308 + $0x18] sm:$0xff]
        %v7313 = vld [vmem:[%s7308 + $0x20] sm:$0xff]
        %v7314 = vld [vmem:[%s7308 + $0x28] sm:$0xff]
        %v7315 = vld [vmem:[%s7308 + $0x30] sm:$0xff]
        %v7316 = vld [vmem:[%s7308 + $0x38] sm:$0xff]
        %v7318 = vsel %vm316, %v7276, 0
        %v7321 = vsel %vm316, %v7277, 0
        %v7324 = vsel %vm316, %v7278, 0
        %v7327 = vsel %vm316, %v7279, 0
        %v7330 = vsel %vm316, %v7280, 0
        %v7333 = vsel %vm316, %v7281, 0
        %v7336 = vsel %vm316, %v7282, 0
        %v7339 = vsel %vm316, %v7283, 0
        %v7342 = vsel %vm316, %v7284, 0
        %v7345 = vsel %vm316, %v7285, 0
        %v7348 = vsel %vm316, %v7286, 0
        %v7351 = vsel %vm316, %v7287, 0
        %v7354 = vsel %vm316, %v7288, 0
        %v7357 = vsel %vm316, %v7289, 0
        %v7360 = vsel %vm316, %v7290, 0
        %v7363 = vsel %vm316, %v7291, 0
        %v7366 = vsel %vm316, %v7292, 0
        %v7369 = vsel %vm316, %v7293, 0
        %v7372 = vsel %vm316, %v7294, 0
        %v7375 = vsel %vm316, %v7295, 0
        %v7378 = vsel %vm316, %v7296, 0
        %v7381 = vsel %vm316, %v7297, 0
        %v7384 = vsel %vm316, %v7298, 0
        %v7387 = vsel %vm316, %v7299, 0
        %v7390 = vsel %vm316, %v7300, 0
        %v7393 = vsel %vm316, %v7301, 0
        %v7396 = vsel %vm316, %v7302, 0
        %v7399 = vsel %vm316, %v7303, 0
        %v7402 = vsel %vm316, %v7304, 0
        %v7405 = vsel %vm316, %v7305, 0
        %v7408 = vsel %vm316, %v7306, 0
        %v7411 = vsel %vm316, %v7307, 0
        %7413 = vmatpush.msra.mxu0 0.0
        %7414 = vmatpush.msra.mxu0 0.0
        %7415 = vmatpush.msra.mxu0 0.0
        %7416 = vmatpush.msra.mxu0 0.0
        %7417 = vmatpush.msra.mxu0 0.0
        %7418 = vmatpush.msra.mxu0 0.0
        %7419 = vmatpush.msra.mxu0 0.0
        %7420 = vmatpush.msra.mxu0 0.0
        %7421 = vmatpush.msra.mxu0 %v7316
        %7422 = vmatpush.msra.mxu0 %v7315
        %7423 = vmatpush.msra.mxu0 %v7314
        %7424 = vmatpush.msra.mxu0 %v7313
        %7425 = vmatpush.msra.mxu0 %v7312
        %7426 = vmatpush.msra.mxu0 %v7311
        %7427 = vmatpush.msra.mxu0 %v7310
        %7428 = vmatpush.msra.mxu0 %v7309
        %7429 = vmatmul.f32.gmra.mxu0 %v7318
        %v7430 = vpop.f32.mrf.mxu0
        %v7431 = vadd.f32 0.0, %v7430
        %7432 = vmatmul.f32.gmra.mxu0 %v7321
        %v7433 = vpop.f32.mrf.mxu0
        %v7434 = vadd.f32 0.0, %v7433
        %7435 = vmatmul.f32.gmra.mxu0 %v7324
        %v7436 = vpop.f32.mrf.mxu0
        %v7437 = vadd.f32 0.0, %v7436
        %7438 = vmatmul.f32.gmra.mxu0 %v7327
        %v7439 = vpop.f32.mrf.mxu0
        %v7440 = vadd.f32 0.0, %v7439
        %7441 = vmatmul.f32.gmra.mxu0 %v7330
        %v7442 = vpop.f32.mrf.mxu0
        %v7443 = vadd.f32 0.0, %v7442
        %7444 = vmatmul.f32.gmra.mxu0 %v7333
        %v7445 = vpop.f32.mrf.mxu0
        %v7446 = vadd.f32 0.0, %v7445
        %7447 = vmatmul.f32.gmra.mxu0 %v7336
        %v7448 = vpop.f32.mrf.mxu0
        %v7449 = vadd.f32 0.0, %v7448
        %7450 = vmatmul.f32.gmra.mxu0 %v7339
        %v7451 = vpop.f32.mrf.mxu0
        %v7452 = vadd.f32 0.0, %v7451
        %7453 = vmatmul.f32.gmra.mxu0 %v7342
        %v7454 = vpop.f32.mrf.mxu0
        %v7455 = vadd.f32 0.0, %v7454
        %7456 = vmatmul.f32.gmra.mxu0 %v7345
        %v7457 = vpop.f32.mrf.mxu0
        %v7458 = vadd.f32 0.0, %v7457
        %7459 = vmatmul.f32.gmra.mxu0 %v7348
        %v7460 = vpop.f32.mrf.mxu0
        %v7461 = vadd.f32 0.0, %v7460
        %7462 = vmatmul.f32.gmra.mxu0 %v7351
        %v7463 = vpop.f32.mrf.mxu0
        %v7464 = vadd.f32 0.0, %v7463
        %7465 = vmatmul.f32.gmra.mxu0 %v7354
        %v7466 = vpop.f32.mrf.mxu0
        %v7467 = vadd.f32 0.0, %v7466
        %7468 = vmatmul.f32.gmra.mxu0 %v7357
        %v7469 = vpop.f32.mrf.mxu0
        %v7470 = vadd.f32 0.0, %v7469
        %7471 = vmatmul.f32.gmra.mxu0 %v7360
        %v7472 = vpop.f32.mrf.mxu0
        %v7473 = vadd.f32 0.0, %v7472
        %7474 = vmatmul.f32.gmra.mxu0 %v7363
        %v7475 = vpop.f32.mrf.mxu0
        %v7476 = vadd.f32 0.0, %v7475
        %7477 = vmatmul.f32.gmra.mxu0 %v7366
        %v7478 = vpop.f32.mrf.mxu0
        %v7479 = vadd.f32 0.0, %v7478
        %7480 = vmatmul.f32.gmra.mxu0 %v7369
        %v7481 = vpop.f32.mrf.mxu0
        %v7482 = vadd.f32 0.0, %v7481
        %7483 = vmatmul.f32.gmra.mxu0 %v7372
        %v7484 = vpop.f32.mrf.mxu0
        %v7485 = vadd.f32 0.0, %v7484
        %7486 = vmatmul.f32.gmra.mxu0 %v7375
        %v7487 = vpop.f32.mrf.mxu0
        %v7488 = vadd.f32 0.0, %v7487
        %7489 = vmatmul.f32.gmra.mxu0 %v7378
        %v7490 = vpop.f32.mrf.mxu0
        %v7491 = vadd.f32 0.0, %v7490
        %7492 = vmatmul.f32.gmra.mxu0 %v7381
        %v7493 = vpop.f32.mrf.mxu0
        %v7494 = vadd.f32 0.0, %v7493
        %7495 = vmatmul.f32.gmra.mxu0 %v7384
        %v7496 = vpop.f32.mrf.mxu0
        %v7497 = vadd.f32 0.0, %v7496
        %7498 = vmatmul.f32.gmra.mxu0 %v7387
        %v7499 = vpop.f32.mrf.mxu0
        %v7500 = vadd.f32 0.0, %v7499
        %7501 = vmatmul.f32.gmra.mxu0 %v7390
        %v7502 = vpop.f32.mrf.mxu0
        %v7503 = vadd.f32 0.0, %v7502
        %7504 = vmatmul.f32.gmra.mxu0 %v7393
        %v7505 = vpop.f32.mrf.mxu0
        %v7506 = vadd.f32 0.0, %v7505
        %7507 = vmatmul.f32.gmra.mxu0 %v7396
        %v7508 = vpop.f32.mrf.mxu0
        %v7509 = vadd.f32 0.0, %v7508
        %7510 = vmatmul.f32.gmra.mxu0 %v7399
        %v7511 = vpop.f32.mrf.mxu0
        %v7512 = vadd.f32 0.0, %v7511
        %7513 = vmatmul.f32.gmra.mxu0 %v7402
        %v7514 = vpop.f32.mrf.mxu0
        %v7515 = vadd.f32 0.0, %v7514
        %7516 = vmatmul.f32.gmra.mxu0 %v7405
        %v7517 = vpop.f32.mrf.mxu0
        %v7518 = vadd.f32 0.0, %v7517
        %7519 = vmatmul.f32.gmra.mxu0 %v7408
        %v7520 = vpop.f32.mrf.mxu0
        %v7521 = vadd.f32 0.0, %v7520
        %7522 = vmatmul.f32.gmra.mxu0 %v7411
        %v7523 = vpop.f32.mrf.mxu0
        %v7524 = vadd.f32 0.0, %v7523
        %7525 = vdwg.mxu0
        %v7526 = vadd.f32 %v7244, %v7431
        %v7527 = vadd.f32 %v7245, %v7434
        %v7528 = vadd.f32 %v7246, %v7437
        %v7529 = vadd.f32 %v7247, %v7440
        %v7530 = vadd.f32 %v7248, %v7443
        %v7531 = vadd.f32 %v7249, %v7446
        %v7532 = vadd.f32 %v7250, %v7449
        %v7533 = vadd.f32 %v7251, %v7452
        %v7534 = vadd.f32 %v7252, %v7455
        %v7535 = vadd.f32 %v7253, %v7458
        %v7536 = vadd.f32 %v7254, %v7461
        %v7537 = vadd.f32 %v7255, %v7464
        %v7538 = vadd.f32 %v7256, %v7467
        %v7539 = vadd.f32 %v7257, %v7470
        %v7540 = vadd.f32 %v7258, %v7473
        %v7541 = vadd.f32 %v7259, %v7476
        %v7542 = vadd.f32 %v7260, %v7479
        %v7543 = vadd.f32 %v7261, %v7482
        %v7544 = vadd.f32 %v7262, %v7485
        %v7545 = vadd.f32 %v7263, %v7488
        %v7546 = vadd.f32 %v7264, %v7491
        %v7547 = vadd.f32 %v7265, %v7494
        %v7548 = vadd.f32 %v7266, %v7497
        %v7549 = vadd.f32 %v7267, %v7500
        %v7550 = vadd.f32 %v7268, %v7503
        %v7551 = vadd.f32 %v7269, %v7506
        %v7552 = vadd.f32 %v7270, %v7509
        %v7553 = vadd.f32 %v7271, %v7512
        %v7554 = vadd.f32 %v7272, %v7515
        %v7555 = vadd.f32 %v7273, %v7518
        %v7556 = vadd.f32 %v7274, %v7521
        %v7557 = vadd.f32 %v7275, %v7524
        %v7558 = vld [vmem:[%s2343 + $0x7] sm:$0xff]
        %v7559 = vld [vmem:[%s2343 + $0xf] sm:$0xff]
        %v7560 = vld [vmem:[%s2343 + $0x27] sm:$0xff]
        %v7561 = vld [vmem:[%s2343 + $0x2f] sm:$0xff]
        %v7562 = vld [vmem:[%s2343 + $0x47] sm:$0xff]
        %v7563 = vld [vmem:[%s2343 + $0x4f] sm:$0xff]
        %v7564 = vld [vmem:[%s2343 + $0x67] sm:$0xff]
        %v7565 = vld [vmem:[%s2343 + $0x6f] sm:$0xff]
        %v7566 = vld [vmem:[%s2343 + $0x87] sm:$0xff]
        %v7567 = vld [vmem:[%s2343 + $0x8f] sm:$0xff]
        %v7568 = vld [vmem:[%s2343 + $0xa7] sm:$0xff]
        %v7569 = vld [vmem:[%s2343 + $0xaf] sm:$0xff]
        %v7570 = vld [vmem:[%s2343 + $0xc7] sm:$0xff]
        %v7571 = vld [vmem:[%s2343 + $0xcf] sm:$0xff]
        %v7572 = vld [vmem:[%s2343 + $0xe7] sm:$0xff]
        %v7573 = vld [vmem:[%s2343 + $0xef] sm:$0xff]
        %v7574 = vld [vmem:[%s2343 + $0x107] sm:$0xff]
        %v7575 = vld [vmem:[%s2343 + $0x10f] sm:$0xff]
        %v7576 = vld [vmem:[%s2343 + $0x127] sm:$0xff]
        %v7577 = vld [vmem:[%s2343 + $0x12f] sm:$0xff]
        %v7578 = vld [vmem:[%s2343 + $0x147] sm:$0xff]
        %v7579 = vld [vmem:[%s2343 + $0x14f] sm:$0xff]
        %v7580 = vld [vmem:[%s2343 + $0x167] sm:$0xff]
        %v7581 = vld [vmem:[%s2343 + $0x16f] sm:$0xff]
        %v7582 = vld [vmem:[%s2343 + $0x187] sm:$0xff]
        %v7583 = vld [vmem:[%s2343 + $0x18f] sm:$0xff]
        %v7584 = vld [vmem:[%s2343 + $0x1a7] sm:$0xff]
        %v7585 = vld [vmem:[%s2343 + $0x1af] sm:$0xff]
        %v7586 = vld [vmem:[%s2343 + $0x1c7] sm:$0xff]
        %v7587 = vld [vmem:[%s2343 + $0x1cf] sm:$0xff]
        %v7588 = vld [vmem:[%s2343 + $0x1e7] sm:$0xff]
        %v7589 = vld [vmem:[%s2343 + $0x1ef] sm:$0xff]
        %s7590 = scalar_lea.vmem %s3, 1536
        %v7591 = vld [vmem:[%s7590] sm:$0xff]
        %v7592 = vld [vmem:[%s7590 + $0x8] sm:$0xff]
        %v7593 = vld [vmem:[%s7590 + $0x10] sm:$0xff]
        %v7594 = vld [vmem:[%s7590 + $0x18] sm:$0xff]
        %v7595 = vld [vmem:[%s7590 + $0x20] sm:$0xff]
        %v7596 = vld [vmem:[%s7590 + $0x28] sm:$0xff]
        %v7597 = vld [vmem:[%s7590 + $0x30] sm:$0xff]
        %v7598 = vld [vmem:[%s7590 + $0x38] sm:$0xff]
        %v7600 = vsel %vm316, %v7558, 0
        %v7603 = vsel %vm316, %v7559, 0
        %v7606 = vsel %vm316, %v7560, 0
        %v7609 = vsel %vm316, %v7561, 0
        %v7612 = vsel %vm316, %v7562, 0
        %v7615 = vsel %vm316, %v7563, 0
        %v7618 = vsel %vm316, %v7564, 0
        %v7621 = vsel %vm316, %v7565, 0
        %v7624 = vsel %vm316, %v7566, 0
        %v7627 = vsel %vm316, %v7567, 0
        %v7630 = vsel %vm316, %v7568, 0
        %v7633 = vsel %vm316, %v7569, 0
        %v7636 = vsel %vm316, %v7570, 0
        %v7639 = vsel %vm316, %v7571, 0
        %v7642 = vsel %vm316, %v7572, 0
        %v7645 = vsel %vm316, %v7573, 0
        %v7648 = vsel %vm316, %v7574, 0
        %v7651 = vsel %vm316, %v7575, 0
        %v7654 = vsel %vm316, %v7576, 0
        %v7657 = vsel %vm316, %v7577, 0
        %v7660 = vsel %vm316, %v7578, 0
        %v7663 = vsel %vm316, %v7579, 0
        %v7666 = vsel %vm316, %v7580, 0
        %v7669 = vsel %vm316, %v7581, 0
        %v7672 = vsel %vm316, %v7582, 0
        %v7675 = vsel %vm316, %v7583, 0
        %v7678 = vsel %vm316, %v7584, 0
        %v7681 = vsel %vm316, %v7585, 0
        %v7684 = vsel %vm316, %v7586, 0
        %v7687 = vsel %vm316, %v7587, 0
        %v7690 = vsel %vm316, %v7588, 0
        %v7693 = vsel %vm316, %v7589, 0
        %7695 = vmatpush.msra.mxu0 0.0
        %7696 = vmatpush.msra.mxu0 0.0
        %7697 = vmatpush.msra.mxu0 0.0
        %7698 = vmatpush.msra.mxu0 0.0
        %7699 = vmatpush.msra.mxu0 0.0
        %7700 = vmatpush.msra.mxu0 0.0
        %7701 = vmatpush.msra.mxu0 0.0
        %7702 = vmatpush.msra.mxu0 0.0
        %7703 = vmatpush.msra.mxu0 %v7598
        %7704 = vmatpush.msra.mxu0 %v7597
        %7705 = vmatpush.msra.mxu0 %v7596
        %7706 = vmatpush.msra.mxu0 %v7595
        %7707 = vmatpush.msra.mxu0 %v7594
        %7708 = vmatpush.msra.mxu0 %v7593
        %7709 = vmatpush.msra.mxu0 %v7592
        %7710 = vmatpush.msra.mxu0 %v7591
        %7711 = vmatmul.f32.gmra.mxu0 %v7600
        %v7712 = vpop.f32.mrf.mxu0
        %v7713 = vadd.f32 0.0, %v7712
        %7714 = vmatmul.f32.gmra.mxu0 %v7603
        %v7715 = vpop.f32.mrf.mxu0
        %v7716 = vadd.f32 0.0, %v7715
        %7717 = vmatmul.f32.gmra.mxu0 %v7606
        %v7718 = vpop.f32.mrf.mxu0
        %v7719 = vadd.f32 0.0, %v7718
        %7720 = vmatmul.f32.gmra.mxu0 %v7609
        %v7721 = vpop.f32.mrf.mxu0
        %v7722 = vadd.f32 0.0, %v7721
        %7723 = vmatmul.f32.gmra.mxu0 %v7612
        %v7724 = vpop.f32.mrf.mxu0
        %v7725 = vadd.f32 0.0, %v7724
        %7726 = vmatmul.f32.gmra.mxu0 %v7615
        %v7727 = vpop.f32.mrf.mxu0
        %v7728 = vadd.f32 0.0, %v7727
        %7729 = vmatmul.f32.gmra.mxu0 %v7618
        %v7730 = vpop.f32.mrf.mxu0
        %v7731 = vadd.f32 0.0, %v7730
        %7732 = vmatmul.f32.gmra.mxu0 %v7621
        %v7733 = vpop.f32.mrf.mxu0
        %v7734 = vadd.f32 0.0, %v7733
        %7735 = vmatmul.f32.gmra.mxu0 %v7624
        %v7736 = vpop.f32.mrf.mxu0
        %v7737 = vadd.f32 0.0, %v7736
        %7738 = vmatmul.f32.gmra.mxu0 %v7627
        %v7739 = vpop.f32.mrf.mxu0
        %v7740 = vadd.f32 0.0, %v7739
        %7741 = vmatmul.f32.gmra.mxu0 %v7630
        %v7742 = vpop.f32.mrf.mxu0
        %v7743 = vadd.f32 0.0, %v7742
        %7744 = vmatmul.f32.gmra.mxu0 %v7633
        %v7745 = vpop.f32.mrf.mxu0
        %v7746 = vadd.f32 0.0, %v7745
        %7747 = vmatmul.f32.gmra.mxu0 %v7636
        %v7748 = vpop.f32.mrf.mxu0
        %v7749 = vadd.f32 0.0, %v7748
        %7750 = vmatmul.f32.gmra.mxu0 %v7639
        %v7751 = vpop.f32.mrf.mxu0
        %v7752 = vadd.f32 0.0, %v7751
        %7753 = vmatmul.f32.gmra.mxu0 %v7642
        %v7754 = vpop.f32.mrf.mxu0
        %v7755 = vadd.f32 0.0, %v7754
        %7756 = vmatmul.f32.gmra.mxu0 %v7645
        %v7757 = vpop.f32.mrf.mxu0
        %v7758 = vadd.f32 0.0, %v7757
        %7759 = vmatmul.f32.gmra.mxu0 %v7648
        %v7760 = vpop.f32.mrf.mxu0
        %v7761 = vadd.f32 0.0, %v7760
        %7762 = vmatmul.f32.gmra.mxu0 %v7651
        %v7763 = vpop.f32.mrf.mxu0
        %v7764 = vadd.f32 0.0, %v7763
        %7765 = vmatmul.f32.gmra.mxu0 %v7654
        %v7766 = vpop.f32.mrf.mxu0
        %v7767 = vadd.f32 0.0, %v7766
        %7768 = vmatmul.f32.gmra.mxu0 %v7657
        %v7769 = vpop.f32.mrf.mxu0
        %v7770 = vadd.f32 0.0, %v7769
        %7771 = vmatmul.f32.gmra.mxu0 %v7660
        %v7772 = vpop.f32.mrf.mxu0
        %v7773 = vadd.f32 0.0, %v7772
        %7774 = vmatmul.f32.gmra.mxu0 %v7663
        %v7775 = vpop.f32.mrf.mxu0
        %v7776 = vadd.f32 0.0, %v7775
        %7777 = vmatmul.f32.gmra.mxu0 %v7666
        %v7778 = vpop.f32.mrf.mxu0
        %v7779 = vadd.f32 0.0, %v7778
        %7780 = vmatmul.f32.gmra.mxu0 %v7669
        %v7781 = vpop.f32.mrf.mxu0
        %v7782 = vadd.f32 0.0, %v7781
        %7783 = vmatmul.f32.gmra.mxu0 %v7672
        %v7784 = vpop.f32.mrf.mxu0
        %v7785 = vadd.f32 0.0, %v7784
        %7786 = vmatmul.f32.gmra.mxu0 %v7675
        %v7787 = vpop.f32.mrf.mxu0
        %v7788 = vadd.f32 0.0, %v7787
        %7789 = vmatmul.f32.gmra.mxu0 %v7678
        %v7790 = vpop.f32.mrf.mxu0
        %v7791 = vadd.f32 0.0, %v7790
        %7792 = vmatmul.f32.gmra.mxu0 %v7681
        %v7793 = vpop.f32.mrf.mxu0
        %v7794 = vadd.f32 0.0, %v7793
        %7795 = vmatmul.f32.gmra.mxu0 %v7684
        %v7796 = vpop.f32.mrf.mxu0
        %v7797 = vadd.f32 0.0, %v7796
        %7798 = vmatmul.f32.gmra.mxu0 %v7687
        %v7799 = vpop.f32.mrf.mxu0
        %v7800 = vadd.f32 0.0, %v7799
        %7801 = vmatmul.f32.gmra.mxu0 %v7690
        %v7802 = vpop.f32.mrf.mxu0
        %v7803 = vadd.f32 0.0, %v7802
        %7804 = vmatmul.f32.gmra.mxu0 %v7693
        %v7805 = vpop.f32.mrf.mxu0
        %v7806 = vadd.f32 0.0, %v7805
        %7807 = vdwg.mxu0
        %v7808 = vadd.f32 %v7526, %v7713
        %v7809 = vadd.f32 %v7527, %v7716
        %v7810 = vadd.f32 %v7528, %v7719
        %v7811 = vadd.f32 %v7529, %v7722
        %v7812 = vadd.f32 %v7530, %v7725
        %v7813 = vadd.f32 %v7531, %v7728
        %v7814 = vadd.f32 %v7532, %v7731
        %v7815 = vadd.f32 %v7533, %v7734
        %v7816 = vadd.f32 %v7534, %v7737
        %v7817 = vadd.f32 %v7535, %v7740
        %v7818 = vadd.f32 %v7536, %v7743
        %v7819 = vadd.f32 %v7537, %v7746
        %v7820 = vadd.f32 %v7538, %v7749
        %v7821 = vadd.f32 %v7539, %v7752
        %v7822 = vadd.f32 %v7540, %v7755
        %v7823 = vadd.f32 %v7541, %v7758
        %v7824 = vadd.f32 %v7542, %v7761
        %v7825 = vadd.f32 %v7543, %v7764
        %v7826 = vadd.f32 %v7544, %v7767
        %v7827 = vadd.f32 %v7545, %v7770
        %v7828 = vadd.f32 %v7546, %v7773
        %v7829 = vadd.f32 %v7547, %v7776
        %v7830 = vadd.f32 %v7548, %v7779
        %v7831 = vadd.f32 %v7549, %v7782
        %v7832 = vadd.f32 %v7550, %v7785
        %v7833 = vadd.f32 %v7551, %v7788
        %v7834 = vadd.f32 %v7552, %v7791
        %v7835 = vadd.f32 %v7553, %v7794
        %v7836 = vadd.f32 %v7554, %v7797
        %v7837 = vadd.f32 %v7555, %v7800
        %v7838 = vadd.f32 %v7556, %v7803
        %v7839 = vadd.f32 %v7557, %v7806
        %v7840 = vld [vmem:[%s2343 + $0x8] sm:$0xff]
        %v7841 = vld [vmem:[%s2343 + $0x10] sm:$0xff]
        %v7842 = vld [vmem:[%s2343 + $0x28] sm:$0xff]
        %v7843 = vld [vmem:[%s2343 + $0x30] sm:$0xff]
        %v7844 = vld [vmem:[%s2343 + $0x48] sm:$0xff]
        %v7845 = vld [vmem:[%s2343 + $0x50] sm:$0xff]
        %v7846 = vld [vmem:[%s2343 + $0x68] sm:$0xff]
        %v7847 = vld [vmem:[%s2343 + $0x70] sm:$0xff]
        %v7848 = vld [vmem:[%s2343 + $0x88] sm:$0xff]
        %v7849 = vld [vmem:[%s2343 + $0x90] sm:$0xff]
        %v7850 = vld [vmem:[%s2343 + $0xa8] sm:$0xff]
        %v7851 = vld [vmem:[%s2343 + $0xb0] sm:$0xff]
        %v7852 = vld [vmem:[%s2343 + $0xc8] sm:$0xff]
        %v7853 = vld [vmem:[%s2343 + $0xd0] sm:$0xff]
        %v7854 = vld [vmem:[%s2343 + $0xe8] sm:$0xff]
        %v7855 = vld [vmem:[%s2343 + $0xf0] sm:$0xff]
        %v7856 = vld [vmem:[%s2343 + $0x108] sm:$0xff]
        %v7857 = vld [vmem:[%s2343 + $0x110] sm:$0xff]
        %v7858 = vld [vmem:[%s2343 + $0x128] sm:$0xff]
        %v7859 = vld [vmem:[%s2343 + $0x130] sm:$0xff]
        %v7860 = vld [vmem:[%s2343 + $0x148] sm:$0xff]
        %v7861 = vld [vmem:[%s2343 + $0x150] sm:$0xff]
        %v7862 = vld [vmem:[%s2343 + $0x168] sm:$0xff]
        %v7863 = vld [vmem:[%s2343 + $0x170] sm:$0xff]
        %v7864 = vld [vmem:[%s2343 + $0x188] sm:$0xff]
        %v7865 = vld [vmem:[%s2343 + $0x190] sm:$0xff]
        %v7866 = vld [vmem:[%s2343 + $0x1a8] sm:$0xff]
        %v7867 = vld [vmem:[%s2343 + $0x1b0] sm:$0xff]
        %v7868 = vld [vmem:[%s2343 + $0x1c8] sm:$0xff]
        %v7869 = vld [vmem:[%s2343 + $0x1d0] sm:$0xff]
        %v7870 = vld [vmem:[%s2343 + $0x1e8] sm:$0xff]
        %v7871 = vld [vmem:[%s2343 + $0x1f0] sm:$0xff]
        %s7872 = scalar_lea.vmem %s3, 1600
        %v7873 = vld [vmem:[%s7872] sm:$0xff]
        %v7874 = vld [vmem:[%s7872 + $0x8] sm:$0xff]
        %v7875 = vld [vmem:[%s7872 + $0x10] sm:$0xff]
        %v7876 = vld [vmem:[%s7872 + $0x18] sm:$0xff]
        %v7877 = vld [vmem:[%s7872 + $0x20] sm:$0xff]
        %v7878 = vld [vmem:[%s7872 + $0x28] sm:$0xff]
        %v7879 = vld [vmem:[%s7872 + $0x30] sm:$0xff]
        %v7880 = vld [vmem:[%s7872 + $0x38] sm:$0xff]
        %v7882 = vsel %vm316, %v7840, 0
        %v7885 = vsel %vm316, %v7841, 0
        %v7888 = vsel %vm316, %v7842, 0
        %v7891 = vsel %vm316, %v7843, 0
        %v7894 = vsel %vm316, %v7844, 0
        %v7897 = vsel %vm316, %v7845, 0
        %v7900 = vsel %vm316, %v7846, 0
        %v7903 = vsel %vm316, %v7847, 0
        %v7906 = vsel %vm316, %v7848, 0
        %v7909 = vsel %vm316, %v7849, 0
        %v7912 = vsel %vm316, %v7850, 0
        %v7915 = vsel %vm316, %v7851, 0
        %v7918 = vsel %vm316, %v7852, 0
        %v7921 = vsel %vm316, %v7853, 0
        %v7924 = vsel %vm316, %v7854, 0
        %v7927 = vsel %vm316, %v7855, 0
        %v7930 = vsel %vm316, %v7856, 0
        %v7933 = vsel %vm316, %v7857, 0
        %v7936 = vsel %vm316, %v7858, 0
        %v7939 = vsel %vm316, %v7859, 0
        %v7942 = vsel %vm316, %v7860, 0
        %v7945 = vsel %vm316, %v7861, 0
        %v7948 = vsel %vm316, %v7862, 0
        %v7951 = vsel %vm316, %v7863, 0
        %v7954 = vsel %vm316, %v7864, 0
        %v7957 = vsel %vm316, %v7865, 0
        %v7960 = vsel %vm316, %v7866, 0
        %v7963 = vsel %vm316, %v7867, 0
        %v7966 = vsel %vm316, %v7868, 0
        %v7969 = vsel %vm316, %v7869, 0
        %v7972 = vsel %vm316, %v7870, 0
        %v7975 = vsel %vm316, %v7871, 0
        %7977 = vmatpush.msra.mxu0 0.0
        %7978 = vmatpush.msra.mxu0 0.0
        %7979 = vmatpush.msra.mxu0 0.0
        %7980 = vmatpush.msra.mxu0 0.0
        %7981 = vmatpush.msra.mxu0 0.0
        %7982 = vmatpush.msra.mxu0 0.0
        %7983 = vmatpush.msra.mxu0 0.0
        %7984 = vmatpush.msra.mxu0 0.0
        %7985 = vmatpush.msra.mxu0 %v7880
        %7986 = vmatpush.msra.mxu0 %v7879
        %7987 = vmatpush.msra.mxu0 %v7878
        %7988 = vmatpush.msra.mxu0 %v7877
        %7989 = vmatpush.msra.mxu0 %v7876
        %7990 = vmatpush.msra.mxu0 %v7875
        %7991 = vmatpush.msra.mxu0 %v7874
        %7992 = vmatpush.msra.mxu0 %v7873
        %7993 = vmatmul.f32.gmra.mxu0 %v7882
        %v7994 = vpop.f32.mrf.mxu0
        %v7995 = vadd.f32 0.0, %v7994
        %7996 = vmatmul.f32.gmra.mxu0 %v7885
        %v7997 = vpop.f32.mrf.mxu0
        %v7998 = vadd.f32 0.0, %v7997
        %7999 = vmatmul.f32.gmra.mxu0 %v7888
        %v8000 = vpop.f32.mrf.mxu0
        %v8001 = vadd.f32 0.0, %v8000
        %8002 = vmatmul.f32.gmra.mxu0 %v7891
        %v8003 = vpop.f32.mrf.mxu0
        %v8004 = vadd.f32 0.0, %v8003
        %8005 = vmatmul.f32.gmra.mxu0 %v7894
        %v8006 = vpop.f32.mrf.mxu0
        %v8007 = vadd.f32 0.0, %v8006
        %8008 = vmatmul.f32.gmra.mxu0 %v7897
        %v8009 = vpop.f32.mrf.mxu0
        %v8010 = vadd.f32 0.0, %v8009
        %8011 = vmatmul.f32.gmra.mxu0 %v7900
        %v8012 = vpop.f32.mrf.mxu0
        %v8013 = vadd.f32 0.0, %v8012
        %8014 = vmatmul.f32.gmra.mxu0 %v7903
        %v8015 = vpop.f32.mrf.mxu0
        %v8016 = vadd.f32 0.0, %v8015
        %8017 = vmatmul.f32.gmra.mxu0 %v7906
        %v8018 = vpop.f32.mrf.mxu0
        %v8019 = vadd.f32 0.0, %v8018
        %8020 = vmatmul.f32.gmra.mxu0 %v7909
        %v8021 = vpop.f32.mrf.mxu0
        %v8022 = vadd.f32 0.0, %v8021
        %8023 = vmatmul.f32.gmra.mxu0 %v7912
        %v8024 = vpop.f32.mrf.mxu0
        %v8025 = vadd.f32 0.0, %v8024
        %8026 = vmatmul.f32.gmra.mxu0 %v7915
        %v8027 = vpop.f32.mrf.mxu0
        %v8028 = vadd.f32 0.0, %v8027
        %8029 = vmatmul.f32.gmra.mxu0 %v7918
        %v8030 = vpop.f32.mrf.mxu0
        %v8031 = vadd.f32 0.0, %v8030
        %8032 = vmatmul.f32.gmra.mxu0 %v7921
        %v8033 = vpop.f32.mrf.mxu0
        %v8034 = vadd.f32 0.0, %v8033
        %8035 = vmatmul.f32.gmra.mxu0 %v7924
        %v8036 = vpop.f32.mrf.mxu0
        %v8037 = vadd.f32 0.0, %v8036
        %8038 = vmatmul.f32.gmra.mxu0 %v7927
        %v8039 = vpop.f32.mrf.mxu0
        %v8040 = vadd.f32 0.0, %v8039
        %8041 = vmatmul.f32.gmra.mxu0 %v7930
        %v8042 = vpop.f32.mrf.mxu0
        %v8043 = vadd.f32 0.0, %v8042
        %8044 = vmatmul.f32.gmra.mxu0 %v7933
        %v8045 = vpop.f32.mrf.mxu0
        %v8046 = vadd.f32 0.0, %v8045
        %8047 = vmatmul.f32.gmra.mxu0 %v7936
        %v8048 = vpop.f32.mrf.mxu0
        %v8049 = vadd.f32 0.0, %v8048
        %8050 = vmatmul.f32.gmra.mxu0 %v7939
        %v8051 = vpop.f32.mrf.mxu0
        %v8052 = vadd.f32 0.0, %v8051
        %8053 = vmatmul.f32.gmra.mxu0 %v7942
        %v8054 = vpop.f32.mrf.mxu0
        %v8055 = vadd.f32 0.0, %v8054
        %8056 = vmatmul.f32.gmra.mxu0 %v7945
        %v8057 = vpop.f32.mrf.mxu0
        %v8058 = vadd.f32 0.0, %v8057
        %8059 = vmatmul.f32.gmra.mxu0 %v7948
        %v8060 = vpop.f32.mrf.mxu0
        %v8061 = vadd.f32 0.0, %v8060
        %8062 = vmatmul.f32.gmra.mxu0 %v7951
        %v8063 = vpop.f32.mrf.mxu0
        %v8064 = vadd.f32 0.0, %v8063
        %8065 = vmatmul.f32.gmra.mxu0 %v7954
        %v8066 = vpop.f32.mrf.mxu0
        %v8067 = vadd.f32 0.0, %v8066
        %8068 = vmatmul.f32.gmra.mxu0 %v7957
        %v8069 = vpop.f32.mrf.mxu0
        %v8070 = vadd.f32 0.0, %v8069
        %8071 = vmatmul.f32.gmra.mxu0 %v7960
        %v8072 = vpop.f32.mrf.mxu0
        %v8073 = vadd.f32 0.0, %v8072
        %8074 = vmatmul.f32.gmra.mxu0 %v7963
        %v8075 = vpop.f32.mrf.mxu0
        %v8076 = vadd.f32 0.0, %v8075
        %8077 = vmatmul.f32.gmra.mxu0 %v7966
        %v8078 = vpop.f32.mrf.mxu0
        %v8079 = vadd.f32 0.0, %v8078
        %8080 = vmatmul.f32.gmra.mxu0 %v7969
        %v8081 = vpop.f32.mrf.mxu0
        %v8082 = vadd.f32 0.0, %v8081
        %8083 = vmatmul.f32.gmra.mxu0 %v7972
        %v8084 = vpop.f32.mrf.mxu0
        %v8085 = vadd.f32 0.0, %v8084
        %8086 = vmatmul.f32.gmra.mxu0 %v7975
        %v8087 = vpop.f32.mrf.mxu0
        %v8088 = vadd.f32 0.0, %v8087
        %8089 = vdwg.mxu0
        %v8090 = vadd.f32 %v7808, %v7995
        %v8091 = vadd.f32 %v7809, %v7998
        %v8092 = vadd.f32 %v7810, %v8001
        %v8093 = vadd.f32 %v7811, %v8004
        %v8094 = vadd.f32 %v7812, %v8007
        %v8095 = vadd.f32 %v7813, %v8010
        %v8096 = vadd.f32 %v7814, %v8013
        %v8097 = vadd.f32 %v7815, %v8016
        %v8098 = vadd.f32 %v7816, %v8019
        %v8099 = vadd.f32 %v7817, %v8022
        %v8100 = vadd.f32 %v7818, %v8025
        %v8101 = vadd.f32 %v7819, %v8028
        %v8102 = vadd.f32 %v7820, %v8031
        %v8103 = vadd.f32 %v7821, %v8034
        %v8104 = vadd.f32 %v7822, %v8037
        %v8105 = vadd.f32 %v7823, %v8040
        %v8106 = vadd.f32 %v7824, %v8043
        %v8107 = vadd.f32 %v7825, %v8046
        %v8108 = vadd.f32 %v7826, %v8049
        %v8109 = vadd.f32 %v7827, %v8052
        %v8110 = vadd.f32 %v7828, %v8055
        %v8111 = vadd.f32 %v7829, %v8058
        %v8112 = vadd.f32 %v7830, %v8061
        %v8113 = vadd.f32 %v7831, %v8064
        %v8114 = vadd.f32 %v7832, %v8067
        %v8115 = vadd.f32 %v7833, %v8070
        %v8116 = vadd.f32 %v7834, %v8073
        %v8117 = vadd.f32 %v7835, %v8076
        %v8118 = vadd.f32 %v7836, %v8079
        %v8119 = vadd.f32 %v7837, %v8082
        %v8120 = vadd.f32 %v7838, %v8085
        %v8121 = vadd.f32 %v7839, %v8088
        %v8122 = vld [vmem:[%s2343 + $0x9] sm:$0xff]
        %v8123 = vld [vmem:[%s2343 + $0x11] sm:$0xff]
        %v8124 = vld [vmem:[%s2343 + $0x29] sm:$0xff]
        %v8125 = vld [vmem:[%s2343 + $0x31] sm:$0xff]
        %v8126 = vld [vmem:[%s2343 + $0x49] sm:$0xff]
        %v8127 = vld [vmem:[%s2343 + $0x51] sm:$0xff]
        %v8128 = vld [vmem:[%s2343 + $0x69] sm:$0xff]
        %v8129 = vld [vmem:[%s2343 + $0x71] sm:$0xff]
        %v8130 = vld [vmem:[%s2343 + $0x89] sm:$0xff]
        %v8131 = vld [vmem:[%s2343 + $0x91] sm:$0xff]
        %v8132 = vld [vmem:[%s2343 + $0xa9] sm:$0xff]
        %v8133 = vld [vmem:[%s2343 + $0xb1] sm:$0xff]
        %v8134 = vld [vmem:[%s2343 + $0xc9] sm:$0xff]
        %v8135 = vld [vmem:[%s2343 + $0xd1] sm:$0xff]
        %v8136 = vld [vmem:[%s2343 + $0xe9] sm:$0xff]
        %v8137 = vld [vmem:[%s2343 + $0xf1] sm:$0xff]
        %v8138 = vld [vmem:[%s2343 + $0x109] sm:$0xff]
        %v8139 = vld [vmem:[%s2343 + $0x111] sm:$0xff]
        %v8140 = vld [vmem:[%s2343 + $0x129] sm:$0xff]
        %v8141 = vld [vmem:[%s2343 + $0x131] sm:$0xff]
        %v8142 = vld [vmem:[%s2343 + $0x149] sm:$0xff]
        %v8143 = vld [vmem:[%s2343 + $0x151] sm:$0xff]
        %v8144 = vld [vmem:[%s2343 + $0x169] sm:$0xff]
        %v8145 = vld [vmem:[%s2343 + $0x171] sm:$0xff]
        %v8146 = vld [vmem:[%s2343 + $0x189] sm:$0xff]
        %v8147 = vld [vmem:[%s2343 + $0x191] sm:$0xff]
        %v8148 = vld [vmem:[%s2343 + $0x1a9] sm:$0xff]
        %v8149 = vld [vmem:[%s2343 + $0x1b1] sm:$0xff]
        %v8150 = vld [vmem:[%s2343 + $0x1c9] sm:$0xff]
        %v8151 = vld [vmem:[%s2343 + $0x1d1] sm:$0xff]
        %v8152 = vld [vmem:[%s2343 + $0x1e9] sm:$0xff]
        %v8153 = vld [vmem:[%s2343 + $0x1f1] sm:$0xff]
        %s8154 = scalar_lea.vmem %s3, 1664
        %v8155 = vld [vmem:[%s8154] sm:$0xff]
        %v8156 = vld [vmem:[%s8154 + $0x8] sm:$0xff]
        %v8157 = vld [vmem:[%s8154 + $0x10] sm:$0xff]
        %v8158 = vld [vmem:[%s8154 + $0x18] sm:$0xff]
        %v8159 = vld [vmem:[%s8154 + $0x20] sm:$0xff]
        %v8160 = vld [vmem:[%s8154 + $0x28] sm:$0xff]
        %v8161 = vld [vmem:[%s8154 + $0x30] sm:$0xff]
        %v8162 = vld [vmem:[%s8154 + $0x38] sm:$0xff]
        %v8164 = vsel %vm316, %v8122, 0
        %v8167 = vsel %vm316, %v8123, 0
        %v8170 = vsel %vm316, %v8124, 0
        %v8173 = vsel %vm316, %v8125, 0
        %v8176 = vsel %vm316, %v8126, 0
        %v8179 = vsel %vm316, %v8127, 0
        %v8182 = vsel %vm316, %v8128, 0
        %v8185 = vsel %vm316, %v8129, 0
        %v8188 = vsel %vm316, %v8130, 0
        %v8191 = vsel %vm316, %v8131, 0
        %v8194 = vsel %vm316, %v8132, 0
        %v8197 = vsel %vm316, %v8133, 0
        %v8200 = vsel %vm316, %v8134, 0
        %v8203 = vsel %vm316, %v8135, 0
        %v8206 = vsel %vm316, %v8136, 0
        %v8209 = vsel %vm316, %v8137, 0
        %v8212 = vsel %vm316, %v8138, 0
        %v8215 = vsel %vm316, %v8139, 0
        %v8218 = vsel %vm316, %v8140, 0
        %v8221 = vsel %vm316, %v8141, 0
        %v8224 = vsel %vm316, %v8142, 0
        %v8227 = vsel %vm316, %v8143, 0
        %v8230 = vsel %vm316, %v8144, 0
        %v8233 = vsel %vm316, %v8145, 0
        %v8236 = vsel %vm316, %v8146, 0
        %v8239 = vsel %vm316, %v8147, 0
        %v8242 = vsel %vm316, %v8148, 0
        %v8245 = vsel %vm316, %v8149, 0
        %v8248 = vsel %vm316, %v8150, 0
        %v8251 = vsel %vm316, %v8151, 0
        %v8254 = vsel %vm316, %v8152, 0
        %v8257 = vsel %vm316, %v8153, 0
        %8259 = vmatpush.msra.mxu0 0.0
        %8260 = vmatpush.msra.mxu0 0.0
        %8261 = vmatpush.msra.mxu0 0.0
        %8262 = vmatpush.msra.mxu0 0.0
        %8263 = vmatpush.msra.mxu0 0.0
        %8264 = vmatpush.msra.mxu0 0.0
        %8265 = vmatpush.msra.mxu0 0.0
        %8266 = vmatpush.msra.mxu0 0.0
        %8267 = vmatpush.msra.mxu0 %v8162
        %8268 = vmatpush.msra.mxu0 %v8161
        %8269 = vmatpush.msra.mxu0 %v8160
        %8270 = vmatpush.msra.mxu0 %v8159
        %8271 = vmatpush.msra.mxu0 %v8158
        %8272 = vmatpush.msra.mxu0 %v8157
        %8273 = vmatpush.msra.mxu0 %v8156
        %8274 = vmatpush.msra.mxu0 %v8155
        %8275 = vmatmul.f32.gmra.mxu0 %v8164
        %v8276 = vpop.f32.mrf.mxu0
        %v8277 = vadd.f32 0.0, %v8276
        %8278 = vmatmul.f32.gmra.mxu0 %v8167
        %v8279 = vpop.f32.mrf.mxu0
        %v8280 = vadd.f32 0.0, %v8279
        %8281 = vmatmul.f32.gmra.mxu0 %v8170
        %v8282 = vpop.f32.mrf.mxu0
        %v8283 = vadd.f32 0.0, %v8282
        %8284 = vmatmul.f32.gmra.mxu0 %v8173
        %v8285 = vpop.f32.mrf.mxu0
        %v8286 = vadd.f32 0.0, %v8285
        %8287 = vmatmul.f32.gmra.mxu0 %v8176
        %v8288 = vpop.f32.mrf.mxu0
        %v8289 = vadd.f32 0.0, %v8288
        %8290 = vmatmul.f32.gmra.mxu0 %v8179
        %v8291 = vpop.f32.mrf.mxu0
        %v8292 = vadd.f32 0.0, %v8291
        %8293 = vmatmul.f32.gmra.mxu0 %v8182
        %v8294 = vpop.f32.mrf.mxu0
        %v8295 = vadd.f32 0.0, %v8294
        %8296 = vmatmul.f32.gmra.mxu0 %v8185
        %v8297 = vpop.f32.mrf.mxu0
        %v8298 = vadd.f32 0.0, %v8297
        %8299 = vmatmul.f32.gmra.mxu0 %v8188
        %v8300 = vpop.f32.mrf.mxu0
        %v8301 = vadd.f32 0.0, %v8300
        %8302 = vmatmul.f32.gmra.mxu0 %v8191
        %v8303 = vpop.f32.mrf.mxu0
        %v8304 = vadd.f32 0.0, %v8303
        %8305 = vmatmul.f32.gmra.mxu0 %v8194
        %v8306 = vpop.f32.mrf.mxu0
        %v8307 = vadd.f32 0.0, %v8306
        %8308 = vmatmul.f32.gmra.mxu0 %v8197
        %v8309 = vpop.f32.mrf.mxu0
        %v8310 = vadd.f32 0.0, %v8309
        %8311 = vmatmul.f32.gmra.mxu0 %v8200
        %v8312 = vpop.f32.mrf.mxu0
        %v8313 = vadd.f32 0.0, %v8312
        %8314 = vmatmul.f32.gmra.mxu0 %v8203
        %v8315 = vpop.f32.mrf.mxu0
        %v8316 = vadd.f32 0.0, %v8315
        %8317 = vmatmul.f32.gmra.mxu0 %v8206
        %v8318 = vpop.f32.mrf.mxu0
        %v8319 = vadd.f32 0.0, %v8318
        %8320 = vmatmul.f32.gmra.mxu0 %v8209
        %v8321 = vpop.f32.mrf.mxu0
        %v8322 = vadd.f32 0.0, %v8321
        %8323 = vmatmul.f32.gmra.mxu0 %v8212
        %v8324 = vpop.f32.mrf.mxu0
        %v8325 = vadd.f32 0.0, %v8324
        %8326 = vmatmul.f32.gmra.mxu0 %v8215
        %v8327 = vpop.f32.mrf.mxu0
        %v8328 = vadd.f32 0.0, %v8327
        %8329 = vmatmul.f32.gmra.mxu0 %v8218
        %v8330 = vpop.f32.mrf.mxu0
        %v8331 = vadd.f32 0.0, %v8330
        %8332 = vmatmul.f32.gmra.mxu0 %v8221
        %v8333 = vpop.f32.mrf.mxu0
        %v8334 = vadd.f32 0.0, %v8333
        %8335 = vmatmul.f32.gmra.mxu0 %v8224
        %v8336 = vpop.f32.mrf.mxu0
        %v8337 = vadd.f32 0.0, %v8336
        %8338 = vmatmul.f32.gmra.mxu0 %v8227
        %v8339 = vpop.f32.mrf.mxu0
        %v8340 = vadd.f32 0.0, %v8339
        %8341 = vmatmul.f32.gmra.mxu0 %v8230
        %v8342 = vpop.f32.mrf.mxu0
        %v8343 = vadd.f32 0.0, %v8342
        %8344 = vmatmul.f32.gmra.mxu0 %v8233
        %v8345 = vpop.f32.mrf.mxu0
        %v8346 = vadd.f32 0.0, %v8345
        %8347 = vmatmul.f32.gmra.mxu0 %v8236
        %v8348 = vpop.f32.mrf.mxu0
        %v8349 = vadd.f32 0.0, %v8348
        %8350 = vmatmul.f32.gmra.mxu0 %v8239
        %v8351 = vpop.f32.mrf.mxu0
        %v8352 = vadd.f32 0.0, %v8351
        %8353 = vmatmul.f32.gmra.mxu0 %v8242
        %v8354 = vpop.f32.mrf.mxu0
        %v8355 = vadd.f32 0.0, %v8354
        %8356 = vmatmul.f32.gmra.mxu0 %v8245
        %v8357 = vpop.f32.mrf.mxu0
        %v8358 = vadd.f32 0.0, %v8357
        %8359 = vmatmul.f32.gmra.mxu0 %v8248
        %v8360 = vpop.f32.mrf.mxu0
        %v8361 = vadd.f32 0.0, %v8360
        %8362 = vmatmul.f32.gmra.mxu0 %v8251
        %v8363 = vpop.f32.mrf.mxu0
        %v8364 = vadd.f32 0.0, %v8363
        %8365 = vmatmul.f32.gmra.mxu0 %v8254
        %v8366 = vpop.f32.mrf.mxu0
        %v8367 = vadd.f32 0.0, %v8366
        %8368 = vmatmul.f32.gmra.mxu0 %v8257
        %v8369 = vpop.f32.mrf.mxu0
        %v8370 = vadd.f32 0.0, %v8369
        %8371 = vdwg.mxu0
        %v8372 = vadd.f32 %v8090, %v8277
        %v8373 = vadd.f32 %v8091, %v8280
        %v8374 = vadd.f32 %v8092, %v8283
        %v8375 = vadd.f32 %v8093, %v8286
        %v8376 = vadd.f32 %v8094, %v8289
        %v8377 = vadd.f32 %v8095, %v8292
        %v8378 = vadd.f32 %v8096, %v8295
        %v8379 = vadd.f32 %v8097, %v8298
        %v8380 = vadd.f32 %v8098, %v8301
        %v8381 = vadd.f32 %v8099, %v8304
        %v8382 = vadd.f32 %v8100, %v8307
        %v8383 = vadd.f32 %v8101, %v8310
        %v8384 = vadd.f32 %v8102, %v8313
        %v8385 = vadd.f32 %v8103, %v8316
        %v8386 = vadd.f32 %v8104, %v8319
        %v8387 = vadd.f32 %v8105, %v8322
        %v8388 = vadd.f32 %v8106, %v8325
        %v8389 = vadd.f32 %v8107, %v8328
        %v8390 = vadd.f32 %v8108, %v8331
        %v8391 = vadd.f32 %v8109, %v8334
        %v8392 = vadd.f32 %v8110, %v8337
        %v8393 = vadd.f32 %v8111, %v8340
        %v8394 = vadd.f32 %v8112, %v8343
        %v8395 = vadd.f32 %v8113, %v8346
        %v8396 = vadd.f32 %v8114, %v8349
        %v8397 = vadd.f32 %v8115, %v8352
        %v8398 = vadd.f32 %v8116, %v8355
        %v8399 = vadd.f32 %v8117, %v8358
        %v8400 = vadd.f32 %v8118, %v8361
        %v8401 = vadd.f32 %v8119, %v8364
        %v8402 = vadd.f32 %v8120, %v8367
        %v8403 = vadd.f32 %v8121, %v8370
        %s8404 = scalar_lea.vmem %s4, 2
        %v8405 = vld [vmem:[%s8404] sm:$0x1]
        %v8407 = vperm.slane %v8405, 0
        %v8409 = vadd.f32 %v8372, %v8407
        %v8410 = vadd.f32 %v8373, %v8407
        %v8411 = vadd.f32 %v8374, %v8407
        %v8412 = vadd.f32 %v8375, %v8407
        %v8413 = vadd.f32 %v8376, %v8407
        %v8414 = vadd.f32 %v8377, %v8407
        %v8415 = vadd.f32 %v8378, %v8407
        %v8416 = vadd.f32 %v8379, %v8407
        %v8417 = vadd.f32 %v8380, %v8407
        %v8418 = vadd.f32 %v8381, %v8407
        %v8419 = vadd.f32 %v8382, %v8407
        %v8420 = vadd.f32 %v8383, %v8407
        %v8421 = vadd.f32 %v8384, %v8407
        %v8422 = vadd.f32 %v8385, %v8407
        %v8423 = vadd.f32 %v8386, %v8407
        %v8424 = vadd.f32 %v8387, %v8407
        %v8425 = vadd.f32 %v8388, %v8407
        %v8426 = vadd.f32 %v8389, %v8407
        %v8427 = vadd.f32 %v8390, %v8407
        %v8428 = vadd.f32 %v8391, %v8407
        %v8429 = vadd.f32 %v8392, %v8407
        %v8430 = vadd.f32 %v8393, %v8407
        %v8431 = vadd.f32 %v8394, %v8407
        %v8432 = vadd.f32 %v8395, %v8407
        %v8433 = vadd.f32 %v8396, %v8407
        %v8434 = vadd.f32 %v8397, %v8407
        %v8435 = vadd.f32 %v8398, %v8407
        %v8436 = vadd.f32 %v8399, %v8407
        %v8437 = vadd.f32 %v8400, %v8407
        %v8438 = vadd.f32 %v8401, %v8407
        %v8439 = vadd.f32 %v8402, %v8407
        %v8440 = vadd.f32 %v8403, %v8407
        %v8441 = vmax.f32 %v8409, 0.0
        %v8442 = vmax.f32 %v8410, 0.0
        %v8443 = vmax.f32 %v8411, 0.0
        %v8444 = vmax.f32 %v8412, 0.0
        %v8445 = vmax.f32 %v8413, 0.0
        %v8446 = vmax.f32 %v8414, 0.0
        %v8447 = vmax.f32 %v8415, 0.0
        %v8448 = vmax.f32 %v8416, 0.0
        %v8449 = vmax.f32 %v8417, 0.0
        %v8450 = vmax.f32 %v8418, 0.0
        %v8451 = vmax.f32 %v8419, 0.0
        %v8452 = vmax.f32 %v8420, 0.0
        %v8453 = vmax.f32 %v8421, 0.0
        %v8454 = vmax.f32 %v8422, 0.0
        %v8455 = vmax.f32 %v8423, 0.0
        %v8456 = vmax.f32 %v8424, 0.0
        %v8457 = vmax.f32 %v8425, 0.0
        %v8458 = vmax.f32 %v8426, 0.0
        %v8459 = vmax.f32 %v8427, 0.0
        %v8460 = vmax.f32 %v8428, 0.0
        %v8461 = vmax.f32 %v8429, 0.0
        %v8462 = vmax.f32 %v8430, 0.0
        %v8463 = vmax.f32 %v8431, 0.0
        %v8464 = vmax.f32 %v8432, 0.0
        %v8465 = vmax.f32 %v8433, 0.0
        %v8466 = vmax.f32 %v8434, 0.0
        %v8467 = vmax.f32 %v8435, 0.0
        %v8468 = vmax.f32 %v8436, 0.0
        %v8469 = vmax.f32 %v8437, 0.0
        %v8470 = vmax.f32 %v8438, 0.0
        %v8471 = vmax.f32 %v8439, 0.0
        %v8472 = vmax.f32 %v8440, 0.0
        %8473 = vst.msk [vmem:[%s369 + $0x8] sm:$0xff] %vm316, %v8441
        %8474 = vst.msk [vmem:[%s369 + $0x10] sm:$0xff] %vm316, %v8442
        %8475 = vst.msk [vmem:[%s369 + $0x28] sm:$0xff] %vm316, %v8443
        %8476 = vst.msk [vmem:[%s369 + $0x30] sm:$0xff] %vm316, %v8444
        %8477 = vst.msk [vmem:[%s369 + $0x48] sm:$0xff] %vm316, %v8445
        %8478 = vst.msk [vmem:[%s369 + $0x50] sm:$0xff] %vm316, %v8446
        %8479 = vst.msk [vmem:[%s369 + $0x68] sm:$0xff] %vm316, %v8447
        %8480 = vst.msk [vmem:[%s369 + $0x70] sm:$0xff] %vm316, %v8448
        %8481 = vst.msk [vmem:[%s369 + $0x88] sm:$0xff] %vm316, %v8449
        %8482 = vst.msk [vmem:[%s369 + $0x90] sm:$0xff] %vm316, %v8450
        %8483 = vst.msk [vmem:[%s369 + $0xa8] sm:$0xff] %vm316, %v8451
        %8484 = vst.msk [vmem:[%s369 + $0xb0] sm:$0xff] %vm316, %v8452
        %8485 = vst.msk [vmem:[%s369 + $0xc8] sm:$0xff] %vm316, %v8453
        %8486 = vst.msk [vmem:[%s369 + $0xd0] sm:$0xff] %vm316, %v8454
        %8487 = vst.msk [vmem:[%s369 + $0xe8] sm:$0xff] %vm316, %v8455
        %8488 = vst.msk [vmem:[%s369 + $0xf0] sm:$0xff] %vm316, %v8456
        %8489 = vst.msk [vmem:[%s369 + $0x108] sm:$0xff] %vm316, %v8457
        %8490 = vst.msk [vmem:[%s369 + $0x110] sm:$0xff] %vm316, %v8458
        %8491 = vst.msk [vmem:[%s369 + $0x128] sm:$0xff] %vm316, %v8459
        %8492 = vst.msk [vmem:[%s369 + $0x130] sm:$0xff] %vm316, %v8460
        %8493 = vst.msk [vmem:[%s369 + $0x148] sm:$0xff] %vm316, %v8461
        %8494 = vst.msk [vmem:[%s369 + $0x150] sm:$0xff] %vm316, %v8462
        %8495 = vst.msk [vmem:[%s369 + $0x168] sm:$0xff] %vm316, %v8463
        %8496 = vst.msk [vmem:[%s369 + $0x170] sm:$0xff] %vm316, %v8464
        %8497 = vst.msk [vmem:[%s369 + $0x188] sm:$0xff] %vm316, %v8465
        %8498 = vst.msk [vmem:[%s369 + $0x190] sm:$0xff] %vm316, %v8466
        %8499 = vst.msk [vmem:[%s369 + $0x1a8] sm:$0xff] %vm316, %v8467
        %8500 = vst.msk [vmem:[%s369 + $0x1b0] sm:$0xff] %vm316, %v8468
        %8501 = vst.msk [vmem:[%s369 + $0x1c8] sm:$0xff] %vm316, %v8469
        %8502 = vst.msk [vmem:[%s369 + $0x1d0] sm:$0xff] %vm316, %v8470
        %8503 = vst.msk [vmem:[%s369 + $0x1e8] sm:$0xff] %vm316, %v8471
        %8504 = vst.msk [vmem:[%s369 + $0x1f0] sm:$0xff] %vm316, %v8472
        %v8505 = vld [vmem:[#allocation3 + $0x7] sm:$0xff]
        %v8506 = vld [vmem:[#allocation3 + $0xf] sm:$0xff]
        %v8507 = vld [vmem:[#allocation3 + $0x27] sm:$0xff]
        %v8508 = vld [vmem:[#allocation3 + $0x2f] sm:$0xff]
        %v8509 = vld [vmem:[#allocation3 + $0x47] sm:$0xff]
        %v8510 = vld [vmem:[#allocation3 + $0x4f] sm:$0xff]
        %v8511 = vld [vmem:[#allocation3 + $0x67] sm:$0xff]
        %v8512 = vld [vmem:[#allocation3 + $0x6f] sm:$0xff]
        %v8513 = vld [vmem:[#allocation3 + $0x87] sm:$0xff]
        %v8514 = vld [vmem:[#allocation3 + $0x8f] sm:$0xff]
        %v8515 = vld [vmem:[#allocation3 + $0xa7] sm:$0xff]
        %v8516 = vld [vmem:[#allocation3 + $0xaf] sm:$0xff]
        %v8517 = vld [vmem:[#allocation3 + $0xc7] sm:$0xff]
        %v8518 = vld [vmem:[#allocation3 + $0xcf] sm:$0xff]
        %v8519 = vld [vmem:[#allocation3 + $0xe7] sm:$0xff]
        %v8520 = vld [vmem:[#allocation3 + $0xef] sm:$0xff]
        %v8521 = vld [vmem:[#allocation3 + $0x107] sm:$0xff]
        %v8522 = vld [vmem:[#allocation3 + $0x10f] sm:$0xff]
        %v8523 = vld [vmem:[#allocation3 + $0x127] sm:$0xff]
        %v8524 = vld [vmem:[#allocation3 + $0x12f] sm:$0xff]
        %v8525 = vld [vmem:[#allocation3 + $0x147] sm:$0xff]
        %v8526 = vld [vmem:[#allocation3 + $0x14f] sm:$0xff]
        %v8527 = vld [vmem:[#allocation3 + $0x167] sm:$0xff]
        %v8528 = vld [vmem:[#allocation3 + $0x16f] sm:$0xff]
        %v8529 = vld [vmem:[#allocation3 + $0x187] sm:$0xff]
        %v8530 = vld [vmem:[#allocation3 + $0x18f] sm:$0xff]
        %v8531 = vld [vmem:[#allocation3 + $0x1a7] sm:$0xff]
        %v8532 = vld [vmem:[#allocation3 + $0x1af] sm:$0xff]
        %v8533 = vld [vmem:[#allocation3 + $0x1c7] sm:$0xff]
        %v8534 = vld [vmem:[#allocation3 + $0x1cf] sm:$0xff]
        %v8535 = vld [vmem:[#allocation3 + $0x1e7] sm:$0xff]
        %v8536 = vld [vmem:[#allocation3 + $0x1ef] sm:$0xff]
        %s8537 = scalar_lea.vmem %s3, 1728
        %v8538 = vld [vmem:[%s8537] sm:$0xff]
        %v8539 = vld [vmem:[%s8537 + $0x8] sm:$0xff]
        %v8540 = vld [vmem:[%s8537 + $0x10] sm:$0xff]
        %v8541 = vld [vmem:[%s8537 + $0x18] sm:$0xff]
        %v8542 = vld [vmem:[%s8537 + $0x20] sm:$0xff]
        %v8543 = vld [vmem:[%s8537 + $0x28] sm:$0xff]
        %v8544 = vld [vmem:[%s8537 + $0x30] sm:$0xff]
        %v8545 = vld [vmem:[%s8537 + $0x38] sm:$0xff]
        %v8546 = vld [vmem:[#allocation3 + $0x8] sm:$0xff]
        %v8547 = vld [vmem:[#allocation3 + $0x10] sm:$0xff]
        %v8548 = vld [vmem:[#allocation3 + $0x28] sm:$0xff]
        %v8549 = vld [vmem:[#allocation3 + $0x30] sm:$0xff]
        %v8550 = vld [vmem:[#allocation3 + $0x48] sm:$0xff]
        %v8551 = vld [vmem:[#allocation3 + $0x50] sm:$0xff]
        %v8552 = vld [vmem:[#allocation3 + $0x68] sm:$0xff]
        %v8553 = vld [vmem:[#allocation3 + $0x70] sm:$0xff]
        %v8554 = vld [vmem:[#allocation3 + $0x88] sm:$0xff]
        %v8555 = vld [vmem:[#allocation3 + $0x90] sm:$0xff]
        %v8556 = vld [vmem:[#allocation3 + $0xa8] sm:$0xff]
        %v8557 = vld [vmem:[#allocation3 + $0xb0] sm:$0xff]
        %v8558 = vld [vmem:[#allocation3 + $0xc8] sm:$0xff]
        %v8559 = vld [vmem:[#allocation3 + $0xd0] sm:$0xff]
        %v8560 = vld [vmem:[#allocation3 + $0xe8] sm:$0xff]
        %v8561 = vld [vmem:[#allocation3 + $0xf0] sm:$0xff]
        %v8562 = vld [vmem:[#allocation3 + $0x108] sm:$0xff]
        %v8563 = vld [vmem:[#allocation3 + $0x110] sm:$0xff]
        %v8564 = vld [vmem:[#allocation3 + $0x128] sm:$0xff]
        %v8565 = vld [vmem:[#allocation3 + $0x130] sm:$0xff]
        %v8566 = vld [vmem:[#allocation3 + $0x148] sm:$0xff]
        %v8567 = vld [vmem:[#allocation3 + $0x150] sm:$0xff]
        %v8568 = vld [vmem:[#allocation3 + $0x168] sm:$0xff]
        %v8569 = vld [vmem:[#allocation3 + $0x170] sm:$0xff]
        %v8570 = vld [vmem:[#allocation3 + $0x188] sm:$0xff]
        %v8571 = vld [vmem:[#allocation3 + $0x190] sm:$0xff]
        %v8572 = vld [vmem:[#allocation3 + $0x1a8] sm:$0xff]
        %v8573 = vld [vmem:[#allocation3 + $0x1b0] sm:$0xff]
        %v8574 = vld [vmem:[#allocation3 + $0x1c8] sm:$0xff]
        %v8575 = vld [vmem:[#allocation3 + $0x1d0] sm:$0xff]
        %v8576 = vld [vmem:[#allocation3 + $0x1e8] sm:$0xff]
        %v8577 = vld [vmem:[#allocation3 + $0x1f0] sm:$0xff]
        %s8578 = scalar_lea.vmem %s3, 1792
        %v8579 = vld [vmem:[%s8578] sm:$0xff]
        %v8580 = vld [vmem:[%s8578 + $0x8] sm:$0xff]
        %v8581 = vld [vmem:[%s8578 + $0x10] sm:$0xff]
        %v8582 = vld [vmem:[%s8578 + $0x18] sm:$0xff]
        %v8583 = vld [vmem:[%s8578 + $0x20] sm:$0xff]
        %v8584 = vld [vmem:[%s8578 + $0x28] sm:$0xff]
        %v8585 = vld [vmem:[%s8578 + $0x30] sm:$0xff]
        %v8586 = vld [vmem:[%s8578 + $0x38] sm:$0xff]
        %v8588 = vsel %vm316, %v8546, 0
        %v8591 = vsel %vm316, %v8547, 0
        %v8594 = vsel %vm316, %v8548, 0
        %v8597 = vsel %vm316, %v8549, 0
        %v8600 = vsel %vm316, %v8550, 0
        %v8603 = vsel %vm316, %v8551, 0
        %v8606 = vsel %vm316, %v8552, 0
        %v8609 = vsel %vm316, %v8553, 0
        %v8612 = vsel %vm316, %v8554, 0
        %v8615 = vsel %vm316, %v8555, 0
        %v8618 = vsel %vm316, %v8556, 0
        %v8621 = vsel %vm316, %v8557, 0
        %v8624 = vsel %vm316, %v8558, 0
        %v8627 = vsel %vm316, %v8559, 0
        %v8630 = vsel %vm316, %v8560, 0
        %v8633 = vsel %vm316, %v8561, 0
        %v8636 = vsel %vm316, %v8562, 0
        %v8639 = vsel %vm316, %v8563, 0
        %v8642 = vsel %vm316, %v8564, 0
        %v8645 = vsel %vm316, %v8565, 0
        %v8648 = vsel %vm316, %v8566, 0
        %v8651 = vsel %vm316, %v8567, 0
        %v8654 = vsel %vm316, %v8568, 0
        %v8657 = vsel %vm316, %v8569, 0
        %v8660 = vsel %vm316, %v8570, 0
        %v8663 = vsel %vm316, %v8571, 0
        %v8666 = vsel %vm316, %v8572, 0
        %v8669 = vsel %vm316, %v8573, 0
        %v8672 = vsel %vm316, %v8574, 0
        %v8675 = vsel %vm316, %v8575, 0
        %v8678 = vsel %vm316, %v8576, 0
        %v8681 = vsel %vm316, %v8577, 0
        %8683 = vmatpush.msra.mxu0 0.0
        %8684 = vmatpush.msra.mxu0 0.0
        %8685 = vmatpush.msra.mxu0 0.0
        %8686 = vmatpush.msra.mxu0 0.0
        %8687 = vmatpush.msra.mxu0 0.0
        %8688 = vmatpush.msra.mxu0 0.0
        %8689 = vmatpush.msra.mxu0 0.0
        %8690 = vmatpush.msra.mxu0 0.0
        %8691 = vmatpush.msra.mxu0 %v8586
        %8692 = vmatpush.msra.mxu0 %v8585
        %8693 = vmatpush.msra.mxu0 %v8584
        %8694 = vmatpush.msra.mxu0 %v8583
        %8695 = vmatpush.msra.mxu0 %v8582
        %8696 = vmatpush.msra.mxu0 %v8581
        %8697 = vmatpush.msra.mxu0 %v8580
        %8698 = vmatpush.msra.mxu0 %v8579
        %8699 = vmatmul.f32.gmra.mxu0 %v8588
        %v8700 = vpop.f32.mrf.mxu0
        %v8701 = vadd.f32 0.0, %v8700
        %8702 = vmatmul.f32.gmra.mxu0 %v8591
        %v8703 = vpop.f32.mrf.mxu0
        %v8704 = vadd.f32 0.0, %v8703
        %8705 = vmatmul.f32.gmra.mxu0 %v8594
        %v8706 = vpop.f32.mrf.mxu0
        %v8707 = vadd.f32 0.0, %v8706
        %8708 = vmatmul.f32.gmra.mxu0 %v8597
        %v8709 = vpop.f32.mrf.mxu0
        %v8710 = vadd.f32 0.0, %v8709
        %8711 = vmatmul.f32.gmra.mxu0 %v8600
        %v8712 = vpop.f32.mrf.mxu0
        %v8713 = vadd.f32 0.0, %v8712
        %8714 = vmatmul.f32.gmra.mxu0 %v8603
        %v8715 = vpop.f32.mrf.mxu0
        %v8716 = vadd.f32 0.0, %v8715
        %8717 = vmatmul.f32.gmra.mxu0 %v8606
        %v8718 = vpop.f32.mrf.mxu0
        %v8719 = vadd.f32 0.0, %v8718
        %8720 = vmatmul.f32.gmra.mxu0 %v8609
        %v8721 = vpop.f32.mrf.mxu0
        %v8722 = vadd.f32 0.0, %v8721
        %8723 = vmatmul.f32.gmra.mxu0 %v8612
        %v8724 = vpop.f32.mrf.mxu0
        %v8725 = vadd.f32 0.0, %v8724
        %8726 = vmatmul.f32.gmra.mxu0 %v8615
        %v8727 = vpop.f32.mrf.mxu0
        %v8728 = vadd.f32 0.0, %v8727
        %8729 = vmatmul.f32.gmra.mxu0 %v8618
        %v8730 = vpop.f32.mrf.mxu0
        %v8731 = vadd.f32 0.0, %v8730
        %8732 = vmatmul.f32.gmra.mxu0 %v8621
        %v8733 = vpop.f32.mrf.mxu0
        %v8734 = vadd.f32 0.0, %v8733
        %8735 = vmatmul.f32.gmra.mxu0 %v8624
        %v8736 = vpop.f32.mrf.mxu0
        %v8737 = vadd.f32 0.0, %v8736
        %8738 = vmatmul.f32.gmra.mxu0 %v8627
        %v8739 = vpop.f32.mrf.mxu0
        %v8740 = vadd.f32 0.0, %v8739
        %8741 = vmatmul.f32.gmra.mxu0 %v8630
        %v8742 = vpop.f32.mrf.mxu0
        %v8743 = vadd.f32 0.0, %v8742
        %8744 = vmatmul.f32.gmra.mxu0 %v8633
        %v8745 = vpop.f32.mrf.mxu0
        %v8746 = vadd.f32 0.0, %v8745
        %8747 = vmatmul.f32.gmra.mxu0 %v8636
        %v8748 = vpop.f32.mrf.mxu0
        %v8749 = vadd.f32 0.0, %v8748
        %8750 = vmatmul.f32.gmra.mxu0 %v8639
        %v8751 = vpop.f32.mrf.mxu0
        %v8752 = vadd.f32 0.0, %v8751
        %8753 = vmatmul.f32.gmra.mxu0 %v8642
        %v8754 = vpop.f32.mrf.mxu0
        %v8755 = vadd.f32 0.0, %v8754
        %8756 = vmatmul.f32.gmra.mxu0 %v8645
        %v8757 = vpop.f32.mrf.mxu0
        %v8758 = vadd.f32 0.0, %v8757
        %8759 = vmatmul.f32.gmra.mxu0 %v8648
        %v8760 = vpop.f32.mrf.mxu0
        %v8761 = vadd.f32 0.0, %v8760
        %8762 = vmatmul.f32.gmra.mxu0 %v8651
        %v8763 = vpop.f32.mrf.mxu0
        %v8764 = vadd.f32 0.0, %v8763
        %8765 = vmatmul.f32.gmra.mxu0 %v8654
        %v8766 = vpop.f32.mrf.mxu0
        %v8767 = vadd.f32 0.0, %v8766
        %8768 = vmatmul.f32.gmra.mxu0 %v8657
        %v8769 = vpop.f32.mrf.mxu0
        %v8770 = vadd.f32 0.0, %v8769
        %8771 = vmatmul.f32.gmra.mxu0 %v8660
        %v8772 = vpop.f32.mrf.mxu0
        %v8773 = vadd.f32 0.0, %v8772
        %8774 = vmatmul.f32.gmra.mxu0 %v8663
        %v8775 = vpop.f32.mrf.mxu0
        %v8776 = vadd.f32 0.0, %v8775
        %8777 = vmatmul.f32.gmra.mxu0 %v8666
        %v8778 = vpop.f32.mrf.mxu0
        %v8779 = vadd.f32 0.0, %v8778
        %8780 = vmatmul.f32.gmra.mxu0 %v8669
        %v8781 = vpop.f32.mrf.mxu0
        %v8782 = vadd.f32 0.0, %v8781
        %8783 = vmatmul.f32.gmra.mxu0 %v8672
        %v8784 = vpop.f32.mrf.mxu0
        %v8785 = vadd.f32 0.0, %v8784
        %8786 = vmatmul.f32.gmra.mxu0 %v8675
        %v8787 = vpop.f32.mrf.mxu0
        %v8788 = vadd.f32 0.0, %v8787
        %8789 = vmatmul.f32.gmra.mxu0 %v8678
        %v8790 = vpop.f32.mrf.mxu0
        %v8791 = vadd.f32 0.0, %v8790
        %8792 = vmatmul.f32.gmra.mxu0 %v8681
        %v8793 = vpop.f32.mrf.mxu0
        %v8794 = vadd.f32 0.0, %v8793
        %8795 = vdwg.mxu0
        %v8797 = vsel %vm316, %v8505, 0
        %v8800 = vsel %vm316, %v8506, 0
        %v8803 = vsel %vm316, %v8507, 0
        %v8806 = vsel %vm316, %v8508, 0
        %v8809 = vsel %vm316, %v8509, 0
        %v8812 = vsel %vm316, %v8510, 0
        %v8815 = vsel %vm316, %v8511, 0
        %v8818 = vsel %vm316, %v8512, 0
        %v8821 = vsel %vm316, %v8513, 0
        %v8824 = vsel %vm316, %v8514, 0
        %v8827 = vsel %vm316, %v8515, 0
        %v8830 = vsel %vm316, %v8516, 0
        %v8833 = vsel %vm316, %v8517, 0
        %v8836 = vsel %vm316, %v8518, 0
        %v8839 = vsel %vm316, %v8519, 0
        %v8842 = vsel %vm316, %v8520, 0
        %v8845 = vsel %vm316, %v8521, 0
        %v8848 = vsel %vm316, %v8522, 0
        %v8851 = vsel %vm316, %v8523, 0
        %v8854 = vsel %vm316, %v8524, 0
        %v8857 = vsel %vm316, %v8525, 0
        %v8860 = vsel %vm316, %v8526, 0
        %v8863 = vsel %vm316, %v8527, 0
        %v8866 = vsel %vm316, %v8528, 0
        %v8869 = vsel %vm316, %v8529, 0
        %v8872 = vsel %vm316, %v8530, 0
        %v8875 = vsel %vm316, %v8531, 0
        %v8878 = vsel %vm316, %v8532, 0
        %v8881 = vsel %vm316, %v8533, 0
        %v8884 = vsel %vm316, %v8534, 0
        %v8887 = vsel %vm316, %v8535, 0
        %v8890 = vsel %vm316, %v8536, 0
        %8892 = vmatpush.msra.mxu0 0.0
        %8893 = vmatpush.msra.mxu0 0.0
        %8894 = vmatpush.msra.mxu0 0.0
        %8895 = vmatpush.msra.mxu0 0.0
        %8896 = vmatpush.msra.mxu0 0.0
        %8897 = vmatpush.msra.mxu0 0.0
        %8898 = vmatpush.msra.mxu0 0.0
        %8899 = vmatpush.msra.mxu0 0.0
        %8900 = vmatpush.msra.mxu0 %v8545
        %8901 = vmatpush.msra.mxu0 %v8544
        %8902 = vmatpush.msra.mxu0 %v8543
        %8903 = vmatpush.msra.mxu0 %v8542
        %8904 = vmatpush.msra.mxu0 %v8541
        %8905 = vmatpush.msra.mxu0 %v8540
        %8906 = vmatpush.msra.mxu0 %v8539
        %8907 = vmatpush.msra.mxu0 %v8538
        %8908 = vmatmul.f32.gmra.mxu0 %v8797
        %v8909 = vpop.f32.mrf.mxu0
        %v8910 = vadd.f32 %v8701, %v8909
        %8911 = vmatmul.f32.gmra.mxu0 %v8800
        %v8912 = vpop.f32.mrf.mxu0
        %v8913 = vadd.f32 %v8704, %v8912
        %8914 = vmatmul.f32.gmra.mxu0 %v8803
        %v8915 = vpop.f32.mrf.mxu0
        %v8916 = vadd.f32 %v8707, %v8915
        %8917 = vmatmul.f32.gmra.mxu0 %v8806
        %v8918 = vpop.f32.mrf.mxu0
        %v8919 = vadd.f32 %v8710, %v8918
        %8920 = vmatmul.f32.gmra.mxu0 %v8809
        %v8921 = vpop.f32.mrf.mxu0
        %v8922 = vadd.f32 %v8713, %v8921
        %8923 = vmatmul.f32.gmra.mxu0 %v8812
        %v8924 = vpop.f32.mrf.mxu0
        %v8925 = vadd.f32 %v8716, %v8924
        %8926 = vmatmul.f32.gmra.mxu0 %v8815
        %v8927 = vpop.f32.mrf.mxu0
        %v8928 = vadd.f32 %v8719, %v8927
        %8929 = vmatmul.f32.gmra.mxu0 %v8818
        %v8930 = vpop.f32.mrf.mxu0
        %v8931 = vadd.f32 %v8722, %v8930
        %8932 = vmatmul.f32.gmra.mxu0 %v8821
        %v8933 = vpop.f32.mrf.mxu0
        %v8934 = vadd.f32 %v8725, %v8933
        %8935 = vmatmul.f32.gmra.mxu0 %v8824
        %v8936 = vpop.f32.mrf.mxu0
        %v8937 = vadd.f32 %v8728, %v8936
        %8938 = vmatmul.f32.gmra.mxu0 %v8827
        %v8939 = vpop.f32.mrf.mxu0
        %v8940 = vadd.f32 %v8731, %v8939
        %8941 = vmatmul.f32.gmra.mxu0 %v8830
        %v8942 = vpop.f32.mrf.mxu0
        %v8943 = vadd.f32 %v8734, %v8942
        %8944 = vmatmul.f32.gmra.mxu0 %v8833
        %v8945 = vpop.f32.mrf.mxu0
        %v8946 = vadd.f32 %v8737, %v8945
        %8947 = vmatmul.f32.gmra.mxu0 %v8836
        %v8948 = vpop.f32.mrf.mxu0
        %v8949 = vadd.f32 %v8740, %v8948
        %8950 = vmatmul.f32.gmra.mxu0 %v8839
        %v8951 = vpop.f32.mrf.mxu0
        %v8952 = vadd.f32 %v8743, %v8951
        %8953 = vmatmul.f32.gmra.mxu0 %v8842
        %v8954 = vpop.f32.mrf.mxu0
        %v8955 = vadd.f32 %v8746, %v8954
        %8956 = vmatmul.f32.gmra.mxu0 %v8845
        %v8957 = vpop.f32.mrf.mxu0
        %v8958 = vadd.f32 %v8749, %v8957
        %8959 = vmatmul.f32.gmra.mxu0 %v8848
        %v8960 = vpop.f32.mrf.mxu0
        %v8961 = vadd.f32 %v8752, %v8960
        %8962 = vmatmul.f32.gmra.mxu0 %v8851
        %v8963 = vpop.f32.mrf.mxu0
        %v8964 = vadd.f32 %v8755, %v8963
        %8965 = vmatmul.f32.gmra.mxu0 %v8854
        %v8966 = vpop.f32.mrf.mxu0
        %v8967 = vadd.f32 %v8758, %v8966
        %8968 = vmatmul.f32.gmra.mxu0 %v8857
        %v8969 = vpop.f32.mrf.mxu0
        %v8970 = vadd.f32 %v8761, %v8969
        %8971 = vmatmul.f32.gmra.mxu0 %v8860
        %v8972 = vpop.f32.mrf.mxu0
        %v8973 = vadd.f32 %v8764, %v8972
        %8974 = vmatmul.f32.gmra.mxu0 %v8863
        %v8975 = vpop.f32.mrf.mxu0
        %v8976 = vadd.f32 %v8767, %v8975
        %8977 = vmatmul.f32.gmra.mxu0 %v8866
        %v8978 = vpop.f32.mrf.mxu0
        %v8979 = vadd.f32 %v8770, %v8978
        %8980 = vmatmul.f32.gmra.mxu0 %v8869
        %v8981 = vpop.f32.mrf.mxu0
        %v8982 = vadd.f32 %v8773, %v8981
        %8983 = vmatmul.f32.gmra.mxu0 %v8872
        %v8984 = vpop.f32.mrf.mxu0
        %v8985 = vadd.f32 %v8776, %v8984
        %8986 = vmatmul.f32.gmra.mxu0 %v8875
        %v8987 = vpop.f32.mrf.mxu0
        %v8988 = vadd.f32 %v8779, %v8987
        %8989 = vmatmul.f32.gmra.mxu0 %v8878
        %v8990 = vpop.f32.mrf.mxu0
        %v8991 = vadd.f32 %v8782, %v8990
        %8992 = vmatmul.f32.gmra.mxu0 %v8881
        %v8993 = vpop.f32.mrf.mxu0
        %v8994 = vadd.f32 %v8785, %v8993
        %8995 = vmatmul.f32.gmra.mxu0 %v8884
        %v8996 = vpop.f32.mrf.mxu0
        %v8997 = vadd.f32 %v8788, %v8996
        %8998 = vmatmul.f32.gmra.mxu0 %v8887
        %v8999 = vpop.f32.mrf.mxu0
        %v9000 = vadd.f32 %v8791, %v8999
        %9001 = vmatmul.f32.gmra.mxu0 %v8890
        %v9002 = vpop.f32.mrf.mxu0
        %v9003 = vadd.f32 %v8794, %v9002
        %9004 = vdwg.mxu0
        %v9005 = vld [vmem:[#allocation3 + $0x9] sm:$0xff]
        %v9006 = vld [vmem:[#allocation3 + $0x11] sm:$0xff]
        %v9007 = vld [vmem:[#allocation3 + $0x29] sm:$0xff]
        %v9008 = vld [vmem:[#allocation3 + $0x31] sm:$0xff]
        %v9009 = vld [vmem:[#allocation3 + $0x49] sm:$0xff]
        %v9010 = vld [vmem:[#allocation3 + $0x51] sm:$0xff]
        %v9011 = vld [vmem:[#allocation3 + $0x69] sm:$0xff]
        %v9012 = vld [vmem:[#allocation3 + $0x71] sm:$0xff]
        %v9013 = vld [vmem:[#allocation3 + $0x89] sm:$0xff]
        %v9014 = vld [vmem:[#allocation3 + $0x91] sm:$0xff]
        %v9015 = vld [vmem:[#allocation3 + $0xa9] sm:$0xff]
        %v9016 = vld [vmem:[#allocation3 + $0xb1] sm:$0xff]
        %v9017 = vld [vmem:[#allocation3 + $0xc9] sm:$0xff]
        %v9018 = vld [vmem:[#allocation3 + $0xd1] sm:$0xff]
        %v9019 = vld [vmem:[#allocation3 + $0xe9] sm:$0xff]
        %v9020 = vld [vmem:[#allocation3 + $0xf1] sm:$0xff]
        %v9021 = vld [vmem:[#allocation3 + $0x109] sm:$0xff]
        %v9022 = vld [vmem:[#allocation3 + $0x111] sm:$0xff]
        %v9023 = vld [vmem:[#allocation3 + $0x129] sm:$0xff]
        %v9024 = vld [vmem:[#allocation3 + $0x131] sm:$0xff]
        %v9025 = vld [vmem:[#allocation3 + $0x149] sm:$0xff]
        %v9026 = vld [vmem:[#allocation3 + $0x151] sm:$0xff]
        %v9027 = vld [vmem:[#allocation3 + $0x169] sm:$0xff]
        %v9028 = vld [vmem:[#allocation3 + $0x171] sm:$0xff]
        %v9029 = vld [vmem:[#allocation3 + $0x189] sm:$0xff]
        %v9030 = vld [vmem:[#allocation3 + $0x191] sm:$0xff]
        %v9031 = vld [vmem:[#allocation3 + $0x1a9] sm:$0xff]
        %v9032 = vld [vmem:[#allocation3 + $0x1b1] sm:$0xff]
        %v9033 = vld [vmem:[#allocation3 + $0x1c9] sm:$0xff]
        %v9034 = vld [vmem:[#allocation3 + $0x1d1] sm:$0xff]
        %v9035 = vld [vmem:[#allocation3 + $0x1e9] sm:$0xff]
        %v9036 = vld [vmem:[#allocation3 + $0x1f1] sm:$0xff]
        %s9037 = scalar_lea.vmem %s3, 1856
        %v9038 = vld [vmem:[%s9037] sm:$0xff]
        %v9039 = vld [vmem:[%s9037 + $0x8] sm:$0xff]
        %v9040 = vld [vmem:[%s9037 + $0x10] sm:$0xff]
        %v9041 = vld [vmem:[%s9037 + $0x18] sm:$0xff]
        %v9042 = vld [vmem:[%s9037 + $0x20] sm:$0xff]
        %v9043 = vld [vmem:[%s9037 + $0x28] sm:$0xff]
        %v9044 = vld [vmem:[%s9037 + $0x30] sm:$0xff]
        %v9045 = vld [vmem:[%s9037 + $0x38] sm:$0xff]
        %v9047 = vsel %vm316, %v9005, 0
        %v9050 = vsel %vm316, %v9006, 0
        %v9053 = vsel %vm316, %v9007, 0
        %v9056 = vsel %vm316, %v9008, 0
        %v9059 = vsel %vm316, %v9009, 0
        %v9062 = vsel %vm316, %v9010, 0
        %v9065 = vsel %vm316, %v9011, 0
        %v9068 = vsel %vm316, %v9012, 0
        %v9071 = vsel %vm316, %v9013, 0
        %v9074 = vsel %vm316, %v9014, 0
        %v9077 = vsel %vm316, %v9015, 0
        %v9080 = vsel %vm316, %v9016, 0
        %v9083 = vsel %vm316, %v9017, 0
        %v9086 = vsel %vm316, %v9018, 0
        %v9089 = vsel %vm316, %v9019, 0
        %v9092 = vsel %vm316, %v9020, 0
        %v9095 = vsel %vm316, %v9021, 0
        %v9098 = vsel %vm316, %v9022, 0
        %v9101 = vsel %vm316, %v9023, 0
        %v9104 = vsel %vm316, %v9024, 0
        %v9107 = vsel %vm316, %v9025, 0
        %v9110 = vsel %vm316, %v9026, 0
        %v9113 = vsel %vm316, %v9027, 0
        %v9116 = vsel %vm316, %v9028, 0
        %v9119 = vsel %vm316, %v9029, 0
        %v9122 = vsel %vm316, %v9030, 0
        %v9125 = vsel %vm316, %v9031, 0
        %v9128 = vsel %vm316, %v9032, 0
        %v9131 = vsel %vm316, %v9033, 0
        %v9134 = vsel %vm316, %v9034, 0
        %v9137 = vsel %vm316, %v9035, 0
        %v9140 = vsel %vm316, %v9036, 0
        %9142 = vmatpush.msra.mxu0 0.0
        %9143 = vmatpush.msra.mxu0 0.0
        %9144 = vmatpush.msra.mxu0 0.0
        %9145 = vmatpush.msra.mxu0 0.0
        %9146 = vmatpush.msra.mxu0 0.0
        %9147 = vmatpush.msra.mxu0 0.0
        %9148 = vmatpush.msra.mxu0 0.0
        %9149 = vmatpush.msra.mxu0 0.0
        %9150 = vmatpush.msra.mxu0 %v9045
        %9151 = vmatpush.msra.mxu0 %v9044
        %9152 = vmatpush.msra.mxu0 %v9043
        %9153 = vmatpush.msra.mxu0 %v9042
        %9154 = vmatpush.msra.mxu0 %v9041
        %9155 = vmatpush.msra.mxu0 %v9040
        %9156 = vmatpush.msra.mxu0 %v9039
        %9157 = vmatpush.msra.mxu0 %v9038
        %9158 = vmatmul.f32.gmra.mxu0 %v9047
        %v9159 = vpop.f32.mrf.mxu0
        %v9160 = vadd.f32 0.0, %v9159
        %9161 = vmatmul.f32.gmra.mxu0 %v9050
        %v9162 = vpop.f32.mrf.mxu0
        %v9163 = vadd.f32 0.0, %v9162
        %9164 = vmatmul.f32.gmra.mxu0 %v9053
        %v9165 = vpop.f32.mrf.mxu0
        %v9166 = vadd.f32 0.0, %v9165
        %9167 = vmatmul.f32.gmra.mxu0 %v9056
        %v9168 = vpop.f32.mrf.mxu0
        %v9169 = vadd.f32 0.0, %v9168
        %9170 = vmatmul.f32.gmra.mxu0 %v9059
        %v9171 = vpop.f32.mrf.mxu0
        %v9172 = vadd.f32 0.0, %v9171
        %9173 = vmatmul.f32.gmra.mxu0 %v9062
        %v9174 = vpop.f32.mrf.mxu0
        %v9175 = vadd.f32 0.0, %v9174
        %9176 = vmatmul.f32.gmra.mxu0 %v9065
        %v9177 = vpop.f32.mrf.mxu0
        %v9178 = vadd.f32 0.0, %v9177
        %9179 = vmatmul.f32.gmra.mxu0 %v9068
        %v9180 = vpop.f32.mrf.mxu0
        %v9181 = vadd.f32 0.0, %v9180
        %9182 = vmatmul.f32.gmra.mxu0 %v9071
        %v9183 = vpop.f32.mrf.mxu0
        %v9184 = vadd.f32 0.0, %v9183
        %9185 = vmatmul.f32.gmra.mxu0 %v9074
        %v9186 = vpop.f32.mrf.mxu0
        %v9187 = vadd.f32 0.0, %v9186
        %9188 = vmatmul.f32.gmra.mxu0 %v9077
        %v9189 = vpop.f32.mrf.mxu0
        %v9190 = vadd.f32 0.0, %v9189
        %9191 = vmatmul.f32.gmra.mxu0 %v9080
        %v9192 = vpop.f32.mrf.mxu0
        %v9193 = vadd.f32 0.0, %v9192
        %9194 = vmatmul.f32.gmra.mxu0 %v9083
        %v9195 = vpop.f32.mrf.mxu0
        %v9196 = vadd.f32 0.0, %v9195
        %9197 = vmatmul.f32.gmra.mxu0 %v9086
        %v9198 = vpop.f32.mrf.mxu0
        %v9199 = vadd.f32 0.0, %v9198
        %9200 = vmatmul.f32.gmra.mxu0 %v9089
        %v9201 = vpop.f32.mrf.mxu0
        %v9202 = vadd.f32 0.0, %v9201
        %9203 = vmatmul.f32.gmra.mxu0 %v9092
        %v9204 = vpop.f32.mrf.mxu0
        %v9205 = vadd.f32 0.0, %v9204
        %9206 = vmatmul.f32.gmra.mxu0 %v9095
        %v9207 = vpop.f32.mrf.mxu0
        %v9208 = vadd.f32 0.0, %v9207
        %9209 = vmatmul.f32.gmra.mxu0 %v9098
        %v9210 = vpop.f32.mrf.mxu0
        %v9211 = vadd.f32 0.0, %v9210
        %9212 = vmatmul.f32.gmra.mxu0 %v9101
        %v9213 = vpop.f32.mrf.mxu0
        %v9214 = vadd.f32 0.0, %v9213
        %9215 = vmatmul.f32.gmra.mxu0 %v9104
        %v9216 = vpop.f32.mrf.mxu0
        %v9217 = vadd.f32 0.0, %v9216
        %9218 = vmatmul.f32.gmra.mxu0 %v9107
        %v9219 = vpop.f32.mrf.mxu0
        %v9220 = vadd.f32 0.0, %v9219
        %9221 = vmatmul.f32.gmra.mxu0 %v9110
        %v9222 = vpop.f32.mrf.mxu0
        %v9223 = vadd.f32 0.0, %v9222
        %9224 = vmatmul.f32.gmra.mxu0 %v9113
        %v9225 = vpop.f32.mrf.mxu0
        %v9226 = vadd.f32 0.0, %v9225
        %9227 = vmatmul.f32.gmra.mxu0 %v9116
        %v9228 = vpop.f32.mrf.mxu0
        %v9229 = vadd.f32 0.0, %v9228
        %9230 = vmatmul.f32.gmra.mxu0 %v9119
        %v9231 = vpop.f32.mrf.mxu0
        %v9232 = vadd.f32 0.0, %v9231
        %9233 = vmatmul.f32.gmra.mxu0 %v9122
        %v9234 = vpop.f32.mrf.mxu0
        %v9235 = vadd.f32 0.0, %v9234
        %9236 = vmatmul.f32.gmra.mxu0 %v9125
        %v9237 = vpop.f32.mrf.mxu0
        %v9238 = vadd.f32 0.0, %v9237
        %9239 = vmatmul.f32.gmra.mxu0 %v9128
        %v9240 = vpop.f32.mrf.mxu0
        %v9241 = vadd.f32 0.0, %v9240
        %9242 = vmatmul.f32.gmra.mxu0 %v9131
        %v9243 = vpop.f32.mrf.mxu0
        %v9244 = vadd.f32 0.0, %v9243
        %9245 = vmatmul.f32.gmra.mxu0 %v9134
        %v9246 = vpop.f32.mrf.mxu0
        %v9247 = vadd.f32 0.0, %v9246
        %9248 = vmatmul.f32.gmra.mxu0 %v9137
        %v9249 = vpop.f32.mrf.mxu0
        %v9250 = vadd.f32 0.0, %v9249
        %9251 = vmatmul.f32.gmra.mxu0 %v9140
        %v9252 = vpop.f32.mrf.mxu0
        %v9253 = vadd.f32 0.0, %v9252
        %9254 = vdwg.mxu0
        %v9255 = vadd.f32 %v8910, %v9160
        %v9256 = vadd.f32 %v8913, %v9163
        %v9257 = vadd.f32 %v8916, %v9166
        %v9258 = vadd.f32 %v8919, %v9169
        %v9259 = vadd.f32 %v8922, %v9172
        %v9260 = vadd.f32 %v8925, %v9175
        %v9261 = vadd.f32 %v8928, %v9178
        %v9262 = vadd.f32 %v8931, %v9181
        %v9263 = vadd.f32 %v8934, %v9184
        %v9264 = vadd.f32 %v8937, %v9187
        %v9265 = vadd.f32 %v8940, %v9190
        %v9266 = vadd.f32 %v8943, %v9193
        %v9267 = vadd.f32 %v8946, %v9196
        %v9268 = vadd.f32 %v8949, %v9199
        %v9269 = vadd.f32 %v8952, %v9202
        %v9270 = vadd.f32 %v8955, %v9205
        %v9271 = vadd.f32 %v8958, %v9208
        %v9272 = vadd.f32 %v8961, %v9211
        %v9273 = vadd.f32 %v8964, %v9214
        %v9274 = vadd.f32 %v8967, %v9217
        %v9275 = vadd.f32 %v8970, %v9220
        %v9276 = vadd.f32 %v8973, %v9223
        %v9277 = vadd.f32 %v8976, %v9226
        %v9278 = vadd.f32 %v8979, %v9229
        %v9279 = vadd.f32 %v8982, %v9232
        %v9280 = vadd.f32 %v8985, %v9235
        %v9281 = vadd.f32 %v8988, %v9238
        %v9282 = vadd.f32 %v8991, %v9241
        %v9283 = vadd.f32 %v8994, %v9244
        %v9284 = vadd.f32 %v8997, %v9247
        %v9285 = vadd.f32 %v9000, %v9250
        %v9286 = vadd.f32 %v9003, %v9253
        %v9287 = vld [vmem:[%s369 + $0x7] sm:$0xff]
        %v9288 = vld [vmem:[%s369 + $0xf] sm:$0xff]
        %v9289 = vld [vmem:[%s369 + $0x27] sm:$0xff]
        %v9290 = vld [vmem:[%s369 + $0x2f] sm:$0xff]
        %v9291 = vld [vmem:[%s369 + $0x47] sm:$0xff]
        %v9292 = vld [vmem:[%s369 + $0x4f] sm:$0xff]
        %v9293 = vld [vmem:[%s369 + $0x67] sm:$0xff]
        %v9294 = vld [vmem:[%s369 + $0x6f] sm:$0xff]
        %v9295 = vld [vmem:[%s369 + $0x87] sm:$0xff]
        %v9296 = vld [vmem:[%s369 + $0x8f] sm:$0xff]
        %v9297 = vld [vmem:[%s369 + $0xa7] sm:$0xff]
        %v9298 = vld [vmem:[%s369 + $0xaf] sm:$0xff]
        %v9299 = vld [vmem:[%s369 + $0xc7] sm:$0xff]
        %v9300 = vld [vmem:[%s369 + $0xcf] sm:$0xff]
        %v9301 = vld [vmem:[%s369 + $0xe7] sm:$0xff]
        %v9302 = vld [vmem:[%s369 + $0xef] sm:$0xff]
        %v9303 = vld [vmem:[%s369 + $0x107] sm:$0xff]
        %v9304 = vld [vmem:[%s369 + $0x10f] sm:$0xff]
        %v9305 = vld [vmem:[%s369 + $0x127] sm:$0xff]
        %v9306 = vld [vmem:[%s369 + $0x12f] sm:$0xff]
        %v9307 = vld [vmem:[%s369 + $0x147] sm:$0xff]
        %v9308 = vld [vmem:[%s369 + $0x14f] sm:$0xff]
        %v9309 = vld [vmem:[%s369 + $0x167] sm:$0xff]
        %v9310 = vld [vmem:[%s369 + $0x16f] sm:$0xff]
        %v9311 = vld [vmem:[%s369 + $0x187] sm:$0xff]
        %v9312 = vld [vmem:[%s369 + $0x18f] sm:$0xff]
        %v9313 = vld [vmem:[%s369 + $0x1a7] sm:$0xff]
        %v9314 = vld [vmem:[%s369 + $0x1af] sm:$0xff]
        %v9315 = vld [vmem:[%s369 + $0x1c7] sm:$0xff]
        %v9316 = vld [vmem:[%s369 + $0x1cf] sm:$0xff]
        %v9317 = vld [vmem:[%s369 + $0x1e7] sm:$0xff]
        %v9318 = vld [vmem:[%s369 + $0x1ef] sm:$0xff]
        %s9319 = scalar_lea.vmem %s3, 1920
        %v9320 = vld [vmem:[%s9319] sm:$0xff]
        %v9321 = vld [vmem:[%s9319 + $0x8] sm:$0xff]
        %v9322 = vld [vmem:[%s9319 + $0x10] sm:$0xff]
        %v9323 = vld [vmem:[%s9319 + $0x18] sm:$0xff]
        %v9324 = vld [vmem:[%s9319 + $0x20] sm:$0xff]
        %v9325 = vld [vmem:[%s9319 + $0x28] sm:$0xff]
        %v9326 = vld [vmem:[%s9319 + $0x30] sm:$0xff]
        %v9327 = vld [vmem:[%s9319 + $0x38] sm:$0xff]
        %v9329 = vsel %vm316, %v9287, 0
        %v9332 = vsel %vm316, %v9288, 0
        %v9335 = vsel %vm316, %v9289, 0
        %v9338 = vsel %vm316, %v9290, 0
        %v9341 = vsel %vm316, %v9291, 0
        %v9344 = vsel %vm316, %v9292, 0
        %v9347 = vsel %vm316, %v9293, 0
        %v9350 = vsel %vm316, %v9294, 0
        %v9353 = vsel %vm316, %v9295, 0
        %v9356 = vsel %vm316, %v9296, 0
        %v9359 = vsel %vm316, %v9297, 0
        %v9362 = vsel %vm316, %v9298, 0
        %v9365 = vsel %vm316, %v9299, 0
        %v9368 = vsel %vm316, %v9300, 0
        %v9371 = vsel %vm316, %v9301, 0
        %v9374 = vsel %vm316, %v9302, 0
        %v9377 = vsel %vm316, %v9303, 0
        %v9380 = vsel %vm316, %v9304, 0
        %v9383 = vsel %vm316, %v9305, 0
        %v9386 = vsel %vm316, %v9306, 0
        %v9389 = vsel %vm316, %v9307, 0
        %v9392 = vsel %vm316, %v9308, 0
        %v9395 = vsel %vm316, %v9309, 0
        %v9398 = vsel %vm316, %v9310, 0
        %v9401 = vsel %vm316, %v9311, 0
        %v9404 = vsel %vm316, %v9312, 0
        %v9407 = vsel %vm316, %v9313, 0
        %v9410 = vsel %vm316, %v9314, 0
        %v9413 = vsel %vm316, %v9315, 0
        %v9416 = vsel %vm316, %v9316, 0
        %v9419 = vsel %vm316, %v9317, 0
        %v9422 = vsel %vm316, %v9318, 0
        %9424 = vmatpush.msra.mxu0 0.0
        %9425 = vmatpush.msra.mxu0 0.0
        %9426 = vmatpush.msra.mxu0 0.0
        %9427 = vmatpush.msra.mxu0 0.0
        %9428 = vmatpush.msra.mxu0 0.0
        %9429 = vmatpush.msra.mxu0 0.0
        %9430 = vmatpush.msra.mxu0 0.0
        %9431 = vmatpush.msra.mxu0 0.0
        %9432 = vmatpush.msra.mxu0 %v9327
        %9433 = vmatpush.msra.mxu0 %v9326
        %9434 = vmatpush.msra.mxu0 %v9325
        %9435 = vmatpush.msra.mxu0 %v9324
        %9436 = vmatpush.msra.mxu0 %v9323
        %9437 = vmatpush.msra.mxu0 %v9322
        %9438 = vmatpush.msra.mxu0 %v9321
        %9439 = vmatpush.msra.mxu0 %v9320
        %9440 = vmatmul.f32.gmra.mxu0 %v9329
        %v9441 = vpop.f32.mrf.mxu0
        %v9442 = vadd.f32 0.0, %v9441
        %9443 = vmatmul.f32.gmra.mxu0 %v9332
        %v9444 = vpop.f32.mrf.mxu0
        %v9445 = vadd.f32 0.0, %v9444
        %9446 = vmatmul.f32.gmra.mxu0 %v9335
        %v9447 = vpop.f32.mrf.mxu0
        %v9448 = vadd.f32 0.0, %v9447
        %9449 = vmatmul.f32.gmra.mxu0 %v9338
        %v9450 = vpop.f32.mrf.mxu0
        %v9451 = vadd.f32 0.0, %v9450
        %9452 = vmatmul.f32.gmra.mxu0 %v9341
        %v9453 = vpop.f32.mrf.mxu0
        %v9454 = vadd.f32 0.0, %v9453
        %9455 = vmatmul.f32.gmra.mxu0 %v9344
        %v9456 = vpop.f32.mrf.mxu0
        %v9457 = vadd.f32 0.0, %v9456
        %9458 = vmatmul.f32.gmra.mxu0 %v9347
        %v9459 = vpop.f32.mrf.mxu0
        %v9460 = vadd.f32 0.0, %v9459
        %9461 = vmatmul.f32.gmra.mxu0 %v9350
        %v9462 = vpop.f32.mrf.mxu0
        %v9463 = vadd.f32 0.0, %v9462
        %9464 = vmatmul.f32.gmra.mxu0 %v9353
        %v9465 = vpop.f32.mrf.mxu0
        %v9466 = vadd.f32 0.0, %v9465
        %9467 = vmatmul.f32.gmra.mxu0 %v9356
        %v9468 = vpop.f32.mrf.mxu0
        %v9469 = vadd.f32 0.0, %v9468
        %9470 = vmatmul.f32.gmra.mxu0 %v9359
        %v9471 = vpop.f32.mrf.mxu0
        %v9472 = vadd.f32 0.0, %v9471
        %9473 = vmatmul.f32.gmra.mxu0 %v9362
        %v9474 = vpop.f32.mrf.mxu0
        %v9475 = vadd.f32 0.0, %v9474
        %9476 = vmatmul.f32.gmra.mxu0 %v9365
        %v9477 = vpop.f32.mrf.mxu0
        %v9478 = vadd.f32 0.0, %v9477
        %9479 = vmatmul.f32.gmra.mxu0 %v9368
        %v9480 = vpop.f32.mrf.mxu0
        %v9481 = vadd.f32 0.0, %v9480
        %9482 = vmatmul.f32.gmra.mxu0 %v9371
        %v9483 = vpop.f32.mrf.mxu0
        %v9484 = vadd.f32 0.0, %v9483
        %9485 = vmatmul.f32.gmra.mxu0 %v9374
        %v9486 = vpop.f32.mrf.mxu0
        %v9487 = vadd.f32 0.0, %v9486
        %9488 = vmatmul.f32.gmra.mxu0 %v9377
        %v9489 = vpop.f32.mrf.mxu0
        %v9490 = vadd.f32 0.0, %v9489
        %9491 = vmatmul.f32.gmra.mxu0 %v9380
        %v9492 = vpop.f32.mrf.mxu0
        %v9493 = vadd.f32 0.0, %v9492
        %9494 = vmatmul.f32.gmra.mxu0 %v9383
        %v9495 = vpop.f32.mrf.mxu0
        %v9496 = vadd.f32 0.0, %v9495
        %9497 = vmatmul.f32.gmra.mxu0 %v9386
        %v9498 = vpop.f32.mrf.mxu0
        %v9499 = vadd.f32 0.0, %v9498
        %9500 = vmatmul.f32.gmra.mxu0 %v9389
        %v9501 = vpop.f32.mrf.mxu0
        %v9502 = vadd.f32 0.0, %v9501
        %9503 = vmatmul.f32.gmra.mxu0 %v9392
        %v9504 = vpop.f32.mrf.mxu0
        %v9505 = vadd.f32 0.0, %v9504
        %9506 = vmatmul.f32.gmra.mxu0 %v9395
        %v9507 = vpop.f32.mrf.mxu0
        %v9508 = vadd.f32 0.0, %v9507
        %9509 = vmatmul.f32.gmra.mxu0 %v9398
        %v9510 = vpop.f32.mrf.mxu0
        %v9511 = vadd.f32 0.0, %v9510
        %9512 = vmatmul.f32.gmra.mxu0 %v9401
        %v9513 = vpop.f32.mrf.mxu0
        %v9514 = vadd.f32 0.0, %v9513
        %9515 = vmatmul.f32.gmra.mxu0 %v9404
        %v9516 = vpop.f32.mrf.mxu0
        %v9517 = vadd.f32 0.0, %v9516
        %9518 = vmatmul.f32.gmra.mxu0 %v9407
        %v9519 = vpop.f32.mrf.mxu0
        %v9520 = vadd.f32 0.0, %v9519
        %9521 = vmatmul.f32.gmra.mxu0 %v9410
        %v9522 = vpop.f32.mrf.mxu0
        %v9523 = vadd.f32 0.0, %v9522
        %9524 = vmatmul.f32.gmra.mxu0 %v9413
        %v9525 = vpop.f32.mrf.mxu0
        %v9526 = vadd.f32 0.0, %v9525
        %9527 = vmatmul.f32.gmra.mxu0 %v9416
        %v9528 = vpop.f32.mrf.mxu0
        %v9529 = vadd.f32 0.0, %v9528
        %9530 = vmatmul.f32.gmra.mxu0 %v9419
        %v9531 = vpop.f32.mrf.mxu0
        %v9532 = vadd.f32 0.0, %v9531
        %9533 = vmatmul.f32.gmra.mxu0 %v9422
        %v9534 = vpop.f32.mrf.mxu0
        %v9535 = vadd.f32 0.0, %v9534
        %9536 = vdwg.mxu0
        %v9537 = vadd.f32 %v9255, %v9442
        %v9538 = vadd.f32 %v9256, %v9445
        %v9539 = vadd.f32 %v9257, %v9448
        %v9540 = vadd.f32 %v9258, %v9451
        %v9541 = vadd.f32 %v9259, %v9454
        %v9542 = vadd.f32 %v9260, %v9457
        %v9543 = vadd.f32 %v9261, %v9460
        %v9544 = vadd.f32 %v9262, %v9463
        %v9545 = vadd.f32 %v9263, %v9466
        %v9546 = vadd.f32 %v9264, %v9469
        %v9547 = vadd.f32 %v9265, %v9472
        %v9548 = vadd.f32 %v9266, %v9475
        %v9549 = vadd.f32 %v9267, %v9478
        %v9550 = vadd.f32 %v9268, %v9481
        %v9551 = vadd.f32 %v9269, %v9484
        %v9552 = vadd.f32 %v9270, %v9487
        %v9553 = vadd.f32 %v9271, %v9490
        %v9554 = vadd.f32 %v9272, %v9493
        %v9555 = vadd.f32 %v9273, %v9496
        %v9556 = vadd.f32 %v9274, %v9499
        %v9557 = vadd.f32 %v9275, %v9502
        %v9558 = vadd.f32 %v9276, %v9505
        %v9559 = vadd.f32 %v9277, %v9508
        %v9560 = vadd.f32 %v9278, %v9511
        %v9561 = vadd.f32 %v9279, %v9514
        %v9562 = vadd.f32 %v9280, %v9517
        %v9563 = vadd.f32 %v9281, %v9520
        %v9564 = vadd.f32 %v9282, %v9523
        %v9565 = vadd.f32 %v9283, %v9526
        %v9566 = vadd.f32 %v9284, %v9529
        %v9567 = vadd.f32 %v9285, %v9532
        %v9568 = vadd.f32 %v9286, %v9535
        %v9569 = vld [vmem:[%s369 + $0x8] sm:$0xff]
        %v9570 = vld [vmem:[%s369 + $0x10] sm:$0xff]
        %v9571 = vld [vmem:[%s369 + $0x28] sm:$0xff]
        %v9572 = vld [vmem:[%s369 + $0x30] sm:$0xff]
        %v9573 = vld [vmem:[%s369 + $0x48] sm:$0xff]
        %v9574 = vld [vmem:[%s369 + $0x50] sm:$0xff]
        %v9575 = vld [vmem:[%s369 + $0x68] sm:$0xff]
        %v9576 = vld [vmem:[%s369 + $0x70] sm:$0xff]
        %v9577 = vld [vmem:[%s369 + $0x88] sm:$0xff]
        %v9578 = vld [vmem:[%s369 + $0x90] sm:$0xff]
        %v9579 = vld [vmem:[%s369 + $0xa8] sm:$0xff]
        %v9580 = vld [vmem:[%s369 + $0xb0] sm:$0xff]
        %v9581 = vld [vmem:[%s369 + $0xc8] sm:$0xff]
        %v9582 = vld [vmem:[%s369 + $0xd0] sm:$0xff]
        %v9583 = vld [vmem:[%s369 + $0xe8] sm:$0xff]
        %v9584 = vld [vmem:[%s369 + $0xf0] sm:$0xff]
        %v9585 = vld [vmem:[%s369 + $0x108] sm:$0xff]
        %v9586 = vld [vmem:[%s369 + $0x110] sm:$0xff]
        %v9587 = vld [vmem:[%s369 + $0x128] sm:$0xff]
        %v9588 = vld [vmem:[%s369 + $0x130] sm:$0xff]
        %v9589 = vld [vmem:[%s369 + $0x148] sm:$0xff]
        %v9590 = vld [vmem:[%s369 + $0x150] sm:$0xff]
        %v9591 = vld [vmem:[%s369 + $0x168] sm:$0xff]
        %v9592 = vld [vmem:[%s369 + $0x170] sm:$0xff]
        %v9593 = vld [vmem:[%s369 + $0x188] sm:$0xff]
        %v9594 = vld [vmem:[%s369 + $0x190] sm:$0xff]
        %v9595 = vld [vmem:[%s369 + $0x1a8] sm:$0xff]
        %v9596 = vld [vmem:[%s369 + $0x1b0] sm:$0xff]
        %v9597 = vld [vmem:[%s369 + $0x1c8] sm:$0xff]
        %v9598 = vld [vmem:[%s369 + $0x1d0] sm:$0xff]
        %v9599 = vld [vmem:[%s369 + $0x1e8] sm:$0xff]
        %v9600 = vld [vmem:[%s369 + $0x1f0] sm:$0xff]
        %s9601 = scalar_lea.vmem %s3, 1984
        %v9602 = vld [vmem:[%s9601] sm:$0xff]
        %v9603 = vld [vmem:[%s9601 + $0x8] sm:$0xff]
        %v9604 = vld [vmem:[%s9601 + $0x10] sm:$0xff]
        %v9605 = vld [vmem:[%s9601 + $0x18] sm:$0xff]
        %v9606 = vld [vmem:[%s9601 + $0x20] sm:$0xff]
        %v9607 = vld [vmem:[%s9601 + $0x28] sm:$0xff]
        %v9608 = vld [vmem:[%s9601 + $0x30] sm:$0xff]
        %v9609 = vld [vmem:[%s9601 + $0x38] sm:$0xff]
        %v9611 = vsel %vm316, %v9569, 0
        %v9614 = vsel %vm316, %v9570, 0
        %v9617 = vsel %vm316, %v9571, 0
        %v9620 = vsel %vm316, %v9572, 0
        %v9623 = vsel %vm316, %v9573, 0
        %v9626 = vsel %vm316, %v9574, 0
        %v9629 = vsel %vm316, %v9575, 0
        %v9632 = vsel %vm316, %v9576, 0
        %v9635 = vsel %vm316, %v9577, 0
        %v9638 = vsel %vm316, %v9578, 0
        %v9641 = vsel %vm316, %v9579, 0
        %v9644 = vsel %vm316, %v9580, 0
        %v9647 = vsel %vm316, %v9581, 0
        %v9650 = vsel %vm316, %v9582, 0
        %v9653 = vsel %vm316, %v9583, 0
        %v9656 = vsel %vm316, %v9584, 0
        %v9659 = vsel %vm316, %v9585, 0
        %v9662 = vsel %vm316, %v9586, 0
        %v9665 = vsel %vm316, %v9587, 0
        %v9668 = vsel %vm316, %v9588, 0
        %v9671 = vsel %vm316, %v9589, 0
        %v9674 = vsel %vm316, %v9590, 0
        %v9677 = vsel %vm316, %v9591, 0
        %v9680 = vsel %vm316, %v9592, 0
        %v9683 = vsel %vm316, %v9593, 0
        %v9686 = vsel %vm316, %v9594, 0
        %v9689 = vsel %vm316, %v9595, 0
        %v9692 = vsel %vm316, %v9596, 0
        %v9695 = vsel %vm316, %v9597, 0
        %v9698 = vsel %vm316, %v9598, 0
        %v9701 = vsel %vm316, %v9599, 0
        %v9704 = vsel %vm316, %v9600, 0
        %9706 = vmatpush.msra.mxu0 0.0
        %9707 = vmatpush.msra.mxu0 0.0
        %9708 = vmatpush.msra.mxu0 0.0
        %9709 = vmatpush.msra.mxu0 0.0
        %9710 = vmatpush.msra.mxu0 0.0
        %9711 = vmatpush.msra.mxu0 0.0
        %9712 = vmatpush.msra.mxu0 0.0
        %9713 = vmatpush.msra.mxu0 0.0
        %9714 = vmatpush.msra.mxu0 %v9609
        %9715 = vmatpush.msra.mxu0 %v9608
        %9716 = vmatpush.msra.mxu0 %v9607
        %9717 = vmatpush.msra.mxu0 %v9606
        %9718 = vmatpush.msra.mxu0 %v9605
        %9719 = vmatpush.msra.mxu0 %v9604
        %9720 = vmatpush.msra.mxu0 %v9603
        %9721 = vmatpush.msra.mxu0 %v9602
        %9722 = vmatmul.f32.gmra.mxu0 %v9611
        %v9723 = vpop.f32.mrf.mxu0
        %v9724 = vadd.f32 0.0, %v9723
        %9725 = vmatmul.f32.gmra.mxu0 %v9614
        %v9726 = vpop.f32.mrf.mxu0
        %v9727 = vadd.f32 0.0, %v9726
        %9728 = vmatmul.f32.gmra.mxu0 %v9617
        %v9729 = vpop.f32.mrf.mxu0
        %v9730 = vadd.f32 0.0, %v9729
        %9731 = vmatmul.f32.gmra.mxu0 %v9620
        %v9732 = vpop.f32.mrf.mxu0
        %v9733 = vadd.f32 0.0, %v9732
        %9734 = vmatmul.f32.gmra.mxu0 %v9623
        %v9735 = vpop.f32.mrf.mxu0
        %v9736 = vadd.f32 0.0, %v9735
        %9737 = vmatmul.f32.gmra.mxu0 %v9626
        %v9738 = vpop.f32.mrf.mxu0
        %v9739 = vadd.f32 0.0, %v9738
        %9740 = vmatmul.f32.gmra.mxu0 %v9629
        %v9741 = vpop.f32.mrf.mxu0
        %v9742 = vadd.f32 0.0, %v9741
        %9743 = vmatmul.f32.gmra.mxu0 %v9632
        %v9744 = vpop.f32.mrf.mxu0
        %v9745 = vadd.f32 0.0, %v9744
        %9746 = vmatmul.f32.gmra.mxu0 %v9635
        %v9747 = vpop.f32.mrf.mxu0
        %v9748 = vadd.f32 0.0, %v9747
        %9749 = vmatmul.f32.gmra.mxu0 %v9638
        %v9750 = vpop.f32.mrf.mxu0
        %v9751 = vadd.f32 0.0, %v9750
        %9752 = vmatmul.f32.gmra.mxu0 %v9641
        %v9753 = vpop.f32.mrf.mxu0
        %v9754 = vadd.f32 0.0, %v9753
        %9755 = vmatmul.f32.gmra.mxu0 %v9644
        %v9756 = vpop.f32.mrf.mxu0
        %v9757 = vadd.f32 0.0, %v9756
        %9758 = vmatmul.f32.gmra.mxu0 %v9647
        %v9759 = vpop.f32.mrf.mxu0
        %v9760 = vadd.f32 0.0, %v9759
        %9761 = vmatmul.f32.gmra.mxu0 %v9650
        %v9762 = vpop.f32.mrf.mxu0
        %v9763 = vadd.f32 0.0, %v9762
        %9764 = vmatmul.f32.gmra.mxu0 %v9653
        %v9765 = vpop.f32.mrf.mxu0
        %v9766 = vadd.f32 0.0, %v9765
        %9767 = vmatmul.f32.gmra.mxu0 %v9656
        %v9768 = vpop.f32.mrf.mxu0
        %v9769 = vadd.f32 0.0, %v9768
        %9770 = vmatmul.f32.gmra.mxu0 %v9659
        %v9771 = vpop.f32.mrf.mxu0
        %v9772 = vadd.f32 0.0, %v9771
        %9773 = vmatmul.f32.gmra.mxu0 %v9662
        %v9774 = vpop.f32.mrf.mxu0
        %v9775 = vadd.f32 0.0, %v9774
        %9776 = vmatmul.f32.gmra.mxu0 %v9665
        %v9777 = vpop.f32.mrf.mxu0
        %v9778 = vadd.f32 0.0, %v9777
        %9779 = vmatmul.f32.gmra.mxu0 %v9668
        %v9780 = vpop.f32.mrf.mxu0
        %v9781 = vadd.f32 0.0, %v9780
        %9782 = vmatmul.f32.gmra.mxu0 %v9671
        %v9783 = vpop.f32.mrf.mxu0
        %v9784 = vadd.f32 0.0, %v9783
        %9785 = vmatmul.f32.gmra.mxu0 %v9674
        %v9786 = vpop.f32.mrf.mxu0
        %v9787 = vadd.f32 0.0, %v9786
        %9788 = vmatmul.f32.gmra.mxu0 %v9677
        %v9789 = vpop.f32.mrf.mxu0
        %v9790 = vadd.f32 0.0, %v9789
        %9791 = vmatmul.f32.gmra.mxu0 %v9680
        %v9792 = vpop.f32.mrf.mxu0
        %v9793 = vadd.f32 0.0, %v9792
        %9794 = vmatmul.f32.gmra.mxu0 %v9683
        %v9795 = vpop.f32.mrf.mxu0
        %v9796 = vadd.f32 0.0, %v9795
        %9797 = vmatmul.f32.gmra.mxu0 %v9686
        %v9798 = vpop.f32.mrf.mxu0
        %v9799 = vadd.f32 0.0, %v9798
        %9800 = vmatmul.f32.gmra.mxu0 %v9689
        %v9801 = vpop.f32.mrf.mxu0
        %v9802 = vadd.f32 0.0, %v9801
        %9803 = vmatmul.f32.gmra.mxu0 %v9692
        %v9804 = vpop.f32.mrf.mxu0
        %v9805 = vadd.f32 0.0, %v9804
        %9806 = vmatmul.f32.gmra.mxu0 %v9695
        %v9807 = vpop.f32.mrf.mxu0
        %v9808 = vadd.f32 0.0, %v9807
        %9809 = vmatmul.f32.gmra.mxu0 %v9698
        %v9810 = vpop.f32.mrf.mxu0
        %v9811 = vadd.f32 0.0, %v9810
        %9812 = vmatmul.f32.gmra.mxu0 %v9701
        %v9813 = vpop.f32.mrf.mxu0
        %v9814 = vadd.f32 0.0, %v9813
        %9815 = vmatmul.f32.gmra.mxu0 %v9704
        %v9816 = vpop.f32.mrf.mxu0
        %v9817 = vadd.f32 0.0, %v9816
        %9818 = vdwg.mxu0
        %v9819 = vadd.f32 %v9537, %v9724
        %v9820 = vadd.f32 %v9538, %v9727
        %v9821 = vadd.f32 %v9539, %v9730
        %v9822 = vadd.f32 %v9540, %v9733
        %v9823 = vadd.f32 %v9541, %v9736
        %v9824 = vadd.f32 %v9542, %v9739
        %v9825 = vadd.f32 %v9543, %v9742
        %v9826 = vadd.f32 %v9544, %v9745
        %v9827 = vadd.f32 %v9545, %v9748
        %v9828 = vadd.f32 %v9546, %v9751
        %v9829 = vadd.f32 %v9547, %v9754
        %v9830 = vadd.f32 %v9548, %v9757
        %v9831 = vadd.f32 %v9549, %v9760
        %v9832 = vadd.f32 %v9550, %v9763
        %v9833 = vadd.f32 %v9551, %v9766
        %v9834 = vadd.f32 %v9552, %v9769
        %v9835 = vadd.f32 %v9553, %v9772
        %v9836 = vadd.f32 %v9554, %v9775
        %v9837 = vadd.f32 %v9555, %v9778
        %v9838 = vadd.f32 %v9556, %v9781
        %v9839 = vadd.f32 %v9557, %v9784
        %v9840 = vadd.f32 %v9558, %v9787
        %v9841 = vadd.f32 %v9559, %v9790
        %v9842 = vadd.f32 %v9560, %v9793
        %v9843 = vadd.f32 %v9561, %v9796
        %v9844 = vadd.f32 %v9562, %v9799
        %v9845 = vadd.f32 %v9563, %v9802
        %v9846 = vadd.f32 %v9564, %v9805
        %v9847 = vadd.f32 %v9565, %v9808
        %v9848 = vadd.f32 %v9566, %v9811
        %v9849 = vadd.f32 %v9567, %v9814
        %v9850 = vadd.f32 %v9568, %v9817
        %v9851 = vld [vmem:[%s369 + $0x9] sm:$0xff]
        %v9852 = vld [vmem:[%s369 + $0x11] sm:$0xff]
        %v9853 = vld [vmem:[%s369 + $0x29] sm:$0xff]
        %v9854 = vld [vmem:[%s369 + $0x31] sm:$0xff]
        %v9855 = vld [vmem:[%s369 + $0x49] sm:$0xff]
        %v9856 = vld [vmem:[%s369 + $0x51] sm:$0xff]
        %v9857 = vld [vmem:[%s369 + $0x69] sm:$0xff]
        %v9858 = vld [vmem:[%s369 + $0x71] sm:$0xff]
        %v9859 = vld [vmem:[%s369 + $0x89] sm:$0xff]
        %v9860 = vld [vmem:[%s369 + $0x91] sm:$0xff]
        %v9861 = vld [vmem:[%s369 + $0xa9] sm:$0xff]
        %v9862 = vld [vmem:[%s369 + $0xb1] sm:$0xff]
        %v9863 = vld [vmem:[%s369 + $0xc9] sm:$0xff]
        %v9864 = vld [vmem:[%s369 + $0xd1] sm:$0xff]
        %v9865 = vld [vmem:[%s369 + $0xe9] sm:$0xff]
        %v9866 = vld [vmem:[%s369 + $0xf1] sm:$0xff]
        %v9867 = vld [vmem:[%s369 + $0x109] sm:$0xff]
        %v9868 = vld [vmem:[%s369 + $0x111] sm:$0xff]
        %v9869 = vld [vmem:[%s369 + $0x129] sm:$0xff]
        %v9870 = vld [vmem:[%s369 + $0x131] sm:$0xff]
        %v9871 = vld [vmem:[%s369 + $0x149] sm:$0xff]
        %v9872 = vld [vmem:[%s369 + $0x151] sm:$0xff]
        %v9873 = vld [vmem:[%s369 + $0x169] sm:$0xff]
        %v9874 = vld [vmem:[%s369 + $0x171] sm:$0xff]
        %v9875 = vld [vmem:[%s369 + $0x189] sm:$0xff]
        %v9876 = vld [vmem:[%s369 + $0x191] sm:$0xff]
        %v9877 = vld [vmem:[%s369 + $0x1a9] sm:$0xff]
        %v9878 = vld [vmem:[%s369 + $0x1b1] sm:$0xff]
        %v9879 = vld [vmem:[%s369 + $0x1c9] sm:$0xff]
        %v9880 = vld [vmem:[%s369 + $0x1d1] sm:$0xff]
        %v9881 = vld [vmem:[%s369 + $0x1e9] sm:$0xff]
        %v9882 = vld [vmem:[%s369 + $0x1f1] sm:$0xff]
        %s9883 = scalar_lea.vmem %s3, 2048
        %v9884 = vld [vmem:[%s9883] sm:$0xff]
        %v9885 = vld [vmem:[%s9883 + $0x8] sm:$0xff]
        %v9886 = vld [vmem:[%s9883 + $0x10] sm:$0xff]
        %v9887 = vld [vmem:[%s9883 + $0x18] sm:$0xff]
        %v9888 = vld [vmem:[%s9883 + $0x20] sm:$0xff]
        %v9889 = vld [vmem:[%s9883 + $0x28] sm:$0xff]
        %v9890 = vld [vmem:[%s9883 + $0x30] sm:$0xff]
        %v9891 = vld [vmem:[%s9883 + $0x38] sm:$0xff]
        %v9893 = vsel %vm316, %v9851, 0
        %v9896 = vsel %vm316, %v9852, 0
        %v9899 = vsel %vm316, %v9853, 0
        %v9902 = vsel %vm316, %v9854, 0
        %v9905 = vsel %vm316, %v9855, 0
        %v9908 = vsel %vm316, %v9856, 0
        %v9911 = vsel %vm316, %v9857, 0
        %v9914 = vsel %vm316, %v9858, 0
        %v9917 = vsel %vm316, %v9859, 0
        %v9920 = vsel %vm316, %v9860, 0
        %v9923 = vsel %vm316, %v9861, 0
        %v9926 = vsel %vm316, %v9862, 0
        %v9929 = vsel %vm316, %v9863, 0
        %v9932 = vsel %vm316, %v9864, 0
        %v9935 = vsel %vm316, %v9865, 0
        %v9938 = vsel %vm316, %v9866, 0
        %v9941 = vsel %vm316, %v9867, 0
        %v9944 = vsel %vm316, %v9868, 0
        %v9947 = vsel %vm316, %v9869, 0
        %v9950 = vsel %vm316, %v9870, 0
        %v9953 = vsel %vm316, %v9871, 0
        %v9956 = vsel %vm316, %v9872, 0
        %v9959 = vsel %vm316, %v9873, 0
        %v9962 = vsel %vm316, %v9874, 0
        %v9965 = vsel %vm316, %v9875, 0
        %v9968 = vsel %vm316, %v9876, 0
        %v9971 = vsel %vm316, %v9877, 0
        %v9974 = vsel %vm316, %v9878, 0
        %v9977 = vsel %vm316, %v9879, 0
        %v9980 = vsel %vm316, %v9880, 0
        %v9983 = vsel %vm316, %v9881, 0
        %v9986 = vsel %vm316, %v9882, 0
        %9988 = vmatpush.msra.mxu0 0.0
        %9989 = vmatpush.msra.mxu0 0.0
        %9990 = vmatpush.msra.mxu0 0.0
        %9991 = vmatpush.msra.mxu0 0.0
        %9992 = vmatpush.msra.mxu0 0.0
        %9993 = vmatpush.msra.mxu0 0.0
        %9994 = vmatpush.msra.mxu0 0.0
        %9995 = vmatpush.msra.mxu0 0.0
        %9996 = vmatpush.msra.mxu0 %v9891
        %9997 = vmatpush.msra.mxu0 %v9890
        %9998 = vmatpush.msra.mxu0 %v9889
        %9999 = vmatpush.msra.mxu0 %v9888
        %10000 = vmatpush.msra.mxu0 %v9887
        %10001 = vmatpush.msra.mxu0 %v9886
        %10002 = vmatpush.msra.mxu0 %v9885
        %10003 = vmatpush.msra.mxu0 %v9884
        %10004 = vmatmul.f32.gmra.mxu0 %v9893
        %v10005 = vpop.f32.mrf.mxu0
        %v10006 = vadd.f32 0.0, %v10005
        %10007 = vmatmul.f32.gmra.mxu0 %v9896
        %v10008 = vpop.f32.mrf.mxu0
        %v10009 = vadd.f32 0.0, %v10008
        %10010 = vmatmul.f32.gmra.mxu0 %v9899
        %v10011 = vpop.f32.mrf.mxu0
        %v10012 = vadd.f32 0.0, %v10011
        %10013 = vmatmul.f32.gmra.mxu0 %v9902
        %v10014 = vpop.f32.mrf.mxu0
        %v10015 = vadd.f32 0.0, %v10014
        %10016 = vmatmul.f32.gmra.mxu0 %v9905
        %v10017 = vpop.f32.mrf.mxu0
        %v10018 = vadd.f32 0.0, %v10017
        %10019 = vmatmul.f32.gmra.mxu0 %v9908
        %v10020 = vpop.f32.mrf.mxu0
        %v10021 = vadd.f32 0.0, %v10020
        %10022 = vmatmul.f32.gmra.mxu0 %v9911
        %v10023 = vpop.f32.mrf.mxu0
        %v10024 = vadd.f32 0.0, %v10023
        %10025 = vmatmul.f32.gmra.mxu0 %v9914
        %v10026 = vpop.f32.mrf.mxu0
        %v10027 = vadd.f32 0.0, %v10026
        %10028 = vmatmul.f32.gmra.mxu0 %v9917
        %v10029 = vpop.f32.mrf.mxu0
        %v10030 = vadd.f32 0.0, %v10029
        %10031 = vmatmul.f32.gmra.mxu0 %v9920
        %v10032 = vpop.f32.mrf.mxu0
        %v10033 = vadd.f32 0.0, %v10032
        %10034 = vmatmul.f32.gmra.mxu0 %v9923
        %v10035 = vpop.f32.mrf.mxu0
        %v10036 = vadd.f32 0.0, %v10035
        %10037 = vmatmul.f32.gmra.mxu0 %v9926
        %v10038 = vpop.f32.mrf.mxu0
        %v10039 = vadd.f32 0.0, %v10038
        %10040 = vmatmul.f32.gmra.mxu0 %v9929
        %v10041 = vpop.f32.mrf.mxu0
        %v10042 = vadd.f32 0.0, %v10041
        %10043 = vmatmul.f32.gmra.mxu0 %v9932
        %v10044 = vpop.f32.mrf.mxu0
        %v10045 = vadd.f32 0.0, %v10044
        %10046 = vmatmul.f32.gmra.mxu0 %v9935
        %v10047 = vpop.f32.mrf.mxu0
        %v10048 = vadd.f32 0.0, %v10047
        %10049 = vmatmul.f32.gmra.mxu0 %v9938
        %v10050 = vpop.f32.mrf.mxu0
        %v10051 = vadd.f32 0.0, %v10050
        %10052 = vmatmul.f32.gmra.mxu0 %v9941
        %v10053 = vpop.f32.mrf.mxu0
        %v10054 = vadd.f32 0.0, %v10053
        %10055 = vmatmul.f32.gmra.mxu0 %v9944
        %v10056 = vpop.f32.mrf.mxu0
        %v10057 = vadd.f32 0.0, %v10056
        %10058 = vmatmul.f32.gmra.mxu0 %v9947
        %v10059 = vpop.f32.mrf.mxu0
        %v10060 = vadd.f32 0.0, %v10059
        %10061 = vmatmul.f32.gmra.mxu0 %v9950
        %v10062 = vpop.f32.mrf.mxu0
        %v10063 = vadd.f32 0.0, %v10062
        %10064 = vmatmul.f32.gmra.mxu0 %v9953
        %v10065 = vpop.f32.mrf.mxu0
        %v10066 = vadd.f32 0.0, %v10065
        %10067 = vmatmul.f32.gmra.mxu0 %v9956
        %v10068 = vpop.f32.mrf.mxu0
        %v10069 = vadd.f32 0.0, %v10068
        %10070 = vmatmul.f32.gmra.mxu0 %v9959
        %v10071 = vpop.f32.mrf.mxu0
        %v10072 = vadd.f32 0.0, %v10071
        %10073 = vmatmul.f32.gmra.mxu0 %v9962
        %v10074 = vpop.f32.mrf.mxu0
        %v10075 = vadd.f32 0.0, %v10074
        %10076 = vmatmul.f32.gmra.mxu0 %v9965
        %v10077 = vpop.f32.mrf.mxu0
        %v10078 = vadd.f32 0.0, %v10077
        %10079 = vmatmul.f32.gmra.mxu0 %v9968
        %v10080 = vpop.f32.mrf.mxu0
        %v10081 = vadd.f32 0.0, %v10080
        %10082 = vmatmul.f32.gmra.mxu0 %v9971
        %v10083 = vpop.f32.mrf.mxu0
        %v10084 = vadd.f32 0.0, %v10083
        %10085 = vmatmul.f32.gmra.mxu0 %v9974
        %v10086 = vpop.f32.mrf.mxu0
        %v10087 = vadd.f32 0.0, %v10086
        %10088 = vmatmul.f32.gmra.mxu0 %v9977
        %v10089 = vpop.f32.mrf.mxu0
        %v10090 = vadd.f32 0.0, %v10089
        %10091 = vmatmul.f32.gmra.mxu0 %v9980
        %v10092 = vpop.f32.mrf.mxu0
        %v10093 = vadd.f32 0.0, %v10092
        %10094 = vmatmul.f32.gmra.mxu0 %v9983
        %v10095 = vpop.f32.mrf.mxu0
        %v10096 = vadd.f32 0.0, %v10095
        %10097 = vmatmul.f32.gmra.mxu0 %v9986
        %v10098 = vpop.f32.mrf.mxu0
        %v10099 = vadd.f32 0.0, %v10098
        %10100 = vdwg.mxu0
        %v10101 = vadd.f32 %v9819, %v10006
        %v10102 = vadd.f32 %v9820, %v10009
        %v10103 = vadd.f32 %v9821, %v10012
        %v10104 = vadd.f32 %v9822, %v10015
        %v10105 = vadd.f32 %v9823, %v10018
        %v10106 = vadd.f32 %v9824, %v10021
        %v10107 = vadd.f32 %v9825, %v10024
        %v10108 = vadd.f32 %v9826, %v10027
        %v10109 = vadd.f32 %v9827, %v10030
        %v10110 = vadd.f32 %v9828, %v10033
        %v10111 = vadd.f32 %v9829, %v10036
        %v10112 = vadd.f32 %v9830, %v10039
        %v10113 = vadd.f32 %v9831, %v10042
        %v10114 = vadd.f32 %v9832, %v10045
        %v10115 = vadd.f32 %v9833, %v10048
        %v10116 = vadd.f32 %v9834, %v10051
        %v10117 = vadd.f32 %v9835, %v10054
        %v10118 = vadd.f32 %v9836, %v10057
        %v10119 = vadd.f32 %v9837, %v10060
        %v10120 = vadd.f32 %v9838, %v10063
        %v10121 = vadd.f32 %v9839, %v10066
        %v10122 = vadd.f32 %v9840, %v10069
        %v10123 = vadd.f32 %v9841, %v10072
        %v10124 = vadd.f32 %v9842, %v10075
        %v10125 = vadd.f32 %v9843, %v10078
        %v10126 = vadd.f32 %v9844, %v10081
        %v10127 = vadd.f32 %v9845, %v10084
        %v10128 = vadd.f32 %v9846, %v10087
        %v10129 = vadd.f32 %v9847, %v10090
        %v10130 = vadd.f32 %v9848, %v10093
        %v10131 = vadd.f32 %v9849, %v10096
        %v10132 = vadd.f32 %v9850, %v10099
        %v10133 = vld [vmem:[%s4918 + $0x7] sm:$0xff]
        %v10134 = vld [vmem:[%s4918 + $0xf] sm:$0xff]
        %v10135 = vld [vmem:[%s4918 + $0x27] sm:$0xff]
        %v10136 = vld [vmem:[%s4918 + $0x2f] sm:$0xff]
        %v10137 = vld [vmem:[%s4918 + $0x47] sm:$0xff]
        %v10138 = vld [vmem:[%s4918 + $0x4f] sm:$0xff]
        %v10139 = vld [vmem:[%s4918 + $0x67] sm:$0xff]
        %v10140 = vld [vmem:[%s4918 + $0x6f] sm:$0xff]
        %v10141 = vld [vmem:[%s4918 + $0x87] sm:$0xff]
        %v10142 = vld [vmem:[%s4918 + $0x8f] sm:$0xff]
        %v10143 = vld [vmem:[%s4918 + $0xa7] sm:$0xff]
        %v10144 = vld [vmem:[%s4918 + $0xaf] sm:$0xff]
        %v10145 = vld [vmem:[%s4918 + $0xc7] sm:$0xff]
        %v10146 = vld [vmem:[%s4918 + $0xcf] sm:$0xff]
        %v10147 = vld [vmem:[%s4918 + $0xe7] sm:$0xff]
        %v10148 = vld [vmem:[%s4918 + $0xef] sm:$0xff]
        %v10149 = vld [vmem:[%s4918 + $0x107] sm:$0xff]
        %v10150 = vld [vmem:[%s4918 + $0x10f] sm:$0xff]
        %v10151 = vld [vmem:[%s4918 + $0x127] sm:$0xff]
        %v10152 = vld [vmem:[%s4918 + $0x12f] sm:$0xff]
        %v10153 = vld [vmem:[%s4918 + $0x147] sm:$0xff]
        %v10154 = vld [vmem:[%s4918 + $0x14f] sm:$0xff]
        %v10155 = vld [vmem:[%s4918 + $0x167] sm:$0xff]
        %v10156 = vld [vmem:[%s4918 + $0x16f] sm:$0xff]
        %v10157 = vld [vmem:[%s4918 + $0x187] sm:$0xff]
        %v10158 = vld [vmem:[%s4918 + $0x18f] sm:$0xff]
        %v10159 = vld [vmem:[%s4918 + $0x1a7] sm:$0xff]
        %v10160 = vld [vmem:[%s4918 + $0x1af] sm:$0xff]
        %v10161 = vld [vmem:[%s4918 + $0x1c7] sm:$0xff]
        %v10162 = vld [vmem:[%s4918 + $0x1cf] sm:$0xff]
        %v10163 = vld [vmem:[%s4918 + $0x1e7] sm:$0xff]
        %v10164 = vld [vmem:[%s4918 + $0x1ef] sm:$0xff]
        %s10165 = scalar_lea.vmem %s3, 2112
        %v10166 = vld [vmem:[%s10165] sm:$0xff]
        %v10167 = vld [vmem:[%s10165 + $0x8] sm:$0xff]
        %v10168 = vld [vmem:[%s10165 + $0x10] sm:$0xff]
        %v10169 = vld [vmem:[%s10165 + $0x18] sm:$0xff]
        %v10170 = vld [vmem:[%s10165 + $0x20] sm:$0xff]
        %v10171 = vld [vmem:[%s10165 + $0x28] sm:$0xff]
        %v10172 = vld [vmem:[%s10165 + $0x30] sm:$0xff]
        %v10173 = vld [vmem:[%s10165 + $0x38] sm:$0xff]
        %v10175 = vsel %vm316, %v10133, 0
        %v10178 = vsel %vm316, %v10134, 0
        %v10181 = vsel %vm316, %v10135, 0
        %v10184 = vsel %vm316, %v10136, 0
        %v10187 = vsel %vm316, %v10137, 0
        %v10190 = vsel %vm316, %v10138, 0
        %v10193 = vsel %vm316, %v10139, 0
        %v10196 = vsel %vm316, %v10140, 0
        %v10199 = vsel %vm316, %v10141, 0
        %v10202 = vsel %vm316, %v10142, 0
        %v10205 = vsel %vm316, %v10143, 0
        %v10208 = vsel %vm316, %v10144, 0
        %v10211 = vsel %vm316, %v10145, 0
        %v10214 = vsel %vm316, %v10146, 0
        %v10217 = vsel %vm316, %v10147, 0
        %v10220 = vsel %vm316, %v10148, 0
        %v10223 = vsel %vm316, %v10149, 0
        %v10226 = vsel %vm316, %v10150, 0
        %v10229 = vsel %vm316, %v10151, 0
        %v10232 = vsel %vm316, %v10152, 0
        %v10235 = vsel %vm316, %v10153, 0
        %v10238 = vsel %vm316, %v10154, 0
        %v10241 = vsel %vm316, %v10155, 0
        %v10244 = vsel %vm316, %v10156, 0
        %v10247 = vsel %vm316, %v10157, 0
        %v10250 = vsel %vm316, %v10158, 0
        %v10253 = vsel %vm316, %v10159, 0
        %v10256 = vsel %vm316, %v10160, 0
        %v10259 = vsel %vm316, %v10161, 0
        %v10262 = vsel %vm316, %v10162, 0
        %v10265 = vsel %vm316, %v10163, 0
        %v10268 = vsel %vm316, %v10164, 0
        %10270 = vmatpush.msra.mxu0 0.0
        %10271 = vmatpush.msra.mxu0 0.0
        %10272 = vmatpush.msra.mxu0 0.0
        %10273 = vmatpush.msra.mxu0 0.0
        %10274 = vmatpush.msra.mxu0 0.0
        %10275 = vmatpush.msra.mxu0 0.0
        %10276 = vmatpush.msra.mxu0 0.0
        %10277 = vmatpush.msra.mxu0 0.0
        %10278 = vmatpush.msra.mxu0 %v10173
        %10279 = vmatpush.msra.mxu0 %v10172
        %10280 = vmatpush.msra.mxu0 %v10171
        %10281 = vmatpush.msra.mxu0 %v10170
        %10282 = vmatpush.msra.mxu0 %v10169
        %10283 = vmatpush.msra.mxu0 %v10168
        %10284 = vmatpush.msra.mxu0 %v10167
        %10285 = vmatpush.msra.mxu0 %v10166
        %10286 = vmatmul.f32.gmra.mxu0 %v10175
        %v10287 = vpop.f32.mrf.mxu0
        %v10288 = vadd.f32 0.0, %v10287
        %10289 = vmatmul.f32.gmra.mxu0 %v10178
        %v10290 = vpop.f32.mrf.mxu0
        %v10291 = vadd.f32 0.0, %v10290
        %10292 = vmatmul.f32.gmra.mxu0 %v10181
        %v10293 = vpop.f32.mrf.mxu0
        %v10294 = vadd.f32 0.0, %v10293
        %10295 = vmatmul.f32.gmra.mxu0 %v10184
        %v10296 = vpop.f32.mrf.mxu0
        %v10297 = vadd.f32 0.0, %v10296
        %10298 = vmatmul.f32.gmra.mxu0 %v10187
        %v10299 = vpop.f32.mrf.mxu0
        %v10300 = vadd.f32 0.0, %v10299
        %10301 = vmatmul.f32.gmra.mxu0 %v10190
        %v10302 = vpop.f32.mrf.mxu0
        %v10303 = vadd.f32 0.0, %v10302
        %10304 = vmatmul.f32.gmra.mxu0 %v10193
        %v10305 = vpop.f32.mrf.mxu0
        %v10306 = vadd.f32 0.0, %v10305
        %10307 = vmatmul.f32.gmra.mxu0 %v10196
        %v10308 = vpop.f32.mrf.mxu0
        %v10309 = vadd.f32 0.0, %v10308
        %10310 = vmatmul.f32.gmra.mxu0 %v10199
        %v10311 = vpop.f32.mrf.mxu0
        %v10312 = vadd.f32 0.0, %v10311
        %10313 = vmatmul.f32.gmra.mxu0 %v10202
        %v10314 = vpop.f32.mrf.mxu0
        %v10315 = vadd.f32 0.0, %v10314
        %10316 = vmatmul.f32.gmra.mxu0 %v10205
        %v10317 = vpop.f32.mrf.mxu0
        %v10318 = vadd.f32 0.0, %v10317
        %10319 = vmatmul.f32.gmra.mxu0 %v10208
        %v10320 = vpop.f32.mrf.mxu0
        %v10321 = vadd.f32 0.0, %v10320
        %10322 = vmatmul.f32.gmra.mxu0 %v10211
        %v10323 = vpop.f32.mrf.mxu0
        %v10324 = vadd.f32 0.0, %v10323
        %10325 = vmatmul.f32.gmra.mxu0 %v10214
        %v10326 = vpop.f32.mrf.mxu0
        %v10327 = vadd.f32 0.0, %v10326
        %10328 = vmatmul.f32.gmra.mxu0 %v10217
        %v10329 = vpop.f32.mrf.mxu0
        %v10330 = vadd.f32 0.0, %v10329
        %10331 = vmatmul.f32.gmra.mxu0 %v10220
        %v10332 = vpop.f32.mrf.mxu0
        %v10333 = vadd.f32 0.0, %v10332
        %10334 = vmatmul.f32.gmra.mxu0 %v10223
        %v10335 = vpop.f32.mrf.mxu0
        %v10336 = vadd.f32 0.0, %v10335
        %10337 = vmatmul.f32.gmra.mxu0 %v10226
        %v10338 = vpop.f32.mrf.mxu0
        %v10339 = vadd.f32 0.0, %v10338
        %10340 = vmatmul.f32.gmra.mxu0 %v10229
        %v10341 = vpop.f32.mrf.mxu0
        %v10342 = vadd.f32 0.0, %v10341
        %10343 = vmatmul.f32.gmra.mxu0 %v10232
        %v10344 = vpop.f32.mrf.mxu0
        %v10345 = vadd.f32 0.0, %v10344
        %10346 = vmatmul.f32.gmra.mxu0 %v10235
        %v10347 = vpop.f32.mrf.mxu0
        %v10348 = vadd.f32 0.0, %v10347
        %10349 = vmatmul.f32.gmra.mxu0 %v10238
        %v10350 = vpop.f32.mrf.mxu0
        %v10351 = vadd.f32 0.0, %v10350
        %10352 = vmatmul.f32.gmra.mxu0 %v10241
        %v10353 = vpop.f32.mrf.mxu0
        %v10354 = vadd.f32 0.0, %v10353
        %10355 = vmatmul.f32.gmra.mxu0 %v10244
        %v10356 = vpop.f32.mrf.mxu0
        %v10357 = vadd.f32 0.0, %v10356
        %10358 = vmatmul.f32.gmra.mxu0 %v10247
        %v10359 = vpop.f32.mrf.mxu0
        %v10360 = vadd.f32 0.0, %v10359
        %10361 = vmatmul.f32.gmra.mxu0 %v10250
        %v10362 = vpop.f32.mrf.mxu0
        %v10363 = vadd.f32 0.0, %v10362
        %10364 = vmatmul.f32.gmra.mxu0 %v10253
        %v10365 = vpop.f32.mrf.mxu0
        %v10366 = vadd.f32 0.0, %v10365
        %10367 = vmatmul.f32.gmra.mxu0 %v10256
        %v10368 = vpop.f32.mrf.mxu0
        %v10369 = vadd.f32 0.0, %v10368
        %10370 = vmatmul.f32.gmra.mxu0 %v10259
        %v10371 = vpop.f32.mrf.mxu0
        %v10372 = vadd.f32 0.0, %v10371
        %10373 = vmatmul.f32.gmra.mxu0 %v10262
        %v10374 = vpop.f32.mrf.mxu0
        %v10375 = vadd.f32 0.0, %v10374
        %10376 = vmatmul.f32.gmra.mxu0 %v10265
        %v10377 = vpop.f32.mrf.mxu0
        %v10378 = vadd.f32 0.0, %v10377
        %10379 = vmatmul.f32.gmra.mxu0 %v10268
        %v10380 = vpop.f32.mrf.mxu0
        %v10381 = vadd.f32 0.0, %v10380
        %10382 = vdwg.mxu0
        %v10383 = vadd.f32 %v10101, %v10288
        %v10384 = vadd.f32 %v10102, %v10291
        %v10385 = vadd.f32 %v10103, %v10294
        %v10386 = vadd.f32 %v10104, %v10297
        %v10387 = vadd.f32 %v10105, %v10300
        %v10388 = vadd.f32 %v10106, %v10303
        %v10389 = vadd.f32 %v10107, %v10306
        %v10390 = vadd.f32 %v10108, %v10309
        %v10391 = vadd.f32 %v10109, %v10312
        %v10392 = vadd.f32 %v10110, %v10315
        %v10393 = vadd.f32 %v10111, %v10318
        %v10394 = vadd.f32 %v10112, %v10321
        %v10395 = vadd.f32 %v10113, %v10324
        %v10396 = vadd.f32 %v10114, %v10327
        %v10397 = vadd.f32 %v10115, %v10330
        %v10398 = vadd.f32 %v10116, %v10333
        %v10399 = vadd.f32 %v10117, %v10336
        %v10400 = vadd.f32 %v10118, %v10339
        %v10401 = vadd.f32 %v10119, %v10342
        %v10402 = vadd.f32 %v10120, %v10345
        %v10403 = vadd.f32 %v10121, %v10348
        %v10404 = vadd.f32 %v10122, %v10351
        %v10405 = vadd.f32 %v10123, %v10354
        %v10406 = vadd.f32 %v10124, %v10357
        %v10407 = vadd.f32 %v10125, %v10360
        %v10408 = vadd.f32 %v10126, %v10363
        %v10409 = vadd.f32 %v10127, %v10366
        %v10410 = vadd.f32 %v10128, %v10369
        %v10411 = vadd.f32 %v10129, %v10372
        %v10412 = vadd.f32 %v10130, %v10375
        %v10413 = vadd.f32 %v10131, %v10378
        %v10414 = vadd.f32 %v10132, %v10381
        %v10415 = vld [vmem:[%s4918 + $0x8] sm:$0xff]
        %v10416 = vld [vmem:[%s4918 + $0x10] sm:$0xff]
        %v10417 = vld [vmem:[%s4918 + $0x28] sm:$0xff]
        %v10418 = vld [vmem:[%s4918 + $0x30] sm:$0xff]
        %v10419 = vld [vmem:[%s4918 + $0x48] sm:$0xff]
        %v10420 = vld [vmem:[%s4918 + $0x50] sm:$0xff]
        %v10421 = vld [vmem:[%s4918 + $0x68] sm:$0xff]
        %v10422 = vld [vmem:[%s4918 + $0x70] sm:$0xff]
        %v10423 = vld [vmem:[%s4918 + $0x88] sm:$0xff]
        %v10424 = vld [vmem:[%s4918 + $0x90] sm:$0xff]
        %v10425 = vld [vmem:[%s4918 + $0xa8] sm:$0xff]
        %v10426 = vld [vmem:[%s4918 + $0xb0] sm:$0xff]
        %v10427 = vld [vmem:[%s4918 + $0xc8] sm:$0xff]
        %v10428 = vld [vmem:[%s4918 + $0xd0] sm:$0xff]
        %v10429 = vld [vmem:[%s4918 + $0xe8] sm:$0xff]
        %v10430 = vld [vmem:[%s4918 + $0xf0] sm:$0xff]
        %v10431 = vld [vmem:[%s4918 + $0x108] sm:$0xff]
        %v10432 = vld [vmem:[%s4918 + $0x110] sm:$0xff]
        %v10433 = vld [vmem:[%s4918 + $0x128] sm:$0xff]
        %v10434 = vld [vmem:[%s4918 + $0x130] sm:$0xff]
        %v10435 = vld [vmem:[%s4918 + $0x148] sm:$0xff]
        %v10436 = vld [vmem:[%s4918 + $0x150] sm:$0xff]
        %v10437 = vld [vmem:[%s4918 + $0x168] sm:$0xff]
        %v10438 = vld [vmem:[%s4918 + $0x170] sm:$0xff]
        %v10439 = vld [vmem:[%s4918 + $0x188] sm:$0xff]
        %v10440 = vld [vmem:[%s4918 + $0x190] sm:$0xff]
        %v10441 = vld [vmem:[%s4918 + $0x1a8] sm:$0xff]
        %v10442 = vld [vmem:[%s4918 + $0x1b0] sm:$0xff]
        %v10443 = vld [vmem:[%s4918 + $0x1c8] sm:$0xff]
        %v10444 = vld [vmem:[%s4918 + $0x1d0] sm:$0xff]
        %v10445 = vld [vmem:[%s4918 + $0x1e8] sm:$0xff]
        %v10446 = vld [vmem:[%s4918 + $0x1f0] sm:$0xff]
        %s10447 = scalar_lea.vmem %s3, 2176
        %v10448 = vld [vmem:[%s10447] sm:$0xff]
        %v10449 = vld [vmem:[%s10447 + $0x8] sm:$0xff]
        %v10450 = vld [vmem:[%s10447 + $0x10] sm:$0xff]
        %v10451 = vld [vmem:[%s10447 + $0x18] sm:$0xff]
        %v10452 = vld [vmem:[%s10447 + $0x20] sm:$0xff]
        %v10453 = vld [vmem:[%s10447 + $0x28] sm:$0xff]
        %v10454 = vld [vmem:[%s10447 + $0x30] sm:$0xff]
        %v10455 = vld [vmem:[%s10447 + $0x38] sm:$0xff]
        %v10457 = vsel %vm316, %v10415, 0
        %v10460 = vsel %vm316, %v10416, 0
        %v10463 = vsel %vm316, %v10417, 0
        %v10466 = vsel %vm316, %v10418, 0
        %v10469 = vsel %vm316, %v10419, 0
        %v10472 = vsel %vm316, %v10420, 0
        %v10475 = vsel %vm316, %v10421, 0
        %v10478 = vsel %vm316, %v10422, 0
        %v10481 = vsel %vm316, %v10423, 0
        %v10484 = vsel %vm316, %v10424, 0
        %v10487 = vsel %vm316, %v10425, 0
        %v10490 = vsel %vm316, %v10426, 0
        %v10493 = vsel %vm316, %v10427, 0
        %v10496 = vsel %vm316, %v10428, 0
        %v10499 = vsel %vm316, %v10429, 0
        %v10502 = vsel %vm316, %v10430, 0
        %v10505 = vsel %vm316, %v10431, 0
        %v10508 = vsel %vm316, %v10432, 0
        %v10511 = vsel %vm316, %v10433, 0
        %v10514 = vsel %vm316, %v10434, 0
        %v10517 = vsel %vm316, %v10435, 0
        %v10520 = vsel %vm316, %v10436, 0
        %v10523 = vsel %vm316, %v10437, 0
        %v10526 = vsel %vm316, %v10438, 0
        %v10529 = vsel %vm316, %v10439, 0
        %v10532 = vsel %vm316, %v10440, 0
        %v10535 = vsel %vm316, %v10441, 0
        %v10538 = vsel %vm316, %v10442, 0
        %v10541 = vsel %vm316, %v10443, 0
        %v10544 = vsel %vm316, %v10444, 0
        %v10547 = vsel %vm316, %v10445, 0
        %v10550 = vsel %vm316, %v10446, 0
        %10552 = vmatpush.msra.mxu0 0.0
        %10553 = vmatpush.msra.mxu0 0.0
        %10554 = vmatpush.msra.mxu0 0.0
        %10555 = vmatpush.msra.mxu0 0.0
        %10556 = vmatpush.msra.mxu0 0.0
        %10557 = vmatpush.msra.mxu0 0.0
        %10558 = vmatpush.msra.mxu0 0.0
        %10559 = vmatpush.msra.mxu0 0.0
        %10560 = vmatpush.msra.mxu0 %v10455
        %10561 = vmatpush.msra.mxu0 %v10454
        %10562 = vmatpush.msra.mxu0 %v10453
        %10563 = vmatpush.msra.mxu0 %v10452
        %10564 = vmatpush.msra.mxu0 %v10451
        %10565 = vmatpush.msra.mxu0 %v10450
        %10566 = vmatpush.msra.mxu0 %v10449
        %10567 = vmatpush.msra.mxu0 %v10448
        %10568 = vmatmul.f32.gmra.mxu0 %v10457
        %v10569 = vpop.f32.mrf.mxu0
        %v10570 = vadd.f32 0.0, %v10569
        %10571 = vmatmul.f32.gmra.mxu0 %v10460
        %v10572 = vpop.f32.mrf.mxu0
        %v10573 = vadd.f32 0.0, %v10572
        %10574 = vmatmul.f32.gmra.mxu0 %v10463
        %v10575 = vpop.f32.mrf.mxu0
        %v10576 = vadd.f32 0.0, %v10575
        %10577 = vmatmul.f32.gmra.mxu0 %v10466
        %v10578 = vpop.f32.mrf.mxu0
        %v10579 = vadd.f32 0.0, %v10578
        %10580 = vmatmul.f32.gmra.mxu0 %v10469
        %v10581 = vpop.f32.mrf.mxu0
        %v10582 = vadd.f32 0.0, %v10581
        %10583 = vmatmul.f32.gmra.mxu0 %v10472
        %v10584 = vpop.f32.mrf.mxu0
        %v10585 = vadd.f32 0.0, %v10584
        %10586 = vmatmul.f32.gmra.mxu0 %v10475
        %v10587 = vpop.f32.mrf.mxu0
        %v10588 = vadd.f32 0.0, %v10587
        %10589 = vmatmul.f32.gmra.mxu0 %v10478
        %v10590 = vpop.f32.mrf.mxu0
        %v10591 = vadd.f32 0.0, %v10590
        %10592 = vmatmul.f32.gmra.mxu0 %v10481
        %v10593 = vpop.f32.mrf.mxu0
        %v10594 = vadd.f32 0.0, %v10593
        %10595 = vmatmul.f32.gmra.mxu0 %v10484
        %v10596 = vpop.f32.mrf.mxu0
        %v10597 = vadd.f32 0.0, %v10596
        %10598 = vmatmul.f32.gmra.mxu0 %v10487
        %v10599 = vpop.f32.mrf.mxu0
        %v10600 = vadd.f32 0.0, %v10599
        %10601 = vmatmul.f32.gmra.mxu0 %v10490
        %v10602 = vpop.f32.mrf.mxu0
        %v10603 = vadd.f32 0.0, %v10602
        %10604 = vmatmul.f32.gmra.mxu0 %v10493
        %v10605 = vpop.f32.mrf.mxu0
        %v10606 = vadd.f32 0.0, %v10605
        %10607 = vmatmul.f32.gmra.mxu0 %v10496
        %v10608 = vpop.f32.mrf.mxu0
        %v10609 = vadd.f32 0.0, %v10608
        %10610 = vmatmul.f32.gmra.mxu0 %v10499
        %v10611 = vpop.f32.mrf.mxu0
        %v10612 = vadd.f32 0.0, %v10611
        %10613 = vmatmul.f32.gmra.mxu0 %v10502
        %v10614 = vpop.f32.mrf.mxu0
        %v10615 = vadd.f32 0.0, %v10614
        %10616 = vmatmul.f32.gmra.mxu0 %v10505
        %v10617 = vpop.f32.mrf.mxu0
        %v10618 = vadd.f32 0.0, %v10617
        %10619 = vmatmul.f32.gmra.mxu0 %v10508
        %v10620 = vpop.f32.mrf.mxu0
        %v10621 = vadd.f32 0.0, %v10620
        %10622 = vmatmul.f32.gmra.mxu0 %v10511
        %v10623 = vpop.f32.mrf.mxu0
        %v10624 = vadd.f32 0.0, %v10623
        %10625 = vmatmul.f32.gmra.mxu0 %v10514
        %v10626 = vpop.f32.mrf.mxu0
        %v10627 = vadd.f32 0.0, %v10626
        %10628 = vmatmul.f32.gmra.mxu0 %v10517
        %v10629 = vpop.f32.mrf.mxu0
        %v10630 = vadd.f32 0.0, %v10629
        %10631 = vmatmul.f32.gmra.mxu0 %v10520
        %v10632 = vpop.f32.mrf.mxu0
        %v10633 = vadd.f32 0.0, %v10632
        %10634 = vmatmul.f32.gmra.mxu0 %v10523
        %v10635 = vpop.f32.mrf.mxu0
        %v10636 = vadd.f32 0.0, %v10635
        %10637 = vmatmul.f32.gmra.mxu0 %v10526
        %v10638 = vpop.f32.mrf.mxu0
        %v10639 = vadd.f32 0.0, %v10638
        %10640 = vmatmul.f32.gmra.mxu0 %v10529
        %v10641 = vpop.f32.mrf.mxu0
        %v10642 = vadd.f32 0.0, %v10641
        %10643 = vmatmul.f32.gmra.mxu0 %v10532
        %v10644 = vpop.f32.mrf.mxu0
        %v10645 = vadd.f32 0.0, %v10644
        %10646 = vmatmul.f32.gmra.mxu0 %v10535
        %v10647 = vpop.f32.mrf.mxu0
        %v10648 = vadd.f32 0.0, %v10647
        %10649 = vmatmul.f32.gmra.mxu0 %v10538
        %v10650 = vpop.f32.mrf.mxu0
        %v10651 = vadd.f32 0.0, %v10650
        %10652 = vmatmul.f32.gmra.mxu0 %v10541
        %v10653 = vpop.f32.mrf.mxu0
        %v10654 = vadd.f32 0.0, %v10653
        %10655 = vmatmul.f32.gmra.mxu0 %v10544
        %v10656 = vpop.f32.mrf.mxu0
        %v10657 = vadd.f32 0.0, %v10656
        %10658 = vmatmul.f32.gmra.mxu0 %v10547
        %v10659 = vpop.f32.mrf.mxu0
        %v10660 = vadd.f32 0.0, %v10659
        %10661 = vmatmul.f32.gmra.mxu0 %v10550
        %v10662 = vpop.f32.mrf.mxu0
        %v10663 = vadd.f32 0.0, %v10662
        %10664 = vdwg.mxu0
        %v10665 = vadd.f32 %v10383, %v10570
        %v10666 = vadd.f32 %v10384, %v10573
        %v10667 = vadd.f32 %v10385, %v10576
        %v10668 = vadd.f32 %v10386, %v10579
        %v10669 = vadd.f32 %v10387, %v10582
        %v10670 = vadd.f32 %v10388, %v10585
        %v10671 = vadd.f32 %v10389, %v10588
        %v10672 = vadd.f32 %v10390, %v10591
        %v10673 = vadd.f32 %v10391, %v10594
        %v10674 = vadd.f32 %v10392, %v10597
        %v10675 = vadd.f32 %v10393, %v10600
        %v10676 = vadd.f32 %v10394, %v10603
        %v10677 = vadd.f32 %v10395, %v10606
        %v10678 = vadd.f32 %v10396, %v10609
        %v10679 = vadd.f32 %v10397, %v10612
        %v10680 = vadd.f32 %v10398, %v10615
        %v10681 = vadd.f32 %v10399, %v10618
        %v10682 = vadd.f32 %v10400, %v10621
        %v10683 = vadd.f32 %v10401, %v10624
        %v10684 = vadd.f32 %v10402, %v10627
        %v10685 = vadd.f32 %v10403, %v10630
        %v10686 = vadd.f32 %v10404, %v10633
        %v10687 = vadd.f32 %v10405, %v10636
        %v10688 = vadd.f32 %v10406, %v10639
        %v10689 = vadd.f32 %v10407, %v10642
        %v10690 = vadd.f32 %v10408, %v10645
        %v10691 = vadd.f32 %v10409, %v10648
        %v10692 = vadd.f32 %v10410, %v10651
        %v10693 = vadd.f32 %v10411, %v10654
        %v10694 = vadd.f32 %v10412, %v10657
        %v10695 = vadd.f32 %v10413, %v10660
        %v10696 = vadd.f32 %v10414, %v10663
        %v10697 = vld [vmem:[%s4918 + $0x9] sm:$0xff]
        %v10698 = vld [vmem:[%s4918 + $0x11] sm:$0xff]
        %v10699 = vld [vmem:[%s4918 + $0x29] sm:$0xff]
        %v10700 = vld [vmem:[%s4918 + $0x31] sm:$0xff]
        %v10701 = vld [vmem:[%s4918 + $0x49] sm:$0xff]
        %v10702 = vld [vmem:[%s4918 + $0x51] sm:$0xff]
        %v10703 = vld [vmem:[%s4918 + $0x69] sm:$0xff]
        %v10704 = vld [vmem:[%s4918 + $0x71] sm:$0xff]
        %v10705 = vld [vmem:[%s4918 + $0x89] sm:$0xff]
        %v10706 = vld [vmem:[%s4918 + $0x91] sm:$0xff]
        %v10707 = vld [vmem:[%s4918 + $0xa9] sm:$0xff]
        %v10708 = vld [vmem:[%s4918 + $0xb1] sm:$0xff]
        %v10709 = vld [vmem:[%s4918 + $0xc9] sm:$0xff]
        %v10710 = vld [vmem:[%s4918 + $0xd1] sm:$0xff]
        %v10711 = vld [vmem:[%s4918 + $0xe9] sm:$0xff]
        %v10712 = vld [vmem:[%s4918 + $0xf1] sm:$0xff]
        %v10713 = vld [vmem:[%s4918 + $0x109] sm:$0xff]
        %v10714 = vld [vmem:[%s4918 + $0x111] sm:$0xff]
        %v10715 = vld [vmem:[%s4918 + $0x129] sm:$0xff]
        %v10716 = vld [vmem:[%s4918 + $0x131] sm:$0xff]
        %v10717 = vld [vmem:[%s4918 + $0x149] sm:$0xff]
        %v10718 = vld [vmem:[%s4918 + $0x151] sm:$0xff]
        %v10719 = vld [vmem:[%s4918 + $0x169] sm:$0xff]
        %v10720 = vld [vmem:[%s4918 + $0x171] sm:$0xff]
        %v10721 = vld [vmem:[%s4918 + $0x189] sm:$0xff]
        %v10722 = vld [vmem:[%s4918 + $0x191] sm:$0xff]
        %v10723 = vld [vmem:[%s4918 + $0x1a9] sm:$0xff]
        %v10724 = vld [vmem:[%s4918 + $0x1b1] sm:$0xff]
        %v10725 = vld [vmem:[%s4918 + $0x1c9] sm:$0xff]
        %v10726 = vld [vmem:[%s4918 + $0x1d1] sm:$0xff]
        %v10727 = vld [vmem:[%s4918 + $0x1e9] sm:$0xff]
        %v10728 = vld [vmem:[%s4918 + $0x1f1] sm:$0xff]
        %s10729 = scalar_lea.vmem %s3, 2240
        %v10730 = vld [vmem:[%s10729] sm:$0xff]
        %v10731 = vld [vmem:[%s10729 + $0x8] sm:$0xff]
        %v10732 = vld [vmem:[%s10729 + $0x10] sm:$0xff]
        %v10733 = vld [vmem:[%s10729 + $0x18] sm:$0xff]
        %v10734 = vld [vmem:[%s10729 + $0x20] sm:$0xff]
        %v10735 = vld [vmem:[%s10729 + $0x28] sm:$0xff]
        %v10736 = vld [vmem:[%s10729 + $0x30] sm:$0xff]
        %v10737 = vld [vmem:[%s10729 + $0x38] sm:$0xff]
        %v10739 = vsel %vm316, %v10697, 0
        %v10742 = vsel %vm316, %v10698, 0
        %v10745 = vsel %vm316, %v10699, 0
        %v10748 = vsel %vm316, %v10700, 0
        %v10751 = vsel %vm316, %v10701, 0
        %v10754 = vsel %vm316, %v10702, 0
        %v10757 = vsel %vm316, %v10703, 0
        %v10760 = vsel %vm316, %v10704, 0
        %v10763 = vsel %vm316, %v10705, 0
        %v10766 = vsel %vm316, %v10706, 0
        %v10769 = vsel %vm316, %v10707, 0
        %v10772 = vsel %vm316, %v10708, 0
        %v10775 = vsel %vm316, %v10709, 0
        %v10778 = vsel %vm316, %v10710, 0
        %v10781 = vsel %vm316, %v10711, 0
        %v10784 = vsel %vm316, %v10712, 0
        %v10787 = vsel %vm316, %v10713, 0
        %v10790 = vsel %vm316, %v10714, 0
        %v10793 = vsel %vm316, %v10715, 0
        %v10796 = vsel %vm316, %v10716, 0
        %v10799 = vsel %vm316, %v10717, 0
        %v10802 = vsel %vm316, %v10718, 0
        %v10805 = vsel %vm316, %v10719, 0
        %v10808 = vsel %vm316, %v10720, 0
        %v10811 = vsel %vm316, %v10721, 0
        %v10814 = vsel %vm316, %v10722, 0
        %v10817 = vsel %vm316, %v10723, 0
        %v10820 = vsel %vm316, %v10724, 0
        %v10823 = vsel %vm316, %v10725, 0
        %v10826 = vsel %vm316, %v10726, 0
        %v10829 = vsel %vm316, %v10727, 0
        %v10832 = vsel %vm316, %v10728, 0
        %10834 = vmatpush.msra.mxu0 0.0
        %10835 = vmatpush.msra.mxu0 0.0
        %10836 = vmatpush.msra.mxu0 0.0
        %10837 = vmatpush.msra.mxu0 0.0
        %10838 = vmatpush.msra.mxu0 0.0
        %10839 = vmatpush.msra.mxu0 0.0
        %10840 = vmatpush.msra.mxu0 0.0
        %10841 = vmatpush.msra.mxu0 0.0
        %10842 = vmatpush.msra.mxu0 %v10737
        %10843 = vmatpush.msra.mxu0 %v10736
        %10844 = vmatpush.msra.mxu0 %v10735
        %10845 = vmatpush.msra.mxu0 %v10734
        %10846 = vmatpush.msra.mxu0 %v10733
        %10847 = vmatpush.msra.mxu0 %v10732
        %10848 = vmatpush.msra.mxu0 %v10731
        %10849 = vmatpush.msra.mxu0 %v10730
        %10850 = vmatmul.f32.gmra.mxu0 %v10739
        %v10851 = vpop.f32.mrf.mxu0
        %v10852 = vadd.f32 0.0, %v10851
        %10853 = vmatmul.f32.gmra.mxu0 %v10742
        %v10854 = vpop.f32.mrf.mxu0
        %v10855 = vadd.f32 0.0, %v10854
        %10856 = vmatmul.f32.gmra.mxu0 %v10745
        %v10857 = vpop.f32.mrf.mxu0
        %v10858 = vadd.f32 0.0, %v10857
        %10859 = vmatmul.f32.gmra.mxu0 %v10748
        %v10860 = vpop.f32.mrf.mxu0
        %v10861 = vadd.f32 0.0, %v10860
        %10862 = vmatmul.f32.gmra.mxu0 %v10751
        %v10863 = vpop.f32.mrf.mxu0
        %v10864 = vadd.f32 0.0, %v10863
        %10865 = vmatmul.f32.gmra.mxu0 %v10754
        %v10866 = vpop.f32.mrf.mxu0
        %v10867 = vadd.f32 0.0, %v10866
        %10868 = vmatmul.f32.gmra.mxu0 %v10757
        %v10869 = vpop.f32.mrf.mxu0
        %v10870 = vadd.f32 0.0, %v10869
        %10871 = vmatmul.f32.gmra.mxu0 %v10760
        %v10872 = vpop.f32.mrf.mxu0
        %v10873 = vadd.f32 0.0, %v10872
        %10874 = vmatmul.f32.gmra.mxu0 %v10763
        %v10875 = vpop.f32.mrf.mxu0
        %v10876 = vadd.f32 0.0, %v10875
        %10877 = vmatmul.f32.gmra.mxu0 %v10766
        %v10878 = vpop.f32.mrf.mxu0
        %v10879 = vadd.f32 0.0, %v10878
        %10880 = vmatmul.f32.gmra.mxu0 %v10769
        %v10881 = vpop.f32.mrf.mxu0
        %v10882 = vadd.f32 0.0, %v10881
        %10883 = vmatmul.f32.gmra.mxu0 %v10772
        %v10884 = vpop.f32.mrf.mxu0
        %v10885 = vadd.f32 0.0, %v10884
        %10886 = vmatmul.f32.gmra.mxu0 %v10775
        %v10887 = vpop.f32.mrf.mxu0
        %v10888 = vadd.f32 0.0, %v10887
        %10889 = vmatmul.f32.gmra.mxu0 %v10778
        %v10890 = vpop.f32.mrf.mxu0
        %v10891 = vadd.f32 0.0, %v10890
        %10892 = vmatmul.f32.gmra.mxu0 %v10781
        %v10893 = vpop.f32.mrf.mxu0
        %v10894 = vadd.f32 0.0, %v10893
        %10895 = vmatmul.f32.gmra.mxu0 %v10784
        %v10896 = vpop.f32.mrf.mxu0
        %v10897 = vadd.f32 0.0, %v10896
        %10898 = vmatmul.f32.gmra.mxu0 %v10787
        %v10899 = vpop.f32.mrf.mxu0
        %v10900 = vadd.f32 0.0, %v10899
        %10901 = vmatmul.f32.gmra.mxu0 %v10790
        %v10902 = vpop.f32.mrf.mxu0
        %v10903 = vadd.f32 0.0, %v10902
        %10904 = vmatmul.f32.gmra.mxu0 %v10793
        %v10905 = vpop.f32.mrf.mxu0
        %v10906 = vadd.f32 0.0, %v10905
        %10907 = vmatmul.f32.gmra.mxu0 %v10796
        %v10908 = vpop.f32.mrf.mxu0
        %v10909 = vadd.f32 0.0, %v10908
        %10910 = vmatmul.f32.gmra.mxu0 %v10799
        %v10911 = vpop.f32.mrf.mxu0
        %v10912 = vadd.f32 0.0, %v10911
        %10913 = vmatmul.f32.gmra.mxu0 %v10802
        %v10914 = vpop.f32.mrf.mxu0
        %v10915 = vadd.f32 0.0, %v10914
        %10916 = vmatmul.f32.gmra.mxu0 %v10805
        %v10917 = vpop.f32.mrf.mxu0
        %v10918 = vadd.f32 0.0, %v10917
        %10919 = vmatmul.f32.gmra.mxu0 %v10808
        %v10920 = vpop.f32.mrf.mxu0
        %v10921 = vadd.f32 0.0, %v10920
        %10922 = vmatmul.f32.gmra.mxu0 %v10811
        %v10923 = vpop.f32.mrf.mxu0
        %v10924 = vadd.f32 0.0, %v10923
        %10925 = vmatmul.f32.gmra.mxu0 %v10814
        %v10926 = vpop.f32.mrf.mxu0
        %v10927 = vadd.f32 0.0, %v10926
        %10928 = vmatmul.f32.gmra.mxu0 %v10817
        %v10929 = vpop.f32.mrf.mxu0
        %v10930 = vadd.f32 0.0, %v10929
        %10931 = vmatmul.f32.gmra.mxu0 %v10820
        %v10932 = vpop.f32.mrf.mxu0
        %v10933 = vadd.f32 0.0, %v10932
        %10934 = vmatmul.f32.gmra.mxu0 %v10823
        %v10935 = vpop.f32.mrf.mxu0
        %v10936 = vadd.f32 0.0, %v10935
        %10937 = vmatmul.f32.gmra.mxu0 %v10826
        %v10938 = vpop.f32.mrf.mxu0
        %v10939 = vadd.f32 0.0, %v10938
        %10940 = vmatmul.f32.gmra.mxu0 %v10829
        %v10941 = vpop.f32.mrf.mxu0
        %v10942 = vadd.f32 0.0, %v10941
        %10943 = vmatmul.f32.gmra.mxu0 %v10832
        %v10944 = vpop.f32.mrf.mxu0
        %v10945 = vadd.f32 0.0, %v10944
        %10946 = vdwg.mxu0
        %v10947 = vadd.f32 %v10665, %v10852
        %v10948 = vadd.f32 %v10666, %v10855
        %v10949 = vadd.f32 %v10667, %v10858
        %v10950 = vadd.f32 %v10668, %v10861
        %v10951 = vadd.f32 %v10669, %v10864
        %v10952 = vadd.f32 %v10670, %v10867
        %v10953 = vadd.f32 %v10671, %v10870
        %v10954 = vadd.f32 %v10672, %v10873
        %v10955 = vadd.f32 %v10673, %v10876
        %v10956 = vadd.f32 %v10674, %v10879
        %v10957 = vadd.f32 %v10675, %v10882
        %v10958 = vadd.f32 %v10676, %v10885
        %v10959 = vadd.f32 %v10677, %v10888
        %v10960 = vadd.f32 %v10678, %v10891
        %v10961 = vadd.f32 %v10679, %v10894
        %v10962 = vadd.f32 %v10680, %v10897
        %v10963 = vadd.f32 %v10681, %v10900
        %v10964 = vadd.f32 %v10682, %v10903
        %v10965 = vadd.f32 %v10683, %v10906
        %v10966 = vadd.f32 %v10684, %v10909
        %v10967 = vadd.f32 %v10685, %v10912
        %v10968 = vadd.f32 %v10686, %v10915
        %v10969 = vadd.f32 %v10687, %v10918
        %v10970 = vadd.f32 %v10688, %v10921
        %v10971 = vadd.f32 %v10689, %v10924
        %v10972 = vadd.f32 %v10690, %v10927
        %v10973 = vadd.f32 %v10691, %v10930
        %v10974 = vadd.f32 %v10692, %v10933
        %v10975 = vadd.f32 %v10693, %v10936
        %v10976 = vadd.f32 %v10694, %v10939
        %v10977 = vadd.f32 %v10695, %v10942
        %v10978 = vadd.f32 %v10696, %v10945
        %s10979 = scalar_lea.vmem %s4, 3
        %v10980 = vld [vmem:[%s10979] sm:$0x1]
        %v10982 = vperm.slane %v10980, 0
        %v10984 = vadd.f32 %v10947, %v10982
        %v10985 = vadd.f32 %v10948, %v10982
        %v10986 = vadd.f32 %v10949, %v10982
        %v10987 = vadd.f32 %v10950, %v10982
        %v10988 = vadd.f32 %v10951, %v10982
        %v10989 = vadd.f32 %v10952, %v10982
        %v10990 = vadd.f32 %v10953, %v10982
        %v10991 = vadd.f32 %v10954, %v10982
        %v10992 = vadd.f32 %v10955, %v10982
        %v10993 = vadd.f32 %v10956, %v10982
        %v10994 = vadd.f32 %v10957, %v10982
        %v10995 = vadd.f32 %v10958, %v10982
        %v10996 = vadd.f32 %v10959, %v10982
        %v10997 = vadd.f32 %v10960, %v10982
        %v10998 = vadd.f32 %v10961, %v10982
        %v10999 = vadd.f32 %v10962, %v10982
        %v11000 = vadd.f32 %v10963, %v10982
        %v11001 = vadd.f32 %v10964, %v10982
        %v11002 = vadd.f32 %v10965, %v10982
        %v11003 = vadd.f32 %v10966, %v10982
        %v11004 = vadd.f32 %v10967, %v10982
        %v11005 = vadd.f32 %v10968, %v10982
        %v11006 = vadd.f32 %v10969, %v10982
        %v11007 = vadd.f32 %v10970, %v10982
        %v11008 = vadd.f32 %v10971, %v10982
        %v11009 = vadd.f32 %v10972, %v10982
        %v11010 = vadd.f32 %v10973, %v10982
        %v11011 = vadd.f32 %v10974, %v10982
        %v11012 = vadd.f32 %v10975, %v10982
        %v11013 = vadd.f32 %v10976, %v10982
        %v11014 = vadd.f32 %v10977, %v10982
        %v11015 = vadd.f32 %v10978, %v10982
        %v11016 = vld [vmem:[%s326 + $0x8] sm:$0xff]
        %v11017 = vld [vmem:[%s326 + $0x10] sm:$0xff]
        %v11018 = vld [vmem:[%s326 + $0x28] sm:$0xff]
        %v11019 = vld [vmem:[%s326 + $0x30] sm:$0xff]
        %v11020 = vld [vmem:[%s326 + $0x48] sm:$0xff]
        %v11021 = vld [vmem:[%s326 + $0x50] sm:$0xff]
        %v11022 = vld [vmem:[%s326 + $0x68] sm:$0xff]
        %v11023 = vld [vmem:[%s326 + $0x70] sm:$0xff]
        %v11024 = vld [vmem:[%s326 + $0x88] sm:$0xff]
        %v11025 = vld [vmem:[%s326 + $0x90] sm:$0xff]
        %v11026 = vld [vmem:[%s326 + $0xa8] sm:$0xff]
        %v11027 = vld [vmem:[%s326 + $0xb0] sm:$0xff]
        %v11028 = vld [vmem:[%s326 + $0xc8] sm:$0xff]
        %v11029 = vld [vmem:[%s326 + $0xd0] sm:$0xff]
        %v11030 = vld [vmem:[%s326 + $0xe8] sm:$0xff]
        %v11031 = vld [vmem:[%s326 + $0xf0] sm:$0xff]
        %v11032 = vld [vmem:[%s326 + $0x108] sm:$0xff]
        %v11033 = vld [vmem:[%s326 + $0x110] sm:$0xff]
        %v11034 = vld [vmem:[%s326 + $0x128] sm:$0xff]
        %v11035 = vld [vmem:[%s326 + $0x130] sm:$0xff]
        %v11036 = vld [vmem:[%s326 + $0x148] sm:$0xff]
        %v11037 = vld [vmem:[%s326 + $0x150] sm:$0xff]
        %v11038 = vld [vmem:[%s326 + $0x168] sm:$0xff]
        %v11039 = vld [vmem:[%s326 + $0x170] sm:$0xff]
        %v11040 = vld [vmem:[%s326 + $0x188] sm:$0xff]
        %v11041 = vld [vmem:[%s326 + $0x190] sm:$0xff]
        %v11042 = vld [vmem:[%s326 + $0x1a8] sm:$0xff]
        %v11043 = vld [vmem:[%s326 + $0x1b0] sm:$0xff]
        %v11044 = vld [vmem:[%s326 + $0x1c8] sm:$0xff]
        %v11045 = vld [vmem:[%s326 + $0x1d0] sm:$0xff]
        %v11046 = vld [vmem:[%s326 + $0x1e8] sm:$0xff]
        %v11047 = vld [vmem:[%s326 + $0x1f0] sm:$0xff]
        %v11048 = vadd.f32 %v10984, %v11016
        %v11049 = vadd.f32 %v10985, %v11017
        %v11050 = vadd.f32 %v10986, %v11018
        %v11051 = vadd.f32 %v10987, %v11019
        %v11052 = vadd.f32 %v10988, %v11020
        %v11053 = vadd.f32 %v10989, %v11021
        %v11054 = vadd.f32 %v10990, %v11022
        %v11055 = vadd.f32 %v10991, %v11023
        %v11056 = vadd.f32 %v10992, %v11024
        %v11057 = vadd.f32 %v10993, %v11025
        %v11058 = vadd.f32 %v10994, %v11026
        %v11059 = vadd.f32 %v10995, %v11027
        %v11060 = vadd.f32 %v10996, %v11028
        %v11061 = vadd.f32 %v10997, %v11029
        %v11062 = vadd.f32 %v10998, %v11030
        %v11063 = vadd.f32 %v10999, %v11031
        %v11064 = vadd.f32 %v11000, %v11032
        %v11065 = vadd.f32 %v11001, %v11033
        %v11066 = vadd.f32 %v11002, %v11034
        %v11067 = vadd.f32 %v11003, %v11035
        %v11068 = vadd.f32 %v11004, %v11036
        %v11069 = vadd.f32 %v11005, %v11037
        %v11070 = vadd.f32 %v11006, %v11038
        %v11071 = vadd.f32 %v11007, %v11039
        %v11072 = vadd.f32 %v11008, %v11040
        %v11073 = vadd.f32 %v11009, %v11041
        %v11074 = vadd.f32 %v11010, %v11042
        %v11075 = vadd.f32 %v11011, %v11043
        %v11076 = vadd.f32 %v11012, %v11044
        %v11077 = vadd.f32 %v11013, %v11045
        %v11078 = vadd.f32 %v11014, %v11046
        %v11079 = vadd.f32 %v11015, %v11047
        %v11080 = vmax.f32 %v11048, 0.0
        %v11081 = vmax.f32 %v11049, 0.0
        %v11082 = vmax.f32 %v11050, 0.0
        %v11083 = vmax.f32 %v11051, 0.0
        %v11084 = vmax.f32 %v11052, 0.0
        %v11085 = vmax.f32 %v11053, 0.0
        %v11086 = vmax.f32 %v11054, 0.0
        %v11087 = vmax.f32 %v11055, 0.0
        %v11088 = vmax.f32 %v11056, 0.0
        %v11089 = vmax.f32 %v11057, 0.0
        %v11090 = vmax.f32 %v11058, 0.0
        %v11091 = vmax.f32 %v11059, 0.0
        %v11092 = vmax.f32 %v11060, 0.0
        %v11093 = vmax.f32 %v11061, 0.0
        %v11094 = vmax.f32 %v11062, 0.0
        %v11095 = vmax.f32 %v11063, 0.0
        %v11096 = vmax.f32 %v11064, 0.0
        %v11097 = vmax.f32 %v11065, 0.0
        %v11098 = vmax.f32 %v11066, 0.0
        %v11099 = vmax.f32 %v11067, 0.0
        %v11100 = vmax.f32 %v11068, 0.0
        %v11101 = vmax.f32 %v11069, 0.0
        %v11102 = vmax.f32 %v11070, 0.0
        %v11103 = vmax.f32 %v11071, 0.0
        %v11104 = vmax.f32 %v11072, 0.0
        %v11105 = vmax.f32 %v11073, 0.0
        %v11106 = vmax.f32 %v11074, 0.0
        %v11107 = vmax.f32 %v11075, 0.0
        %v11108 = vmax.f32 %v11076, 0.0
        %v11109 = vmax.f32 %v11077, 0.0
        %v11110 = vmax.f32 %v11078, 0.0
        %v11111 = vmax.f32 %v11079, 0.0
        %v11112 = vsel %vm316, %v11080, 0.0
        %v11113 = vsel %vm316, %v11081, 0.0
        %v11114 = vadd.f32 %v11112, %v11113
        %v11115 = vsel %vm316, %v11082, 0.0
        %v11116 = vadd.f32 %v11114, %v11115
        %v11117 = vsel %vm316, %v11083, 0.0
        %v11118 = vadd.f32 %v11116, %v11117
        %v11119 = vsel %vm316, %v11084, 0.0
        %v11120 = vadd.f32 %v11118, %v11119
        %v11121 = vsel %vm316, %v11085, 0.0
        %v11122 = vadd.f32 %v11120, %v11121
        %v11123 = vsel %vm316, %v11086, 0.0
        %v11124 = vadd.f32 %v11122, %v11123
        %v11125 = vsel %vm316, %v11087, 0.0
        %v11126 = vadd.f32 %v11124, %v11125
        %v11127 = vsel %vm316, %v11088, 0.0
        %v11128 = vadd.f32 %v11126, %v11127
        %v11129 = vsel %vm316, %v11089, 0.0
        %v11130 = vadd.f32 %v11128, %v11129
        %v11131 = vsel %vm316, %v11090, 0.0
        %v11132 = vadd.f32 %v11130, %v11131
        %v11133 = vsel %vm316, %v11091, 0.0
        %v11134 = vadd.f32 %v11132, %v11133
        %v11135 = vsel %vm316, %v11092, 0.0
        %v11136 = vadd.f32 %v11134, %v11135
        %v11137 = vsel %vm316, %v11093, 0.0
        %v11138 = vadd.f32 %v11136, %v11137
        %v11139 = vsel %vm316, %v11094, 0.0
        %v11140 = vadd.f32 %v11138, %v11139
        %v11141 = vsel %vm316, %v11095, 0.0
        %v11142 = vadd.f32 %v11140, %v11141
        %v11143 = vsel %vm316, %v11096, 0.0
        %v11144 = vadd.f32 %v11142, %v11143
        %v11145 = vsel %vm316, %v11097, 0.0
        %v11146 = vadd.f32 %v11144, %v11145
        %v11147 = vsel %vm316, %v11098, 0.0
        %v11148 = vadd.f32 %v11146, %v11147
        %v11149 = vsel %vm316, %v11099, 0.0
        %v11150 = vadd.f32 %v11148, %v11149
        %v11151 = vsel %vm316, %v11100, 0.0
        %v11152 = vadd.f32 %v11150, %v11151
        %v11153 = vsel %vm316, %v11101, 0.0
        %v11154 = vadd.f32 %v11152, %v11153
        %v11155 = vsel %vm316, %v11102, 0.0
        %v11156 = vadd.f32 %v11154, %v11155
        %v11157 = vsel %vm316, %v11103, 0.0
        %v11158 = vadd.f32 %v11156, %v11157
        %v11159 = vsel %vm316, %v11104, 0.0
        %v11160 = vadd.f32 %v11158, %v11159
        %v11161 = vsel %vm316, %v11105, 0.0
        %v11162 = vadd.f32 %v11160, %v11161
        %v11163 = vsel %vm316, %v11106, 0.0
        %v11164 = vadd.f32 %v11162, %v11163
        %v11165 = vsel %vm316, %v11107, 0.0
        %v11166 = vadd.f32 %v11164, %v11165
        %v11167 = vsel %vm316, %v11108, 0.0
        %v11168 = vadd.f32 %v11166, %v11167
        %v11169 = vsel %vm316, %v11109, 0.0
        %v11170 = vadd.f32 %v11168, %v11169
        %v11171 = vsel %vm316, %v11110, 0.0
        %v11172 = vadd.f32 %v11170, %v11171
        %v11173 = vsel %vm316, %v11111, 0.0
        %v11174 = vadd.f32 %v11172, %v11173
        %v11175 = vrot.slane %v11174, 4
        %v11176 = vadd.f32 %v11174, %v11175
        %v11177 = vrot.slane %v11176, 2
        %v11178 = vadd.f32 %v11176, %v11177
        %v11179 = vrot.slane %v11178, 1
        %v11180 = vadd.f32 %v11178, %v11179
        %v11181 = vrcp.pop 256.0
        %v11182 = vmul.f32 256.0, %v11181
        %v11183 = vsub.f32 1.0, %v11182
        %v11184 = vmul.f32 %v11181, %v11183
        %v11185 = vadd.f32 %v11181, %v11184
        %vm11186 = vweird.f32 %v11181
        %v11187 = vsel %vm11186, %v11181, %v11185
        %v11188 = vmul.f32 %v11180, %v11187
        %v11189 = vld [vmem:[%s5] sm:$0xff]
        %v11190 = vld [vmem:[%s5 + $0x8] sm:$0xff]
        %v11191 = vld [vmem:[%s5 + $0x10] sm:$0xff]
        %v11192 = vld [vmem:[%s5 + $0x18] sm:$0xff]
        %v11193 = vld [vmem:[%s5 + $0x20] sm:$0xff]
        %v11194 = vld [vmem:[%s5 + $0x28] sm:$0xff]
        %v11195 = vld [vmem:[%s5 + $0x30] sm:$0xff]
        %v11196 = vld [vmem:[%s5 + $0x38] sm:$0xff]
        %v11198 = vsel %vm316, %v11188, 0
        %11200 = vmatpush.msra.mxu0 0.0
        %11201 = vmatpush.msra.mxu0 0.0
        %11202 = vmatpush.msra.mxu0 0.0
        %11203 = vmatpush.msra.mxu0 0.0
        %11204 = vmatpush.msra.mxu0 0.0
        %11205 = vmatpush.msra.mxu0 0.0
        %11206 = vmatpush.msra.mxu0 0.0
        %11207 = vmatpush.msra.mxu0 0.0
        %11208 = vmatpush.msra.mxu0 %v11196
        %11209 = vmatpush.msra.mxu0 %v11195
        %11210 = vmatpush.msra.mxu0 %v11194
        %11211 = vmatpush.msra.mxu0 %v11193
        %11212 = vmatpush.msra.mxu0 %v11192
        %11213 = vmatpush.msra.mxu0 %v11191
        %11214 = vmatpush.msra.mxu0 %v11190
        %11215 = vmatpush.msra.mxu0 %v11189
        %11216 = vmatmul.f32.gmra.mxu0 %v11198
        %v11217 = vpop.f32.mrf.mxu0
        %v11218 = vadd.f32 0.0, %v11217
        %11219 = vdwg.mxu0
        %vm11220 = vcmask 253952
        %11221 = vst.msk [vmem:[%s305] sm:$0x1] %vm11220, %v11218
        %v11222 = vld [vmem:[%s6] sm:$0xff]
        %v11223 = vld [vmem:[%s6 + $0x8] sm:$0xff]
        %v11224 = vld [vmem:[%s6 + $0x10] sm:$0xff]
        %v11225 = vld [vmem:[%s6 + $0x18] sm:$0xff]
        %v11226 = vld [vmem:[%s6 + $0x20] sm:$0xff]
        %v11227 = vld [vmem:[%s6 + $0x28] sm:$0xff]
        %v11228 = vld [vmem:[%s6 + $0x30] sm:$0xff]
        %v11229 = vld [vmem:[%s6 + $0x38] sm:$0xff]
        %v11231 = vsel %vm316, %v11222, 0
        %v11234 = vsel %vm316, %v11223, 0
        %v11237 = vsel %vm316, %v11224, 0
        %v11240 = vsel %vm316, %v11225, 0
        %v11243 = vsel %vm316, %v11226, 0
        %v11246 = vsel %vm316, %v11227, 0
        %v11249 = vsel %vm316, %v11228, 0
        %v11252 = vsel %vm316, %v11229, 0
        %v11255 = vsel %vm316, %v11080, 0
        %v11258 = vsel %vm316, %v11081, 0
        %v11261 = vsel %vm316, %v11082, 0
        %v11264 = vsel %vm316, %v11083, 0
        %v11267 = vsel %vm316, %v11084, 0
        %v11270 = vsel %vm316, %v11085, 0
        %v11273 = vsel %vm316, %v11086, 0
        %v11276 = vsel %vm316, %v11087, 0
        %v11279 = vsel %vm316, %v11088, 0
        %v11282 = vsel %vm316, %v11089, 0
        %v11285 = vsel %vm316, %v11090, 0
        %v11288 = vsel %vm316, %v11091, 0
        %v11291 = vsel %vm316, %v11092, 0
        %v11294 = vsel %vm316, %v11093, 0
        %v11297 = vsel %vm316, %v11094, 0
        %v11300 = vsel %vm316, %v11095, 0
        %v11303 = vsel %vm316, %v11096, 0
        %v11306 = vsel %vm316, %v11097, 0
        %v11309 = vsel %vm316, %v11098, 0
        %v11312 = vsel %vm316, %v11099, 0
        %v11315 = vsel %vm316, %v11100, 0
        %v11318 = vsel %vm316, %v11101, 0
        %v11321 = vsel %vm316, %v11102, 0
        %v11324 = vsel %vm316, %v11103, 0
        %v11327 = vsel %vm316, %v11104, 0
        %v11330 = vsel %vm316, %v11105, 0
        %v11333 = vsel %vm316, %v11106, 0
        %v11336 = vsel %vm316, %v11107, 0
        %v11339 = vsel %vm316, %v11108, 0
        %v11342 = vsel %vm316, %v11109, 0
        %v11345 = vsel %vm316, %v11110, 0
        %v11348 = vsel %vm316, %v11111, 0
        %11350 = vmatpush.xpose.msra.mxu0 %v11300
        %11351 = vmatpush.xpose.msra.mxu0 %v11297
        %11352 = vmatpush.xpose.msra.mxu0 %v11294
        %11353 = vmatpush.xpose.msra.mxu0 %v11291
        %11354 = vmatpush.xpose.msra.mxu0 %v11288
        %11355 = vmatpush.xpose.msra.mxu0 %v11285
        %11356 = vmatpush.xpose.msra.mxu0 %v11282
        %11357 = vmatpush.xpose.msra.mxu0 %v11279
        %11358 = vmatpush.xpose.msra.mxu0 %v11276
        %11359 = vmatpush.xpose.msra.mxu0 %v11273
        %11360 = vmatpush.xpose.msra.mxu0 %v11270
        %11361 = vmatpush.xpose.msra.mxu0 %v11267
        %11362 = vmatpush.xpose.msra.mxu0 %v11264
        %11363 = vmatpush.xpose.msra.mxu0 %v11261
        %11364 = vmatpush.xpose.msra.mxu0 %v11258
        %11365 = vmatpush.xpose.msra.mxu0 %v11255
        %11366 = vmatmul.f32.gmra.mxu0 %v11231
        %v11367 = vpop.f32.mrf.mxu0
        %v11368 = vadd.f32 0.0, %v11367
        %11369 = vmatmul.f32.gmra.mxu0 %v11234
        %v11370 = vpop.f32.mrf.mxu0
        %v11371 = vadd.f32 0.0, %v11370
        %11372 = vmatmul.f32.gmra.mxu0 %v11237
        %v11373 = vpop.f32.mrf.mxu0
        %v11374 = vadd.f32 0.0, %v11373
        %11375 = vmatmul.f32.gmra.mxu0 %v11240
        %v11376 = vpop.f32.mrf.mxu0
        %v11377 = vadd.f32 0.0, %v11376
        %11378 = vmatmul.f32.gmra.mxu0 %v11243
        %v11379 = vpop.f32.mrf.mxu0
        %v11380 = vadd.f32 0.0, %v11379
        %11381 = vmatmul.f32.gmra.mxu0 %v11246
        %v11382 = vpop.f32.mrf.mxu0
        %v11383 = vadd.f32 0.0, %v11382
        %11384 = vmatmul.f32.gmra.mxu0 %v11249
        %v11385 = vpop.f32.mrf.mxu0
        %v11386 = vadd.f32 0.0, %v11385
        %11387 = vmatmul.f32.gmra.mxu0 %v11252
        %v11388 = vpop.f32.mrf.mxu0
        %v11389 = vadd.f32 0.0, %v11388
        %11390 = vdwg.mxu0
        %11391 = vmatpush.xpose.msra.mxu0 %v11348
        %11392 = vmatpush.xpose.msra.mxu0 %v11345
        %11393 = vmatpush.xpose.msra.mxu0 %v11342
        %11394 = vmatpush.xpose.msra.mxu0 %v11339
        %11395 = vmatpush.xpose.msra.mxu0 %v11336
        %11396 = vmatpush.xpose.msra.mxu0 %v11333
        %11397 = vmatpush.xpose.msra.mxu0 %v11330
        %11398 = vmatpush.xpose.msra.mxu0 %v11327
        %11399 = vmatpush.xpose.msra.mxu0 %v11324
        %11400 = vmatpush.xpose.msra.mxu0 %v11321
        %11401 = vmatpush.xpose.msra.mxu0 %v11318
        %11402 = vmatpush.xpose.msra.mxu0 %v11315
        %11403 = vmatpush.xpose.msra.mxu0 %v11312
        %11404 = vmatpush.xpose.msra.mxu0 %v11309
        %11405 = vmatpush.xpose.msra.mxu0 %v11306
        %11406 = vmatpush.xpose.msra.mxu0 %v11303
        %11407 = vmatmul.f32.gmra.mxu0 %v11231
        %v11408 = vpop.f32.mrf.mxu0
        %v11409 = vadd.f32 0.0, %v11408
        %11410 = vmatmul.f32.gmra.mxu0 %v11234
        %v11411 = vpop.f32.mrf.mxu0
        %v11412 = vadd.f32 0.0, %v11411
        %11413 = vmatmul.f32.gmra.mxu0 %v11237
        %v11414 = vpop.f32.mrf.mxu0
        %v11415 = vadd.f32 0.0, %v11414
        %11416 = vmatmul.f32.gmra.mxu0 %v11240
        %v11417 = vpop.f32.mrf.mxu0
        %v11418 = vadd.f32 0.0, %v11417
        %11419 = vmatmul.f32.gmra.mxu0 %v11243
        %v11420 = vpop.f32.mrf.mxu0
        %v11421 = vadd.f32 0.0, %v11420
        %11422 = vmatmul.f32.gmra.mxu0 %v11246
        %v11423 = vpop.f32.mrf.mxu0
        %v11424 = vadd.f32 0.0, %v11423
        %11425 = vmatmul.f32.gmra.mxu0 %v11249
        %v11426 = vpop.f32.mrf.mxu0
        %v11427 = vadd.f32 0.0, %v11426
        %11428 = vmatmul.f32.gmra.mxu0 %v11252
        %v11429 = vpop.f32.mrf.mxu0
        %v11430 = vadd.f32 0.0, %v11429
        %11431 = vdwg.mxu0
        %11432 = vst [vmem:[%s315] sm:$0xff] %v11368
        %11433 = vst [vmem:[%s315 + $0x8] sm:$0xff] %v11409
        %11434 = vst [vmem:[%s315 + $0x10] sm:$0xff] %v11371
        %11435 = vst [vmem:[%s315 + $0x18] sm:$0xff] %v11412
        %11436 = vst [vmem:[%s315 + $0x20] sm:$0xff] %v11374
        %11437 = vst [vmem:[%s315 + $0x28] sm:$0xff] %v11415
        %11438 = vst [vmem:[%s315 + $0x30] sm:$0xff] %v11377
        %11439 = vst [vmem:[%s315 + $0x38] sm:$0xff] %v11418
        %11440 = vst [vmem:[%s315 + $0x40] sm:$0xff] %v11380
        %11441 = vst [vmem:[%s315 + $0x48] sm:$0xff] %v11421
        %11442 = vst [vmem:[%s315 + $0x50] sm:$0xff] %v11383
        %11443 = vst [vmem:[%s315 + $0x58] sm:$0xff] %v11424
        %11444 = vst [vmem:[%s315 + $0x60] sm:$0xff] %v11386
        %11445 = vst [vmem:[%s315 + $0x68] sm:$0xff] %v11427
        %11446 = vst [vmem:[%s315 + $0x70] sm:$0xff] %v11389
        %11447 = vst [vmem:[%s315 + $0x78] sm:$0xff] %v11430
        %p11448 = scmp.lt.s32.totalorder %s23, 1
        %s11449 = scalar_select %p11448, %s23, 1
        %s11450 = smul.addr %s11449, 16
        %s11451 = smul.addr %s11450, 8
        %s11452 = scalar_lea.vmem %s7, %s11451
        %s11453 = sand.u32 %s209, 1
        %s11454 = scalar_lea.sflag [#allocation5], %s11453
        %s11455 = sand.u32 %s209, 1
        %s11456 = scalar_lea.vmem [#allocation4], %s11455
        // Predicated region
        $region49: #{resnet_null_forward.1} parent=47 // pred_check
          %p11457 = pneg %p193
        $region50: #{resnet_null_forward.1} parent=47 // pred_check_branch
          %11459 = sbr.rel (%p11457) target = $region52
        $region51: #{resnet_null_forward.1} parent=47 // pred_region
          _
        $region52: #{resnet_null_forward.1} parent=47 // pred_fallthru
          _
        // Predicated region
        $region53: #{resnet_null_forward.1} parent=47 // pred_check
          %p11460 = pneg %p219
        $region54: #{resnet_null_forward.1} parent=47 // pred_check_branch
          %11462 = sbr.rel (%p11460) target = $region56
        $region55: #{resnet_null_forward.1} parent=47 // pred_region
          %11464 = vsyncadd %s11454, 0
          %s11465 = scalar_lea.hbm %s8, %s23
          %s11467 = sshll.u32 %s11456, 4
          %s11468 = int_to_ptr.vmem [resolvable:$true] %s11467
          %s11469 = sshll.u32 %s11465, 4
          %s11470 = int_to_ptr.hbm [resolvable:$true] %s11469
          %11472 = dma.vmem_to_hbm [thread:$0]  %s11468, 16, %s11470, %s11454
        $region56: #{resnet_null_forward.1} parent=47 // pred_fallthru
          _
      $region48: #{resnet_null_forward.1} parent=5 // pred_fallthru
        _
      %p11473 = scmp.le.s32.totalorder 2, %s18
      // Predicated region
      $region57: #{resnet_null_forward.1} parent=5 // pred_check
        %p11474 = pneg %p11473
      $region58: #{resnet_null_forward.1} parent=5 // pred_check_branch
        %11476 = sbr.rel (%p11474) target = $region60
      $region59: #{resnet_null_forward.1} parent=5 // pred_region
        %s11477 = ssub.s32 %s18, 2
        // Predicated region
        $region61: #{resnet_null_forward.1} parent=59 // pred_check
          %p11478 = pneg %p199
        $region62: #{resnet_null_forward.1} parent=59 // pred_check_branch
          %11480 = sbr.rel (%p11478) target = $region64
        $region63: #{resnet_null_forward.1} parent=59 // pred_region
          %p11481 = scmp.lt.s32.totalorder %s24, 1
          %s11482 = scalar_select %p11481, %s24, 1
          %s11483 = smul.addr %s11482, 16
          %s11484 = smul.addr %s11483, 8
          %s11485 = scalar_lea.vmem %s7, %s11484
        $region64: #{resnet_null_forward.1} parent=59 // pred_fallthru
          _
        // Predicated region
        $region65: #{resnet_null_forward.1} parent=59 // pred_check
          %p11486 = pneg %p225
        $region66: #{resnet_null_forward.1} parent=59 // pred_check_branch
          %11488 = sbr.rel (%p11486) target = $region68
        $region67: #{resnet_null_forward.1} parent=59 // pred_region
          %s11489 = sand.u32 %s210, 1
          %s11490 = scalar_lea.sflag [#allocation5], %s11489
          %s11491 = sand.u32 %s210, 1
          %s11492 = scalar_lea.vmem [#allocation4], %s11491
          %11494 = dma.done %s11490, 16
        $region68: #{resnet_null_forward.1} parent=59 // pred_fallthru
          _
      $region60: #{resnet_null_forward.1} parent=5 // pred_fallthru
        _
    $region6: #{resnet_null_forward.1} parent=1 // loop_footer
      %s22 = sadd.s32 1, %s18
    $region7: #{resnet_null_forward.1} parent=1 // loop_footer_branch
      %17 = sbr.rel target = $region3
    $region8: #{resnet_null_forward.1} parent=1 // loop_exit
      _
    %11495 = vsyncpa [#allocation5], 1
    %s11496 = scalar_lea.sflag [#allocation5], 1
    %11497 = vsyncpa %s11496, 1

</llo_original>
